<compile_context>
chip_gen: v7x
topology: tpu7x:2x2x1
jax: 0.10.0
libtpu: 0.0.40
codegen_flags: <defaults>
</compile_context>

<pallas_src>
import math

import jax
import jax.numpy as jnp
from jax.experimental import pallas as pl
from jax.experimental.pallas import tpu as pltpu

# ---- module configuration (matches the decoder's SourceModuleHnNSF) ----
SAMPLE_RATE = 24000
HARMONIC_NUM = 11
NUM_HARM = HARMONIC_NUM + 1        # 12
SINE_AMP = 0.1
NOISE_STD = 0.003
VOICED_THRESHOLD = 10.0            # decoder config (SineGen class default is 0)

TILE_MAX = 8192                    # lane-axis time-tile upper bound
TILE_MIN = 2048                    # amortizes ~0.35 us per grid step
TWO_PI = 2.0 * math.pi


def _round_up(x, m):
    return (x + m - 1) // m * m


def _pick_tile(n):
    """Lane-dense time tile that minimizes tail padding."""
    n = max(int(n), 128)
    if n <= TILE_MIN:
        return _round_up(n, 128)
    k = -(-n // TILE_MAX)                      # number of tiles at max tile size
    tile = _round_up(-(-n // k), 128)          # smallest tile giving k tiles
    return min(max(tile, TILE_MIN), TILE_MAX)


# ----------------------------- Pallas kernel ------------------------------

def source_kernel(b_ref, harm_ref, wamp_ref, rand_ref,
                  phase_ref, uv_ref, g_ref, merge_ref):
    """Time-on-lanes blocks: phase/uv/g (1,1,T) -> merge (1,1,T).
    harm/wamp are (12,1) VMEM columns, rand is (1,12,1) per-batch,
    b is a f32[1] SMEM scalar. g is pre-scaled by ||w||_2."""
    ph = phase_ref[0]                                   # (1, T)  fundamental phase
    uv = uv_ref[0]                                      # (1, T)
    g = g_ref[0]                                        # (1, T)  randn * ||w||_2
    harm = harm_ref[...]                                # (12, 1) 1..12
    wamp = wamp_ref[...]                                # (12, 1) w * sine_amp
    rand = rand_ref[0]                                  # (12, 1) rand_ini (row 0 = 0)

    # Harmonic phases from the fundamental: sin(2*pi*x) is 1-periodic, and the
    # bounded cumsum_shift phase keeps h*ph well inside f32 precision.
    ph_h = harm * ph + rand                             # (12, T)  VPU broadcast FMA
    sines = jnp.sin(TWO_PI * ph_h)                      # (12, T)  dense EUP work

    # Linear(12 -> 1): dense multiply + cross-sublane reduce (XLU slot)
    wsum = jnp.sum(wamp * sines, axis=0, keepdims=True)     # (1, T)

    # SineGen noise mix, folded through the linear layer:
    #   sum_h w_h * (noise_amp * g_h)  ==d==  noise_amp * ||w||_2 * g
    noise_amp = uv * NOISE_STD + (1.0 - uv) * (SINE_AMP / 3.0)
    merge_ref[0] = jnp.tanh(b_ref[0] + uv * wsum + noise_amp * g)


# ----------------------------- forward pass --------------------------------

def source_module_hn_nsf_forward(f0, w, b, key):
    """f0: (B, N, 1) sample-rate F0 (0 where unvoiced), w: (1, 12), b: (1,).
    Returns (sine_merge, noise, uv), each (B, N, 1) f32 — matches
    SourceModuleHnNSF.forward (sine_merge, noise, uv)."""
    B, N, _ = f0.shape
    f0 = f0[:, :, 0].astype(jnp.float32)                                # (B, N)

    # fundamental-only phase, torch SineGen cumsum_shift formulation
    rad = (f0 / SAMPLE_RATE) % 1.0                                      # (B, N)
    tmp = jnp.cumsum(rad, axis=1) % 1.0
    wrap = (tmp[:, 1:] - tmp[:, :-1]) < 0.0
    shift = jnp.concatenate(
        [jnp.zeros_like(rad[:, :1]), -wrap.astype(jnp.float32)], axis=1)
    phase = jnp.cumsum(rad + shift, axis=1)[:, None, :]                 # (B, 1, N)

    uv = (f0 > VOICED_THRESHOLD).astype(jnp.float32)[:, None, :]        # (B, 1, N)

    k_ini, k_merge, k_noise = jax.random.split(key, 3)
    rand_ini = jax.random.uniform(k_ini, (B, NUM_HARM), dtype=jnp.float32)
    rand_ini = rand_ini.at[:, 0].set(0.0)
    rand_col = rand_ini[:, :, None]                                     # (B, 12, 1)

    w_flat = w.reshape(-1).astype(jnp.float32)                          # (12,)
    b_flat = b.reshape(-1).astype(jnp.float32)                          # (1,)
    wamp_col = (w_flat * SINE_AMP)[:, None]                             # (12, 1)
    harm_col = jnp.arange(1, NUM_HARM + 1, dtype=jnp.float32)[:, None]  # (12, 1)
    w_norm = jnp.sqrt(jnp.sum(w_flat * w_flat))

    # lane-friendly time tiling / padding
    tile = _pick_tile(N)
    n_pad = _round_up(N, tile)
    pad = n_pad - N
    phase_p = jnp.pad(phase, ((0, 0), (0, 0), (0, pad))) if pad else phase
    uv_p = jnp.pad(uv, ((0, 0), (0, 0), (0, pad))) if pad else uv

    # single Gaussian row for the merged-sine noise (folded through Linear)
    g = jax.random.normal(k_merge, (B, 1, n_pad), dtype=jnp.float32) * w_norm

    merge = pl.pallas_call(
        source_kernel,
        out_shape=jax.ShapeDtypeStruct((B, 1, n_pad), jnp.float32),
        grid=(B, n_pad // tile),
        in_specs=[
            pl.BlockSpec(memory_space=pltpu.MemorySpace.SMEM),             # b
            pl.BlockSpec((NUM_HARM, 1), lambda bi, ti: (0, 0)),            # harm
            pl.BlockSpec((NUM_HARM, 1), lambda bi, ti: (0, 0)),            # w*amp
            pl.BlockSpec((1, NUM_HARM, 1), lambda bi, ti: (bi, 0, 0)),     # rand_ini
            pl.BlockSpec((1, 1, tile), lambda bi, ti: (bi, 0, ti)),        # phase
            pl.BlockSpec((1, 1, tile), lambda bi, ti: (bi, 0, ti)),        # uv
            pl.BlockSpec((1, 1, tile), lambda bi, ti: (bi, 0, ti)),        # g
        ],
        out_specs=pl.BlockSpec((1, 1, tile), lambda bi, ti: (bi, 0, ti)),
        compiler_params=pltpu.CompilerParams(
            dimension_semantics=("parallel", "parallel")),
    )(b_flat, harm_col, wamp_col, rand_col, phase_p, uv_p, g)

    sine_merge = jnp.transpose(merge[:, :, :N], (0, 2, 1))               # (B, N, 1)
    # SourceModuleHnNSF's extra noise output: randn_like(uv) * sine_amp / 3
    noise_out = jax.random.normal(k_noise, (B, N, 1),
                                  dtype=jnp.float32) * (SINE_AMP / 3.0)
    uv_out = jnp.transpose(uv, (0, 2, 1))                                # (B, N, 1)
    return sine_merge, noise_out, uv_out


# ------------------- pure-JAX mirror (kernel cross-check) ------------------

def _reference_merge(f0, w, b, key):
    """Same math & RNG draws as the wrapper+kernel, in plain jnp."""
    B, N, _ = f0.shape
    f0 = f0[:, :, 0].astype(jnp.float32)
    rad = (f0 / SAMPLE_RATE) % 1.0
    tmp = jnp.cumsum(rad, axis=1) % 1.0
    wrap = (tmp[:, 1:] - tmp[:, :-1]) < 0.0
    shift = jnp.concatenate(
        [jnp.zeros_like(rad[:, :1]), -wrap.astype(jnp.float32)], axis=1)
    phase = jnp.cumsum(rad + shift, axis=1)[:, None, :]
    uv = (f0 > VOICED_THRESHOLD).astype(jnp.float32)[:, None, :]

    k_ini, k_merge, _ = jax.random.split(key, 3)
    rand_ini = jax.random.uniform(k_ini, (B, NUM_HARM), dtype=jnp.float32)
    rand_ini = rand_ini.at[:, 0].set(0.0)
    w_flat = w.reshape(-1).astype(jnp.float32)
    b_flat = b.reshape(-1).astype(jnp.float32)
    w_norm = jnp.sqrt(jnp.sum(w_flat * w_flat))

    tile = _pick_tile(N)
    n_pad = _round_up(N, tile)
    g = jax.random.normal(k_merge, (B, 1, n_pad), dtype=jnp.float32) * w_norm
    g = g[:, :, :N]

    harm = jnp.arange(1, NUM_HARM + 1, dtype=jnp.float32)
    ph_h = harm[None, :, None] * phase + rand_ini[:, :, None]           # (B,12,N)
    sines = jnp.sin(TWO_PI * ph_h)
    wsum = jnp.sum((w_flat * SINE_AMP)[None, :, None] * sines,
                   axis=1, keepdims=True)                               # (B,1,N)
    noise_amp = uv * NOISE_STD + (1.0 - uv) * (SINE_AMP / 3.0)
    merge = jnp.tanh(b_flat[0] + uv * wsum + noise_amp * g)
    return jnp.transpose(merge, (0, 2, 1))                              # (B,N,1)


# ----------------------------- demo ---------------------------------------

if __name__ == "__main__":
    key = jax.random.PRNGKey(0)
    kf, kv, kw, kb, kk = jax.random.split(key, 5)

    # sample-rate F0 track: B=2, 0.375 s of 24 kHz audio (exercises the
    # multi-tile time grid and the tail-padding path).
    B, N = 2, 9000
    pitch = jax.random.uniform(kf, (B, N, 1), minval=80.0, maxval=300.0,
                               dtype=jnp.float32)
    voiced = (jax.random.uniform(kv, (B, N, 1)) > 0.3).astype(jnp.float32)
    f0 = pitch * voiced                        # unvoiced samples have F0 = 0

    # Linear(12 -> 1) params (torch weight shape is (1, 12), bias (1,))
    limit = 1.0 / math.sqrt(NUM_HARM)
    w = jax.random.uniform(kw, (1, NUM_HARM), minval=-limit, maxval=limit,
                           dtype=jnp.float32)
    b = jax.random.uniform(kb, (1,), minval=-limit, maxval=limit,
                           dtype=jnp.float32)

    sine_merge, noise, uv = source_module_hn_nsf_forward(f0, w, b, kk)
    jax.block_until_ready((sine_merge, noise, uv))

    assert sine_merge.shape == (B, N, 1)
    assert noise.shape == (B, N, 1)
    assert uv.shape == (B, N, 1)
    assert bool(jnp.all(jnp.isfinite(sine_merge)))
    assert bool(jnp.all(jnp.abs(sine_merge) <= 1.0))
    assert bool(jnp.all((uv == 0.0) | (uv == 1.0)))

    ref = _reference_merge(f0, w, b, kk)
    max_err = float(jnp.max(jnp.abs(sine_merge - ref)))
    assert max_err < 5e-3, f"kernel vs reference mismatch: {max_err}"

    print("KERNEL_OK")
</pallas_src>

<mosaic_0001>
module attributes {stable_mosaic.version = 11 : i64} {
  func.func @source_kernel(%arg0: i32, %arg1: i32, %arg2: memref<1xf32, #tpu.memory_space<smem>>, %arg3: memref<12x1xf32, #tpu.memory_space<vmem>>, %arg4: memref<12x1xf32, #tpu.memory_space<vmem>>, %arg5: memref<1x12x1xf32, #tpu.memory_space<vmem>>, %arg6: memref<1x1x4608xf32, #tpu.memory_space<vmem>>, %arg7: memref<1x1x4608xf32, #tpu.memory_space<vmem>>, %arg8: memref<1x1x4608xf32, #tpu.memory_space<vmem>>, %arg9: memref<1x1x4608xf32, #tpu.memory_space<vmem>>) attributes {dimension_semantics = [#tpu.dimension_semantics<parallel>, #tpu.dimension_semantics<parallel>], iteration_bounds = array<i64: 2, 2>, scalar_prefetch = 0 : i64, scratch_operands = 0 : i64, tpu.core_type = #tpu.core_type<tc>, window_params = [{transform_indices = @transform_0, window_bounds = array<i64: 1>}, {pipeline_mode = #tpu.pipeline_mode<synchronous>, transform_indices = @transform_1, window_bounds = array<i64: 12, 1>}, {pipeline_mode = #tpu.pipeline_mode<synchronous>, transform_indices = @transform_2, window_bounds = array<i64: 12, 1>}, {transform_indices = @transform_3, window_bounds = array<i64: 1, 12, 1>}, {transform_indices = @transform_4, window_bounds = array<i64: 1, 1, 4608>}, {transform_indices = @transform_5, window_bounds = array<i64: 1, 1, 4608>}, {transform_indices = @transform_6, window_bounds = array<i64: 1, 1, 4608>}, {transform_indices = @transform_7, window_bounds = array<i64: 1, 1, 4608>}]} {
    %c0 = arith.constant 0 : index
    %c0_0 = arith.constant 0 : index
    %c0_1 = arith.constant 0 : index
    %0 = vector.load %arg6[%c0, %c0_0, %c0_1] : memref<1x1x4608xf32, #tpu.memory_space<vmem>>, vector<1x1x4608xf32>
    %1 = vector.shape_cast %0 : vector<1x1x4608xf32> to vector<1x4608xf32>
    %c0_2 = arith.constant 0 : index
    %c0_3 = arith.constant 0 : index
    %c0_4 = arith.constant 0 : index
    %2 = vector.load %arg7[%c0_2, %c0_3, %c0_4] : memref<1x1x4608xf32, #tpu.memory_space<vmem>>, vector<1x1x4608xf32>
    %3 = vector.shape_cast %2 : vector<1x1x4608xf32> to vector<1x4608xf32>
    %c0_5 = arith.constant 0 : index
    %c0_6 = arith.constant 0 : index
    %c0_7 = arith.constant 0 : index
    %4 = vector.load %arg8[%c0_5, %c0_6, %c0_7] : memref<1x1x4608xf32, #tpu.memory_space<vmem>>, vector<1x1x4608xf32>
    %5 = vector.shape_cast %4 : vector<1x1x4608xf32> to vector<1x4608xf32>
    %c0_8 = arith.constant 0 : index
    %c0_9 = arith.constant 0 : index
    %6 = vector.load %arg3[%c0_8, %c0_9] : memref<12x1xf32, #tpu.memory_space<vmem>>, vector<12x1xf32>
    %c0_10 = arith.constant 0 : index
    %c0_11 = arith.constant 0 : index
    %7 = vector.load %arg4[%c0_10, %c0_11] : memref<12x1xf32, #tpu.memory_space<vmem>>, vector<12x1xf32>
    %c0_12 = arith.constant 0 : index
    %c0_13 = arith.constant 0 : index
    %c0_14 = arith.constant 0 : index
    %8 = vector.load %arg5[%c0_12, %c0_13, %c0_14] : memref<1x12x1xf32, #tpu.memory_space<vmem>>, vector<1x12x1xf32>
    %9 = vector.shape_cast %8 : vector<1x12x1xf32> to vector<12x1xf32>
    %10 = vector.broadcast %6 : vector<12x1xf32> to vector<12x4608xf32>
    %11 = vector.broadcast %1 : vector<1x4608xf32> to vector<12x4608xf32>
    %12 = arith.mulf %10, %11 : vector<12x4608xf32>
    %13 = vector.broadcast %9 : vector<12x1xf32> to vector<12x4608xf32>
    %14 = arith.addf %12, %13 : vector<12x4608xf32>
    %cst = arith.constant 6.28318548 : f32
    %15 = vector.broadcast %cst : f32 to vector<12x4608xf32>
    %16 = arith.mulf %15, %14 : vector<12x4608xf32>
    %17 = math.sin %16 : vector<12x4608xf32>
    %18 = vector.broadcast %7 : vector<12x1xf32> to vector<12x4608xf32>
    %19 = arith.mulf %18, %17 : vector<12x4608xf32>
    %cst_15 = arith.constant dense<0.000000e+00> : vector<4608xf32>
    %20 = vector.multi_reduction <add>, %19, %cst_15 [0] : vector<12x4608xf32> to vector<4608xf32>
    %21 = vector.shape_cast %20 : vector<4608xf32> to vector<1x4608xf32>
    %cst_16 = arith.constant 3.000000e-03 : f32
    %22 = vector.broadcast %cst_16 : f32 to vector<1x4608xf32>
    %23 = arith.mulf %3, %22 : vector<1x4608xf32>
    %cst_17 = arith.constant 1.000000e+00 : f32
    %24 = vector.broadcast %cst_17 : f32 to vector<1x4608xf32>
    %25 = arith.subf %24, %3 : vector<1x4608xf32>
    %cst_18 = arith.constant 0.0333333351 : f32
    %26 = vector.broadcast %cst_18 : f32 to vector<1x4608xf32>
    %27 = arith.mulf %25, %26 : vector<1x4608xf32>
    %28 = arith.addf %23, %27 : vector<1x4608xf32>
    %c0_19 = arith.constant 0 : index
    %29 = memref.load %arg2[%c0_19] : memref<1xf32, #tpu.memory_space<smem>>
    %30 = arith.mulf %3, %21 : vector<1x4608xf32>
    %31 = vector.broadcast %29 : f32 to vector<1x4608xf32>
    %32 = arith.addf %31, %30 : vector<1x4608xf32>
    %33 = arith.mulf %28, %5 : vector<1x4608xf32>
    %34 = arith.addf %32, %33 : vector<1x4608xf32>
    %35 = math.tanh %34 : vector<1x4608xf32>
    %c0_20 = arith.constant 0 : index
    %c0_21 = arith.constant 0 : index
    %c0_22 = arith.constant 0 : index
    %36 = vector.load %arg9[%c0_20, %c0_21, %c0_22] : memref<1x1x4608xf32, #tpu.memory_space<vmem>>, vector<1x1x4608xf32>
    %37 = vector.shape_cast %36 : vector<1x1x4608xf32> to vector<1x4608xf32>
    %38 = vector.shape_cast %35 : vector<1x4608xf32> to vector<1x1x4608xf32>
    tpu.vector_store %arg9[%c0_20, %c0_21, %c0_22], %38 {strides = array<i32>} : memref<1x1x4608xf32, #tpu.memory_space<vmem>>, vector<1x1x4608xf32>,
    return
  }
  func.func @transform_0(%arg0: i32, %arg1: i32) -> i32 {
    %c0_i32 = arith.constant 0 : i32
    %c0_i32_0 = arith.constant 0 : i32
    return %c0_i32 : i32
  }
  func.func @transform_1(%arg0: i32, %arg1: i32) -> (i32, i32) {
    %c0_i32 = arith.constant 0 : i32
    %c0_i32_0 = arith.constant 0 : i32
    %c0_i32_1 = arith.constant 0 : i32
    return %c0_i32, %c0_i32_0 : i32, i32
  }
  func.func @transform_2(%arg0: i32, %arg1: i32) -> (i32, i32) {
    %c0_i32 = arith.constant 0 : i32
    %c0_i32_0 = arith.constant 0 : i32
    %c0_i32_1 = arith.constant 0 : i32
    return %c0_i32, %c0_i32_0 : i32, i32
  }
  func.func @transform_3(%arg0: i32, %arg1: i32) -> (i32, i32, i32) {
    %c0_i32 = arith.constant 0 : i32
    %c0_i32_0 = arith.constant 0 : i32
    %c0_i32_1 = arith.constant 0 : i32
    return %arg0, %c0_i32, %c0_i32_0 : i32, i32, i32
  }
  func.func @transform_4(%arg0: i32, %arg1: i32) -> (i32, i32, i32) {
    %c0_i32 = arith.constant 0 : i32
    %c0_i32_0 = arith.constant 0 : i32
    return %arg0, %c0_i32, %arg1 : i32, i32, i32
  }
  func.func @transform_5(%arg0: i32, %arg1: i32) -> (i32, i32, i32) {
    %c0_i32 = arith.constant 0 : i32
    %c0_i32_0 = arith.constant 0 : i32
    return %arg0, %c0_i32, %arg1 : i32, i32, i32
  }
  func.func @transform_6(%arg0: i32, %arg1: i32) -> (i32, i32, i32) {
    %c0_i32 = arith.constant 0 : i32
    %c0_i32_0 = arith.constant 0 : i32
    return %arg0, %c0_i32, %arg1 : i32, i32, i32
  }
  func.func @transform_7(%arg0: i32, %arg1: i32) -> (i32, i32, i32) {
    %c0_i32 = arith.constant 0 : i32
    %c0_i32_0 = arith.constant 0 : i32
    return %arg0, %c0_i32, %arg1 : i32, i32, i32
  }
}

</mosaic_0001>

<llo_original>
// kernel: tpu_custom_call.1
$region0: #{tpu_custom_call.1}
  #allocation0 [shape = 'u32[]', space=smem, size = 0x4, offset = 0x4, fixed_abs, tag = 'smem constant byte address 0x4 - core index']
  #allocation1 [shape = 'u32[144,128]{1,0:T(1,128)}', space=vmem, size = 0x12000, scoped, tag = 'internal scratch']
  #allocation2 [shape = 'f32[1]{0:T(128)S(6)}', space=smem, size = 0x200, scoped, tag = 'scoped memory for tpu_custom_call.1']
  %s0 = inlined_call_operand.<no memory space> [shape: f32[1], index: 0, kind: input, shape index: {}]
  %s1 = inlined_call_operand.vmem [shape: f32[12,1], index: 1, kind: input, shape index: {}]
  %s2 = inlined_call_operand.vmem [shape: f32[12,1], index: 2, kind: input, shape index: {}]
  %s3 = inlined_call_operand.vmem [shape: f32[2,12,1], index: 3, kind: input, shape index: {}]
  %s4 = inlined_call_operand.hbm [shape: f32[2,1,9216], index: 4, kind: input, shape index: {}]
  %s5 = inlined_call_operand.hbm [shape: f32[2,1,9216], index: 5, kind: input, shape index: {}]
  %s6 = inlined_call_operand.hbm [shape: f32[2,1,9216], index: 6, kind: input, shape index: {}]
  %s7 = inlined_call_operand.hbm [shape: f32[2,1,9216], index: 7, kind: output, shape index: {}]
  %s8 = sld [smem:[#allocation0]]
  $region73: #{tpu_custom_call.1} parent=0
    _
  %s10 = ssub.s32 1, %s8
  %s11 = scalar_select 0, %s10, %s8
  %12 = sst [smem:[#allocation2]] %s0
  $region1: #{tpu_custom_call.1} parent=0
    #allocation3 [shape = 'u8[36864]{0}', space=vmem, size = 0x9000, scoped, tag = 'input window, operand 4']
    #allocation4 [shape = 's32[2]{0}', space=sflag, size = 0x8, scoped, tag = 'scoped memory for tpu_custom_call.1']
    #allocation5 [shape = 's32[2]{0}', space=sflag, size = 0x8, scoped, tag = 'scoped memory for tpu_custom_call.1']
    #allocation6 [shape = 'u8[36864]{0}', space=vmem, size = 0x9000, scoped, tag = 'input window, operand 5']
    #allocation7 [shape = 's32[2]{0}', space=sflag, size = 0x8, scoped, tag = 'scoped memory for tpu_custom_call.1']
    #allocation8 [shape = 'u8[36864]{0}', space=vmem, size = 0x9000, scoped, tag = 'input window, operand 6']
    #allocation9 [shape = 'u8[36864]{0}', space=vmem, size = 0x9000, scoped, tag = 'output window, operand 0']
    %13 = vsyncpa [#allocation4], 0
    %s14 = scalar_lea.sflag [#allocation4], 1
    %15 = vsyncpa %s14, 0
    %16 = vsyncpa [#allocation7], 0
    %s17 = scalar_lea.sflag [#allocation7], 1
    %18 = vsyncpa %s17, 0
    %19 = vsyncpa [#allocation5], 0
    %s20 = scalar_lea.sflag [#allocation5], 1
    %21 = vsyncpa %s20, 0
    loop: start=0, step=1, limit=6
    $region2: #{tpu_custom_call.1} parent=1 // loop_pre_header
      _
    $region3: #{tpu_custom_call.1} parent=1 // loop_header
      %s23 = sphi 0, %s27
      %p24 = scmp.ge.s32.totalorder %s23, 6
      %s30 = sphi 0, %s42
      %s31 = sphi 0, %s38
      %s32 = sphi 0, %s30
      %s33 = sphi 0, %s31
      %s34 = sphi 0, %s32
      %s35 = sphi 0, %s33
      %s43 = sphi 0, %s43
      %s45 = sphi 0, %s43
      %s46 = sphi 0, %s45
      %s60 = sphi 0, %s46
      %s64 = sphi 0, %s64
      %s66 = sphi 0, %s64
      %s67 = sphi 0, %s66
      %s81 = sphi 0, %s67
      %s85 = sphi 0, %s85
      %s87 = sphi 0, %s85
      %s88 = sphi 0, %s87
      %s102 = sphi 0, %s88
      %s108 = sphi 0, %s110
      %s111 = sphi 0, %s108
      %s112 = sphi 0, %s111
      %s128 = sphi 0, %s112
      %s136 = sphi 0, %s138
      %s139 = sphi 0, %s136
      %s140 = sphi 0, %s139
      %s156 = sphi 0, %s140
      %s164 = sphi 0, %s166
      %s167 = sphi 0, %s164
      %s168 = sphi 0, %s167
      %s184 = sphi 0, %s168
      %s192 = sphi 0, %s194
      %s195 = sphi 0, %s192
      %s196 = sphi 0, %s195
      %s212 = sphi 0, %s196
      %s220 = sphi 0, %s222
      %s223 = sphi 0, %s220
      %s224 = sphi 0, %s223
      %s240 = sphi 0, %s224
    $region4: #{tpu_custom_call.1} parent=1 // loop_header_branch
      %26 = sbr.rel (%p24) target = $region8
    $region5: #{tpu_custom_call.1} parent=1 // loop_body
      %s28 = ssub.s32 %s23, 1
      %s29 = ssub.s32 %s23, 2
      %s36 = sadd.s32 1, %s31
      %p37 = scmp.ge.s32.totalorder %s36, 2
      %s38 = scalar_select %p37, 0, %s36
      %s39 = sadd.s32 1, %s30
      %s40 = scalar_select %p37, %s39, %s30
      %p41 = scmp.ge.s32.totalorder %s40, 2
      %s42 = scalar_select %p41, 0, %s40
      %s44 = sadd.s32 %s43, 1
      %p47 = scmp.eq.s32.totalorder %s23, 3
      %p48 = scmp.ne.s32.totalorder %s43, %s45
      %p49 = scmp.eq.s32.totalorder %s23, 0
      %p50 = por %p48, %p49
      %p51 = scmp.ne.s32.totalorder %s43, %s45
      %p52 = scmp.eq.s32.totalorder %s28, 3
      %p53 = por %p51, %p52
      %p54 = scmp.ne.s32.totalorder %s45, %s46
      %p55 = scmp.eq.s32.totalorder %s28, 0
      %p56 = por %p54, %p55
      %p57 = scmp.ne.s32.totalorder %s45, %s46
      %p58 = scmp.eq.s32.totalorder %s29, 3
      %p59 = por %p57, %p58
      %p61 = scmp.ne.s32.totalorder %s46, %s60
      %p62 = scmp.eq.s32.totalorder %s29, 0
      %p63 = por %p61, %p62
      %s65 = sadd.s32 %s64, 1
      %p68 = scmp.eq.s32.totalorder %s23, 3
      %p69 = scmp.ne.s32.totalorder %s64, %s66
      %p70 = scmp.eq.s32.totalorder %s23, 0
      %p71 = por %p69, %p70
      %p72 = scmp.ne.s32.totalorder %s64, %s66
      %p73 = scmp.eq.s32.totalorder %s28, 3
      %p74 = por %p72, %p73
      %p75 = scmp.ne.s32.totalorder %s66, %s67
      %p76 = scmp.eq.s32.totalorder %s28, 0
      %p77 = por %p75, %p76
      %p78 = scmp.ne.s32.totalorder %s66, %s67
      %p79 = scmp.eq.s32.totalorder %s29, 3
      %p80 = por %p78, %p79
      %p82 = scmp.ne.s32.totalorder %s67, %s81
      %p83 = scmp.eq.s32.totalorder %s29, 0
      %p84 = por %p82, %p83
      %s86 = sadd.s32 %s85, 1
      %p89 = scmp.eq.s32.totalorder %s23, 3
      %p90 = scmp.ne.s32.totalorder %s85, %s87
      %p91 = scmp.eq.s32.totalorder %s23, 0
      %p92 = por %p90, %p91
      %p93 = scmp.ne.s32.totalorder %s85, %s87
      %p94 = scmp.eq.s32.totalorder %s28, 3
      %p95 = por %p93, %p94
      %p96 = scmp.ne.s32.totalorder %s87, %s88
      %p97 = scmp.eq.s32.totalorder %s28, 0
      %p98 = por %p96, %p97
      %p99 = scmp.ne.s32.totalorder %s87, %s88
      %p100 = scmp.eq.s32.totalorder %s29, 3
      %p101 = por %p99, %p100
      %p103 = scmp.ne.s32.totalorder %s88, %s102
      %p104 = scmp.eq.s32.totalorder %s29, 0
      %p105 = por %p103, %p104
      %s106 = ssub.s32 %s30, %s42
      %p107 = scmp.eq.s32.totalorder %s106, 0
      %s109 = sadd.s32 %s108, 1
      %s110 = scalar_select %p107, %s108, %s109
      %p113 = pneg %p107
      %p114 = scmp.eq.s32.totalorder %s23, 3
      %p115 = por %p113, %p114
      %p116 = scmp.ne.s32.totalorder %s108, %s111
      %p117 = scmp.eq.s32.totalorder %s23, 0
      %p118 = por %p116, %p117
      %p119 = scmp.ne.s32.totalorder %s108, %s111
      %p120 = scmp.eq.s32.totalorder %s28, 3
      %p121 = por %p119, %p120
      %p122 = scmp.ne.s32.totalorder %s111, %s112
      %p123 = scmp.eq.s32.totalorder %s28, 0
      %p124 = por %p122, %p123
      %p125 = scmp.ne.s32.totalorder %s111, %s112
      %p126 = scmp.eq.s32.totalorder %s29, 3
      %p127 = por %p125, %p126
      %p129 = scmp.ne.s32.totalorder %s112, %s128
      %p130 = scmp.eq.s32.totalorder %s29, 0
      %p131 = por %p129, %p130
      %s132 = ssub.s32 %s30, %s42
      %s133 = ssub.s32 %s31, %s38
      %s134 = sor.u32 %s132, %s133
      %p135 = scmp.eq.s32.totalorder %s134, 0
      %s137 = sadd.s32 %s136, 1
      %s138 = scalar_select %p135, %s136, %s137
      %p141 = pneg %p135
      %p142 = scmp.eq.s32.totalorder %s23, 3
      %p143 = por %p141, %p142
      %p144 = scmp.ne.s32.totalorder %s136, %s139
      %p145 = scmp.eq.s32.totalorder %s23, 0
      %p146 = por %p144, %p145
      %p147 = scmp.ne.s32.totalorder %s136, %s139
      %p148 = scmp.eq.s32.totalorder %s28, 3
      %p149 = por %p147, %p148
      %p150 = scmp.ne.s32.totalorder %s139, %s140
      %p151 = scmp.eq.s32.totalorder %s28, 0
      %p152 = por %p150, %p151
      %p153 = scmp.ne.s32.totalorder %s139, %s140
      %p154 = scmp.eq.s32.totalorder %s29, 3
      %p155 = por %p153, %p154
      %p157 = scmp.ne.s32.totalorder %s140, %s156
      %p158 = scmp.eq.s32.totalorder %s29, 0
      %p159 = por %p157, %p158
      %s160 = ssub.s32 %s30, %s42
      %s161 = ssub.s32 %s31, %s38
      %s162 = sor.u32 %s160, %s161
      %p163 = scmp.eq.s32.totalorder %s162, 0
      %s165 = sadd.s32 %s164, 1
      %s166 = scalar_select %p163, %s164, %s165
      %p169 = pneg %p163
      %p170 = scmp.eq.s32.totalorder %s23, 3
      %p171 = por %p169, %p170
      %p172 = scmp.ne.s32.totalorder %s164, %s167
      %p173 = scmp.eq.s32.totalorder %s23, 0
      %p174 = por %p172, %p173
      %p175 = scmp.ne.s32.totalorder %s164, %s167
      %p176 = scmp.eq.s32.totalorder %s28, 3
      %p177 = por %p175, %p176
      %p178 = scmp.ne.s32.totalorder %s167, %s168
      %p179 = scmp.eq.s32.totalorder %s28, 0
      %p180 = por %p178, %p179
      %p181 = scmp.ne.s32.totalorder %s167, %s168
      %p182 = scmp.eq.s32.totalorder %s29, 3
      %p183 = por %p181, %p182
      %p185 = scmp.ne.s32.totalorder %s168, %s184
      %p186 = scmp.eq.s32.totalorder %s29, 0
      %p187 = por %p185, %p186
      %s188 = ssub.s32 %s30, %s42
      %s189 = ssub.s32 %s31, %s38
      %s190 = sor.u32 %s188, %s189
      %p191 = scmp.eq.s32.totalorder %s190, 0
      %s193 = sadd.s32 %s192, 1
      %s194 = scalar_select %p191, %s192, %s193
      %p197 = pneg %p191
      %p198 = scmp.eq.s32.totalorder %s23, 3
      %p199 = por %p197, %p198
      %p200 = scmp.ne.s32.totalorder %s192, %s195
      %p201 = scmp.eq.s32.totalorder %s23, 0
      %p202 = por %p200, %p201
      %p203 = scmp.ne.s32.totalorder %s192, %s195
      %p204 = scmp.eq.s32.totalorder %s28, 3
      %p205 = por %p203, %p204
      %p206 = scmp.ne.s32.totalorder %s195, %s196
      %p207 = scmp.eq.s32.totalorder %s28, 0
      %p208 = por %p206, %p207
      %p209 = scmp.ne.s32.totalorder %s195, %s196
      %p210 = scmp.eq.s32.totalorder %s29, 3
      %p211 = por %p209, %p210
      %p213 = scmp.ne.s32.totalorder %s196, %s212
      %p214 = scmp.eq.s32.totalorder %s29, 0
      %p215 = por %p213, %p214
      %s216 = ssub.s32 %s30, %s42
      %s217 = ssub.s32 %s31, %s38
      %s218 = sor.u32 %s216, %s217
      %p219 = scmp.eq.s32.totalorder %s218, 0
      %s221 = sadd.s32 %s220, 1
      %s222 = scalar_select %p219, %s220, %s221
      %p225 = pneg %p219
      %p226 = scmp.eq.s32.totalorder %s23, 3
      %p227 = por %p225, %p226
      %p228 = scmp.ne.s32.totalorder %s220, %s223
      %p229 = scmp.eq.s32.totalorder %s23, 0
      %p230 = por %p228, %p229
      %p231 = scmp.ne.s32.totalorder %s220, %s223
      %p232 = scmp.eq.s32.totalorder %s28, 3
      %p233 = por %p231, %p232
      %p234 = scmp.ne.s32.totalorder %s223, %s224
      %p235 = scmp.eq.s32.totalorder %s28, 0
      %p236 = por %p234, %p235
      %p237 = scmp.ne.s32.totalorder %s223, %s224
      %p238 = scmp.eq.s32.totalorder %s29, 3
      %p239 = por %p237, %p238
      %p241 = scmp.ne.s32.totalorder %s224, %s240
      %p242 = scmp.eq.s32.totalorder %s29, 0
      %p243 = por %p241, %p242
      %p244 = scmp.le.s32.totalorder 1, %s23
      %p245 = scmp.lt.s32.totalorder %s23, 5
      %p246 = pnand %p244, %p245
      %p247 = pneg %p246
      // Predicated region
      $region9: #{tpu_custom_call.1} parent=5 // pred_check
        _
      $region10: #{tpu_custom_call.1} parent=5 // pred_check_branch
        %249 = sbr.rel (%p246) target = $region12
      $region11: #{tpu_custom_call.1} parent=5 // pred_region
        %s250 = ssub.s32 %s23, 1
        // Predicated region
        $region13: #{tpu_custom_call.1} parent=11 // pred_check
          %p251 = pneg %p56
        $region14: #{tpu_custom_call.1} parent=11 // pred_check_branch
          %253 = sbr.rel (%p251) target = $region16
        $region15: #{tpu_custom_call.1} parent=11 // pred_region
          _
        $region16: #{tpu_custom_call.1} parent=11 // pred_fallthru
          _
        // Predicated region
        $region17: #{tpu_custom_call.1} parent=11 // pred_check
          %p254 = pneg %p77
        $region18: #{tpu_custom_call.1} parent=11 // pred_check_branch
          %256 = sbr.rel (%p254) target = $region20
        $region19: #{tpu_custom_call.1} parent=11 // pred_region
          _
        $region20: #{tpu_custom_call.1} parent=11 // pred_fallthru
          _
        // Predicated region
        $region21: #{tpu_custom_call.1} parent=11 // pred_check
          %p257 = pneg %p98
        $region22: #{tpu_custom_call.1} parent=11 // pred_check_branch
          %259 = sbr.rel (%p257) target = $region24
        $region23: #{tpu_custom_call.1} parent=11 // pred_region
          _
        $region24: #{tpu_custom_call.1} parent=11 // pred_fallthru
          _
      $region12: #{tpu_custom_call.1} parent=5 // pred_fallthru
        _
      %p260 = scmp.lt.s32.totalorder %s23, 4
      // Predicated region
      $region25: #{tpu_custom_call.1} parent=5 // pred_check
        %p261 = pneg %p260
      $region26: #{tpu_custom_call.1} parent=5 // pred_check_branch
        %263 = sbr.rel (%p261) target = $region28
      $region27: #{tpu_custom_call.1} parent=5 // pred_region
        // Predicated region
        $region29: #{tpu_custom_call.1} parent=27 // pred_check
          %p264 = pneg %p118
        $region30: #{tpu_custom_call.1} parent=27 // pred_check_branch
          %266 = sbr.rel (%p264) target = $region32
        $region31: #{tpu_custom_call.1} parent=27 // pred_region
          %p267 = scmp.lt.s32.totalorder %s30, 1
          %s268 = scalar_select %p267, %s30, 1
          %s269 = smul.addr %s268, 2
          %s270 = smul.addr %s269, 8
          %s271 = scalar_lea.vmem %s3, %s270
        $region32: #{tpu_custom_call.1} parent=27 // pred_fallthru
          _
        // Predicated region
        $region33: #{tpu_custom_call.1} parent=27 // pred_check
          %p272 = pneg %p146
        $region34: #{tpu_custom_call.1} parent=27 // pred_check_branch
          %274 = sbr.rel (%p272) target = $region36
        $region35: #{tpu_custom_call.1} parent=27 // pred_region
          %s275 = sand.u32 %s136, 1
          %s276 = scalar_lea.sflag [#allocation4], %s275
          %s277 = sand.u32 %s136, 1
          %s278 = smul.addr %s277, 36
          %s279 = scalar_lea.vmem [#allocation3], %s278
          %s280 = smul.u32 36, %s31
          %s282 = ssub.s32 576, 576
          %283 = vsyncadd %s276, %s282
          %s284 = smul.addr %s30, 72
          %s285 = sadd.s32 %s280, %s284
          %s286 = smul.addr %s285, 16
          %s287 = scalar_lea.hbm %s4, %s286
          %s289 = sshll.u32 %s279, 4
          %s290 = int_to_ptr.vmem [resolvable:$true] %s289
          %292 = dma.hbm_to_vmem [thread:$0]  %s287, 576, %s290, %s276
        $region36: #{tpu_custom_call.1} parent=27 // pred_fallthru
          _
        // Predicated region
        $region37: #{tpu_custom_call.1} parent=27 // pred_check
          %p293 = pneg %p174
        $region38: #{tpu_custom_call.1} parent=27 // pred_check_branch
          %295 = sbr.rel (%p293) target = $region40
        $region39: #{tpu_custom_call.1} parent=27 // pred_region
          %s296 = sand.u32 %s23, 1
          %s297 = scalar_lea.sflag [#allocation7], %s296
          %s298 = sand.u32 %s164, 1
          %s299 = smul.addr %s298, 36
          %s300 = scalar_lea.vmem [#allocation6], %s299
          %s301 = smul.u32 36, %s31
          %s303 = ssub.s32 576, 576
          %304 = vsyncadd %s297, %s303
          %s305 = smul.addr %s30, 72
          %s306 = sadd.s32 %s301, %s305
          %s307 = smul.addr %s306, 16
          %s308 = scalar_lea.hbm %s5, %s307
          %s310 = sshll.u32 %s300, 4
          %s311 = int_to_ptr.vmem [resolvable:$true] %s310
          %313 = dma.hbm_to_vmem [thread:$0]  %s308, 576, %s311, %s297
        $region40: #{tpu_custom_call.1} parent=27 // pred_fallthru
          _
        // Predicated region
        $region41: #{tpu_custom_call.1} parent=27 // pred_check
          %p314 = pneg %p202
        $region42: #{tpu_custom_call.1} parent=27 // pred_check_branch
          %316 = sbr.rel (%p314) target = $region44
        $region43: #{tpu_custom_call.1} parent=27 // pred_region
          %s317 = sand.u32 %s23, 1
          %s318 = scalar_lea.sflag [#allocation7], %s317
          %s319 = sand.u32 %s192, 1
          %s320 = smul.addr %s319, 36
          %s321 = scalar_lea.vmem [#allocation8], %s320
          %s322 = smul.u32 36, %s31
          %s324 = ssub.s32 576, 576
          %325 = vsyncadd %s318, %s324
          %s326 = smul.addr %s30, 72
          %s327 = sadd.s32 %s322, %s326
          %s328 = smul.addr %s327, 16
          %s329 = scalar_lea.hbm %s6, %s328
          %s331 = sshll.u32 %s321, 4
          %s332 = int_to_ptr.vmem [resolvable:$true] %s331
          %334 = dma.hbm_to_vmem [thread:$0]  %s329, 576, %s332, %s318
        $region44: #{tpu_custom_call.1} parent=27 // pred_fallthru
          _
      $region28: #{tpu_custom_call.1} parent=5 // pred_fallthru
        _
      %p335 = scmp.le.s32.totalorder 1, %s23
      %p336 = scmp.lt.s32.totalorder %s23, 5
      %p337 = pnand %p335, %p336
      %p338 = pneg %p337
      // Predicated region
      $region45: #{tpu_custom_call.1} parent=5 // pred_check
        _
      $region46: #{tpu_custom_call.1} parent=5 // pred_check_branch
        %340 = sbr.rel (%p337) target = $region48
      $region47: #{tpu_custom_call.1} parent=5 // pred_region
        %s341 = ssub.s32 %s23, 1
        %s342 = sand.u32 %s139, 1
        %s343 = scalar_lea.sflag [#allocation4], %s342
        %s344 = sand.u32 %s139, 1
        %s345 = smul.addr %s344, 36
        %s346 = scalar_lea.vmem [#allocation3], %s345
        // Predicated region
        $region49: #{tpu_custom_call.1} parent=47 // pred_check
          %p347 = pneg %p152
        $region50: #{tpu_custom_call.1} parent=47 // pred_check_branch
          %349 = sbr.rel (%p347) target = $region52
        $region51: #{tpu_custom_call.1} parent=47 // pred_region
          %350 = dma.done %s343, 576
        $region52: #{tpu_custom_call.1} parent=47 // pred_fallthru
          _
        %s351 = sand.u32 %s28, 1
        %s352 = scalar_lea.sflag [#allocation7], %s351
        %s353 = sand.u32 %s167, 1
        %s354 = smul.addr %s353, 36
        %s355 = scalar_lea.vmem [#allocation6], %s354
        // Predicated region
        $region53: #{tpu_custom_call.1} parent=47 // pred_check
          %p356 = pneg %p180
        $region54: #{tpu_custom_call.1} parent=47 // pred_check_branch
          %358 = sbr.rel (%p356) target = $region56
        $region55: #{tpu_custom_call.1} parent=47 // pred_region
          %359 = dma.done %s352, 576
        $region56: #{tpu_custom_call.1} parent=47 // pred_fallthru
          _
        %s360 = sand.u32 %s28, 1
        %s361 = scalar_lea.sflag [#allocation7], %s360
        %s362 = sand.u32 %s195, 1
        %s363 = smul.addr %s362, 36
        %s364 = scalar_lea.vmem [#allocation8], %s363
        // Predicated region
        $region57: #{tpu_custom_call.1} parent=47 // pred_check
          %p365 = pneg %p208
        $region58: #{tpu_custom_call.1} parent=47 // pred_check_branch
          %367 = sbr.rel (%p365) target = $region60
        $region59: #{tpu_custom_call.1} parent=47 // pred_region
          %368 = dma.done %s361, 576
        $region60: #{tpu_custom_call.1} parent=47 // pred_fallthru
          _
        %p369 = pneg %p56
        %p370 = pneg %p53
        %p371 = pneg %p77
        %p372 = pneg %p74
        %p373 = pneg %p98
        %p374 = pneg %p95
        %p375 = scmp.lt.s32.totalorder %s32, 1
        %s376 = scalar_select %p375, %s32, 1
        %s377 = smul.addr %s376, 2
        %s378 = smul.addr %s377, 8
        %s379 = scalar_lea.vmem %s3, %s378
        %p380 = pneg %p124
        %p381 = pneg %p121
        %s382 = sand.u32 %s139, 1
        %s383 = scalar_lea.sflag [#allocation4], %s382
        %s384 = sand.u32 %s139, 1
        %s385 = smul.addr %s384, 36
        %s386 = scalar_lea.vmem [#allocation3], %s385
        %p387 = pneg %p152
        %p388 = pneg %p149
        %s389 = sand.u32 %s28, 1
        %s390 = scalar_lea.sflag [#allocation7], %s389
        %s391 = sand.u32 %s167, 1
        %s392 = smul.addr %s391, 36
        %s393 = scalar_lea.vmem [#allocation6], %s392
        %p394 = pneg %p180
        %p395 = pneg %p177
        %s396 = sand.u32 %s28, 1
        %s397 = scalar_lea.sflag [#allocation7], %s396
        %s398 = sand.u32 %s195, 1
        %s399 = smul.addr %s398, 36
        %s400 = scalar_lea.vmem [#allocation8], %s399
        %p401 = pneg %p208
        %p402 = pneg %p205
        %p403 = pneg %p236
        %p404 = pneg %p233
        %s405 = sand.u32 %s223, 1
        %s406 = scalar_lea.sflag [#allocation5], %s405
        %s407 = sand.u32 %s223, 1
        %s408 = smul.addr %s407, 36
        %s409 = scalar_lea.vmem [#allocation9], %s408
        %p410 = scmp.lt.s32.totalorder %s32, 1
        %s411 = scalar_select %p410, %s32, 1
        %s412 = smul.addr %s411, 2
        %s413 = smul.addr %s412, 8
        %s414 = scalar_lea.vmem %s3, %s413
        %s415 = smul.u32 36, %s33
        %s416 = smul.u32 36, %s33
        %s417 = smul.u32 36, %s33
        %s418 = smul.u32 36, %s33
        %v419 = vld [vmem:[%s346] sm:$0xff]
        %v420 = vld [vmem:[%s346 + $0x8] sm:$0xff]
        %v421 = vld [vmem:[%s346 + $0x10] sm:$0xff]
        %v422 = vld [vmem:[%s346 + $0x18] sm:$0xff]
        %v423 = vld [vmem:[%s346 + $0x20] sm:$0xf]
        %v424 = vld [vmem:[%s355] sm:$0xff]
        %v425 = vld [vmem:[%s355 + $0x8] sm:$0xff]
        %v426 = vld [vmem:[%s355 + $0x10] sm:$0xff]
        %v427 = vld [vmem:[%s355 + $0x18] sm:$0xff]
        %v428 = vld [vmem:[%s355 + $0x20] sm:$0xf]
        %v429 = vld [vmem:[%s364] sm:$0xff]
        %v430 = vld [vmem:[%s364 + $0x8] sm:$0xff]
        %v431 = vld [vmem:[%s364 + $0x10] sm:$0xff]
        %v432 = vld [vmem:[%s364 + $0x18] sm:$0xff]
        %v433 = vld [vmem:[%s364 + $0x20] sm:$0xf]
        %v434 = vld [vmem:[%s1] sm:$0xff]
        %v435 = vld [vmem:[%s1 + $0x8] sm:$0xf]
        %v436 = vld [vmem:[%s2] sm:$0xff]
        %v437 = vld [vmem:[%s2 + $0x8] sm:$0xf]
        %v438 = vld [vmem:[%s414] sm:$0xff]
        %v439 = vld [vmem:[%s414 + $0x8] sm:$0xf]
        %441 = vset.pattern.permute.xlu0 0
        %442 = vperm.xlu0 %441, %v434
        %v443 = vpop.permute.xlu0 %442
        %446 = vset.pattern.permute.xlu0 0
        %447 = vperm.xlu0 %446, %v435
        %v448 = vpop.permute.xlu0 %447
        %v455 = vlaneseq
        %v456 = vshrl.u32 %v455, 7
        %v457 = vsub.s32 0, %v456
        %v458 = vrot.slane %v419, %v457
        %v459 = vlaneseq
        %v460 = vshrl.u32 %v459, 7
        %v461 = vsub.s32 1, %v460
        %v462 = vrot.slane %v419, %v461
        %v463 = vlaneseq
        %v464 = vshrl.u32 %v463, 7
        %v465 = vsub.s32 2, %v464
        %v466 = vrot.slane %v419, %v465
        %v467 = vlaneseq
        %v468 = vshrl.u32 %v467, 7
        %v469 = vsub.s32 3, %v468
        %v470 = vrot.slane %v419, %v469
        %v471 = vlaneseq
        %v472 = vshrl.u32 %v471, 7
        %v473 = vsub.s32 4, %v472
        %v474 = vrot.slane %v419, %v473
        %v475 = vlaneseq
        %v476 = vshrl.u32 %v475, 7
        %v477 = vsub.s32 5, %v476
        %v478 = vrot.slane %v419, %v477
        %v479 = vlaneseq
        %v480 = vshrl.u32 %v479, 7
        %v481 = vsub.s32 6, %v480
        %v482 = vrot.slane %v419, %v481
        %v483 = vlaneseq
        %v484 = vshrl.u32 %v483, 7
        %v485 = vsub.s32 7, %v484
        %v486 = vrot.slane %v419, %v485
        %v487 = vlaneseq
        %v488 = vshrl.u32 %v487, 7
        %v489 = vsub.s32 0, %v488
        %v490 = vrot.slane %v420, %v489
        %v491 = vlaneseq
        %v492 = vshrl.u32 %v491, 7
        %v493 = vsub.s32 1, %v492
        %v494 = vrot.slane %v420, %v493
        %v495 = vlaneseq
        %v496 = vshrl.u32 %v495, 7
        %v497 = vsub.s32 2, %v496
        %v498 = vrot.slane %v420, %v497
        %v499 = vlaneseq
        %v500 = vshrl.u32 %v499, 7
        %v501 = vsub.s32 3, %v500
        %v502 = vrot.slane %v420, %v501
        %v503 = vlaneseq
        %v504 = vshrl.u32 %v503, 7
        %v505 = vsub.s32 4, %v504
        %v506 = vrot.slane %v420, %v505
        %v507 = vlaneseq
        %v508 = vshrl.u32 %v507, 7
        %v509 = vsub.s32 5, %v508
        %v510 = vrot.slane %v420, %v509
        %v511 = vlaneseq
        %v512 = vshrl.u32 %v511, 7
        %v513 = vsub.s32 6, %v512
        %v514 = vrot.slane %v420, %v513
        %v515 = vlaneseq
        %v516 = vshrl.u32 %v515, 7
        %v517 = vsub.s32 7, %v516
        %v518 = vrot.slane %v420, %v517
        %v519 = vlaneseq
        %v520 = vshrl.u32 %v519, 7
        %v521 = vsub.s32 0, %v520
        %v522 = vrot.slane %v421, %v521
        %v523 = vlaneseq
        %v524 = vshrl.u32 %v523, 7
        %v525 = vsub.s32 1, %v524
        %v526 = vrot.slane %v421, %v525
        %v527 = vlaneseq
        %v528 = vshrl.u32 %v527, 7
        %v529 = vsub.s32 2, %v528
        %v530 = vrot.slane %v421, %v529
        %v531 = vlaneseq
        %v532 = vshrl.u32 %v531, 7
        %v533 = vsub.s32 3, %v532
        %v534 = vrot.slane %v421, %v533
        %v535 = vlaneseq
        %v536 = vshrl.u32 %v535, 7
        %v537 = vsub.s32 4, %v536
        %v538 = vrot.slane %v421, %v537
        %v539 = vlaneseq
        %v540 = vshrl.u32 %v539, 7
        %v541 = vsub.s32 5, %v540
        %v542 = vrot.slane %v421, %v541
        %v543 = vlaneseq
        %v544 = vshrl.u32 %v543, 7
        %v545 = vsub.s32 6, %v544
        %v546 = vrot.slane %v421, %v545
        %v547 = vlaneseq
        %v548 = vshrl.u32 %v547, 7
        %v549 = vsub.s32 7, %v548
        %v550 = vrot.slane %v421, %v549
        %v551 = vlaneseq
        %v552 = vshrl.u32 %v551, 7
        %v553 = vsub.s32 0, %v552
        %v554 = vrot.slane %v422, %v553
        %v555 = vlaneseq
        %v556 = vshrl.u32 %v555, 7
        %v557 = vsub.s32 1, %v556
        %v558 = vrot.slane %v422, %v557
        %v559 = vlaneseq
        %v560 = vshrl.u32 %v559, 7
        %v561 = vsub.s32 2, %v560
        %v562 = vrot.slane %v422, %v561
        %v563 = vlaneseq
        %v564 = vshrl.u32 %v563, 7
        %v565 = vsub.s32 3, %v564
        %v566 = vrot.slane %v422, %v565
        %v567 = vlaneseq
        %v568 = vshrl.u32 %v567, 7
        %v569 = vsub.s32 4, %v568
        %v570 = vrot.slane %v422, %v569
        %v571 = vlaneseq
        %v572 = vshrl.u32 %v571, 7
        %v573 = vsub.s32 5, %v572
        %v574 = vrot.slane %v422, %v573
        %v575 = vlaneseq
        %v576 = vshrl.u32 %v575, 7
        %v577 = vsub.s32 6, %v576
        %v578 = vrot.slane %v422, %v577
        %v579 = vlaneseq
        %v580 = vshrl.u32 %v579, 7
        %v581 = vsub.s32 7, %v580
        %v582 = vrot.slane %v422, %v581
        %v583 = vlaneseq
        %v584 = vshrl.u32 %v583, 7
        %v585 = vsub.s32 0, %v584
        %v586 = vrot.slane %v423, %v585
        %v587 = vlaneseq
        %v588 = vshrl.u32 %v587, 7
        %v589 = vsub.s32 1, %v588
        %v590 = vrot.slane %v423, %v589
        %v591 = vlaneseq
        %v592 = vshrl.u32 %v591, 7
        %v593 = vsub.s32 2, %v592
        %v594 = vrot.slane %v423, %v593
        %v595 = vlaneseq
        %v596 = vshrl.u32 %v595, 7
        %v597 = vsub.s32 3, %v596
        %v598 = vrot.slane %v423, %v597
        %v635 = vmul.f32 %v443, %v458
        %v636 = vmul.f32 %v443, %v462
        %v637 = vmul.f32 %v443, %v466
        %v638 = vmul.f32 %v443, %v470
        %v639 = vmul.f32 %v443, %v474
        %v640 = vmul.f32 %v443, %v478
        %v641 = vmul.f32 %v443, %v482
        %v642 = vmul.f32 %v443, %v486
        %v643 = vmul.f32 %v443, %v490
        %v644 = vmul.f32 %v443, %v494
        %v645 = vmul.f32 %v443, %v498
        %v646 = vmul.f32 %v443, %v502
        %v647 = vmul.f32 %v443, %v506
        %v648 = vmul.f32 %v443, %v510
        %v649 = vmul.f32 %v443, %v514
        %v650 = vmul.f32 %v443, %v518
        %v651 = vmul.f32 %v443, %v522
        %v652 = vmul.f32 %v443, %v526
        %v653 = vmul.f32 %v443, %v530
        %v654 = vmul.f32 %v443, %v534
        %v655 = vmul.f32 %v443, %v538
        %v656 = vmul.f32 %v443, %v542
        %v657 = vmul.f32 %v443, %v546
        %v658 = vmul.f32 %v443, %v550
        %v659 = vmul.f32 %v443, %v554
        %v660 = vmul.f32 %v443, %v558
        %v661 = vmul.f32 %v443, %v562
        %v662 = vmul.f32 %v443, %v566
        %v663 = vmul.f32 %v443, %v570
        %v664 = vmul.f32 %v443, %v574
        %v665 = vmul.f32 %v443, %v578
        %v666 = vmul.f32 %v443, %v582
        %v667 = vmul.f32 %v443, %v586
        %v668 = vmul.f32 %v443, %v590
        %v669 = vmul.f32 %v443, %v594
        %v670 = vmul.f32 %v443, %v598
        %v671 = vmul.f32 %v448, %v458
        %v672 = vmul.f32 %v448, %v462
        %v673 = vmul.f32 %v448, %v466
        %v674 = vmul.f32 %v448, %v470
        %v675 = vmul.f32 %v448, %v474
        %v676 = vmul.f32 %v448, %v478
        %v677 = vmul.f32 %v448, %v482
        %v678 = vmul.f32 %v448, %v486
        %v679 = vmul.f32 %v448, %v490
        %v680 = vmul.f32 %v448, %v494
        %v681 = vmul.f32 %v448, %v498
        %v682 = vmul.f32 %v448, %v502
        %v683 = vmul.f32 %v448, %v506
        %v684 = vmul.f32 %v448, %v510
        %v685 = vmul.f32 %v448, %v514
        %v686 = vmul.f32 %v448, %v518
        %v687 = vmul.f32 %v448, %v522
        %v688 = vmul.f32 %v448, %v526
        %v689 = vmul.f32 %v448, %v530
        %v690 = vmul.f32 %v448, %v534
        %v691 = vmul.f32 %v448, %v538
        %v692 = vmul.f32 %v448, %v542
        %v693 = vmul.f32 %v448, %v546
        %v694 = vmul.f32 %v448, %v550
        %v695 = vmul.f32 %v448, %v554
        %v696 = vmul.f32 %v448, %v558
        %v697 = vmul.f32 %v448, %v562
        %v698 = vmul.f32 %v448, %v566
        %v699 = vmul.f32 %v448, %v570
        %v700 = vmul.f32 %v448, %v574
        %v701 = vmul.f32 %v448, %v578
        %v702 = vmul.f32 %v448, %v582
        %v703 = vmul.f32 %v448, %v586
        %v704 = vmul.f32 %v448, %v590
        %v705 = vmul.f32 %v448, %v594
        %v706 = vmul.f32 %v448, %v598
        %708 = vset.pattern.permute.xlu0 0
        %709 = vperm.xlu0 %708, %v438
        %v710 = vpop.permute.xlu0 %709
        %713 = vset.pattern.permute.xlu0 0
        %714 = vperm.xlu0 %713, %v439
        %v715 = vpop.permute.xlu0 %714
        %v717 = vadd.f32 %v635, %v710
        %v718 = vadd.f32 %v636, %v710
        %v719 = vadd.f32 %v637, %v710
        %v720 = vadd.f32 %v638, %v710
        %v721 = vadd.f32 %v639, %v710
        %v722 = vadd.f32 %v640, %v710
        %v723 = vadd.f32 %v641, %v710
        %v724 = vadd.f32 %v642, %v710
        %v725 = vadd.f32 %v643, %v710
        %v726 = vadd.f32 %v644, %v710
        %v727 = vadd.f32 %v645, %v710
        %v728 = vadd.f32 %v646, %v710
        %v729 = vadd.f32 %v647, %v710
        %v730 = vadd.f32 %v648, %v710
        %v731 = vadd.f32 %v649, %v710
        %v732 = vadd.f32 %v650, %v710
        %v733 = vadd.f32 %v651, %v710
        %v734 = vadd.f32 %v652, %v710
        %v735 = vadd.f32 %v653, %v710
        %v736 = vadd.f32 %v654, %v710
        %v737 = vadd.f32 %v655, %v710
        %v738 = vadd.f32 %v656, %v710
        %v739 = vadd.f32 %v657, %v710
        %v740 = vadd.f32 %v658, %v710
        %v741 = vadd.f32 %v659, %v710
        %v742 = vadd.f32 %v660, %v710
        %v743 = vadd.f32 %v661, %v710
        %v744 = vadd.f32 %v662, %v710
        %v745 = vadd.f32 %v663, %v710
        %v746 = vadd.f32 %v664, %v710
        %v747 = vadd.f32 %v665, %v710
        %v748 = vadd.f32 %v666, %v710
        %v749 = vadd.f32 %v667, %v710
        %v750 = vadd.f32 %v668, %v710
        %v751 = vadd.f32 %v669, %v710
        %v752 = vadd.f32 %v670, %v710
        %v753 = vadd.f32 %v671, %v715
        %v754 = vadd.f32 %v672, %v715
        %v755 = vadd.f32 %v673, %v715
        %v756 = vadd.f32 %v674, %v715
        %v757 = vadd.f32 %v675, %v715
        %v758 = vadd.f32 %v676, %v715
        %v759 = vadd.f32 %v677, %v715
        %v760 = vadd.f32 %v678, %v715
        %v761 = vadd.f32 %v679, %v715
        %v762 = vadd.f32 %v680, %v715
        %v763 = vadd.f32 %v681, %v715
        %v764 = vadd.f32 %v682, %v715
        %v765 = vadd.f32 %v683, %v715
        %v766 = vadd.f32 %v684, %v715
        %v767 = vadd.f32 %v685, %v715
        %v768 = vadd.f32 %v686, %v715
        %v769 = vadd.f32 %v687, %v715
        %v770 = vadd.f32 %v688, %v715
        %v771 = vadd.f32 %v689, %v715
        %v772 = vadd.f32 %v690, %v715
        %v773 = vadd.f32 %v691, %v715
        %v774 = vadd.f32 %v692, %v715
        %v775 = vadd.f32 %v693, %v715
        %v776 = vadd.f32 %v694, %v715
        %v777 = vadd.f32 %v695, %v715
        %v778 = vadd.f32 %v696, %v715
        %v779 = vadd.f32 %v697, %v715
        %v780 = vadd.f32 %v698, %v715
        %v781 = vadd.f32 %v699, %v715
        %v782 = vadd.f32 %v700, %v715
        %v783 = vadd.f32 %v701, %v715
        %v784 = vadd.f32 %v702, %v715
        %v785 = vadd.f32 %v703, %v715
        %v786 = vadd.f32 %v704, %v715
        %v787 = vadd.f32 %v705, %v715
        %v788 = vadd.f32 %v706, %v715
        %v789 = vmul.f32 %v717, 6.2831855
        %v790 = vmul.f32 %v718, 6.2831855
        %v791 = vmul.f32 %v719, 6.2831855
        %v792 = vmul.f32 %v720, 6.2831855
        %v793 = vmul.f32 %v721, 6.2831855
        %v794 = vmul.f32 %v722, 6.2831855
        %v795 = vmul.f32 %v723, 6.2831855
        %v796 = vmul.f32 %v724, 6.2831855
        %v797 = vmul.f32 %v725, 6.2831855
        %v798 = vmul.f32 %v726, 6.2831855
        %v799 = vmul.f32 %v727, 6.2831855
        %v800 = vmul.f32 %v728, 6.2831855
        %v801 = vmul.f32 %v729, 6.2831855
        %v802 = vmul.f32 %v730, 6.2831855
        %v803 = vmul.f32 %v731, 6.2831855
        %v804 = vmul.f32 %v732, 6.2831855
        %v805 = vmul.f32 %v733, 6.2831855
        %v806 = vmul.f32 %v734, 6.2831855
        %v807 = vmul.f32 %v735, 6.2831855
        %v808 = vmul.f32 %v736, 6.2831855
        %v809 = vmul.f32 %v737, 6.2831855
        %v810 = vmul.f32 %v738, 6.2831855
        %v811 = vmul.f32 %v739, 6.2831855
        %v812 = vmul.f32 %v740, 6.2831855
        %v813 = vmul.f32 %v741, 6.2831855
        %v814 = vmul.f32 %v742, 6.2831855
        %v815 = vmul.f32 %v743, 6.2831855
        %v816 = vmul.f32 %v744, 6.2831855
        %v817 = vmul.f32 %v745, 6.2831855
        %v818 = vmul.f32 %v746, 6.2831855
        %v819 = vmul.f32 %v747, 6.2831855
        %v820 = vmul.f32 %v748, 6.2831855
        %v821 = vmul.f32 %v749, 6.2831855
        %v822 = vmul.f32 %v750, 6.2831855
        %v823 = vmul.f32 %v751, 6.2831855
        %v824 = vmul.f32 %v752, 6.2831855
        %v825 = vmul.f32 %v753, 6.2831855
        %v826 = vmul.f32 %v754, 6.2831855
        %v827 = vmul.f32 %v755, 6.2831855
        %v828 = vmul.f32 %v756, 6.2831855
        %v829 = vmul.f32 %v757, 6.2831855
        %v830 = vmul.f32 %v758, 6.2831855
        %v831 = vmul.f32 %v759, 6.2831855
        %v832 = vmul.f32 %v760, 6.2831855
        %v833 = vmul.f32 %v761, 6.2831855
        %v834 = vmul.f32 %v762, 6.2831855
        %v835 = vmul.f32 %v763, 6.2831855
        %v836 = vmul.f32 %v764, 6.2831855
        %v837 = vmul.f32 %v765, 6.2831855
        %v838 = vmul.f32 %v766, 6.2831855
        %v839 = vmul.f32 %v767, 6.2831855
        %v840 = vmul.f32 %v768, 6.2831855
        %v841 = vmul.f32 %v769, 6.2831855
        %v842 = vmul.f32 %v770, 6.2831855
        %v843 = vmul.f32 %v771, 6.2831855
        %v844 = vmul.f32 %v772, 6.2831855
        %v845 = vmul.f32 %v773, 6.2831855
        %v846 = vmul.f32 %v774, 6.2831855
        %v847 = vmul.f32 %v775, 6.2831855
        %v848 = vmul.f32 %v776, 6.2831855
        %v849 = vmul.f32 %v777, 6.2831855
        %v850 = vmul.f32 %v778, 6.2831855
        %v851 = vmul.f32 %v779, 6.2831855
        %v852 = vmul.f32 %v780, 6.2831855
        %v853 = vmul.f32 %v781, 6.2831855
        %v854 = vmul.f32 %v782, 6.2831855
        %v855 = vmul.f32 %v783, 6.2831855
        %v856 = vmul.f32 %v784, 6.2831855
        %v857 = vmul.f32 %v785, 6.2831855
        %v858 = vmul.f32 %v786, 6.2831855
        %v859 = vmul.f32 %v787, 6.2831855
        %v860 = vmul.f32 %v788, 6.2831855
        %v861 = vand.u32 2147483647, %v789
        %vm862 = vcmp.le.f32.partialorder %v861, 0.7853982
        %vm863 = vcmp.lt.s32.totalorder %v789, 0
        %v864 = vand.u32 %v789, 2139095040
        %v865 = vshrl.u32 %v864, 23
        %v866 = vsub.s32 %v865, 127
        %v867 = vand.u32 2147483647, %v789
        %v868 = vand.u32 %v867, 8388607
        %v869 = vor.u32 %v868, 8388608
        %v870 = vsub.s32 0, %v869
        %v871 = vadd.s32 %v866, 1
        %vm872 = vcmp.gt.s32.totalorder %v871, 0
        %v873 = vsel %vm872, %v871, 0
        %v874 = vshrl.u32 %v873, 5
        %v875 = vand.u32 %v873, 31
        %v876 = vsub.s32 32, %v875
        %v877 = vshrl.u32 683565275, %v876
        %v878 = vshll.u32 683565275, %v875
        %v879 = vshrl.u32 2475754826, %v876
        %v880 = vor.u32 %v878, %v879
        %v881 = vshll.u32 2475754826, %v875
        %v882 = vshrl.u32 2131351028, %v876
        %v883 = vor.u32 %v881, %v882
        %v884 = vshll.u32 2131351028, %v875
        %v885 = vshrl.u32 2102212464, %v876
        %v886 = vor.u32 %v884, %v885
        %v887 = vshll.u32 2102212464, %v875
        %v888 = vshrl.u32 920167782, %v876
        %v889 = vor.u32 %v887, %v888
        %v890 = vshll.u32 920167782, %v875
        %v891 = vshrl.u32 1326507024, %v876
        %v892 = vor.u32 %v890, %v891
        %vm893 = vcmp.lt.s32.totalorder %v874, 1
        %vm894 = vcmp.lt.s32.totalorder %v874, 2
        %vm895 = vcmp.lt.s32.totalorder %v874, 3
        %vm896 = vcmp.lt.s32.totalorder %v874, 4
        %v897 = vsel %vm893, %v877, %v880
        %v898 = vsel %vm896, %v886, 2102212464
        %v899 = vsel %vm895, %v883, %v898
        %v900 = vsel %vm894, %v897, %v899
        %v901 = vsel %vm893, %v880, %v883
        %v902 = vsel %vm896, %v889, 920167782
        %v903 = vsel %vm895, %v886, %v902
        %v904 = vsel %vm894, %v901, %v903
        %v905 = vsel %vm893, %v883, %v886
        %v906 = vsel %vm896, %v892, 1326507024
        %v907 = vsel %vm895, %v889, %v906
        %v908 = vsel %vm894, %v905, %v907
        %v909 = vshll.u32 %v869, 8
        %v910 = vmul.u32.u64.compose %v909, %v908
        %v911 = vextract.low.u32 %v910
        %v912 = vextract.high.u32 %v910
        %v913 = vmul.u32.u64.compose %v909, %v904
        %v914 = vextract.low.u32 %v913
        %v915 = vextract.high.u32 %v913
        %v916 = vmul.u32 %v909, %v900
        %v917 = vadd.s32 %v912, %v914
        %vm918 = vc.u32 %v912, %v914
        %v919 = vadd.s32 %v915, 1
        %v920 = vsel %vm918, %v919, %v915
        %v921 = vadd.s32 %v916, %v920
        %v922 = vadd.s32 %v921, 536870912
        %v923 = vshrl.u32 %v922, 30
        %v924 = vshll.u32 %v923, 30
        %v925 = vsub.s32 %v921, %v924
        %vm926 = vcmp.lt.s32.totalorder %v925, 0
        %v927 = vsub.s32 0, %v925
        %v928 = vsel %vm926, %v927, %v925
        %v929 = vclz %v928
        %v930 = vsub.s32 %v929, 2
        %vm931 = vcmp.gt.s32.totalorder 0, %v930
        %v932 = vsel %vm931, 0, %v930
        %v933 = vsub.s32 32, %v932
        %v934 = vshll.u32 %v925, %v932
        %v935 = vshrl.u32 %v917, %v933
        %v936 = vor.u32 %v934, %v935
        %v937 = vsub.s32 4294967266, %v932
        %v938 = vadd.s32 %v937, 127
        %v939 = vshll.u32 %v938, 23
        %v940 = vor.u32 4788187, %v939
        %v941 = vand.u32 2147483647, %v940
        %v943 = vcvt.s32.f32 %v936
        %v944 = vmul.f32 %v943, %v941
        %v945 = vxor.u32 %v944, 2147483648
        %v946 = vsel %vm863, %v945, %v944
        %v947 = vsub.s32 4, %v923
        %v948 = vsel %vm863, %v947, %v923
        %v949 = vsel %vm862, %v789, %v946
        %v950 = vsel %vm862, 0, %v948
        %v951 = vcosq.f32.pop %v949
        %v952 = vsinq.f32.pop %v949
        %vm953 = vweird.f32 %v789
        %v954 = vadd.s32 %v950, 3
        %v955 = vand.u32 %v954, 3
        %vm956 = vcmp.lt.s32.totalorder %v955, 2
        %vm957 = vcmp.eq.s32.totalorder %v955, 0
        %v958 = vxor.u32 %v952, 2147483648
        %v959 = vsel %vm957, %v951, %v958
        %vm960 = vcmp.eq.s32.totalorder %v955, 2
        %v961 = vxor.u32 %v951, 2147483648
        %v962 = vsel %vm960, %v961, %v952
        %v963 = vsel %vm956, %v959, %v962
        %v964 = vsel %vm953, nan, %v963
        %v965 = vand.u32 2147483647, %v790
        %vm966 = vcmp.le.f32.partialorder %v965, 0.7853982
        %vm967 = vcmp.lt.s32.totalorder %v790, 0
        %v968 = vand.u32 %v790, 2139095040
        %v969 = vshrl.u32 %v968, 23
        %v970 = vsub.s32 %v969, 127
        %v971 = vand.u32 2147483647, %v790
        %v972 = vand.u32 %v971, 8388607
        %v973 = vor.u32 %v972, 8388608
        %v974 = vsub.s32 0, %v973
        %v975 = vadd.s32 %v970, 1
        %vm976 = vcmp.gt.s32.totalorder %v975, 0
        %v977 = vsel %vm976, %v975, 0
        %v978 = vshrl.u32 %v977, 5
        %v979 = vand.u32 %v977, 31
        %v980 = vsub.s32 32, %v979
        %v981 = vshrl.u32 683565275, %v980
        %v982 = vshll.u32 683565275, %v979
        %v983 = vshrl.u32 2475754826, %v980
        %v984 = vor.u32 %v982, %v983
        %v985 = vshll.u32 2475754826, %v979
        %v986 = vshrl.u32 2131351028, %v980
        %v987 = vor.u32 %v985, %v986
        %v988 = vshll.u32 2131351028, %v979
        %v989 = vshrl.u32 2102212464, %v980
        %v990 = vor.u32 %v988, %v989
        %v991 = vshll.u32 2102212464, %v979
        %v992 = vshrl.u32 920167782, %v980
        %v993 = vor.u32 %v991, %v992
        %v994 = vshll.u32 920167782, %v979
        %v995 = vshrl.u32 1326507024, %v980
        %v996 = vor.u32 %v994, %v995
        %vm997 = vcmp.lt.s32.totalorder %v978, 1
        %vm998 = vcmp.lt.s32.totalorder %v978, 2
        %vm999 = vcmp.lt.s32.totalorder %v978, 3
        %vm1000 = vcmp.lt.s32.totalorder %v978, 4
        %v1001 = vsel %vm997, %v981, %v984
        %v1002 = vsel %vm1000, %v990, 2102212464
        %v1003 = vsel %vm999, %v987, %v1002
        %v1004 = vsel %vm998, %v1001, %v1003
        %v1005 = vsel %vm997, %v984, %v987
        %v1006 = vsel %vm1000, %v993, 920167782
        %v1007 = vsel %vm999, %v990, %v1006
        %v1008 = vsel %vm998, %v1005, %v1007
        %v1009 = vsel %vm997, %v987, %v990
        %v1010 = vsel %vm1000, %v996, 1326507024
        %v1011 = vsel %vm999, %v993, %v1010
        %v1012 = vsel %vm998, %v1009, %v1011
        %v1013 = vshll.u32 %v973, 8
        %v1014 = vmul.u32.u64.compose %v1013, %v1012
        %v1015 = vextract.low.u32 %v1014
        %v1016 = vextract.high.u32 %v1014
        %v1017 = vmul.u32.u64.compose %v1013, %v1008
        %v1018 = vextract.low.u32 %v1017
        %v1019 = vextract.high.u32 %v1017
        %v1020 = vmul.u32 %v1013, %v1004
        %v1021 = vadd.s32 %v1016, %v1018
        %vm1022 = vc.u32 %v1016, %v1018
        %v1023 = vadd.s32 %v1019, 1
        %v1024 = vsel %vm1022, %v1023, %v1019
        %v1025 = vadd.s32 %v1020, %v1024
        %v1026 = vadd.s32 %v1025, 536870912
        %v1027 = vshrl.u32 %v1026, 30
        %v1028 = vshll.u32 %v1027, 30
        %v1029 = vsub.s32 %v1025, %v1028
        %vm1030 = vcmp.lt.s32.totalorder %v1029, 0
        %v1031 = vsub.s32 0, %v1029
        %v1032 = vsel %vm1030, %v1031, %v1029
        %v1033 = vclz %v1032
        %v1034 = vsub.s32 %v1033, 2
        %vm1035 = vcmp.gt.s32.totalorder 0, %v1034
        %v1036 = vsel %vm1035, 0, %v1034
        %v1037 = vsub.s32 32, %v1036
        %v1038 = vshll.u32 %v1029, %v1036
        %v1039 = vshrl.u32 %v1021, %v1037
        %v1040 = vor.u32 %v1038, %v1039
        %v1041 = vsub.s32 4294967266, %v1036
        %v1042 = vadd.s32 %v1041, 127
        %v1043 = vshll.u32 %v1042, 23
        %v1044 = vor.u32 4788187, %v1043
        %v1045 = vand.u32 2147483647, %v1044
        %v1047 = vcvt.s32.f32 %v1040
        %v1048 = vmul.f32 %v1047, %v1045
        %v1049 = vxor.u32 %v1048, 2147483648
        %v1050 = vsel %vm967, %v1049, %v1048
        %v1051 = vsub.s32 4, %v1027
        %v1052 = vsel %vm967, %v1051, %v1027
        %v1053 = vsel %vm966, %v790, %v1050
        %v1054 = vsel %vm966, 0, %v1052
        %v1055 = vcosq.f32.pop %v1053
        %v1056 = vsinq.f32.pop %v1053
        %vm1057 = vweird.f32 %v790
        %v1058 = vadd.s32 %v1054, 3
        %v1059 = vand.u32 %v1058, 3
        %vm1060 = vcmp.lt.s32.totalorder %v1059, 2
        %vm1061 = vcmp.eq.s32.totalorder %v1059, 0
        %v1062 = vxor.u32 %v1056, 2147483648
        %v1063 = vsel %vm1061, %v1055, %v1062
        %vm1064 = vcmp.eq.s32.totalorder %v1059, 2
        %v1065 = vxor.u32 %v1055, 2147483648
        %v1066 = vsel %vm1064, %v1065, %v1056
        %v1067 = vsel %vm1060, %v1063, %v1066
        %v1068 = vsel %vm1057, nan, %v1067
        %v1069 = vand.u32 2147483647, %v791
        %vm1070 = vcmp.le.f32.partialorder %v1069, 0.7853982
        %vm1071 = vcmp.lt.s32.totalorder %v791, 0
        %v1072 = vand.u32 %v791, 2139095040
        %v1073 = vshrl.u32 %v1072, 23
        %v1074 = vsub.s32 %v1073, 127
        %v1075 = vand.u32 2147483647, %v791
        %v1076 = vand.u32 %v1075, 8388607
        %v1077 = vor.u32 %v1076, 8388608
        %v1078 = vsub.s32 0, %v1077
        %v1079 = vadd.s32 %v1074, 1
        %vm1080 = vcmp.gt.s32.totalorder %v1079, 0
        %v1081 = vsel %vm1080, %v1079, 0
        %v1082 = vshrl.u32 %v1081, 5
        %v1083 = vand.u32 %v1081, 31
        %v1084 = vsub.s32 32, %v1083
        %v1085 = vshrl.u32 683565275, %v1084
        %v1086 = vshll.u32 683565275, %v1083
        %v1087 = vshrl.u32 2475754826, %v1084
        %v1088 = vor.u32 %v1086, %v1087
        %v1089 = vshll.u32 2475754826, %v1083
        %v1090 = vshrl.u32 2131351028, %v1084
        %v1091 = vor.u32 %v1089, %v1090
        %v1092 = vshll.u32 2131351028, %v1083
        %v1093 = vshrl.u32 2102212464, %v1084
        %v1094 = vor.u32 %v1092, %v1093
        %v1095 = vshll.u32 2102212464, %v1083
        %v1096 = vshrl.u32 920167782, %v1084
        %v1097 = vor.u32 %v1095, %v1096
        %v1098 = vshll.u32 920167782, %v1083
        %v1099 = vshrl.u32 1326507024, %v1084
        %v1100 = vor.u32 %v1098, %v1099
        %vm1101 = vcmp.lt.s32.totalorder %v1082, 1
        %vm1102 = vcmp.lt.s32.totalorder %v1082, 2
        %vm1103 = vcmp.lt.s32.totalorder %v1082, 3
        %vm1104 = vcmp.lt.s32.totalorder %v1082, 4
        %v1105 = vsel %vm1101, %v1085, %v1088
        %v1106 = vsel %vm1104, %v1094, 2102212464
        %v1107 = vsel %vm1103, %v1091, %v1106
        %v1108 = vsel %vm1102, %v1105, %v1107
        %v1109 = vsel %vm1101, %v1088, %v1091
        %v1110 = vsel %vm1104, %v1097, 920167782
        %v1111 = vsel %vm1103, %v1094, %v1110
        %v1112 = vsel %vm1102, %v1109, %v1111
        %v1113 = vsel %vm1101, %v1091, %v1094
        %v1114 = vsel %vm1104, %v1100, 1326507024
        %v1115 = vsel %vm1103, %v1097, %v1114
        %v1116 = vsel %vm1102, %v1113, %v1115
        %v1117 = vshll.u32 %v1077, 8
        %v1118 = vmul.u32.u64.compose %v1117, %v1116
        %v1119 = vextract.low.u32 %v1118
        %v1120 = vextract.high.u32 %v1118
        %v1121 = vmul.u32.u64.compose %v1117, %v1112
        %v1122 = vextract.low.u32 %v1121
        %v1123 = vextract.high.u32 %v1121
        %v1124 = vmul.u32 %v1117, %v1108
        %v1125 = vadd.s32 %v1120, %v1122
        %vm1126 = vc.u32 %v1120, %v1122
        %v1127 = vadd.s32 %v1123, 1
        %v1128 = vsel %vm1126, %v1127, %v1123
        %v1129 = vadd.s32 %v1124, %v1128
        %v1130 = vadd.s32 %v1129, 536870912
        %v1131 = vshrl.u32 %v1130, 30
        %v1132 = vshll.u32 %v1131, 30
        %v1133 = vsub.s32 %v1129, %v1132
        %vm1134 = vcmp.lt.s32.totalorder %v1133, 0
        %v1135 = vsub.s32 0, %v1133
        %v1136 = vsel %vm1134, %v1135, %v1133
        %v1137 = vclz %v1136
        %v1138 = vsub.s32 %v1137, 2
        %vm1139 = vcmp.gt.s32.totalorder 0, %v1138
        %v1140 = vsel %vm1139, 0, %v1138
        %v1141 = vsub.s32 32, %v1140
        %v1142 = vshll.u32 %v1133, %v1140
        %v1143 = vshrl.u32 %v1125, %v1141
        %v1144 = vor.u32 %v1142, %v1143
        %v1145 = vsub.s32 4294967266, %v1140
        %v1146 = vadd.s32 %v1145, 127
        %v1147 = vshll.u32 %v1146, 23
        %v1148 = vor.u32 4788187, %v1147
        %v1149 = vand.u32 2147483647, %v1148
        %v1151 = vcvt.s32.f32 %v1144
        %v1152 = vmul.f32 %v1151, %v1149
        %v1153 = vxor.u32 %v1152, 2147483648
        %v1154 = vsel %vm1071, %v1153, %v1152
        %v1155 = vsub.s32 4, %v1131
        %v1156 = vsel %vm1071, %v1155, %v1131
        %v1157 = vsel %vm1070, %v791, %v1154
        %v1158 = vsel %vm1070, 0, %v1156
        %v1159 = vcosq.f32.pop %v1157
        %v1160 = vsinq.f32.pop %v1157
        %vm1161 = vweird.f32 %v791
        %v1162 = vadd.s32 %v1158, 3
        %v1163 = vand.u32 %v1162, 3
        %vm1164 = vcmp.lt.s32.totalorder %v1163, 2
        %vm1165 = vcmp.eq.s32.totalorder %v1163, 0
        %v1166 = vxor.u32 %v1160, 2147483648
        %v1167 = vsel %vm1165, %v1159, %v1166
        %vm1168 = vcmp.eq.s32.totalorder %v1163, 2
        %v1169 = vxor.u32 %v1159, 2147483648
        %v1170 = vsel %vm1168, %v1169, %v1160
        %v1171 = vsel %vm1164, %v1167, %v1170
        %v1172 = vsel %vm1161, nan, %v1171
        %v1173 = vand.u32 2147483647, %v792
        %vm1174 = vcmp.le.f32.partialorder %v1173, 0.7853982
        %vm1175 = vcmp.lt.s32.totalorder %v792, 0
        %v1176 = vand.u32 %v792, 2139095040
        %v1177 = vshrl.u32 %v1176, 23
        %v1178 = vsub.s32 %v1177, 127
        %v1179 = vand.u32 2147483647, %v792
        %v1180 = vand.u32 %v1179, 8388607
        %v1181 = vor.u32 %v1180, 8388608
        %v1182 = vsub.s32 0, %v1181
        %v1183 = vadd.s32 %v1178, 1
        %vm1184 = vcmp.gt.s32.totalorder %v1183, 0
        %v1185 = vsel %vm1184, %v1183, 0
        %v1186 = vshrl.u32 %v1185, 5
        %v1187 = vand.u32 %v1185, 31
        %v1188 = vsub.s32 32, %v1187
        %v1189 = vshrl.u32 683565275, %v1188
        %v1190 = vshll.u32 683565275, %v1187
        %v1191 = vshrl.u32 2475754826, %v1188
        %v1192 = vor.u32 %v1190, %v1191
        %v1193 = vshll.u32 2475754826, %v1187
        %v1194 = vshrl.u32 2131351028, %v1188
        %v1195 = vor.u32 %v1193, %v1194
        %v1196 = vshll.u32 2131351028, %v1187
        %v1197 = vshrl.u32 2102212464, %v1188
        %v1198 = vor.u32 %v1196, %v1197
        %v1199 = vshll.u32 2102212464, %v1187
        %v1200 = vshrl.u32 920167782, %v1188
        %v1201 = vor.u32 %v1199, %v1200
        %v1202 = vshll.u32 920167782, %v1187
        %v1203 = vshrl.u32 1326507024, %v1188
        %v1204 = vor.u32 %v1202, %v1203
        %vm1205 = vcmp.lt.s32.totalorder %v1186, 1
        %vm1206 = vcmp.lt.s32.totalorder %v1186, 2
        %vm1207 = vcmp.lt.s32.totalorder %v1186, 3
        %vm1208 = vcmp.lt.s32.totalorder %v1186, 4
        %v1209 = vsel %vm1205, %v1189, %v1192
        %v1210 = vsel %vm1208, %v1198, 2102212464
        %v1211 = vsel %vm1207, %v1195, %v1210
        %v1212 = vsel %vm1206, %v1209, %v1211
        %v1213 = vsel %vm1205, %v1192, %v1195
        %v1214 = vsel %vm1208, %v1201, 920167782
        %v1215 = vsel %vm1207, %v1198, %v1214
        %v1216 = vsel %vm1206, %v1213, %v1215
        %v1217 = vsel %vm1205, %v1195, %v1198
        %v1218 = vsel %vm1208, %v1204, 1326507024
        %v1219 = vsel %vm1207, %v1201, %v1218
        %v1220 = vsel %vm1206, %v1217, %v1219
        %v1221 = vshll.u32 %v1181, 8
        %v1222 = vmul.u32.u64.compose %v1221, %v1220
        %v1223 = vextract.low.u32 %v1222
        %v1224 = vextract.high.u32 %v1222
        %v1225 = vmul.u32.u64.compose %v1221, %v1216
        %v1226 = vextract.low.u32 %v1225
        %v1227 = vextract.high.u32 %v1225
        %v1228 = vmul.u32 %v1221, %v1212
        %v1229 = vadd.s32 %v1224, %v1226
        %vm1230 = vc.u32 %v1224, %v1226
        %v1231 = vadd.s32 %v1227, 1
        %v1232 = vsel %vm1230, %v1231, %v1227
        %v1233 = vadd.s32 %v1228, %v1232
        %v1234 = vadd.s32 %v1233, 536870912
        %v1235 = vshrl.u32 %v1234, 30
        %v1236 = vshll.u32 %v1235, 30
        %v1237 = vsub.s32 %v1233, %v1236
        %vm1238 = vcmp.lt.s32.totalorder %v1237, 0
        %v1239 = vsub.s32 0, %v1237
        %v1240 = vsel %vm1238, %v1239, %v1237
        %v1241 = vclz %v1240
        %v1242 = vsub.s32 %v1241, 2
        %vm1243 = vcmp.gt.s32.totalorder 0, %v1242
        %v1244 = vsel %vm1243, 0, %v1242
        %v1245 = vsub.s32 32, %v1244
        %v1246 = vshll.u32 %v1237, %v1244
        %v1247 = vshrl.u32 %v1229, %v1245
        %v1248 = vor.u32 %v1246, %v1247
        %v1249 = vsub.s32 4294967266, %v1244
        %v1250 = vadd.s32 %v1249, 127
        %v1251 = vshll.u32 %v1250, 23
        %v1252 = vor.u32 4788187, %v1251
        %v1253 = vand.u32 2147483647, %v1252
        %v1255 = vcvt.s32.f32 %v1248
        %v1256 = vmul.f32 %v1255, %v1253
        %v1257 = vxor.u32 %v1256, 2147483648
        %v1258 = vsel %vm1175, %v1257, %v1256
        %v1259 = vsub.s32 4, %v1235
        %v1260 = vsel %vm1175, %v1259, %v1235
        %v1261 = vsel %vm1174, %v792, %v1258
        %v1262 = vsel %vm1174, 0, %v1260
        %v1263 = vcosq.f32.pop %v1261
        %v1264 = vsinq.f32.pop %v1261
        %vm1265 = vweird.f32 %v792
        %v1266 = vadd.s32 %v1262, 3
        %v1267 = vand.u32 %v1266, 3
        %vm1268 = vcmp.lt.s32.totalorder %v1267, 2
        %vm1269 = vcmp.eq.s32.totalorder %v1267, 0
        %v1270 = vxor.u32 %v1264, 2147483648
        %v1271 = vsel %vm1269, %v1263, %v1270
        %vm1272 = vcmp.eq.s32.totalorder %v1267, 2
        %v1273 = vxor.u32 %v1263, 2147483648
        %v1274 = vsel %vm1272, %v1273, %v1264
        %v1275 = vsel %vm1268, %v1271, %v1274
        %v1276 = vsel %vm1265, nan, %v1275
        %v1277 = vand.u32 2147483647, %v793
        %vm1278 = vcmp.le.f32.partialorder %v1277, 0.7853982
        %vm1279 = vcmp.lt.s32.totalorder %v793, 0
        %v1280 = vand.u32 %v793, 2139095040
        %v1281 = vshrl.u32 %v1280, 23
        %v1282 = vsub.s32 %v1281, 127
        %v1283 = vand.u32 2147483647, %v793
        %v1284 = vand.u32 %v1283, 8388607
        %v1285 = vor.u32 %v1284, 8388608
        %v1286 = vsub.s32 0, %v1285
        %v1287 = vadd.s32 %v1282, 1
        %vm1288 = vcmp.gt.s32.totalorder %v1287, 0
        %v1289 = vsel %vm1288, %v1287, 0
        %v1290 = vshrl.u32 %v1289, 5
        %v1291 = vand.u32 %v1289, 31
        %v1292 = vsub.s32 32, %v1291
        %v1293 = vshrl.u32 683565275, %v1292
        %v1294 = vshll.u32 683565275, %v1291
        %v1295 = vshrl.u32 2475754826, %v1292
        %v1296 = vor.u32 %v1294, %v1295
        %v1297 = vshll.u32 2475754826, %v1291
        %v1298 = vshrl.u32 2131351028, %v1292
        %v1299 = vor.u32 %v1297, %v1298
        %v1300 = vshll.u32 2131351028, %v1291
        %v1301 = vshrl.u32 2102212464, %v1292
        %v1302 = vor.u32 %v1300, %v1301
        %v1303 = vshll.u32 2102212464, %v1291
        %v1304 = vshrl.u32 920167782, %v1292
        %v1305 = vor.u32 %v1303, %v1304
        %v1306 = vshll.u32 920167782, %v1291
        %v1307 = vshrl.u32 1326507024, %v1292
        %v1308 = vor.u32 %v1306, %v1307
        %vm1309 = vcmp.lt.s32.totalorder %v1290, 1
        %vm1310 = vcmp.lt.s32.totalorder %v1290, 2
        %vm1311 = vcmp.lt.s32.totalorder %v1290, 3
        %vm1312 = vcmp.lt.s32.totalorder %v1290, 4
        %v1313 = vsel %vm1309, %v1293, %v1296
        %v1314 = vsel %vm1312, %v1302, 2102212464
        %v1315 = vsel %vm1311, %v1299, %v1314
        %v1316 = vsel %vm1310, %v1313, %v1315
        %v1317 = vsel %vm1309, %v1296, %v1299
        %v1318 = vsel %vm1312, %v1305, 920167782
        %v1319 = vsel %vm1311, %v1302, %v1318
        %v1320 = vsel %vm1310, %v1317, %v1319
        %v1321 = vsel %vm1309, %v1299, %v1302
        %v1322 = vsel %vm1312, %v1308, 1326507024
        %v1323 = vsel %vm1311, %v1305, %v1322
        %v1324 = vsel %vm1310, %v1321, %v1323
        %v1325 = vshll.u32 %v1285, 8
        %v1326 = vmul.u32.u64.compose %v1325, %v1324
        %v1327 = vextract.low.u32 %v1326
        %v1328 = vextract.high.u32 %v1326
        %v1329 = vmul.u32.u64.compose %v1325, %v1320
        %v1330 = vextract.low.u32 %v1329
        %v1331 = vextract.high.u32 %v1329
        %v1332 = vmul.u32 %v1325, %v1316
        %v1333 = vadd.s32 %v1328, %v1330
        %vm1334 = vc.u32 %v1328, %v1330
        %v1335 = vadd.s32 %v1331, 1
        %v1336 = vsel %vm1334, %v1335, %v1331
        %v1337 = vadd.s32 %v1332, %v1336
        %v1338 = vadd.s32 %v1337, 536870912
        %v1339 = vshrl.u32 %v1338, 30
        %v1340 = vshll.u32 %v1339, 30
        %v1341 = vsub.s32 %v1337, %v1340
        %vm1342 = vcmp.lt.s32.totalorder %v1341, 0
        %v1343 = vsub.s32 0, %v1341
        %v1344 = vsel %vm1342, %v1343, %v1341
        %v1345 = vclz %v1344
        %v1346 = vsub.s32 %v1345, 2
        %vm1347 = vcmp.gt.s32.totalorder 0, %v1346
        %v1348 = vsel %vm1347, 0, %v1346
        %v1349 = vsub.s32 32, %v1348
        %v1350 = vshll.u32 %v1341, %v1348
        %v1351 = vshrl.u32 %v1333, %v1349
        %v1352 = vor.u32 %v1350, %v1351
        %v1353 = vsub.s32 4294967266, %v1348
        %v1354 = vadd.s32 %v1353, 127
        %v1355 = vshll.u32 %v1354, 23
        %v1356 = vor.u32 4788187, %v1355
        %v1357 = vand.u32 2147483647, %v1356
        %v1359 = vcvt.s32.f32 %v1352
        %v1360 = vmul.f32 %v1359, %v1357
        %v1361 = vxor.u32 %v1360, 2147483648
        %v1362 = vsel %vm1279, %v1361, %v1360
        %v1363 = vsub.s32 4, %v1339
        %v1364 = vsel %vm1279, %v1363, %v1339
        %v1365 = vsel %vm1278, %v793, %v1362
        %v1366 = vsel %vm1278, 0, %v1364
        %v1367 = vcosq.f32.pop %v1365
        %v1368 = vsinq.f32.pop %v1365
        %vm1369 = vweird.f32 %v793
        %v1370 = vadd.s32 %v1366, 3
        %v1371 = vand.u32 %v1370, 3
        %vm1372 = vcmp.lt.s32.totalorder %v1371, 2
        %vm1373 = vcmp.eq.s32.totalorder %v1371, 0
        %v1374 = vxor.u32 %v1368, 2147483648
        %v1375 = vsel %vm1373, %v1367, %v1374
        %vm1376 = vcmp.eq.s32.totalorder %v1371, 2
        %v1377 = vxor.u32 %v1367, 2147483648
        %v1378 = vsel %vm1376, %v1377, %v1368
        %v1379 = vsel %vm1372, %v1375, %v1378
        %v1380 = vsel %vm1369, nan, %v1379
        %v1381 = vand.u32 2147483647, %v794
        %vm1382 = vcmp.le.f32.partialorder %v1381, 0.7853982
        %vm1383 = vcmp.lt.s32.totalorder %v794, 0
        %v1384 = vand.u32 %v794, 2139095040
        %v1385 = vshrl.u32 %v1384, 23
        %v1386 = vsub.s32 %v1385, 127
        %v1387 = vand.u32 2147483647, %v794
        %v1388 = vand.u32 %v1387, 8388607
        %v1389 = vor.u32 %v1388, 8388608
        %v1390 = vsub.s32 0, %v1389
        %v1391 = vadd.s32 %v1386, 1
        %vm1392 = vcmp.gt.s32.totalorder %v1391, 0
        %v1393 = vsel %vm1392, %v1391, 0
        %v1394 = vshrl.u32 %v1393, 5
        %v1395 = vand.u32 %v1393, 31
        %v1396 = vsub.s32 32, %v1395
        %v1397 = vshrl.u32 683565275, %v1396
        %v1398 = vshll.u32 683565275, %v1395
        %v1399 = vshrl.u32 2475754826, %v1396
        %v1400 = vor.u32 %v1398, %v1399
        %v1401 = vshll.u32 2475754826, %v1395
        %v1402 = vshrl.u32 2131351028, %v1396
        %v1403 = vor.u32 %v1401, %v1402
        %v1404 = vshll.u32 2131351028, %v1395
        %v1405 = vshrl.u32 2102212464, %v1396
        %v1406 = vor.u32 %v1404, %v1405
        %v1407 = vshll.u32 2102212464, %v1395
        %v1408 = vshrl.u32 920167782, %v1396
        %v1409 = vor.u32 %v1407, %v1408
        %v1410 = vshll.u32 920167782, %v1395
        %v1411 = vshrl.u32 1326507024, %v1396
        %v1412 = vor.u32 %v1410, %v1411
        %vm1413 = vcmp.lt.s32.totalorder %v1394, 1
        %vm1414 = vcmp.lt.s32.totalorder %v1394, 2
        %vm1415 = vcmp.lt.s32.totalorder %v1394, 3
        %vm1416 = vcmp.lt.s32.totalorder %v1394, 4
        %v1417 = vsel %vm1413, %v1397, %v1400
        %v1418 = vsel %vm1416, %v1406, 2102212464
        %v1419 = vsel %vm1415, %v1403, %v1418
        %v1420 = vsel %vm1414, %v1417, %v1419
        %v1421 = vsel %vm1413, %v1400, %v1403
        %v1422 = vsel %vm1416, %v1409, 920167782
        %v1423 = vsel %vm1415, %v1406, %v1422
        %v1424 = vsel %vm1414, %v1421, %v1423
        %v1425 = vsel %vm1413, %v1403, %v1406
        %v1426 = vsel %vm1416, %v1412, 1326507024
        %v1427 = vsel %vm1415, %v1409, %v1426
        %v1428 = vsel %vm1414, %v1425, %v1427
        %v1429 = vshll.u32 %v1389, 8
        %v1430 = vmul.u32.u64.compose %v1429, %v1428
        %v1431 = vextract.low.u32 %v1430
        %v1432 = vextract.high.u32 %v1430
        %v1433 = vmul.u32.u64.compose %v1429, %v1424
        %v1434 = vextract.low.u32 %v1433
        %v1435 = vextract.high.u32 %v1433
        %v1436 = vmul.u32 %v1429, %v1420
        %v1437 = vadd.s32 %v1432, %v1434
        %vm1438 = vc.u32 %v1432, %v1434
        %v1439 = vadd.s32 %v1435, 1
        %v1440 = vsel %vm1438, %v1439, %v1435
        %v1441 = vadd.s32 %v1436, %v1440
        %v1442 = vadd.s32 %v1441, 536870912
        %v1443 = vshrl.u32 %v1442, 30
        %v1444 = vshll.u32 %v1443, 30
        %v1445 = vsub.s32 %v1441, %v1444
        %vm1446 = vcmp.lt.s32.totalorder %v1445, 0
        %v1447 = vsub.s32 0, %v1445
        %v1448 = vsel %vm1446, %v1447, %v1445
        %v1449 = vclz %v1448
        %v1450 = vsub.s32 %v1449, 2
        %vm1451 = vcmp.gt.s32.totalorder 0, %v1450
        %v1452 = vsel %vm1451, 0, %v1450
        %v1453 = vsub.s32 32, %v1452
        %v1454 = vshll.u32 %v1445, %v1452
        %v1455 = vshrl.u32 %v1437, %v1453
        %v1456 = vor.u32 %v1454, %v1455
        %v1457 = vsub.s32 4294967266, %v1452
        %v1458 = vadd.s32 %v1457, 127
        %v1459 = vshll.u32 %v1458, 23
        %v1460 = vor.u32 4788187, %v1459
        %v1461 = vand.u32 2147483647, %v1460
        %v1463 = vcvt.s32.f32 %v1456
        %v1464 = vmul.f32 %v1463, %v1461
        %v1465 = vxor.u32 %v1464, 2147483648
        %v1466 = vsel %vm1383, %v1465, %v1464
        %v1467 = vsub.s32 4, %v1443
        %v1468 = vsel %vm1383, %v1467, %v1443
        %v1469 = vsel %vm1382, %v794, %v1466
        %v1470 = vsel %vm1382, 0, %v1468
        %v1471 = vcosq.f32.pop %v1469
        %v1472 = vsinq.f32.pop %v1469
        %vm1473 = vweird.f32 %v794
        %v1474 = vadd.s32 %v1470, 3
        %v1475 = vand.u32 %v1474, 3
        %vm1476 = vcmp.lt.s32.totalorder %v1475, 2
        %vm1477 = vcmp.eq.s32.totalorder %v1475, 0
        %v1478 = vxor.u32 %v1472, 2147483648
        %v1479 = vsel %vm1477, %v1471, %v1478
        %vm1480 = vcmp.eq.s32.totalorder %v1475, 2
        %v1481 = vxor.u32 %v1471, 2147483648
        %v1482 = vsel %vm1480, %v1481, %v1472
        %v1483 = vsel %vm1476, %v1479, %v1482
        %v1484 = vsel %vm1473, nan, %v1483
        %v1485 = vand.u32 2147483647, %v795
        %vm1486 = vcmp.le.f32.partialorder %v1485, 0.7853982
        %vm1487 = vcmp.lt.s32.totalorder %v795, 0
        %v1488 = vand.u32 %v795, 2139095040
        %v1489 = vshrl.u32 %v1488, 23
        %v1490 = vsub.s32 %v1489, 127
        %v1491 = vand.u32 2147483647, %v795
        %v1492 = vand.u32 %v1491, 8388607
        %v1493 = vor.u32 %v1492, 8388608
        %v1494 = vsub.s32 0, %v1493
        %v1495 = vadd.s32 %v1490, 1
        %vm1496 = vcmp.gt.s32.totalorder %v1495, 0
        %v1497 = vsel %vm1496, %v1495, 0
        %v1498 = vshrl.u32 %v1497, 5
        %v1499 = vand.u32 %v1497, 31
        %v1500 = vsub.s32 32, %v1499
        %v1501 = vshrl.u32 683565275, %v1500
        %v1502 = vshll.u32 683565275, %v1499
        %v1503 = vshrl.u32 2475754826, %v1500
        %v1504 = vor.u32 %v1502, %v1503
        %v1505 = vshll.u32 2475754826, %v1499
        %v1506 = vshrl.u32 2131351028, %v1500
        %v1507 = vor.u32 %v1505, %v1506
        %v1508 = vshll.u32 2131351028, %v1499
        %v1509 = vshrl.u32 2102212464, %v1500
        %v1510 = vor.u32 %v1508, %v1509
        %v1511 = vshll.u32 2102212464, %v1499
        %v1512 = vshrl.u32 920167782, %v1500
        %v1513 = vor.u32 %v1511, %v1512
        %v1514 = vshll.u32 920167782, %v1499
        %v1515 = vshrl.u32 1326507024, %v1500
        %v1516 = vor.u32 %v1514, %v1515
        %vm1517 = vcmp.lt.s32.totalorder %v1498, 1
        %vm1518 = vcmp.lt.s32.totalorder %v1498, 2
        %vm1519 = vcmp.lt.s32.totalorder %v1498, 3
        %vm1520 = vcmp.lt.s32.totalorder %v1498, 4
        %v1521 = vsel %vm1517, %v1501, %v1504
        %v1522 = vsel %vm1520, %v1510, 2102212464
        %v1523 = vsel %vm1519, %v1507, %v1522
        %v1524 = vsel %vm1518, %v1521, %v1523
        %v1525 = vsel %vm1517, %v1504, %v1507
        %v1526 = vsel %vm1520, %v1513, 920167782
        %v1527 = vsel %vm1519, %v1510, %v1526
        %v1528 = vsel %vm1518, %v1525, %v1527
        %v1529 = vsel %vm1517, %v1507, %v1510
        %v1530 = vsel %vm1520, %v1516, 1326507024
        %v1531 = vsel %vm1519, %v1513, %v1530
        %v1532 = vsel %vm1518, %v1529, %v1531
        %v1533 = vshll.u32 %v1493, 8
        %v1534 = vmul.u32.u64.compose %v1533, %v1532
        %v1535 = vextract.low.u32 %v1534
        %v1536 = vextract.high.u32 %v1534
        %v1537 = vmul.u32.u64.compose %v1533, %v1528
        %v1538 = vextract.low.u32 %v1537
        %v1539 = vextract.high.u32 %v1537
        %v1540 = vmul.u32 %v1533, %v1524
        %v1541 = vadd.s32 %v1536, %v1538
        %vm1542 = vc.u32 %v1536, %v1538
        %v1543 = vadd.s32 %v1539, 1
        %v1544 = vsel %vm1542, %v1543, %v1539
        %v1545 = vadd.s32 %v1540, %v1544
        %v1546 = vadd.s32 %v1545, 536870912
        %v1547 = vshrl.u32 %v1546, 30
        %v1548 = vshll.u32 %v1547, 30
        %v1549 = vsub.s32 %v1545, %v1548
        %vm1550 = vcmp.lt.s32.totalorder %v1549, 0
        %v1551 = vsub.s32 0, %v1549
        %v1552 = vsel %vm1550, %v1551, %v1549
        %v1553 = vclz %v1552
        %v1554 = vsub.s32 %v1553, 2
        %vm1555 = vcmp.gt.s32.totalorder 0, %v1554
        %v1556 = vsel %vm1555, 0, %v1554
        %v1557 = vsub.s32 32, %v1556
        %v1558 = vshll.u32 %v1549, %v1556
        %v1559 = vshrl.u32 %v1541, %v1557
        %v1560 = vor.u32 %v1558, %v1559
        %v1561 = vsub.s32 4294967266, %v1556
        %v1562 = vadd.s32 %v1561, 127
        %v1563 = vshll.u32 %v1562, 23
        %v1564 = vor.u32 4788187, %v1563
        %v1565 = vand.u32 2147483647, %v1564
        %v1567 = vcvt.s32.f32 %v1560
        %v1568 = vmul.f32 %v1567, %v1565
        %v1569 = vxor.u32 %v1568, 2147483648
        %v1570 = vsel %vm1487, %v1569, %v1568
        %v1571 = vsub.s32 4, %v1547
        %v1572 = vsel %vm1487, %v1571, %v1547
        %v1573 = vsel %vm1486, %v795, %v1570
        %v1574 = vsel %vm1486, 0, %v1572
        %v1575 = vcosq.f32.pop %v1573
        %v1576 = vsinq.f32.pop %v1573
        %vm1577 = vweird.f32 %v795
        %v1578 = vadd.s32 %v1574, 3
        %v1579 = vand.u32 %v1578, 3
        %vm1580 = vcmp.lt.s32.totalorder %v1579, 2
        %vm1581 = vcmp.eq.s32.totalorder %v1579, 0
        %v1582 = vxor.u32 %v1576, 2147483648
        %v1583 = vsel %vm1581, %v1575, %v1582
        %vm1584 = vcmp.eq.s32.totalorder %v1579, 2
        %v1585 = vxor.u32 %v1575, 2147483648
        %v1586 = vsel %vm1584, %v1585, %v1576
        %v1587 = vsel %vm1580, %v1583, %v1586
        %v1588 = vsel %vm1577, nan, %v1587
        %v1589 = vand.u32 2147483647, %v796
        %vm1590 = vcmp.le.f32.partialorder %v1589, 0.7853982
        %vm1591 = vcmp.lt.s32.totalorder %v796, 0
        %v1592 = vand.u32 %v796, 2139095040
        %v1593 = vshrl.u32 %v1592, 23
        %v1594 = vsub.s32 %v1593, 127
        %v1595 = vand.u32 2147483647, %v796
        %v1596 = vand.u32 %v1595, 8388607
        %v1597 = vor.u32 %v1596, 8388608
        %v1598 = vsub.s32 0, %v1597
        %v1599 = vadd.s32 %v1594, 1
        %vm1600 = vcmp.gt.s32.totalorder %v1599, 0
        %v1601 = vsel %vm1600, %v1599, 0
        %v1602 = vshrl.u32 %v1601, 5
        %v1603 = vand.u32 %v1601, 31
        %v1604 = vsub.s32 32, %v1603
        %v1605 = vshrl.u32 683565275, %v1604
        %v1606 = vshll.u32 683565275, %v1603
        %v1607 = vshrl.u32 2475754826, %v1604
        %v1608 = vor.u32 %v1606, %v1607
        %v1609 = vshll.u32 2475754826, %v1603
        %v1610 = vshrl.u32 2131351028, %v1604
        %v1611 = vor.u32 %v1609, %v1610
        %v1612 = vshll.u32 2131351028, %v1603
        %v1613 = vshrl.u32 2102212464, %v1604
        %v1614 = vor.u32 %v1612, %v1613
        %v1615 = vshll.u32 2102212464, %v1603
        %v1616 = vshrl.u32 920167782, %v1604
        %v1617 = vor.u32 %v1615, %v1616
        %v1618 = vshll.u32 920167782, %v1603
        %v1619 = vshrl.u32 1326507024, %v1604
        %v1620 = vor.u32 %v1618, %v1619
        %vm1621 = vcmp.lt.s32.totalorder %v1602, 1
        %vm1622 = vcmp.lt.s32.totalorder %v1602, 2
        %vm1623 = vcmp.lt.s32.totalorder %v1602, 3
        %vm1624 = vcmp.lt.s32.totalorder %v1602, 4
        %v1625 = vsel %vm1621, %v1605, %v1608
        %v1626 = vsel %vm1624, %v1614, 2102212464
        %v1627 = vsel %vm1623, %v1611, %v1626
        %v1628 = vsel %vm1622, %v1625, %v1627
        %v1629 = vsel %vm1621, %v1608, %v1611
        %v1630 = vsel %vm1624, %v1617, 920167782
        %v1631 = vsel %vm1623, %v1614, %v1630
        %v1632 = vsel %vm1622, %v1629, %v1631
        %v1633 = vsel %vm1621, %v1611, %v1614
        %v1634 = vsel %vm1624, %v1620, 1326507024
        %v1635 = vsel %vm1623, %v1617, %v1634
        %v1636 = vsel %vm1622, %v1633, %v1635
        %v1637 = vshll.u32 %v1597, 8
        %v1638 = vmul.u32.u64.compose %v1637, %v1636
        %v1639 = vextract.low.u32 %v1638
        %v1640 = vextract.high.u32 %v1638
        %v1641 = vmul.u32.u64.compose %v1637, %v1632
        %v1642 = vextract.low.u32 %v1641
        %v1643 = vextract.high.u32 %v1641
        %v1644 = vmul.u32 %v1637, %v1628
        %v1645 = vadd.s32 %v1640, %v1642
        %vm1646 = vc.u32 %v1640, %v1642
        %v1647 = vadd.s32 %v1643, 1
        %v1648 = vsel %vm1646, %v1647, %v1643
        %v1649 = vadd.s32 %v1644, %v1648
        %v1650 = vadd.s32 %v1649, 536870912
        %v1651 = vshrl.u32 %v1650, 30
        %v1652 = vshll.u32 %v1651, 30
        %v1653 = vsub.s32 %v1649, %v1652
        %vm1654 = vcmp.lt.s32.totalorder %v1653, 0
        %v1655 = vsub.s32 0, %v1653
        %v1656 = vsel %vm1654, %v1655, %v1653
        %v1657 = vclz %v1656
        %v1658 = vsub.s32 %v1657, 2
        %vm1659 = vcmp.gt.s32.totalorder 0, %v1658
        %v1660 = vsel %vm1659, 0, %v1658
        %v1661 = vsub.s32 32, %v1660
        %v1662 = vshll.u32 %v1653, %v1660
        %v1663 = vshrl.u32 %v1645, %v1661
        %v1664 = vor.u32 %v1662, %v1663
        %v1665 = vsub.s32 4294967266, %v1660
        %v1666 = vadd.s32 %v1665, 127
        %v1667 = vshll.u32 %v1666, 23
        %v1668 = vor.u32 4788187, %v1667
        %v1669 = vand.u32 2147483647, %v1668
        %v1671 = vcvt.s32.f32 %v1664
        %v1672 = vmul.f32 %v1671, %v1669
        %v1673 = vxor.u32 %v1672, 2147483648
        %v1674 = vsel %vm1591, %v1673, %v1672
        %v1675 = vsub.s32 4, %v1651
        %v1676 = vsel %vm1591, %v1675, %v1651
        %v1677 = vsel %vm1590, %v796, %v1674
        %v1678 = vsel %vm1590, 0, %v1676
        %v1679 = vcosq.f32.pop %v1677
        %v1680 = vsinq.f32.pop %v1677
        %vm1681 = vweird.f32 %v796
        %v1682 = vadd.s32 %v1678, 3
        %v1683 = vand.u32 %v1682, 3
        %vm1684 = vcmp.lt.s32.totalorder %v1683, 2
        %vm1685 = vcmp.eq.s32.totalorder %v1683, 0
        %v1686 = vxor.u32 %v1680, 2147483648
        %v1687 = vsel %vm1685, %v1679, %v1686
        %vm1688 = vcmp.eq.s32.totalorder %v1683, 2
        %v1689 = vxor.u32 %v1679, 2147483648
        %v1690 = vsel %vm1688, %v1689, %v1680
        %v1691 = vsel %vm1684, %v1687, %v1690
        %v1692 = vsel %vm1681, nan, %v1691
        %v1693 = vand.u32 2147483647, %v797
        %vm1694 = vcmp.le.f32.partialorder %v1693, 0.7853982
        %vm1695 = vcmp.lt.s32.totalorder %v797, 0
        %v1696 = vand.u32 %v797, 2139095040
        %v1697 = vshrl.u32 %v1696, 23
        %v1698 = vsub.s32 %v1697, 127
        %v1699 = vand.u32 2147483647, %v797
        %v1700 = vand.u32 %v1699, 8388607
        %v1701 = vor.u32 %v1700, 8388608
        %v1702 = vsub.s32 0, %v1701
        %v1703 = vadd.s32 %v1698, 1
        %vm1704 = vcmp.gt.s32.totalorder %v1703, 0
        %v1705 = vsel %vm1704, %v1703, 0
        %v1706 = vshrl.u32 %v1705, 5
        %v1707 = vand.u32 %v1705, 31
        %v1708 = vsub.s32 32, %v1707
        %v1709 = vshrl.u32 683565275, %v1708
        %v1710 = vshll.u32 683565275, %v1707
        %v1711 = vshrl.u32 2475754826, %v1708
        %v1712 = vor.u32 %v1710, %v1711
        %v1713 = vshll.u32 2475754826, %v1707
        %v1714 = vshrl.u32 2131351028, %v1708
        %v1715 = vor.u32 %v1713, %v1714
        %v1716 = vshll.u32 2131351028, %v1707
        %v1717 = vshrl.u32 2102212464, %v1708
        %v1718 = vor.u32 %v1716, %v1717
        %v1719 = vshll.u32 2102212464, %v1707
        %v1720 = vshrl.u32 920167782, %v1708
        %v1721 = vor.u32 %v1719, %v1720
        %v1722 = vshll.u32 920167782, %v1707
        %v1723 = vshrl.u32 1326507024, %v1708
        %v1724 = vor.u32 %v1722, %v1723
        %vm1725 = vcmp.lt.s32.totalorder %v1706, 1
        %vm1726 = vcmp.lt.s32.totalorder %v1706, 2
        %vm1727 = vcmp.lt.s32.totalorder %v1706, 3
        %vm1728 = vcmp.lt.s32.totalorder %v1706, 4
        %v1729 = vsel %vm1725, %v1709, %v1712
        %v1730 = vsel %vm1728, %v1718, 2102212464
        %v1731 = vsel %vm1727, %v1715, %v1730
        %v1732 = vsel %vm1726, %v1729, %v1731
        %v1733 = vsel %vm1725, %v1712, %v1715
        %v1734 = vsel %vm1728, %v1721, 920167782
        %v1735 = vsel %vm1727, %v1718, %v1734
        %v1736 = vsel %vm1726, %v1733, %v1735
        %v1737 = vsel %vm1725, %v1715, %v1718
        %v1738 = vsel %vm1728, %v1724, 1326507024
        %v1739 = vsel %vm1727, %v1721, %v1738
        %v1740 = vsel %vm1726, %v1737, %v1739
        %v1741 = vshll.u32 %v1701, 8
        %v1742 = vmul.u32.u64.compose %v1741, %v1740
        %v1743 = vextract.low.u32 %v1742
        %v1744 = vextract.high.u32 %v1742
        %v1745 = vmul.u32.u64.compose %v1741, %v1736
        %v1746 = vextract.low.u32 %v1745
        %v1747 = vextract.high.u32 %v1745
        %v1748 = vmul.u32 %v1741, %v1732
        %v1749 = vadd.s32 %v1744, %v1746
        %vm1750 = vc.u32 %v1744, %v1746
        %v1751 = vadd.s32 %v1747, 1
        %v1752 = vsel %vm1750, %v1751, %v1747
        %v1753 = vadd.s32 %v1748, %v1752
        %v1754 = vadd.s32 %v1753, 536870912
        %v1755 = vshrl.u32 %v1754, 30
        %v1756 = vshll.u32 %v1755, 30
        %v1757 = vsub.s32 %v1753, %v1756
        %vm1758 = vcmp.lt.s32.totalorder %v1757, 0
        %v1759 = vsub.s32 0, %v1757
        %v1760 = vsel %vm1758, %v1759, %v1757
        %v1761 = vclz %v1760
        %v1762 = vsub.s32 %v1761, 2
        %vm1763 = vcmp.gt.s32.totalorder 0, %v1762
        %v1764 = vsel %vm1763, 0, %v1762
        %v1765 = vsub.s32 32, %v1764
        %v1766 = vshll.u32 %v1757, %v1764
        %v1767 = vshrl.u32 %v1749, %v1765
        %v1768 = vor.u32 %v1766, %v1767
        %v1769 = vsub.s32 4294967266, %v1764
        %v1770 = vadd.s32 %v1769, 127
        %v1771 = vshll.u32 %v1770, 23
        %v1772 = vor.u32 4788187, %v1771
        %v1773 = vand.u32 2147483647, %v1772
        %v1775 = vcvt.s32.f32 %v1768
        %v1776 = vmul.f32 %v1775, %v1773
        %v1777 = vxor.u32 %v1776, 2147483648
        %v1778 = vsel %vm1695, %v1777, %v1776
        %v1779 = vsub.s32 4, %v1755
        %v1780 = vsel %vm1695, %v1779, %v1755
        %v1781 = vsel %vm1694, %v797, %v1778
        %v1782 = vsel %vm1694, 0, %v1780
        %v1783 = vcosq.f32.pop %v1781
        %v1784 = vsinq.f32.pop %v1781
        %vm1785 = vweird.f32 %v797
        %v1786 = vadd.s32 %v1782, 3
        %v1787 = vand.u32 %v1786, 3
        %vm1788 = vcmp.lt.s32.totalorder %v1787, 2
        %vm1789 = vcmp.eq.s32.totalorder %v1787, 0
        %v1790 = vxor.u32 %v1784, 2147483648
        %v1791 = vsel %vm1789, %v1783, %v1790
        %vm1792 = vcmp.eq.s32.totalorder %v1787, 2
        %v1793 = vxor.u32 %v1783, 2147483648
        %v1794 = vsel %vm1792, %v1793, %v1784
        %v1795 = vsel %vm1788, %v1791, %v1794
        %v1796 = vsel %vm1785, nan, %v1795
        %v1797 = vand.u32 2147483647, %v798
        %vm1798 = vcmp.le.f32.partialorder %v1797, 0.7853982
        %vm1799 = vcmp.lt.s32.totalorder %v798, 0
        %v1800 = vand.u32 %v798, 2139095040
        %v1801 = vshrl.u32 %v1800, 23
        %v1802 = vsub.s32 %v1801, 127
        %v1803 = vand.u32 2147483647, %v798
        %v1804 = vand.u32 %v1803, 8388607
        %v1805 = vor.u32 %v1804, 8388608
        %v1806 = vsub.s32 0, %v1805
        %v1807 = vadd.s32 %v1802, 1
        %vm1808 = vcmp.gt.s32.totalorder %v1807, 0
        %v1809 = vsel %vm1808, %v1807, 0
        %v1810 = vshrl.u32 %v1809, 5
        %v1811 = vand.u32 %v1809, 31
        %v1812 = vsub.s32 32, %v1811
        %v1813 = vshrl.u32 683565275, %v1812
        %v1814 = vshll.u32 683565275, %v1811
        %v1815 = vshrl.u32 2475754826, %v1812
        %v1816 = vor.u32 %v1814, %v1815
        %v1817 = vshll.u32 2475754826, %v1811
        %v1818 = vshrl.u32 2131351028, %v1812
        %v1819 = vor.u32 %v1817, %v1818
        %v1820 = vshll.u32 2131351028, %v1811
        %v1821 = vshrl.u32 2102212464, %v1812
        %v1822 = vor.u32 %v1820, %v1821
        %v1823 = vshll.u32 2102212464, %v1811
        %v1824 = vshrl.u32 920167782, %v1812
        %v1825 = vor.u32 %v1823, %v1824
        %v1826 = vshll.u32 920167782, %v1811
        %v1827 = vshrl.u32 1326507024, %v1812
        %v1828 = vor.u32 %v1826, %v1827
        %vm1829 = vcmp.lt.s32.totalorder %v1810, 1
        %vm1830 = vcmp.lt.s32.totalorder %v1810, 2
        %vm1831 = vcmp.lt.s32.totalorder %v1810, 3
        %vm1832 = vcmp.lt.s32.totalorder %v1810, 4
        %v1833 = vsel %vm1829, %v1813, %v1816
        %v1834 = vsel %vm1832, %v1822, 2102212464
        %v1835 = vsel %vm1831, %v1819, %v1834
        %v1836 = vsel %vm1830, %v1833, %v1835
        %v1837 = vsel %vm1829, %v1816, %v1819
        %v1838 = vsel %vm1832, %v1825, 920167782
        %v1839 = vsel %vm1831, %v1822, %v1838
        %v1840 = vsel %vm1830, %v1837, %v1839
        %v1841 = vsel %vm1829, %v1819, %v1822
        %v1842 = vsel %vm1832, %v1828, 1326507024
        %v1843 = vsel %vm1831, %v1825, %v1842
        %v1844 = vsel %vm1830, %v1841, %v1843
        %v1845 = vshll.u32 %v1805, 8
        %v1846 = vmul.u32.u64.compose %v1845, %v1844
        %v1847 = vextract.low.u32 %v1846
        %v1848 = vextract.high.u32 %v1846
        %v1849 = vmul.u32.u64.compose %v1845, %v1840
        %v1850 = vextract.low.u32 %v1849
        %v1851 = vextract.high.u32 %v1849
        %v1852 = vmul.u32 %v1845, %v1836
        %v1853 = vadd.s32 %v1848, %v1850
        %vm1854 = vc.u32 %v1848, %v1850
        %v1855 = vadd.s32 %v1851, 1
        %v1856 = vsel %vm1854, %v1855, %v1851
        %v1857 = vadd.s32 %v1852, %v1856
        %v1858 = vadd.s32 %v1857, 536870912
        %v1859 = vshrl.u32 %v1858, 30
        %v1860 = vshll.u32 %v1859, 30
        %v1861 = vsub.s32 %v1857, %v1860
        %vm1862 = vcmp.lt.s32.totalorder %v1861, 0
        %v1863 = vsub.s32 0, %v1861
        %v1864 = vsel %vm1862, %v1863, %v1861
        %v1865 = vclz %v1864
        %v1866 = vsub.s32 %v1865, 2
        %vm1867 = vcmp.gt.s32.totalorder 0, %v1866
        %v1868 = vsel %vm1867, 0, %v1866
        %v1869 = vsub.s32 32, %v1868
        %v1870 = vshll.u32 %v1861, %v1868
        %v1871 = vshrl.u32 %v1853, %v1869
        %v1872 = vor.u32 %v1870, %v1871
        %v1873 = vsub.s32 4294967266, %v1868
        %v1874 = vadd.s32 %v1873, 127
        %v1875 = vshll.u32 %v1874, 23
        %v1876 = vor.u32 4788187, %v1875
        %v1877 = vand.u32 2147483647, %v1876
        %v1879 = vcvt.s32.f32 %v1872
        %v1880 = vmul.f32 %v1879, %v1877
        %v1881 = vxor.u32 %v1880, 2147483648
        %v1882 = vsel %vm1799, %v1881, %v1880
        %v1883 = vsub.s32 4, %v1859
        %v1884 = vsel %vm1799, %v1883, %v1859
        %v1885 = vsel %vm1798, %v798, %v1882
        %v1886 = vsel %vm1798, 0, %v1884
        %v1887 = vcosq.f32.pop %v1885
        %v1888 = vsinq.f32.pop %v1885
        %vm1889 = vweird.f32 %v798
        %v1890 = vadd.s32 %v1886, 3
        %v1891 = vand.u32 %v1890, 3
        %vm1892 = vcmp.lt.s32.totalorder %v1891, 2
        %vm1893 = vcmp.eq.s32.totalorder %v1891, 0
        %v1894 = vxor.u32 %v1888, 2147483648
        %v1895 = vsel %vm1893, %v1887, %v1894
        %vm1896 = vcmp.eq.s32.totalorder %v1891, 2
        %v1897 = vxor.u32 %v1887, 2147483648
        %v1898 = vsel %vm1896, %v1897, %v1888
        %v1899 = vsel %vm1892, %v1895, %v1898
        %v1900 = vsel %vm1889, nan, %v1899
        %v1901 = vand.u32 2147483647, %v799
        %vm1902 = vcmp.le.f32.partialorder %v1901, 0.7853982
        %vm1903 = vcmp.lt.s32.totalorder %v799, 0
        %v1904 = vand.u32 %v799, 2139095040
        %v1905 = vshrl.u32 %v1904, 23
        %v1906 = vsub.s32 %v1905, 127
        %v1907 = vand.u32 2147483647, %v799
        %v1908 = vand.u32 %v1907, 8388607
        %v1909 = vor.u32 %v1908, 8388608
        %v1910 = vsub.s32 0, %v1909
        %v1911 = vadd.s32 %v1906, 1
        %vm1912 = vcmp.gt.s32.totalorder %v1911, 0
        %v1913 = vsel %vm1912, %v1911, 0
        %v1914 = vshrl.u32 %v1913, 5
        %v1915 = vand.u32 %v1913, 31
        %v1916 = vsub.s32 32, %v1915
        %v1917 = vshrl.u32 683565275, %v1916
        %v1918 = vshll.u32 683565275, %v1915
        %v1919 = vshrl.u32 2475754826, %v1916
        %v1920 = vor.u32 %v1918, %v1919
        %v1921 = vshll.u32 2475754826, %v1915
        %v1922 = vshrl.u32 2131351028, %v1916
        %v1923 = vor.u32 %v1921, %v1922
        %v1924 = vshll.u32 2131351028, %v1915
        %v1925 = vshrl.u32 2102212464, %v1916
        %v1926 = vor.u32 %v1924, %v1925
        %v1927 = vshll.u32 2102212464, %v1915
        %v1928 = vshrl.u32 920167782, %v1916
        %v1929 = vor.u32 %v1927, %v1928
        %v1930 = vshll.u32 920167782, %v1915
        %v1931 = vshrl.u32 1326507024, %v1916
        %v1932 = vor.u32 %v1930, %v1931
        %vm1933 = vcmp.lt.s32.totalorder %v1914, 1
        %vm1934 = vcmp.lt.s32.totalorder %v1914, 2
        %vm1935 = vcmp.lt.s32.totalorder %v1914, 3
        %vm1936 = vcmp.lt.s32.totalorder %v1914, 4
        %v1937 = vsel %vm1933, %v1917, %v1920
        %v1938 = vsel %vm1936, %v1926, 2102212464
        %v1939 = vsel %vm1935, %v1923, %v1938
        %v1940 = vsel %vm1934, %v1937, %v1939
        %v1941 = vsel %vm1933, %v1920, %v1923
        %v1942 = vsel %vm1936, %v1929, 920167782
        %v1943 = vsel %vm1935, %v1926, %v1942
        %v1944 = vsel %vm1934, %v1941, %v1943
        %v1945 = vsel %vm1933, %v1923, %v1926
        %v1946 = vsel %vm1936, %v1932, 1326507024
        %v1947 = vsel %vm1935, %v1929, %v1946
        %v1948 = vsel %vm1934, %v1945, %v1947
        %v1949 = vshll.u32 %v1909, 8
        %v1950 = vmul.u32.u64.compose %v1949, %v1948
        %v1951 = vextract.low.u32 %v1950
        %v1952 = vextract.high.u32 %v1950
        %v1953 = vmul.u32.u64.compose %v1949, %v1944
        %v1954 = vextract.low.u32 %v1953
        %v1955 = vextract.high.u32 %v1953
        %v1956 = vmul.u32 %v1949, %v1940
        %v1957 = vadd.s32 %v1952, %v1954
        %vm1958 = vc.u32 %v1952, %v1954
        %v1959 = vadd.s32 %v1955, 1
        %v1960 = vsel %vm1958, %v1959, %v1955
        %v1961 = vadd.s32 %v1956, %v1960
        %v1962 = vadd.s32 %v1961, 536870912
        %v1963 = vshrl.u32 %v1962, 30
        %v1964 = vshll.u32 %v1963, 30
        %v1965 = vsub.s32 %v1961, %v1964
        %vm1966 = vcmp.lt.s32.totalorder %v1965, 0
        %v1967 = vsub.s32 0, %v1965
        %v1968 = vsel %vm1966, %v1967, %v1965
        %v1969 = vclz %v1968
        %v1970 = vsub.s32 %v1969, 2
        %vm1971 = vcmp.gt.s32.totalorder 0, %v1970
        %v1972 = vsel %vm1971, 0, %v1970
        %v1973 = vsub.s32 32, %v1972
        %v1974 = vshll.u32 %v1965, %v1972
        %v1975 = vshrl.u32 %v1957, %v1973
        %v1976 = vor.u32 %v1974, %v1975
        %v1977 = vsub.s32 4294967266, %v1972
        %v1978 = vadd.s32 %v1977, 127
        %v1979 = vshll.u32 %v1978, 23
        %v1980 = vor.u32 4788187, %v1979
        %v1981 = vand.u32 2147483647, %v1980
        %v1983 = vcvt.s32.f32 %v1976
        %v1984 = vmul.f32 %v1983, %v1981
        %v1985 = vxor.u32 %v1984, 2147483648
        %v1986 = vsel %vm1903, %v1985, %v1984
        %v1987 = vsub.s32 4, %v1963
        %v1988 = vsel %vm1903, %v1987, %v1963
        %v1989 = vsel %vm1902, %v799, %v1986
        %v1990 = vsel %vm1902, 0, %v1988
        %v1991 = vcosq.f32.pop %v1989
        %v1992 = vsinq.f32.pop %v1989
        %vm1993 = vweird.f32 %v799
        %v1994 = vadd.s32 %v1990, 3
        %v1995 = vand.u32 %v1994, 3
        %vm1996 = vcmp.lt.s32.totalorder %v1995, 2
        %vm1997 = vcmp.eq.s32.totalorder %v1995, 0
        %v1998 = vxor.u32 %v1992, 2147483648
        %v1999 = vsel %vm1997, %v1991, %v1998
        %vm2000 = vcmp.eq.s32.totalorder %v1995, 2
        %v2001 = vxor.u32 %v1991, 2147483648
        %v2002 = vsel %vm2000, %v2001, %v1992
        %v2003 = vsel %vm1996, %v1999, %v2002
        %v2004 = vsel %vm1993, nan, %v2003
        %v2005 = vand.u32 2147483647, %v800
        %vm2006 = vcmp.le.f32.partialorder %v2005, 0.7853982
        %vm2007 = vcmp.lt.s32.totalorder %v800, 0
        %v2008 = vand.u32 %v800, 2139095040
        %v2009 = vshrl.u32 %v2008, 23
        %v2010 = vsub.s32 %v2009, 127
        %v2011 = vand.u32 2147483647, %v800
        %v2012 = vand.u32 %v2011, 8388607
        %v2013 = vor.u32 %v2012, 8388608
        %v2014 = vsub.s32 0, %v2013
        %v2015 = vadd.s32 %v2010, 1
        %vm2016 = vcmp.gt.s32.totalorder %v2015, 0
        %v2017 = vsel %vm2016, %v2015, 0
        %v2018 = vshrl.u32 %v2017, 5
        %v2019 = vand.u32 %v2017, 31
        %v2020 = vsub.s32 32, %v2019
        %v2021 = vshrl.u32 683565275, %v2020
        %v2022 = vshll.u32 683565275, %v2019
        %v2023 = vshrl.u32 2475754826, %v2020
        %v2024 = vor.u32 %v2022, %v2023
        %v2025 = vshll.u32 2475754826, %v2019
        %v2026 = vshrl.u32 2131351028, %v2020
        %v2027 = vor.u32 %v2025, %v2026
        %v2028 = vshll.u32 2131351028, %v2019
        %v2029 = vshrl.u32 2102212464, %v2020
        %v2030 = vor.u32 %v2028, %v2029
        %v2031 = vshll.u32 2102212464, %v2019
        %v2032 = vshrl.u32 920167782, %v2020
        %v2033 = vor.u32 %v2031, %v2032
        %v2034 = vshll.u32 920167782, %v2019
        %v2035 = vshrl.u32 1326507024, %v2020
        %v2036 = vor.u32 %v2034, %v2035
        %vm2037 = vcmp.lt.s32.totalorder %v2018, 1
        %vm2038 = vcmp.lt.s32.totalorder %v2018, 2
        %vm2039 = vcmp.lt.s32.totalorder %v2018, 3
        %vm2040 = vcmp.lt.s32.totalorder %v2018, 4
        %v2041 = vsel %vm2037, %v2021, %v2024
        %v2042 = vsel %vm2040, %v2030, 2102212464
        %v2043 = vsel %vm2039, %v2027, %v2042
        %v2044 = vsel %vm2038, %v2041, %v2043
        %v2045 = vsel %vm2037, %v2024, %v2027
        %v2046 = vsel %vm2040, %v2033, 920167782
        %v2047 = vsel %vm2039, %v2030, %v2046
        %v2048 = vsel %vm2038, %v2045, %v2047
        %v2049 = vsel %vm2037, %v2027, %v2030
        %v2050 = vsel %vm2040, %v2036, 1326507024
        %v2051 = vsel %vm2039, %v2033, %v2050
        %v2052 = vsel %vm2038, %v2049, %v2051
        %v2053 = vshll.u32 %v2013, 8
        %v2054 = vmul.u32.u64.compose %v2053, %v2052
        %v2055 = vextract.low.u32 %v2054
        %v2056 = vextract.high.u32 %v2054
        %v2057 = vmul.u32.u64.compose %v2053, %v2048
        %v2058 = vextract.low.u32 %v2057
        %v2059 = vextract.high.u32 %v2057
        %v2060 = vmul.u32 %v2053, %v2044
        %v2061 = vadd.s32 %v2056, %v2058
        %vm2062 = vc.u32 %v2056, %v2058
        %v2063 = vadd.s32 %v2059, 1
        %v2064 = vsel %vm2062, %v2063, %v2059
        %v2065 = vadd.s32 %v2060, %v2064
        %v2066 = vadd.s32 %v2065, 536870912
        %v2067 = vshrl.u32 %v2066, 30
        %v2068 = vshll.u32 %v2067, 30
        %v2069 = vsub.s32 %v2065, %v2068
        %vm2070 = vcmp.lt.s32.totalorder %v2069, 0
        %v2071 = vsub.s32 0, %v2069
        %v2072 = vsel %vm2070, %v2071, %v2069
        %v2073 = vclz %v2072
        %v2074 = vsub.s32 %v2073, 2
        %vm2075 = vcmp.gt.s32.totalorder 0, %v2074
        %v2076 = vsel %vm2075, 0, %v2074
        %v2077 = vsub.s32 32, %v2076
        %v2078 = vshll.u32 %v2069, %v2076
        %v2079 = vshrl.u32 %v2061, %v2077
        %v2080 = vor.u32 %v2078, %v2079
        %v2081 = vsub.s32 4294967266, %v2076
        %v2082 = vadd.s32 %v2081, 127
        %v2083 = vshll.u32 %v2082, 23
        %v2084 = vor.u32 4788187, %v2083
        %v2085 = vand.u32 2147483647, %v2084
        %v2087 = vcvt.s32.f32 %v2080
        %v2088 = vmul.f32 %v2087, %v2085
        %v2089 = vxor.u32 %v2088, 2147483648
        %v2090 = vsel %vm2007, %v2089, %v2088
        %v2091 = vsub.s32 4, %v2067
        %v2092 = vsel %vm2007, %v2091, %v2067
        %v2093 = vsel %vm2006, %v800, %v2090
        %v2094 = vsel %vm2006, 0, %v2092
        %v2095 = vcosq.f32.pop %v2093
        %v2096 = vsinq.f32.pop %v2093
        %vm2097 = vweird.f32 %v800
        %v2098 = vadd.s32 %v2094, 3
        %v2099 = vand.u32 %v2098, 3
        %vm2100 = vcmp.lt.s32.totalorder %v2099, 2
        %vm2101 = vcmp.eq.s32.totalorder %v2099, 0
        %v2102 = vxor.u32 %v2096, 2147483648
        %v2103 = vsel %vm2101, %v2095, %v2102
        %vm2104 = vcmp.eq.s32.totalorder %v2099, 2
        %v2105 = vxor.u32 %v2095, 2147483648
        %v2106 = vsel %vm2104, %v2105, %v2096
        %v2107 = vsel %vm2100, %v2103, %v2106
        %v2108 = vsel %vm2097, nan, %v2107
        %v2109 = vand.u32 2147483647, %v801
        %vm2110 = vcmp.le.f32.partialorder %v2109, 0.7853982
        %vm2111 = vcmp.lt.s32.totalorder %v801, 0
        %v2112 = vand.u32 %v801, 2139095040
        %v2113 = vshrl.u32 %v2112, 23
        %v2114 = vsub.s32 %v2113, 127
        %v2115 = vand.u32 2147483647, %v801
        %v2116 = vand.u32 %v2115, 8388607
        %v2117 = vor.u32 %v2116, 8388608
        %v2118 = vsub.s32 0, %v2117
        %v2119 = vadd.s32 %v2114, 1
        %vm2120 = vcmp.gt.s32.totalorder %v2119, 0
        %v2121 = vsel %vm2120, %v2119, 0
        %v2122 = vshrl.u32 %v2121, 5
        %v2123 = vand.u32 %v2121, 31
        %v2124 = vsub.s32 32, %v2123
        %v2125 = vshrl.u32 683565275, %v2124
        %v2126 = vshll.u32 683565275, %v2123
        %v2127 = vshrl.u32 2475754826, %v2124
        %v2128 = vor.u32 %v2126, %v2127
        %v2129 = vshll.u32 2475754826, %v2123
        %v2130 = vshrl.u32 2131351028, %v2124
        %v2131 = vor.u32 %v2129, %v2130
        %v2132 = vshll.u32 2131351028, %v2123
        %v2133 = vshrl.u32 2102212464, %v2124
        %v2134 = vor.u32 %v2132, %v2133
        %v2135 = vshll.u32 2102212464, %v2123
        %v2136 = vshrl.u32 920167782, %v2124
        %v2137 = vor.u32 %v2135, %v2136
        %v2138 = vshll.u32 920167782, %v2123
        %v2139 = vshrl.u32 1326507024, %v2124
        %v2140 = vor.u32 %v2138, %v2139
        %vm2141 = vcmp.lt.s32.totalorder %v2122, 1
        %vm2142 = vcmp.lt.s32.totalorder %v2122, 2
        %vm2143 = vcmp.lt.s32.totalorder %v2122, 3
        %vm2144 = vcmp.lt.s32.totalorder %v2122, 4
        %v2145 = vsel %vm2141, %v2125, %v2128
        %v2146 = vsel %vm2144, %v2134, 2102212464
        %v2147 = vsel %vm2143, %v2131, %v2146
        %v2148 = vsel %vm2142, %v2145, %v2147
        %v2149 = vsel %vm2141, %v2128, %v2131
        %v2150 = vsel %vm2144, %v2137, 920167782
        %v2151 = vsel %vm2143, %v2134, %v2150
        %v2152 = vsel %vm2142, %v2149, %v2151
        %v2153 = vsel %vm2141, %v2131, %v2134
        %v2154 = vsel %vm2144, %v2140, 1326507024
        %v2155 = vsel %vm2143, %v2137, %v2154
        %v2156 = vsel %vm2142, %v2153, %v2155
        %v2157 = vshll.u32 %v2117, 8
        %v2158 = vmul.u32.u64.compose %v2157, %v2156
        %v2159 = vextract.low.u32 %v2158
        %v2160 = vextract.high.u32 %v2158
        %v2161 = vmul.u32.u64.compose %v2157, %v2152
        %v2162 = vextract.low.u32 %v2161
        %v2163 = vextract.high.u32 %v2161
        %v2164 = vmul.u32 %v2157, %v2148
        %v2165 = vadd.s32 %v2160, %v2162
        %vm2166 = vc.u32 %v2160, %v2162
        %v2167 = vadd.s32 %v2163, 1
        %v2168 = vsel %vm2166, %v2167, %v2163
        %v2169 = vadd.s32 %v2164, %v2168
        %v2170 = vadd.s32 %v2169, 536870912
        %v2171 = vshrl.u32 %v2170, 30
        %v2172 = vshll.u32 %v2171, 30
        %v2173 = vsub.s32 %v2169, %v2172
        %vm2174 = vcmp.lt.s32.totalorder %v2173, 0
        %v2175 = vsub.s32 0, %v2173
        %v2176 = vsel %vm2174, %v2175, %v2173
        %v2177 = vclz %v2176
        %v2178 = vsub.s32 %v2177, 2
        %vm2179 = vcmp.gt.s32.totalorder 0, %v2178
        %v2180 = vsel %vm2179, 0, %v2178
        %v2181 = vsub.s32 32, %v2180
        %v2182 = vshll.u32 %v2173, %v2180
        %v2183 = vshrl.u32 %v2165, %v2181
        %v2184 = vor.u32 %v2182, %v2183
        %v2185 = vsub.s32 4294967266, %v2180
        %v2186 = vadd.s32 %v2185, 127
        %v2187 = vshll.u32 %v2186, 23
        %v2188 = vor.u32 4788187, %v2187
        %v2189 = vand.u32 2147483647, %v2188
        %v2191 = vcvt.s32.f32 %v2184
        %v2192 = vmul.f32 %v2191, %v2189
        %v2193 = vxor.u32 %v2192, 2147483648
        %v2194 = vsel %vm2111, %v2193, %v2192
        %v2195 = vsub.s32 4, %v2171
        %v2196 = vsel %vm2111, %v2195, %v2171
        %v2197 = vsel %vm2110, %v801, %v2194
        %v2198 = vsel %vm2110, 0, %v2196
        %v2199 = vcosq.f32.pop %v2197
        %v2200 = vsinq.f32.pop %v2197
        %vm2201 = vweird.f32 %v801
        %v2202 = vadd.s32 %v2198, 3
        %v2203 = vand.u32 %v2202, 3
        %vm2204 = vcmp.lt.s32.totalorder %v2203, 2
        %vm2205 = vcmp.eq.s32.totalorder %v2203, 0
        %v2206 = vxor.u32 %v2200, 2147483648
        %v2207 = vsel %vm2205, %v2199, %v2206
        %vm2208 = vcmp.eq.s32.totalorder %v2203, 2
        %v2209 = vxor.u32 %v2199, 2147483648
        %v2210 = vsel %vm2208, %v2209, %v2200
        %v2211 = vsel %vm2204, %v2207, %v2210
        %v2212 = vsel %vm2201, nan, %v2211
        %v2213 = vand.u32 2147483647, %v802
        %vm2214 = vcmp.le.f32.partialorder %v2213, 0.7853982
        %vm2215 = vcmp.lt.s32.totalorder %v802, 0
        %v2216 = vand.u32 %v802, 2139095040
        %v2217 = vshrl.u32 %v2216, 23
        %v2218 = vsub.s32 %v2217, 127
        %v2219 = vand.u32 2147483647, %v802
        %v2220 = vand.u32 %v2219, 8388607
        %v2221 = vor.u32 %v2220, 8388608
        %v2222 = vsub.s32 0, %v2221
        %v2223 = vadd.s32 %v2218, 1
        %vm2224 = vcmp.gt.s32.totalorder %v2223, 0
        %v2225 = vsel %vm2224, %v2223, 0
        %v2226 = vshrl.u32 %v2225, 5
        %v2227 = vand.u32 %v2225, 31
        %v2228 = vsub.s32 32, %v2227
        %v2229 = vshrl.u32 683565275, %v2228
        %v2230 = vshll.u32 683565275, %v2227
        %v2231 = vshrl.u32 2475754826, %v2228
        %v2232 = vor.u32 %v2230, %v2231
        %v2233 = vshll.u32 2475754826, %v2227
        %v2234 = vshrl.u32 2131351028, %v2228
        %v2235 = vor.u32 %v2233, %v2234
        %v2236 = vshll.u32 2131351028, %v2227
        %v2237 = vshrl.u32 2102212464, %v2228
        %v2238 = vor.u32 %v2236, %v2237
        %v2239 = vshll.u32 2102212464, %v2227
        %v2240 = vshrl.u32 920167782, %v2228
        %v2241 = vor.u32 %v2239, %v2240
        %v2242 = vshll.u32 920167782, %v2227
        %v2243 = vshrl.u32 1326507024, %v2228
        %v2244 = vor.u32 %v2242, %v2243
        %vm2245 = vcmp.lt.s32.totalorder %v2226, 1
        %vm2246 = vcmp.lt.s32.totalorder %v2226, 2
        %vm2247 = vcmp.lt.s32.totalorder %v2226, 3
        %vm2248 = vcmp.lt.s32.totalorder %v2226, 4
        %v2249 = vsel %vm2245, %v2229, %v2232
        %v2250 = vsel %vm2248, %v2238, 2102212464
        %v2251 = vsel %vm2247, %v2235, %v2250
        %v2252 = vsel %vm2246, %v2249, %v2251
        %v2253 = vsel %vm2245, %v2232, %v2235
        %v2254 = vsel %vm2248, %v2241, 920167782
        %v2255 = vsel %vm2247, %v2238, %v2254
        %v2256 = vsel %vm2246, %v2253, %v2255
        %v2257 = vsel %vm2245, %v2235, %v2238
        %v2258 = vsel %vm2248, %v2244, 1326507024
        %v2259 = vsel %vm2247, %v2241, %v2258
        %v2260 = vsel %vm2246, %v2257, %v2259
        %v2261 = vshll.u32 %v2221, 8
        %v2262 = vmul.u32.u64.compose %v2261, %v2260
        %v2263 = vextract.low.u32 %v2262
        %v2264 = vextract.high.u32 %v2262
        %v2265 = vmul.u32.u64.compose %v2261, %v2256
        %v2266 = vextract.low.u32 %v2265
        %v2267 = vextract.high.u32 %v2265
        %v2268 = vmul.u32 %v2261, %v2252
        %v2269 = vadd.s32 %v2264, %v2266
        %vm2270 = vc.u32 %v2264, %v2266
        %v2271 = vadd.s32 %v2267, 1
        %v2272 = vsel %vm2270, %v2271, %v2267
        %v2273 = vadd.s32 %v2268, %v2272
        %v2274 = vadd.s32 %v2273, 536870912
        %v2275 = vshrl.u32 %v2274, 30
        %v2276 = vshll.u32 %v2275, 30
        %v2277 = vsub.s32 %v2273, %v2276
        %vm2278 = vcmp.lt.s32.totalorder %v2277, 0
        %v2279 = vsub.s32 0, %v2277
        %v2280 = vsel %vm2278, %v2279, %v2277
        %v2281 = vclz %v2280
        %v2282 = vsub.s32 %v2281, 2
        %vm2283 = vcmp.gt.s32.totalorder 0, %v2282
        %v2284 = vsel %vm2283, 0, %v2282
        %v2285 = vsub.s32 32, %v2284
        %v2286 = vshll.u32 %v2277, %v2284
        %v2287 = vshrl.u32 %v2269, %v2285
        %v2288 = vor.u32 %v2286, %v2287
        %v2289 = vsub.s32 4294967266, %v2284
        %v2290 = vadd.s32 %v2289, 127
        %v2291 = vshll.u32 %v2290, 23
        %v2292 = vor.u32 4788187, %v2291
        %v2293 = vand.u32 2147483647, %v2292
        %v2295 = vcvt.s32.f32 %v2288
        %v2296 = vmul.f32 %v2295, %v2293
        %v2297 = vxor.u32 %v2296, 2147483648
        %v2298 = vsel %vm2215, %v2297, %v2296
        %v2299 = vsub.s32 4, %v2275
        %v2300 = vsel %vm2215, %v2299, %v2275
        %v2301 = vsel %vm2214, %v802, %v2298
        %v2302 = vsel %vm2214, 0, %v2300
        %v2303 = vcosq.f32.pop %v2301
        %v2304 = vsinq.f32.pop %v2301
        %vm2305 = vweird.f32 %v802
        %v2306 = vadd.s32 %v2302, 3
        %v2307 = vand.u32 %v2306, 3
        %vm2308 = vcmp.lt.s32.totalorder %v2307, 2
        %vm2309 = vcmp.eq.s32.totalorder %v2307, 0
        %v2310 = vxor.u32 %v2304, 2147483648
        %v2311 = vsel %vm2309, %v2303, %v2310
        %vm2312 = vcmp.eq.s32.totalorder %v2307, 2
        %v2313 = vxor.u32 %v2303, 2147483648
        %v2314 = vsel %vm2312, %v2313, %v2304
        %v2315 = vsel %vm2308, %v2311, %v2314
        %v2316 = vsel %vm2305, nan, %v2315
        %v2317 = vand.u32 2147483647, %v803
        %vm2318 = vcmp.le.f32.partialorder %v2317, 0.7853982
        %vm2319 = vcmp.lt.s32.totalorder %v803, 0
        %v2320 = vand.u32 %v803, 2139095040
        %v2321 = vshrl.u32 %v2320, 23
        %v2322 = vsub.s32 %v2321, 127
        %v2323 = vand.u32 2147483647, %v803
        %v2324 = vand.u32 %v2323, 8388607
        %v2325 = vor.u32 %v2324, 8388608
        %v2326 = vsub.s32 0, %v2325
        %v2327 = vadd.s32 %v2322, 1
        %vm2328 = vcmp.gt.s32.totalorder %v2327, 0
        %v2329 = vsel %vm2328, %v2327, 0
        %v2330 = vshrl.u32 %v2329, 5
        %v2331 = vand.u32 %v2329, 31
        %v2332 = vsub.s32 32, %v2331
        %v2333 = vshrl.u32 683565275, %v2332
        %v2334 = vshll.u32 683565275, %v2331
        %v2335 = vshrl.u32 2475754826, %v2332
        %v2336 = vor.u32 %v2334, %v2335
        %v2337 = vshll.u32 2475754826, %v2331
        %v2338 = vshrl.u32 2131351028, %v2332
        %v2339 = vor.u32 %v2337, %v2338
        %v2340 = vshll.u32 2131351028, %v2331
        %v2341 = vshrl.u32 2102212464, %v2332
        %v2342 = vor.u32 %v2340, %v2341
        %v2343 = vshll.u32 2102212464, %v2331
        %v2344 = vshrl.u32 920167782, %v2332
        %v2345 = vor.u32 %v2343, %v2344
        %v2346 = vshll.u32 920167782, %v2331
        %v2347 = vshrl.u32 1326507024, %v2332
        %v2348 = vor.u32 %v2346, %v2347
        %vm2349 = vcmp.lt.s32.totalorder %v2330, 1
        %vm2350 = vcmp.lt.s32.totalorder %v2330, 2
        %vm2351 = vcmp.lt.s32.totalorder %v2330, 3
        %vm2352 = vcmp.lt.s32.totalorder %v2330, 4
        %v2353 = vsel %vm2349, %v2333, %v2336
        %v2354 = vsel %vm2352, %v2342, 2102212464
        %v2355 = vsel %vm2351, %v2339, %v2354
        %v2356 = vsel %vm2350, %v2353, %v2355
        %v2357 = vsel %vm2349, %v2336, %v2339
        %v2358 = vsel %vm2352, %v2345, 920167782
        %v2359 = vsel %vm2351, %v2342, %v2358
        %v2360 = vsel %vm2350, %v2357, %v2359
        %v2361 = vsel %vm2349, %v2339, %v2342
        %v2362 = vsel %vm2352, %v2348, 1326507024
        %v2363 = vsel %vm2351, %v2345, %v2362
        %v2364 = vsel %vm2350, %v2361, %v2363
        %v2365 = vshll.u32 %v2325, 8
        %v2366 = vmul.u32.u64.compose %v2365, %v2364
        %v2367 = vextract.low.u32 %v2366
        %v2368 = vextract.high.u32 %v2366
        %v2369 = vmul.u32.u64.compose %v2365, %v2360
        %v2370 = vextract.low.u32 %v2369
        %v2371 = vextract.high.u32 %v2369
        %v2372 = vmul.u32 %v2365, %v2356
        %v2373 = vadd.s32 %v2368, %v2370
        %vm2374 = vc.u32 %v2368, %v2370
        %v2375 = vadd.s32 %v2371, 1
        %v2376 = vsel %vm2374, %v2375, %v2371
        %v2377 = vadd.s32 %v2372, %v2376
        %v2378 = vadd.s32 %v2377, 536870912
        %v2379 = vshrl.u32 %v2378, 30
        %v2380 = vshll.u32 %v2379, 30
        %v2381 = vsub.s32 %v2377, %v2380
        %vm2382 = vcmp.lt.s32.totalorder %v2381, 0
        %v2383 = vsub.s32 0, %v2381
        %v2384 = vsel %vm2382, %v2383, %v2381
        %v2385 = vclz %v2384
        %v2386 = vsub.s32 %v2385, 2
        %vm2387 = vcmp.gt.s32.totalorder 0, %v2386
        %v2388 = vsel %vm2387, 0, %v2386
        %v2389 = vsub.s32 32, %v2388
        %v2390 = vshll.u32 %v2381, %v2388
        %v2391 = vshrl.u32 %v2373, %v2389
        %v2392 = vor.u32 %v2390, %v2391
        %v2393 = vsub.s32 4294967266, %v2388
        %v2394 = vadd.s32 %v2393, 127
        %v2395 = vshll.u32 %v2394, 23
        %v2396 = vor.u32 4788187, %v2395
        %v2397 = vand.u32 2147483647, %v2396
        %v2399 = vcvt.s32.f32 %v2392
        %v2400 = vmul.f32 %v2399, %v2397
        %v2401 = vxor.u32 %v2400, 2147483648
        %v2402 = vsel %vm2319, %v2401, %v2400
        %v2403 = vsub.s32 4, %v2379
        %v2404 = vsel %vm2319, %v2403, %v2379
        %v2405 = vsel %vm2318, %v803, %v2402
        %v2406 = vsel %vm2318, 0, %v2404
        %v2407 = vcosq.f32.pop %v2405
        %v2408 = vsinq.f32.pop %v2405
        %vm2409 = vweird.f32 %v803
        %v2410 = vadd.s32 %v2406, 3
        %v2411 = vand.u32 %v2410, 3
        %vm2412 = vcmp.lt.s32.totalorder %v2411, 2
        %vm2413 = vcmp.eq.s32.totalorder %v2411, 0
        %v2414 = vxor.u32 %v2408, 2147483648
        %v2415 = vsel %vm2413, %v2407, %v2414
        %vm2416 = vcmp.eq.s32.totalorder %v2411, 2
        %v2417 = vxor.u32 %v2407, 2147483648
        %v2418 = vsel %vm2416, %v2417, %v2408
        %v2419 = vsel %vm2412, %v2415, %v2418
        %v2420 = vsel %vm2409, nan, %v2419
        %v2421 = vand.u32 2147483647, %v804
        %vm2422 = vcmp.le.f32.partialorder %v2421, 0.7853982
        %vm2423 = vcmp.lt.s32.totalorder %v804, 0
        %v2424 = vand.u32 %v804, 2139095040
        %v2425 = vshrl.u32 %v2424, 23
        %v2426 = vsub.s32 %v2425, 127
        %v2427 = vand.u32 2147483647, %v804
        %v2428 = vand.u32 %v2427, 8388607
        %v2429 = vor.u32 %v2428, 8388608
        %v2430 = vsub.s32 0, %v2429
        %v2431 = vadd.s32 %v2426, 1
        %vm2432 = vcmp.gt.s32.totalorder %v2431, 0
        %v2433 = vsel %vm2432, %v2431, 0
        %v2434 = vshrl.u32 %v2433, 5
        %v2435 = vand.u32 %v2433, 31
        %v2436 = vsub.s32 32, %v2435
        %v2437 = vshrl.u32 683565275, %v2436
        %v2438 = vshll.u32 683565275, %v2435
        %v2439 = vshrl.u32 2475754826, %v2436
        %v2440 = vor.u32 %v2438, %v2439
        %v2441 = vshll.u32 2475754826, %v2435
        %v2442 = vshrl.u32 2131351028, %v2436
        %v2443 = vor.u32 %v2441, %v2442
        %v2444 = vshll.u32 2131351028, %v2435
        %v2445 = vshrl.u32 2102212464, %v2436
        %v2446 = vor.u32 %v2444, %v2445
        %v2447 = vshll.u32 2102212464, %v2435
        %v2448 = vshrl.u32 920167782, %v2436
        %v2449 = vor.u32 %v2447, %v2448
        %v2450 = vshll.u32 920167782, %v2435
        %v2451 = vshrl.u32 1326507024, %v2436
        %v2452 = vor.u32 %v2450, %v2451
        %vm2453 = vcmp.lt.s32.totalorder %v2434, 1
        %vm2454 = vcmp.lt.s32.totalorder %v2434, 2
        %vm2455 = vcmp.lt.s32.totalorder %v2434, 3
        %vm2456 = vcmp.lt.s32.totalorder %v2434, 4
        %v2457 = vsel %vm2453, %v2437, %v2440
        %v2458 = vsel %vm2456, %v2446, 2102212464
        %v2459 = vsel %vm2455, %v2443, %v2458
        %v2460 = vsel %vm2454, %v2457, %v2459
        %v2461 = vsel %vm2453, %v2440, %v2443
        %v2462 = vsel %vm2456, %v2449, 920167782
        %v2463 = vsel %vm2455, %v2446, %v2462
        %v2464 = vsel %vm2454, %v2461, %v2463
        %v2465 = vsel %vm2453, %v2443, %v2446
        %v2466 = vsel %vm2456, %v2452, 1326507024
        %v2467 = vsel %vm2455, %v2449, %v2466
        %v2468 = vsel %vm2454, %v2465, %v2467
        %v2469 = vshll.u32 %v2429, 8
        %v2470 = vmul.u32.u64.compose %v2469, %v2468
        %v2471 = vextract.low.u32 %v2470
        %v2472 = vextract.high.u32 %v2470
        %v2473 = vmul.u32.u64.compose %v2469, %v2464
        %v2474 = vextract.low.u32 %v2473
        %v2475 = vextract.high.u32 %v2473
        %v2476 = vmul.u32 %v2469, %v2460
        %v2477 = vadd.s32 %v2472, %v2474
        %vm2478 = vc.u32 %v2472, %v2474
        %v2479 = vadd.s32 %v2475, 1
        %v2480 = vsel %vm2478, %v2479, %v2475
        %v2481 = vadd.s32 %v2476, %v2480
        %v2482 = vadd.s32 %v2481, 536870912
        %v2483 = vshrl.u32 %v2482, 30
        %v2484 = vshll.u32 %v2483, 30
        %v2485 = vsub.s32 %v2481, %v2484
        %vm2486 = vcmp.lt.s32.totalorder %v2485, 0
        %v2487 = vsub.s32 0, %v2485
        %v2488 = vsel %vm2486, %v2487, %v2485
        %v2489 = vclz %v2488
        %v2490 = vsub.s32 %v2489, 2
        %vm2491 = vcmp.gt.s32.totalorder 0, %v2490
        %v2492 = vsel %vm2491, 0, %v2490
        %v2493 = vsub.s32 32, %v2492
        %v2494 = vshll.u32 %v2485, %v2492
        %v2495 = vshrl.u32 %v2477, %v2493
        %v2496 = vor.u32 %v2494, %v2495
        %v2497 = vsub.s32 4294967266, %v2492
        %v2498 = vadd.s32 %v2497, 127
        %v2499 = vshll.u32 %v2498, 23
        %v2500 = vor.u32 4788187, %v2499
        %v2501 = vand.u32 2147483647, %v2500
        %v2503 = vcvt.s32.f32 %v2496
        %v2504 = vmul.f32 %v2503, %v2501
        %v2505 = vxor.u32 %v2504, 2147483648
        %v2506 = vsel %vm2423, %v2505, %v2504
        %v2507 = vsub.s32 4, %v2483
        %v2508 = vsel %vm2423, %v2507, %v2483
        %v2509 = vsel %vm2422, %v804, %v2506
        %v2510 = vsel %vm2422, 0, %v2508
        %v2511 = vcosq.f32.pop %v2509
        %v2512 = vsinq.f32.pop %v2509
        %vm2513 = vweird.f32 %v804
        %v2514 = vadd.s32 %v2510, 3
        %v2515 = vand.u32 %v2514, 3
        %vm2516 = vcmp.lt.s32.totalorder %v2515, 2
        %vm2517 = vcmp.eq.s32.totalorder %v2515, 0
        %v2518 = vxor.u32 %v2512, 2147483648
        %v2519 = vsel %vm2517, %v2511, %v2518
        %vm2520 = vcmp.eq.s32.totalorder %v2515, 2
        %v2521 = vxor.u32 %v2511, 2147483648
        %v2522 = vsel %vm2520, %v2521, %v2512
        %v2523 = vsel %vm2516, %v2519, %v2522
        %v2524 = vsel %vm2513, nan, %v2523
        %v2525 = vand.u32 2147483647, %v805
        %vm2526 = vcmp.le.f32.partialorder %v2525, 0.7853982
        %vm2527 = vcmp.lt.s32.totalorder %v805, 0
        %v2528 = vand.u32 %v805, 2139095040
        %v2529 = vshrl.u32 %v2528, 23
        %v2530 = vsub.s32 %v2529, 127
        %v2531 = vand.u32 2147483647, %v805
        %v2532 = vand.u32 %v2531, 8388607
        %v2533 = vor.u32 %v2532, 8388608
        %v2534 = vsub.s32 0, %v2533
        %v2535 = vadd.s32 %v2530, 1
        %vm2536 = vcmp.gt.s32.totalorder %v2535, 0
        %v2537 = vsel %vm2536, %v2535, 0
        %v2538 = vshrl.u32 %v2537, 5
        %v2539 = vand.u32 %v2537, 31
        %v2540 = vsub.s32 32, %v2539
        %v2541 = vshrl.u32 683565275, %v2540
        %v2542 = vshll.u32 683565275, %v2539
        %v2543 = vshrl.u32 2475754826, %v2540
        %v2544 = vor.u32 %v2542, %v2543
        %v2545 = vshll.u32 2475754826, %v2539
        %v2546 = vshrl.u32 2131351028, %v2540
        %v2547 = vor.u32 %v2545, %v2546
        %v2548 = vshll.u32 2131351028, %v2539
        %v2549 = vshrl.u32 2102212464, %v2540
        %v2550 = vor.u32 %v2548, %v2549
        %v2551 = vshll.u32 2102212464, %v2539
        %v2552 = vshrl.u32 920167782, %v2540
        %v2553 = vor.u32 %v2551, %v2552
        %v2554 = vshll.u32 920167782, %v2539
        %v2555 = vshrl.u32 1326507024, %v2540
        %v2556 = vor.u32 %v2554, %v2555
        %vm2557 = vcmp.lt.s32.totalorder %v2538, 1
        %vm2558 = vcmp.lt.s32.totalorder %v2538, 2
        %vm2559 = vcmp.lt.s32.totalorder %v2538, 3
        %vm2560 = vcmp.lt.s32.totalorder %v2538, 4
        %v2561 = vsel %vm2557, %v2541, %v2544
        %v2562 = vsel %vm2560, %v2550, 2102212464
        %v2563 = vsel %vm2559, %v2547, %v2562
        %v2564 = vsel %vm2558, %v2561, %v2563
        %v2565 = vsel %vm2557, %v2544, %v2547
        %v2566 = vsel %vm2560, %v2553, 920167782
        %v2567 = vsel %vm2559, %v2550, %v2566
        %v2568 = vsel %vm2558, %v2565, %v2567
        %v2569 = vsel %vm2557, %v2547, %v2550
        %v2570 = vsel %vm2560, %v2556, 1326507024
        %v2571 = vsel %vm2559, %v2553, %v2570
        %v2572 = vsel %vm2558, %v2569, %v2571
        %v2573 = vshll.u32 %v2533, 8
        %v2574 = vmul.u32.u64.compose %v2573, %v2572
        %v2575 = vextract.low.u32 %v2574
        %v2576 = vextract.high.u32 %v2574
        %v2577 = vmul.u32.u64.compose %v2573, %v2568
        %v2578 = vextract.low.u32 %v2577
        %v2579 = vextract.high.u32 %v2577
        %v2580 = vmul.u32 %v2573, %v2564
        %v2581 = vadd.s32 %v2576, %v2578
        %vm2582 = vc.u32 %v2576, %v2578
        %v2583 = vadd.s32 %v2579, 1
        %v2584 = vsel %vm2582, %v2583, %v2579
        %v2585 = vadd.s32 %v2580, %v2584
        %v2586 = vadd.s32 %v2585, 536870912
        %v2587 = vshrl.u32 %v2586, 30
        %v2588 = vshll.u32 %v2587, 30
        %v2589 = vsub.s32 %v2585, %v2588
        %vm2590 = vcmp.lt.s32.totalorder %v2589, 0
        %v2591 = vsub.s32 0, %v2589
        %v2592 = vsel %vm2590, %v2591, %v2589
        %v2593 = vclz %v2592
        %v2594 = vsub.s32 %v2593, 2
        %vm2595 = vcmp.gt.s32.totalorder 0, %v2594
        %v2596 = vsel %vm2595, 0, %v2594
        %v2597 = vsub.s32 32, %v2596
        %v2598 = vshll.u32 %v2589, %v2596
        %v2599 = vshrl.u32 %v2581, %v2597
        %v2600 = vor.u32 %v2598, %v2599
        %v2601 = vsub.s32 4294967266, %v2596
        %v2602 = vadd.s32 %v2601, 127
        %v2603 = vshll.u32 %v2602, 23
        %v2604 = vor.u32 4788187, %v2603
        %v2605 = vand.u32 2147483647, %v2604
        %v2607 = vcvt.s32.f32 %v2600
        %v2608 = vmul.f32 %v2607, %v2605
        %v2609 = vxor.u32 %v2608, 2147483648
        %v2610 = vsel %vm2527, %v2609, %v2608
        %v2611 = vsub.s32 4, %v2587
        %v2612 = vsel %vm2527, %v2611, %v2587
        %v2613 = vsel %vm2526, %v805, %v2610
        %v2614 = vsel %vm2526, 0, %v2612
        %v2615 = vcosq.f32.pop %v2613
        %v2616 = vsinq.f32.pop %v2613
        %vm2617 = vweird.f32 %v805
        %v2618 = vadd.s32 %v2614, 3
        %v2619 = vand.u32 %v2618, 3
        %vm2620 = vcmp.lt.s32.totalorder %v2619, 2
        %vm2621 = vcmp.eq.s32.totalorder %v2619, 0
        %v2622 = vxor.u32 %v2616, 2147483648
        %v2623 = vsel %vm2621, %v2615, %v2622
        %vm2624 = vcmp.eq.s32.totalorder %v2619, 2
        %v2625 = vxor.u32 %v2615, 2147483648
        %v2626 = vsel %vm2624, %v2625, %v2616
        %v2627 = vsel %vm2620, %v2623, %v2626
        %v2628 = vsel %vm2617, nan, %v2627
        %v2629 = vand.u32 2147483647, %v806
        %vm2630 = vcmp.le.f32.partialorder %v2629, 0.7853982
        %vm2631 = vcmp.lt.s32.totalorder %v806, 0
        %v2632 = vand.u32 %v806, 2139095040
        %v2633 = vshrl.u32 %v2632, 23
        %v2634 = vsub.s32 %v2633, 127
        %v2635 = vand.u32 2147483647, %v806
        %v2636 = vand.u32 %v2635, 8388607
        %v2637 = vor.u32 %v2636, 8388608
        %v2638 = vsub.s32 0, %v2637
        %v2639 = vadd.s32 %v2634, 1
        %vm2640 = vcmp.gt.s32.totalorder %v2639, 0
        %v2641 = vsel %vm2640, %v2639, 0
        %v2642 = vshrl.u32 %v2641, 5
        %v2643 = vand.u32 %v2641, 31
        %v2644 = vsub.s32 32, %v2643
        %v2645 = vshrl.u32 683565275, %v2644
        %v2646 = vshll.u32 683565275, %v2643
        %v2647 = vshrl.u32 2475754826, %v2644
        %v2648 = vor.u32 %v2646, %v2647
        %v2649 = vshll.u32 2475754826, %v2643
        %v2650 = vshrl.u32 2131351028, %v2644
        %v2651 = vor.u32 %v2649, %v2650
        %v2652 = vshll.u32 2131351028, %v2643
        %v2653 = vshrl.u32 2102212464, %v2644
        %v2654 = vor.u32 %v2652, %v2653
        %v2655 = vshll.u32 2102212464, %v2643
        %v2656 = vshrl.u32 920167782, %v2644
        %v2657 = vor.u32 %v2655, %v2656
        %v2658 = vshll.u32 920167782, %v2643
        %v2659 = vshrl.u32 1326507024, %v2644
        %v2660 = vor.u32 %v2658, %v2659
        %vm2661 = vcmp.lt.s32.totalorder %v2642, 1
        %vm2662 = vcmp.lt.s32.totalorder %v2642, 2
        %vm2663 = vcmp.lt.s32.totalorder %v2642, 3
        %vm2664 = vcmp.lt.s32.totalorder %v2642, 4
        %v2665 = vsel %vm2661, %v2645, %v2648
        %v2666 = vsel %vm2664, %v2654, 2102212464
        %v2667 = vsel %vm2663, %v2651, %v2666
        %v2668 = vsel %vm2662, %v2665, %v2667
        %v2669 = vsel %vm2661, %v2648, %v2651
        %v2670 = vsel %vm2664, %v2657, 920167782
        %v2671 = vsel %vm2663, %v2654, %v2670
        %v2672 = vsel %vm2662, %v2669, %v2671
        %v2673 = vsel %vm2661, %v2651, %v2654
        %v2674 = vsel %vm2664, %v2660, 1326507024
        %v2675 = vsel %vm2663, %v2657, %v2674
        %v2676 = vsel %vm2662, %v2673, %v2675
        %v2677 = vshll.u32 %v2637, 8
        %v2678 = vmul.u32.u64.compose %v2677, %v2676
        %v2679 = vextract.low.u32 %v2678
        %v2680 = vextract.high.u32 %v2678
        %v2681 = vmul.u32.u64.compose %v2677, %v2672
        %v2682 = vextract.low.u32 %v2681
        %v2683 = vextract.high.u32 %v2681
        %v2684 = vmul.u32 %v2677, %v2668
        %v2685 = vadd.s32 %v2680, %v2682
        %vm2686 = vc.u32 %v2680, %v2682
        %v2687 = vadd.s32 %v2683, 1
        %v2688 = vsel %vm2686, %v2687, %v2683
        %v2689 = vadd.s32 %v2684, %v2688
        %v2690 = vadd.s32 %v2689, 536870912
        %v2691 = vshrl.u32 %v2690, 30
        %v2692 = vshll.u32 %v2691, 30
        %v2693 = vsub.s32 %v2689, %v2692
        %vm2694 = vcmp.lt.s32.totalorder %v2693, 0
        %v2695 = vsub.s32 0, %v2693
        %v2696 = vsel %vm2694, %v2695, %v2693
        %v2697 = vclz %v2696
        %v2698 = vsub.s32 %v2697, 2
        %vm2699 = vcmp.gt.s32.totalorder 0, %v2698
        %v2700 = vsel %vm2699, 0, %v2698
        %v2701 = vsub.s32 32, %v2700
        %v2702 = vshll.u32 %v2693, %v2700
        %v2703 = vshrl.u32 %v2685, %v2701
        %v2704 = vor.u32 %v2702, %v2703
        %v2705 = vsub.s32 4294967266, %v2700
        %v2706 = vadd.s32 %v2705, 127
        %v2707 = vshll.u32 %v2706, 23
        %v2708 = vor.u32 4788187, %v2707
        %v2709 = vand.u32 2147483647, %v2708
        %v2711 = vcvt.s32.f32 %v2704
        %v2712 = vmul.f32 %v2711, %v2709
        %v2713 = vxor.u32 %v2712, 2147483648
        %v2714 = vsel %vm2631, %v2713, %v2712
        %v2715 = vsub.s32 4, %v2691
        %v2716 = vsel %vm2631, %v2715, %v2691
        %v2717 = vsel %vm2630, %v806, %v2714
        %v2718 = vsel %vm2630, 0, %v2716
        %v2719 = vcosq.f32.pop %v2717
        %v2720 = vsinq.f32.pop %v2717
        %vm2721 = vweird.f32 %v806
        %v2722 = vadd.s32 %v2718, 3
        %v2723 = vand.u32 %v2722, 3
        %vm2724 = vcmp.lt.s32.totalorder %v2723, 2
        %vm2725 = vcmp.eq.s32.totalorder %v2723, 0
        %v2726 = vxor.u32 %v2720, 2147483648
        %v2727 = vsel %vm2725, %v2719, %v2726
        %vm2728 = vcmp.eq.s32.totalorder %v2723, 2
        %v2729 = vxor.u32 %v2719, 2147483648
        %v2730 = vsel %vm2728, %v2729, %v2720
        %v2731 = vsel %vm2724, %v2727, %v2730
        %v2732 = vsel %vm2721, nan, %v2731
        %v2733 = vand.u32 2147483647, %v807
        %vm2734 = vcmp.le.f32.partialorder %v2733, 0.7853982
        %vm2735 = vcmp.lt.s32.totalorder %v807, 0
        %v2736 = vand.u32 %v807, 2139095040
        %v2737 = vshrl.u32 %v2736, 23
        %v2738 = vsub.s32 %v2737, 127
        %v2739 = vand.u32 2147483647, %v807
        %v2740 = vand.u32 %v2739, 8388607
        %v2741 = vor.u32 %v2740, 8388608
        %v2742 = vsub.s32 0, %v2741
        %v2743 = vadd.s32 %v2738, 1
        %vm2744 = vcmp.gt.s32.totalorder %v2743, 0
        %v2745 = vsel %vm2744, %v2743, 0
        %v2746 = vshrl.u32 %v2745, 5
        %v2747 = vand.u32 %v2745, 31
        %v2748 = vsub.s32 32, %v2747
        %v2749 = vshrl.u32 683565275, %v2748
        %v2750 = vshll.u32 683565275, %v2747
        %v2751 = vshrl.u32 2475754826, %v2748
        %v2752 = vor.u32 %v2750, %v2751
        %v2753 = vshll.u32 2475754826, %v2747
        %v2754 = vshrl.u32 2131351028, %v2748
        %v2755 = vor.u32 %v2753, %v2754
        %v2756 = vshll.u32 2131351028, %v2747
        %v2757 = vshrl.u32 2102212464, %v2748
        %v2758 = vor.u32 %v2756, %v2757
        %v2759 = vshll.u32 2102212464, %v2747
        %v2760 = vshrl.u32 920167782, %v2748
        %v2761 = vor.u32 %v2759, %v2760
        %v2762 = vshll.u32 920167782, %v2747
        %v2763 = vshrl.u32 1326507024, %v2748
        %v2764 = vor.u32 %v2762, %v2763
        %vm2765 = vcmp.lt.s32.totalorder %v2746, 1
        %vm2766 = vcmp.lt.s32.totalorder %v2746, 2
        %vm2767 = vcmp.lt.s32.totalorder %v2746, 3
        %vm2768 = vcmp.lt.s32.totalorder %v2746, 4
        %v2769 = vsel %vm2765, %v2749, %v2752
        %v2770 = vsel %vm2768, %v2758, 2102212464
        %v2771 = vsel %vm2767, %v2755, %v2770
        %v2772 = vsel %vm2766, %v2769, %v2771
        %v2773 = vsel %vm2765, %v2752, %v2755
        %v2774 = vsel %vm2768, %v2761, 920167782
        %v2775 = vsel %vm2767, %v2758, %v2774
        %v2776 = vsel %vm2766, %v2773, %v2775
        %v2777 = vsel %vm2765, %v2755, %v2758
        %v2778 = vsel %vm2768, %v2764, 1326507024
        %v2779 = vsel %vm2767, %v2761, %v2778
        %v2780 = vsel %vm2766, %v2777, %v2779
        %v2781 = vshll.u32 %v2741, 8
        %v2782 = vmul.u32.u64.compose %v2781, %v2780
        %v2783 = vextract.low.u32 %v2782
        %v2784 = vextract.high.u32 %v2782
        %v2785 = vmul.u32.u64.compose %v2781, %v2776
        %v2786 = vextract.low.u32 %v2785
        %v2787 = vextract.high.u32 %v2785
        %v2788 = vmul.u32 %v2781, %v2772
        %v2789 = vadd.s32 %v2784, %v2786
        %vm2790 = vc.u32 %v2784, %v2786
        %v2791 = vadd.s32 %v2787, 1
        %v2792 = vsel %vm2790, %v2791, %v2787
        %v2793 = vadd.s32 %v2788, %v2792
        %v2794 = vadd.s32 %v2793, 536870912
        %v2795 = vshrl.u32 %v2794, 30
        %v2796 = vshll.u32 %v2795, 30
        %v2797 = vsub.s32 %v2793, %v2796
        %vm2798 = vcmp.lt.s32.totalorder %v2797, 0
        %v2799 = vsub.s32 0, %v2797
        %v2800 = vsel %vm2798, %v2799, %v2797
        %v2801 = vclz %v2800
        %v2802 = vsub.s32 %v2801, 2
        %vm2803 = vcmp.gt.s32.totalorder 0, %v2802
        %v2804 = vsel %vm2803, 0, %v2802
        %v2805 = vsub.s32 32, %v2804
        %v2806 = vshll.u32 %v2797, %v2804
        %v2807 = vshrl.u32 %v2789, %v2805
        %v2808 = vor.u32 %v2806, %v2807
        %v2809 = vsub.s32 4294967266, %v2804
        %v2810 = vadd.s32 %v2809, 127
        %v2811 = vshll.u32 %v2810, 23
        %v2812 = vor.u32 4788187, %v2811
        %v2813 = vand.u32 2147483647, %v2812
        %v2815 = vcvt.s32.f32 %v2808
        %v2816 = vmul.f32 %v2815, %v2813
        %v2817 = vxor.u32 %v2816, 2147483648
        %v2818 = vsel %vm2735, %v2817, %v2816
        %v2819 = vsub.s32 4, %v2795
        %v2820 = vsel %vm2735, %v2819, %v2795
        %v2821 = vsel %vm2734, %v807, %v2818
        %v2822 = vsel %vm2734, 0, %v2820
        %v2823 = vcosq.f32.pop %v2821
        %v2824 = vsinq.f32.pop %v2821
        %vm2825 = vweird.f32 %v807
        %v2826 = vadd.s32 %v2822, 3
        %v2827 = vand.u32 %v2826, 3
        %vm2828 = vcmp.lt.s32.totalorder %v2827, 2
        %vm2829 = vcmp.eq.s32.totalorder %v2827, 0
        %v2830 = vxor.u32 %v2824, 2147483648
        %v2831 = vsel %vm2829, %v2823, %v2830
        %vm2832 = vcmp.eq.s32.totalorder %v2827, 2
        %v2833 = vxor.u32 %v2823, 2147483648
        %v2834 = vsel %vm2832, %v2833, %v2824
        %v2835 = vsel %vm2828, %v2831, %v2834
        %v2836 = vsel %vm2825, nan, %v2835
        %v2837 = vand.u32 2147483647, %v808
        %vm2838 = vcmp.le.f32.partialorder %v2837, 0.7853982
        %vm2839 = vcmp.lt.s32.totalorder %v808, 0
        %v2840 = vand.u32 %v808, 2139095040
        %v2841 = vshrl.u32 %v2840, 23
        %v2842 = vsub.s32 %v2841, 127
        %v2843 = vand.u32 2147483647, %v808
        %v2844 = vand.u32 %v2843, 8388607
        %v2845 = vor.u32 %v2844, 8388608
        %v2846 = vsub.s32 0, %v2845
        %v2847 = vadd.s32 %v2842, 1
        %vm2848 = vcmp.gt.s32.totalorder %v2847, 0
        %v2849 = vsel %vm2848, %v2847, 0
        %v2850 = vshrl.u32 %v2849, 5
        %v2851 = vand.u32 %v2849, 31
        %v2852 = vsub.s32 32, %v2851
        %v2853 = vshrl.u32 683565275, %v2852
        %v2854 = vshll.u32 683565275, %v2851
        %v2855 = vshrl.u32 2475754826, %v2852
        %v2856 = vor.u32 %v2854, %v2855
        %v2857 = vshll.u32 2475754826, %v2851
        %v2858 = vshrl.u32 2131351028, %v2852
        %v2859 = vor.u32 %v2857, %v2858
        %v2860 = vshll.u32 2131351028, %v2851
        %v2861 = vshrl.u32 2102212464, %v2852
        %v2862 = vor.u32 %v2860, %v2861
        %v2863 = vshll.u32 2102212464, %v2851
        %v2864 = vshrl.u32 920167782, %v2852
        %v2865 = vor.u32 %v2863, %v2864
        %v2866 = vshll.u32 920167782, %v2851
        %v2867 = vshrl.u32 1326507024, %v2852
        %v2868 = vor.u32 %v2866, %v2867
        %vm2869 = vcmp.lt.s32.totalorder %v2850, 1
        %vm2870 = vcmp.lt.s32.totalorder %v2850, 2
        %vm2871 = vcmp.lt.s32.totalorder %v2850, 3
        %vm2872 = vcmp.lt.s32.totalorder %v2850, 4
        %v2873 = vsel %vm2869, %v2853, %v2856
        %v2874 = vsel %vm2872, %v2862, 2102212464
        %v2875 = vsel %vm2871, %v2859, %v2874
        %v2876 = vsel %vm2870, %v2873, %v2875
        %v2877 = vsel %vm2869, %v2856, %v2859
        %v2878 = vsel %vm2872, %v2865, 920167782
        %v2879 = vsel %vm2871, %v2862, %v2878
        %v2880 = vsel %vm2870, %v2877, %v2879
        %v2881 = vsel %vm2869, %v2859, %v2862
        %v2882 = vsel %vm2872, %v2868, 1326507024
        %v2883 = vsel %vm2871, %v2865, %v2882
        %v2884 = vsel %vm2870, %v2881, %v2883
        %v2885 = vshll.u32 %v2845, 8
        %v2886 = vmul.u32.u64.compose %v2885, %v2884
        %v2887 = vextract.low.u32 %v2886
        %v2888 = vextract.high.u32 %v2886
        %v2889 = vmul.u32.u64.compose %v2885, %v2880
        %v2890 = vextract.low.u32 %v2889
        %v2891 = vextract.high.u32 %v2889
        %v2892 = vmul.u32 %v2885, %v2876
        %v2893 = vadd.s32 %v2888, %v2890
        %vm2894 = vc.u32 %v2888, %v2890
        %v2895 = vadd.s32 %v2891, 1
        %v2896 = vsel %vm2894, %v2895, %v2891
        %v2897 = vadd.s32 %v2892, %v2896
        %v2898 = vadd.s32 %v2897, 536870912
        %v2899 = vshrl.u32 %v2898, 30
        %v2900 = vshll.u32 %v2899, 30
        %v2901 = vsub.s32 %v2897, %v2900
        %vm2902 = vcmp.lt.s32.totalorder %v2901, 0
        %v2903 = vsub.s32 0, %v2901
        %v2904 = vsel %vm2902, %v2903, %v2901
        %v2905 = vclz %v2904
        %v2906 = vsub.s32 %v2905, 2
        %vm2907 = vcmp.gt.s32.totalorder 0, %v2906
        %v2908 = vsel %vm2907, 0, %v2906
        %v2909 = vsub.s32 32, %v2908
        %v2910 = vshll.u32 %v2901, %v2908
        %v2911 = vshrl.u32 %v2893, %v2909
        %v2912 = vor.u32 %v2910, %v2911
        %v2913 = vsub.s32 4294967266, %v2908
        %v2914 = vadd.s32 %v2913, 127
        %v2915 = vshll.u32 %v2914, 23
        %v2916 = vor.u32 4788187, %v2915
        %v2917 = vand.u32 2147483647, %v2916
        %v2919 = vcvt.s32.f32 %v2912
        %v2920 = vmul.f32 %v2919, %v2917
        %v2921 = vxor.u32 %v2920, 2147483648
        %v2922 = vsel %vm2839, %v2921, %v2920
        %v2923 = vsub.s32 4, %v2899
        %v2924 = vsel %vm2839, %v2923, %v2899
        %v2925 = vsel %vm2838, %v808, %v2922
        %v2926 = vsel %vm2838, 0, %v2924
        %v2927 = vcosq.f32.pop %v2925
        %v2928 = vsinq.f32.pop %v2925
        %vm2929 = vweird.f32 %v808
        %v2930 = vadd.s32 %v2926, 3
        %v2931 = vand.u32 %v2930, 3
        %vm2932 = vcmp.lt.s32.totalorder %v2931, 2
        %vm2933 = vcmp.eq.s32.totalorder %v2931, 0
        %v2934 = vxor.u32 %v2928, 2147483648
        %v2935 = vsel %vm2933, %v2927, %v2934
        %vm2936 = vcmp.eq.s32.totalorder %v2931, 2
        %v2937 = vxor.u32 %v2927, 2147483648
        %v2938 = vsel %vm2936, %v2937, %v2928
        %v2939 = vsel %vm2932, %v2935, %v2938
        %v2940 = vsel %vm2929, nan, %v2939
        %v2941 = vand.u32 2147483647, %v809
        %vm2942 = vcmp.le.f32.partialorder %v2941, 0.7853982
        %vm2943 = vcmp.lt.s32.totalorder %v809, 0
        %v2944 = vand.u32 %v809, 2139095040
        %v2945 = vshrl.u32 %v2944, 23
        %v2946 = vsub.s32 %v2945, 127
        %v2947 = vand.u32 2147483647, %v809
        %v2948 = vand.u32 %v2947, 8388607
        %v2949 = vor.u32 %v2948, 8388608
        %v2950 = vsub.s32 0, %v2949
        %v2951 = vadd.s32 %v2946, 1
        %vm2952 = vcmp.gt.s32.totalorder %v2951, 0
        %v2953 = vsel %vm2952, %v2951, 0
        %v2954 = vshrl.u32 %v2953, 5
        %v2955 = vand.u32 %v2953, 31
        %v2956 = vsub.s32 32, %v2955
        %v2957 = vshrl.u32 683565275, %v2956
        %v2958 = vshll.u32 683565275, %v2955
        %v2959 = vshrl.u32 2475754826, %v2956
        %v2960 = vor.u32 %v2958, %v2959
        %v2961 = vshll.u32 2475754826, %v2955
        %v2962 = vshrl.u32 2131351028, %v2956
        %v2963 = vor.u32 %v2961, %v2962
        %v2964 = vshll.u32 2131351028, %v2955
        %v2965 = vshrl.u32 2102212464, %v2956
        %v2966 = vor.u32 %v2964, %v2965
        %v2967 = vshll.u32 2102212464, %v2955
        %v2968 = vshrl.u32 920167782, %v2956
        %v2969 = vor.u32 %v2967, %v2968
        %v2970 = vshll.u32 920167782, %v2955
        %v2971 = vshrl.u32 1326507024, %v2956
        %v2972 = vor.u32 %v2970, %v2971
        %vm2973 = vcmp.lt.s32.totalorder %v2954, 1
        %vm2974 = vcmp.lt.s32.totalorder %v2954, 2
        %vm2975 = vcmp.lt.s32.totalorder %v2954, 3
        %vm2976 = vcmp.lt.s32.totalorder %v2954, 4
        %v2977 = vsel %vm2973, %v2957, %v2960
        %v2978 = vsel %vm2976, %v2966, 2102212464
        %v2979 = vsel %vm2975, %v2963, %v2978
        %v2980 = vsel %vm2974, %v2977, %v2979
        %v2981 = vsel %vm2973, %v2960, %v2963
        %v2982 = vsel %vm2976, %v2969, 920167782
        %v2983 = vsel %vm2975, %v2966, %v2982
        %v2984 = vsel %vm2974, %v2981, %v2983
        %v2985 = vsel %vm2973, %v2963, %v2966
        %v2986 = vsel %vm2976, %v2972, 1326507024
        %v2987 = vsel %vm2975, %v2969, %v2986
        %v2988 = vsel %vm2974, %v2985, %v2987
        %v2989 = vshll.u32 %v2949, 8
        %v2990 = vmul.u32.u64.compose %v2989, %v2988
        %v2991 = vextract.low.u32 %v2990
        %v2992 = vextract.high.u32 %v2990
        %v2993 = vmul.u32.u64.compose %v2989, %v2984
        %v2994 = vextract.low.u32 %v2993
        %v2995 = vextract.high.u32 %v2993
        %v2996 = vmul.u32 %v2989, %v2980
        %v2997 = vadd.s32 %v2992, %v2994
        %vm2998 = vc.u32 %v2992, %v2994
        %v2999 = vadd.s32 %v2995, 1
        %v3000 = vsel %vm2998, %v2999, %v2995
        %v3001 = vadd.s32 %v2996, %v3000
        %v3002 = vadd.s32 %v3001, 536870912
        %v3003 = vshrl.u32 %v3002, 30
        %v3004 = vshll.u32 %v3003, 30
        %v3005 = vsub.s32 %v3001, %v3004
        %vm3006 = vcmp.lt.s32.totalorder %v3005, 0
        %v3007 = vsub.s32 0, %v3005
        %v3008 = vsel %vm3006, %v3007, %v3005
        %v3009 = vclz %v3008
        %v3010 = vsub.s32 %v3009, 2
        %vm3011 = vcmp.gt.s32.totalorder 0, %v3010
        %v3012 = vsel %vm3011, 0, %v3010
        %v3013 = vsub.s32 32, %v3012
        %v3014 = vshll.u32 %v3005, %v3012
        %v3015 = vshrl.u32 %v2997, %v3013
        %v3016 = vor.u32 %v3014, %v3015
        %v3017 = vsub.s32 4294967266, %v3012
        %v3018 = vadd.s32 %v3017, 127
        %v3019 = vshll.u32 %v3018, 23
        %v3020 = vor.u32 4788187, %v3019
        %v3021 = vand.u32 2147483647, %v3020
        %v3023 = vcvt.s32.f32 %v3016
        %v3024 = vmul.f32 %v3023, %v3021
        %v3025 = vxor.u32 %v3024, 2147483648
        %v3026 = vsel %vm2943, %v3025, %v3024
        %v3027 = vsub.s32 4, %v3003
        %v3028 = vsel %vm2943, %v3027, %v3003
        %v3029 = vsel %vm2942, %v809, %v3026
        %v3030 = vsel %vm2942, 0, %v3028
        %v3031 = vcosq.f32.pop %v3029
        %v3032 = vsinq.f32.pop %v3029
        %vm3033 = vweird.f32 %v809
        %v3034 = vadd.s32 %v3030, 3
        %v3035 = vand.u32 %v3034, 3
        %vm3036 = vcmp.lt.s32.totalorder %v3035, 2
        %vm3037 = vcmp.eq.s32.totalorder %v3035, 0
        %v3038 = vxor.u32 %v3032, 2147483648
        %v3039 = vsel %vm3037, %v3031, %v3038
        %vm3040 = vcmp.eq.s32.totalorder %v3035, 2
        %v3041 = vxor.u32 %v3031, 2147483648
        %v3042 = vsel %vm3040, %v3041, %v3032
        %v3043 = vsel %vm3036, %v3039, %v3042
        %v3044 = vsel %vm3033, nan, %v3043
        %v3045 = vand.u32 2147483647, %v810
        %vm3046 = vcmp.le.f32.partialorder %v3045, 0.7853982
        %vm3047 = vcmp.lt.s32.totalorder %v810, 0
        %v3048 = vand.u32 %v810, 2139095040
        %v3049 = vshrl.u32 %v3048, 23
        %v3050 = vsub.s32 %v3049, 127
        %v3051 = vand.u32 2147483647, %v810
        %v3052 = vand.u32 %v3051, 8388607
        %v3053 = vor.u32 %v3052, 8388608
        %v3054 = vsub.s32 0, %v3053
        %v3055 = vadd.s32 %v3050, 1
        %vm3056 = vcmp.gt.s32.totalorder %v3055, 0
        %v3057 = vsel %vm3056, %v3055, 0
        %v3058 = vshrl.u32 %v3057, 5
        %v3059 = vand.u32 %v3057, 31
        %v3060 = vsub.s32 32, %v3059
        %v3061 = vshrl.u32 683565275, %v3060
        %v3062 = vshll.u32 683565275, %v3059
        %v3063 = vshrl.u32 2475754826, %v3060
        %v3064 = vor.u32 %v3062, %v3063
        %v3065 = vshll.u32 2475754826, %v3059
        %v3066 = vshrl.u32 2131351028, %v3060
        %v3067 = vor.u32 %v3065, %v3066
        %v3068 = vshll.u32 2131351028, %v3059
        %v3069 = vshrl.u32 2102212464, %v3060
        %v3070 = vor.u32 %v3068, %v3069
        %v3071 = vshll.u32 2102212464, %v3059
        %v3072 = vshrl.u32 920167782, %v3060
        %v3073 = vor.u32 %v3071, %v3072
        %v3074 = vshll.u32 920167782, %v3059
        %v3075 = vshrl.u32 1326507024, %v3060
        %v3076 = vor.u32 %v3074, %v3075
        %vm3077 = vcmp.lt.s32.totalorder %v3058, 1
        %vm3078 = vcmp.lt.s32.totalorder %v3058, 2
        %vm3079 = vcmp.lt.s32.totalorder %v3058, 3
        %vm3080 = vcmp.lt.s32.totalorder %v3058, 4
        %v3081 = vsel %vm3077, %v3061, %v3064
        %v3082 = vsel %vm3080, %v3070, 2102212464
        %v3083 = vsel %vm3079, %v3067, %v3082
        %v3084 = vsel %vm3078, %v3081, %v3083
        %v3085 = vsel %vm3077, %v3064, %v3067
        %v3086 = vsel %vm3080, %v3073, 920167782
        %v3087 = vsel %vm3079, %v3070, %v3086
        %v3088 = vsel %vm3078, %v3085, %v3087
        %v3089 = vsel %vm3077, %v3067, %v3070
        %v3090 = vsel %vm3080, %v3076, 1326507024
        %v3091 = vsel %vm3079, %v3073, %v3090
        %v3092 = vsel %vm3078, %v3089, %v3091
        %v3093 = vshll.u32 %v3053, 8
        %v3094 = vmul.u32.u64.compose %v3093, %v3092
        %v3095 = vextract.low.u32 %v3094
        %v3096 = vextract.high.u32 %v3094
        %v3097 = vmul.u32.u64.compose %v3093, %v3088
        %v3098 = vextract.low.u32 %v3097
        %v3099 = vextract.high.u32 %v3097
        %v3100 = vmul.u32 %v3093, %v3084
        %v3101 = vadd.s32 %v3096, %v3098
        %vm3102 = vc.u32 %v3096, %v3098
        %v3103 = vadd.s32 %v3099, 1
        %v3104 = vsel %vm3102, %v3103, %v3099
        %v3105 = vadd.s32 %v3100, %v3104
        %v3106 = vadd.s32 %v3105, 536870912
        %v3107 = vshrl.u32 %v3106, 30
        %v3108 = vshll.u32 %v3107, 30
        %v3109 = vsub.s32 %v3105, %v3108
        %vm3110 = vcmp.lt.s32.totalorder %v3109, 0
        %v3111 = vsub.s32 0, %v3109
        %v3112 = vsel %vm3110, %v3111, %v3109
        %v3113 = vclz %v3112
        %v3114 = vsub.s32 %v3113, 2
        %vm3115 = vcmp.gt.s32.totalorder 0, %v3114
        %v3116 = vsel %vm3115, 0, %v3114
        %v3117 = vsub.s32 32, %v3116
        %v3118 = vshll.u32 %v3109, %v3116
        %v3119 = vshrl.u32 %v3101, %v3117
        %v3120 = vor.u32 %v3118, %v3119
        %v3121 = vsub.s32 4294967266, %v3116
        %v3122 = vadd.s32 %v3121, 127
        %v3123 = vshll.u32 %v3122, 23
        %v3124 = vor.u32 4788187, %v3123
        %v3125 = vand.u32 2147483647, %v3124
        %v3127 = vcvt.s32.f32 %v3120
        %v3128 = vmul.f32 %v3127, %v3125
        %v3129 = vxor.u32 %v3128, 2147483648
        %v3130 = vsel %vm3047, %v3129, %v3128
        %v3131 = vsub.s32 4, %v3107
        %v3132 = vsel %vm3047, %v3131, %v3107
        %v3133 = vsel %vm3046, %v810, %v3130
        %v3134 = vsel %vm3046, 0, %v3132
        %v3135 = vcosq.f32.pop %v3133
        %v3136 = vsinq.f32.pop %v3133
        %vm3137 = vweird.f32 %v810
        %v3138 = vadd.s32 %v3134, 3
        %v3139 = vand.u32 %v3138, 3
        %vm3140 = vcmp.lt.s32.totalorder %v3139, 2
        %vm3141 = vcmp.eq.s32.totalorder %v3139, 0
        %v3142 = vxor.u32 %v3136, 2147483648
        %v3143 = vsel %vm3141, %v3135, %v3142
        %vm3144 = vcmp.eq.s32.totalorder %v3139, 2
        %v3145 = vxor.u32 %v3135, 2147483648
        %v3146 = vsel %vm3144, %v3145, %v3136
        %v3147 = vsel %vm3140, %v3143, %v3146
        %v3148 = vsel %vm3137, nan, %v3147
        %v3149 = vand.u32 2147483647, %v811
        %vm3150 = vcmp.le.f32.partialorder %v3149, 0.7853982
        %vm3151 = vcmp.lt.s32.totalorder %v811, 0
        %v3152 = vand.u32 %v811, 2139095040
        %v3153 = vshrl.u32 %v3152, 23
        %v3154 = vsub.s32 %v3153, 127
        %v3155 = vand.u32 2147483647, %v811
        %v3156 = vand.u32 %v3155, 8388607
        %v3157 = vor.u32 %v3156, 8388608
        %v3158 = vsub.s32 0, %v3157
        %v3159 = vadd.s32 %v3154, 1
        %vm3160 = vcmp.gt.s32.totalorder %v3159, 0
        %v3161 = vsel %vm3160, %v3159, 0
        %v3162 = vshrl.u32 %v3161, 5
        %v3163 = vand.u32 %v3161, 31
        %v3164 = vsub.s32 32, %v3163
        %v3165 = vshrl.u32 683565275, %v3164
        %v3166 = vshll.u32 683565275, %v3163
        %v3167 = vshrl.u32 2475754826, %v3164
        %v3168 = vor.u32 %v3166, %v3167
        %v3169 = vshll.u32 2475754826, %v3163
        %v3170 = vshrl.u32 2131351028, %v3164
        %v3171 = vor.u32 %v3169, %v3170
        %v3172 = vshll.u32 2131351028, %v3163
        %v3173 = vshrl.u32 2102212464, %v3164
        %v3174 = vor.u32 %v3172, %v3173
        %v3175 = vshll.u32 2102212464, %v3163
        %v3176 = vshrl.u32 920167782, %v3164
        %v3177 = vor.u32 %v3175, %v3176
        %v3178 = vshll.u32 920167782, %v3163
        %v3179 = vshrl.u32 1326507024, %v3164
        %v3180 = vor.u32 %v3178, %v3179
        %vm3181 = vcmp.lt.s32.totalorder %v3162, 1
        %vm3182 = vcmp.lt.s32.totalorder %v3162, 2
        %vm3183 = vcmp.lt.s32.totalorder %v3162, 3
        %vm3184 = vcmp.lt.s32.totalorder %v3162, 4
        %v3185 = vsel %vm3181, %v3165, %v3168
        %v3186 = vsel %vm3184, %v3174, 2102212464
        %v3187 = vsel %vm3183, %v3171, %v3186
        %v3188 = vsel %vm3182, %v3185, %v3187
        %v3189 = vsel %vm3181, %v3168, %v3171
        %v3190 = vsel %vm3184, %v3177, 920167782
        %v3191 = vsel %vm3183, %v3174, %v3190
        %v3192 = vsel %vm3182, %v3189, %v3191
        %v3193 = vsel %vm3181, %v3171, %v3174
        %v3194 = vsel %vm3184, %v3180, 1326507024
        %v3195 = vsel %vm3183, %v3177, %v3194
        %v3196 = vsel %vm3182, %v3193, %v3195
        %v3197 = vshll.u32 %v3157, 8
        %v3198 = vmul.u32.u64.compose %v3197, %v3196
        %v3199 = vextract.low.u32 %v3198
        %v3200 = vextract.high.u32 %v3198
        %v3201 = vmul.u32.u64.compose %v3197, %v3192
        %v3202 = vextract.low.u32 %v3201
        %v3203 = vextract.high.u32 %v3201
        %v3204 = vmul.u32 %v3197, %v3188
        %v3205 = vadd.s32 %v3200, %v3202
        %vm3206 = vc.u32 %v3200, %v3202
        %v3207 = vadd.s32 %v3203, 1
        %v3208 = vsel %vm3206, %v3207, %v3203
        %v3209 = vadd.s32 %v3204, %v3208
        %v3210 = vadd.s32 %v3209, 536870912
        %v3211 = vshrl.u32 %v3210, 30
        %v3212 = vshll.u32 %v3211, 30
        %v3213 = vsub.s32 %v3209, %v3212
        %vm3214 = vcmp.lt.s32.totalorder %v3213, 0
        %v3215 = vsub.s32 0, %v3213
        %v3216 = vsel %vm3214, %v3215, %v3213
        %v3217 = vclz %v3216
        %v3218 = vsub.s32 %v3217, 2
        %vm3219 = vcmp.gt.s32.totalorder 0, %v3218
        %v3220 = vsel %vm3219, 0, %v3218
        %v3221 = vsub.s32 32, %v3220
        %v3222 = vshll.u32 %v3213, %v3220
        %v3223 = vshrl.u32 %v3205, %v3221
        %v3224 = vor.u32 %v3222, %v3223
        %v3225 = vsub.s32 4294967266, %v3220
        %v3226 = vadd.s32 %v3225, 127
        %v3227 = vshll.u32 %v3226, 23
        %v3228 = vor.u32 4788187, %v3227
        %v3229 = vand.u32 2147483647, %v3228
        %v3231 = vcvt.s32.f32 %v3224
        %v3232 = vmul.f32 %v3231, %v3229
        %v3233 = vxor.u32 %v3232, 2147483648
        %v3234 = vsel %vm3151, %v3233, %v3232
        %v3235 = vsub.s32 4, %v3211
        %v3236 = vsel %vm3151, %v3235, %v3211
        %v3237 = vsel %vm3150, %v811, %v3234
        %v3238 = vsel %vm3150, 0, %v3236
        %v3239 = vcosq.f32.pop %v3237
        %v3240 = vsinq.f32.pop %v3237
        %vm3241 = vweird.f32 %v811
        %v3242 = vadd.s32 %v3238, 3
        %v3243 = vand.u32 %v3242, 3
        %vm3244 = vcmp.lt.s32.totalorder %v3243, 2
        %vm3245 = vcmp.eq.s32.totalorder %v3243, 0
        %v3246 = vxor.u32 %v3240, 2147483648
        %v3247 = vsel %vm3245, %v3239, %v3246
        %vm3248 = vcmp.eq.s32.totalorder %v3243, 2
        %v3249 = vxor.u32 %v3239, 2147483648
        %v3250 = vsel %vm3248, %v3249, %v3240
        %v3251 = vsel %vm3244, %v3247, %v3250
        %v3252 = vsel %vm3241, nan, %v3251
        %v3253 = vand.u32 2147483647, %v812
        %vm3254 = vcmp.le.f32.partialorder %v3253, 0.7853982
        %vm3255 = vcmp.lt.s32.totalorder %v812, 0
        %v3256 = vand.u32 %v812, 2139095040
        %v3257 = vshrl.u32 %v3256, 23
        %v3258 = vsub.s32 %v3257, 127
        %v3259 = vand.u32 2147483647, %v812
        %v3260 = vand.u32 %v3259, 8388607
        %v3261 = vor.u32 %v3260, 8388608
        %v3262 = vsub.s32 0, %v3261
        %v3263 = vadd.s32 %v3258, 1
        %vm3264 = vcmp.gt.s32.totalorder %v3263, 0
        %v3265 = vsel %vm3264, %v3263, 0
        %v3266 = vshrl.u32 %v3265, 5
        %v3267 = vand.u32 %v3265, 31
        %v3268 = vsub.s32 32, %v3267
        %v3269 = vshrl.u32 683565275, %v3268
        %v3270 = vshll.u32 683565275, %v3267
        %v3271 = vshrl.u32 2475754826, %v3268
        %v3272 = vor.u32 %v3270, %v3271
        %v3273 = vshll.u32 2475754826, %v3267
        %v3274 = vshrl.u32 2131351028, %v3268
        %v3275 = vor.u32 %v3273, %v3274
        %v3276 = vshll.u32 2131351028, %v3267
        %v3277 = vshrl.u32 2102212464, %v3268
        %v3278 = vor.u32 %v3276, %v3277
        %v3279 = vshll.u32 2102212464, %v3267
        %v3280 = vshrl.u32 920167782, %v3268
        %v3281 = vor.u32 %v3279, %v3280
        %v3282 = vshll.u32 920167782, %v3267
        %v3283 = vshrl.u32 1326507024, %v3268
        %v3284 = vor.u32 %v3282, %v3283
        %vm3285 = vcmp.lt.s32.totalorder %v3266, 1
        %vm3286 = vcmp.lt.s32.totalorder %v3266, 2
        %vm3287 = vcmp.lt.s32.totalorder %v3266, 3
        %vm3288 = vcmp.lt.s32.totalorder %v3266, 4
        %v3289 = vsel %vm3285, %v3269, %v3272
        %v3290 = vsel %vm3288, %v3278, 2102212464
        %v3291 = vsel %vm3287, %v3275, %v3290
        %v3292 = vsel %vm3286, %v3289, %v3291
        %v3293 = vsel %vm3285, %v3272, %v3275
        %v3294 = vsel %vm3288, %v3281, 920167782
        %v3295 = vsel %vm3287, %v3278, %v3294
        %v3296 = vsel %vm3286, %v3293, %v3295
        %v3297 = vsel %vm3285, %v3275, %v3278
        %v3298 = vsel %vm3288, %v3284, 1326507024
        %v3299 = vsel %vm3287, %v3281, %v3298
        %v3300 = vsel %vm3286, %v3297, %v3299
        %v3301 = vshll.u32 %v3261, 8
        %v3302 = vmul.u32.u64.compose %v3301, %v3300
        %v3303 = vextract.low.u32 %v3302
        %v3304 = vextract.high.u32 %v3302
        %v3305 = vmul.u32.u64.compose %v3301, %v3296
        %v3306 = vextract.low.u32 %v3305
        %v3307 = vextract.high.u32 %v3305
        %v3308 = vmul.u32 %v3301, %v3292
        %v3309 = vadd.s32 %v3304, %v3306
        %vm3310 = vc.u32 %v3304, %v3306
        %v3311 = vadd.s32 %v3307, 1
        %v3312 = vsel %vm3310, %v3311, %v3307
        %v3313 = vadd.s32 %v3308, %v3312
        %v3314 = vadd.s32 %v3313, 536870912
        %v3315 = vshrl.u32 %v3314, 30
        %v3316 = vshll.u32 %v3315, 30
        %v3317 = vsub.s32 %v3313, %v3316
        %vm3318 = vcmp.lt.s32.totalorder %v3317, 0
        %v3319 = vsub.s32 0, %v3317
        %v3320 = vsel %vm3318, %v3319, %v3317
        %v3321 = vclz %v3320
        %v3322 = vsub.s32 %v3321, 2
        %vm3323 = vcmp.gt.s32.totalorder 0, %v3322
        %v3324 = vsel %vm3323, 0, %v3322
        %v3325 = vsub.s32 32, %v3324
        %v3326 = vshll.u32 %v3317, %v3324
        %v3327 = vshrl.u32 %v3309, %v3325
        %v3328 = vor.u32 %v3326, %v3327
        %v3329 = vsub.s32 4294967266, %v3324
        %v3330 = vadd.s32 %v3329, 127
        %v3331 = vshll.u32 %v3330, 23
        %v3332 = vor.u32 4788187, %v3331
        %v3333 = vand.u32 2147483647, %v3332
        %v3335 = vcvt.s32.f32 %v3328
        %v3336 = vmul.f32 %v3335, %v3333
        %v3337 = vxor.u32 %v3336, 2147483648
        %v3338 = vsel %vm3255, %v3337, %v3336
        %v3339 = vsub.s32 4, %v3315
        %v3340 = vsel %vm3255, %v3339, %v3315
        %v3341 = vsel %vm3254, %v812, %v3338
        %v3342 = vsel %vm3254, 0, %v3340
        %v3343 = vcosq.f32.pop %v3341
        %v3344 = vsinq.f32.pop %v3341
        %vm3345 = vweird.f32 %v812
        %v3346 = vadd.s32 %v3342, 3
        %v3347 = vand.u32 %v3346, 3
        %vm3348 = vcmp.lt.s32.totalorder %v3347, 2
        %vm3349 = vcmp.eq.s32.totalorder %v3347, 0
        %v3350 = vxor.u32 %v3344, 2147483648
        %v3351 = vsel %vm3349, %v3343, %v3350
        %vm3352 = vcmp.eq.s32.totalorder %v3347, 2
        %v3353 = vxor.u32 %v3343, 2147483648
        %v3354 = vsel %vm3352, %v3353, %v3344
        %v3355 = vsel %vm3348, %v3351, %v3354
        %v3356 = vsel %vm3345, nan, %v3355
        %v3357 = vand.u32 2147483647, %v813
        %vm3358 = vcmp.le.f32.partialorder %v3357, 0.7853982
        %vm3359 = vcmp.lt.s32.totalorder %v813, 0
        %v3360 = vand.u32 %v813, 2139095040
        %v3361 = vshrl.u32 %v3360, 23
        %v3362 = vsub.s32 %v3361, 127
        %v3363 = vand.u32 2147483647, %v813
        %v3364 = vand.u32 %v3363, 8388607
        %v3365 = vor.u32 %v3364, 8388608
        %v3366 = vsub.s32 0, %v3365
        %v3367 = vadd.s32 %v3362, 1
        %vm3368 = vcmp.gt.s32.totalorder %v3367, 0
        %v3369 = vsel %vm3368, %v3367, 0
        %v3370 = vshrl.u32 %v3369, 5
        %v3371 = vand.u32 %v3369, 31
        %v3372 = vsub.s32 32, %v3371
        %v3373 = vshrl.u32 683565275, %v3372
        %v3374 = vshll.u32 683565275, %v3371
        %v3375 = vshrl.u32 2475754826, %v3372
        %v3376 = vor.u32 %v3374, %v3375
        %v3377 = vshll.u32 2475754826, %v3371
        %v3378 = vshrl.u32 2131351028, %v3372
        %v3379 = vor.u32 %v3377, %v3378
        %v3380 = vshll.u32 2131351028, %v3371
        %v3381 = vshrl.u32 2102212464, %v3372
        %v3382 = vor.u32 %v3380, %v3381
        %v3383 = vshll.u32 2102212464, %v3371
        %v3384 = vshrl.u32 920167782, %v3372
        %v3385 = vor.u32 %v3383, %v3384
        %v3386 = vshll.u32 920167782, %v3371
        %v3387 = vshrl.u32 1326507024, %v3372
        %v3388 = vor.u32 %v3386, %v3387
        %vm3389 = vcmp.lt.s32.totalorder %v3370, 1
        %vm3390 = vcmp.lt.s32.totalorder %v3370, 2
        %vm3391 = vcmp.lt.s32.totalorder %v3370, 3
        %vm3392 = vcmp.lt.s32.totalorder %v3370, 4
        %v3393 = vsel %vm3389, %v3373, %v3376
        %v3394 = vsel %vm3392, %v3382, 2102212464
        %v3395 = vsel %vm3391, %v3379, %v3394
        %v3396 = vsel %vm3390, %v3393, %v3395
        %v3397 = vsel %vm3389, %v3376, %v3379
        %v3398 = vsel %vm3392, %v3385, 920167782
        %v3399 = vsel %vm3391, %v3382, %v3398
        %v3400 = vsel %vm3390, %v3397, %v3399
        %v3401 = vsel %vm3389, %v3379, %v3382
        %v3402 = vsel %vm3392, %v3388, 1326507024
        %v3403 = vsel %vm3391, %v3385, %v3402
        %v3404 = vsel %vm3390, %v3401, %v3403
        %v3405 = vshll.u32 %v3365, 8
        %v3406 = vmul.u32.u64.compose %v3405, %v3404
        %v3407 = vextract.low.u32 %v3406
        %v3408 = vextract.high.u32 %v3406
        %v3409 = vmul.u32.u64.compose %v3405, %v3400
        %v3410 = vextract.low.u32 %v3409
        %v3411 = vextract.high.u32 %v3409
        %v3412 = vmul.u32 %v3405, %v3396
        %v3413 = vadd.s32 %v3408, %v3410
        %vm3414 = vc.u32 %v3408, %v3410
        %v3415 = vadd.s32 %v3411, 1
        %v3416 = vsel %vm3414, %v3415, %v3411
        %v3417 = vadd.s32 %v3412, %v3416
        %v3418 = vadd.s32 %v3417, 536870912
        %v3419 = vshrl.u32 %v3418, 30
        %v3420 = vshll.u32 %v3419, 30
        %v3421 = vsub.s32 %v3417, %v3420
        %vm3422 = vcmp.lt.s32.totalorder %v3421, 0
        %v3423 = vsub.s32 0, %v3421
        %v3424 = vsel %vm3422, %v3423, %v3421
        %v3425 = vclz %v3424
        %v3426 = vsub.s32 %v3425, 2
        %vm3427 = vcmp.gt.s32.totalorder 0, %v3426
        %v3428 = vsel %vm3427, 0, %v3426
        %v3429 = vsub.s32 32, %v3428
        %v3430 = vshll.u32 %v3421, %v3428
        %v3431 = vshrl.u32 %v3413, %v3429
        %v3432 = vor.u32 %v3430, %v3431
        %v3433 = vsub.s32 4294967266, %v3428
        %v3434 = vadd.s32 %v3433, 127
        %v3435 = vshll.u32 %v3434, 23
        %v3436 = vor.u32 4788187, %v3435
        %v3437 = vand.u32 2147483647, %v3436
        %v3439 = vcvt.s32.f32 %v3432
        %v3440 = vmul.f32 %v3439, %v3437
        %v3441 = vxor.u32 %v3440, 2147483648
        %v3442 = vsel %vm3359, %v3441, %v3440
        %v3443 = vsub.s32 4, %v3419
        %v3444 = vsel %vm3359, %v3443, %v3419
        %v3445 = vsel %vm3358, %v813, %v3442
        %v3446 = vsel %vm3358, 0, %v3444
        %v3447 = vcosq.f32.pop %v3445
        %v3448 = vsinq.f32.pop %v3445
        %vm3449 = vweird.f32 %v813
        %v3450 = vadd.s32 %v3446, 3
        %v3451 = vand.u32 %v3450, 3
        %vm3452 = vcmp.lt.s32.totalorder %v3451, 2
        %vm3453 = vcmp.eq.s32.totalorder %v3451, 0
        %v3454 = vxor.u32 %v3448, 2147483648
        %v3455 = vsel %vm3453, %v3447, %v3454
        %vm3456 = vcmp.eq.s32.totalorder %v3451, 2
        %v3457 = vxor.u32 %v3447, 2147483648
        %v3458 = vsel %vm3456, %v3457, %v3448
        %v3459 = vsel %vm3452, %v3455, %v3458
        %v3460 = vsel %vm3449, nan, %v3459
        %v3461 = vand.u32 2147483647, %v814
        %vm3462 = vcmp.le.f32.partialorder %v3461, 0.7853982
        %vm3463 = vcmp.lt.s32.totalorder %v814, 0
        %v3464 = vand.u32 %v814, 2139095040
        %v3465 = vshrl.u32 %v3464, 23
        %v3466 = vsub.s32 %v3465, 127
        %v3467 = vand.u32 2147483647, %v814
        %v3468 = vand.u32 %v3467, 8388607
        %v3469 = vor.u32 %v3468, 8388608
        %v3470 = vsub.s32 0, %v3469
        %v3471 = vadd.s32 %v3466, 1
        %vm3472 = vcmp.gt.s32.totalorder %v3471, 0
        %v3473 = vsel %vm3472, %v3471, 0
        %v3474 = vshrl.u32 %v3473, 5
        %v3475 = vand.u32 %v3473, 31
        %v3476 = vsub.s32 32, %v3475
        %v3477 = vshrl.u32 683565275, %v3476
        %v3478 = vshll.u32 683565275, %v3475
        %v3479 = vshrl.u32 2475754826, %v3476
        %v3480 = vor.u32 %v3478, %v3479
        %v3481 = vshll.u32 2475754826, %v3475
        %v3482 = vshrl.u32 2131351028, %v3476
        %v3483 = vor.u32 %v3481, %v3482
        %v3484 = vshll.u32 2131351028, %v3475
        %v3485 = vshrl.u32 2102212464, %v3476
        %v3486 = vor.u32 %v3484, %v3485
        %v3487 = vshll.u32 2102212464, %v3475
        %v3488 = vshrl.u32 920167782, %v3476
        %v3489 = vor.u32 %v3487, %v3488
        %v3490 = vshll.u32 920167782, %v3475
        %v3491 = vshrl.u32 1326507024, %v3476
        %v3492 = vor.u32 %v3490, %v3491
        %vm3493 = vcmp.lt.s32.totalorder %v3474, 1
        %vm3494 = vcmp.lt.s32.totalorder %v3474, 2
        %vm3495 = vcmp.lt.s32.totalorder %v3474, 3
        %vm3496 = vcmp.lt.s32.totalorder %v3474, 4
        %v3497 = vsel %vm3493, %v3477, %v3480
        %v3498 = vsel %vm3496, %v3486, 2102212464
        %v3499 = vsel %vm3495, %v3483, %v3498
        %v3500 = vsel %vm3494, %v3497, %v3499
        %v3501 = vsel %vm3493, %v3480, %v3483
        %v3502 = vsel %vm3496, %v3489, 920167782
        %v3503 = vsel %vm3495, %v3486, %v3502
        %v3504 = vsel %vm3494, %v3501, %v3503
        %v3505 = vsel %vm3493, %v3483, %v3486
        %v3506 = vsel %vm3496, %v3492, 1326507024
        %v3507 = vsel %vm3495, %v3489, %v3506
        %v3508 = vsel %vm3494, %v3505, %v3507
        %v3509 = vshll.u32 %v3469, 8
        %v3510 = vmul.u32.u64.compose %v3509, %v3508
        %v3511 = vextract.low.u32 %v3510
        %v3512 = vextract.high.u32 %v3510
        %v3513 = vmul.u32.u64.compose %v3509, %v3504
        %v3514 = vextract.low.u32 %v3513
        %v3515 = vextract.high.u32 %v3513
        %v3516 = vmul.u32 %v3509, %v3500
        %v3517 = vadd.s32 %v3512, %v3514
        %vm3518 = vc.u32 %v3512, %v3514
        %v3519 = vadd.s32 %v3515, 1
        %v3520 = vsel %vm3518, %v3519, %v3515
        %v3521 = vadd.s32 %v3516, %v3520
        %v3522 = vadd.s32 %v3521, 536870912
        %v3523 = vshrl.u32 %v3522, 30
        %v3524 = vshll.u32 %v3523, 30
        %v3525 = vsub.s32 %v3521, %v3524
        %vm3526 = vcmp.lt.s32.totalorder %v3525, 0
        %v3527 = vsub.s32 0, %v3525
        %v3528 = vsel %vm3526, %v3527, %v3525
        %v3529 = vclz %v3528
        %v3530 = vsub.s32 %v3529, 2
        %vm3531 = vcmp.gt.s32.totalorder 0, %v3530
        %v3532 = vsel %vm3531, 0, %v3530
        %v3533 = vsub.s32 32, %v3532
        %v3534 = vshll.u32 %v3525, %v3532
        %v3535 = vshrl.u32 %v3517, %v3533
        %v3536 = vor.u32 %v3534, %v3535
        %v3537 = vsub.s32 4294967266, %v3532
        %v3538 = vadd.s32 %v3537, 127
        %v3539 = vshll.u32 %v3538, 23
        %v3540 = vor.u32 4788187, %v3539
        %v3541 = vand.u32 2147483647, %v3540
        %v3543 = vcvt.s32.f32 %v3536
        %v3544 = vmul.f32 %v3543, %v3541
        %v3545 = vxor.u32 %v3544, 2147483648
        %v3546 = vsel %vm3463, %v3545, %v3544
        %v3547 = vsub.s32 4, %v3523
        %v3548 = vsel %vm3463, %v3547, %v3523
        %v3549 = vsel %vm3462, %v814, %v3546
        %v3550 = vsel %vm3462, 0, %v3548
        %v3551 = vcosq.f32.pop %v3549
        %v3552 = vsinq.f32.pop %v3549
        %vm3553 = vweird.f32 %v814
        %v3554 = vadd.s32 %v3550, 3
        %v3555 = vand.u32 %v3554, 3
        %vm3556 = vcmp.lt.s32.totalorder %v3555, 2
        %vm3557 = vcmp.eq.s32.totalorder %v3555, 0
        %v3558 = vxor.u32 %v3552, 2147483648
        %v3559 = vsel %vm3557, %v3551, %v3558
        %vm3560 = vcmp.eq.s32.totalorder %v3555, 2
        %v3561 = vxor.u32 %v3551, 2147483648
        %v3562 = vsel %vm3560, %v3561, %v3552
        %v3563 = vsel %vm3556, %v3559, %v3562
        %v3564 = vsel %vm3553, nan, %v3563
        %v3565 = vand.u32 2147483647, %v815
        %vm3566 = vcmp.le.f32.partialorder %v3565, 0.7853982
        %vm3567 = vcmp.lt.s32.totalorder %v815, 0
        %v3568 = vand.u32 %v815, 2139095040
        %v3569 = vshrl.u32 %v3568, 23
        %v3570 = vsub.s32 %v3569, 127
        %v3571 = vand.u32 2147483647, %v815
        %v3572 = vand.u32 %v3571, 8388607
        %v3573 = vor.u32 %v3572, 8388608
        %v3574 = vsub.s32 0, %v3573
        %v3575 = vadd.s32 %v3570, 1
        %vm3576 = vcmp.gt.s32.totalorder %v3575, 0
        %v3577 = vsel %vm3576, %v3575, 0
        %v3578 = vshrl.u32 %v3577, 5
        %v3579 = vand.u32 %v3577, 31
        %v3580 = vsub.s32 32, %v3579
        %v3581 = vshrl.u32 683565275, %v3580
        %v3582 = vshll.u32 683565275, %v3579
        %v3583 = vshrl.u32 2475754826, %v3580
        %v3584 = vor.u32 %v3582, %v3583
        %v3585 = vshll.u32 2475754826, %v3579
        %v3586 = vshrl.u32 2131351028, %v3580
        %v3587 = vor.u32 %v3585, %v3586
        %v3588 = vshll.u32 2131351028, %v3579
        %v3589 = vshrl.u32 2102212464, %v3580
        %v3590 = vor.u32 %v3588, %v3589
        %v3591 = vshll.u32 2102212464, %v3579
        %v3592 = vshrl.u32 920167782, %v3580
        %v3593 = vor.u32 %v3591, %v3592
        %v3594 = vshll.u32 920167782, %v3579
        %v3595 = vshrl.u32 1326507024, %v3580
        %v3596 = vor.u32 %v3594, %v3595
        %vm3597 = vcmp.lt.s32.totalorder %v3578, 1
        %vm3598 = vcmp.lt.s32.totalorder %v3578, 2
        %vm3599 = vcmp.lt.s32.totalorder %v3578, 3
        %vm3600 = vcmp.lt.s32.totalorder %v3578, 4
        %v3601 = vsel %vm3597, %v3581, %v3584
        %v3602 = vsel %vm3600, %v3590, 2102212464
        %v3603 = vsel %vm3599, %v3587, %v3602
        %v3604 = vsel %vm3598, %v3601, %v3603
        %v3605 = vsel %vm3597, %v3584, %v3587
        %v3606 = vsel %vm3600, %v3593, 920167782
        %v3607 = vsel %vm3599, %v3590, %v3606
        %v3608 = vsel %vm3598, %v3605, %v3607
        %v3609 = vsel %vm3597, %v3587, %v3590
        %v3610 = vsel %vm3600, %v3596, 1326507024
        %v3611 = vsel %vm3599, %v3593, %v3610
        %v3612 = vsel %vm3598, %v3609, %v3611
        %v3613 = vshll.u32 %v3573, 8
        %v3614 = vmul.u32.u64.compose %v3613, %v3612
        %v3615 = vextract.low.u32 %v3614
        %v3616 = vextract.high.u32 %v3614
        %v3617 = vmul.u32.u64.compose %v3613, %v3608
        %v3618 = vextract.low.u32 %v3617
        %v3619 = vextract.high.u32 %v3617
        %v3620 = vmul.u32 %v3613, %v3604
        %v3621 = vadd.s32 %v3616, %v3618
        %vm3622 = vc.u32 %v3616, %v3618
        %v3623 = vadd.s32 %v3619, 1
        %v3624 = vsel %vm3622, %v3623, %v3619
        %v3625 = vadd.s32 %v3620, %v3624
        %v3626 = vadd.s32 %v3625, 536870912
        %v3627 = vshrl.u32 %v3626, 30
        %v3628 = vshll.u32 %v3627, 30
        %v3629 = vsub.s32 %v3625, %v3628
        %vm3630 = vcmp.lt.s32.totalorder %v3629, 0
        %v3631 = vsub.s32 0, %v3629
        %v3632 = vsel %vm3630, %v3631, %v3629
        %v3633 = vclz %v3632
        %v3634 = vsub.s32 %v3633, 2
        %vm3635 = vcmp.gt.s32.totalorder 0, %v3634
        %v3636 = vsel %vm3635, 0, %v3634
        %v3637 = vsub.s32 32, %v3636
        %v3638 = vshll.u32 %v3629, %v3636
        %v3639 = vshrl.u32 %v3621, %v3637
        %v3640 = vor.u32 %v3638, %v3639
        %v3641 = vsub.s32 4294967266, %v3636
        %v3642 = vadd.s32 %v3641, 127
        %v3643 = vshll.u32 %v3642, 23
        %v3644 = vor.u32 4788187, %v3643
        %v3645 = vand.u32 2147483647, %v3644
        %v3647 = vcvt.s32.f32 %v3640
        %v3648 = vmul.f32 %v3647, %v3645
        %v3649 = vxor.u32 %v3648, 2147483648
        %v3650 = vsel %vm3567, %v3649, %v3648
        %v3651 = vsub.s32 4, %v3627
        %v3652 = vsel %vm3567, %v3651, %v3627
        %v3653 = vsel %vm3566, %v815, %v3650
        %v3654 = vsel %vm3566, 0, %v3652
        %v3655 = vcosq.f32.pop %v3653
        %v3656 = vsinq.f32.pop %v3653
        %vm3657 = vweird.f32 %v815
        %v3658 = vadd.s32 %v3654, 3
        %v3659 = vand.u32 %v3658, 3
        %vm3660 = vcmp.lt.s32.totalorder %v3659, 2
        %vm3661 = vcmp.eq.s32.totalorder %v3659, 0
        %v3662 = vxor.u32 %v3656, 2147483648
        %v3663 = vsel %vm3661, %v3655, %v3662
        %vm3664 = vcmp.eq.s32.totalorder %v3659, 2
        %v3665 = vxor.u32 %v3655, 2147483648
        %v3666 = vsel %vm3664, %v3665, %v3656
        %v3667 = vsel %vm3660, %v3663, %v3666
        %v3668 = vsel %vm3657, nan, %v3667
        %v3669 = vand.u32 2147483647, %v816
        %vm3670 = vcmp.le.f32.partialorder %v3669, 0.7853982
        %vm3671 = vcmp.lt.s32.totalorder %v816, 0
        %v3672 = vand.u32 %v816, 2139095040
        %v3673 = vshrl.u32 %v3672, 23
        %v3674 = vsub.s32 %v3673, 127
        %v3675 = vand.u32 2147483647, %v816
        %v3676 = vand.u32 %v3675, 8388607
        %v3677 = vor.u32 %v3676, 8388608
        %v3678 = vsub.s32 0, %v3677
        %v3679 = vadd.s32 %v3674, 1
        %vm3680 = vcmp.gt.s32.totalorder %v3679, 0
        %v3681 = vsel %vm3680, %v3679, 0
        %v3682 = vshrl.u32 %v3681, 5
        %v3683 = vand.u32 %v3681, 31
        %v3684 = vsub.s32 32, %v3683
        %v3685 = vshrl.u32 683565275, %v3684
        %v3686 = vshll.u32 683565275, %v3683
        %v3687 = vshrl.u32 2475754826, %v3684
        %v3688 = vor.u32 %v3686, %v3687
        %v3689 = vshll.u32 2475754826, %v3683
        %v3690 = vshrl.u32 2131351028, %v3684
        %v3691 = vor.u32 %v3689, %v3690
        %v3692 = vshll.u32 2131351028, %v3683
        %v3693 = vshrl.u32 2102212464, %v3684
        %v3694 = vor.u32 %v3692, %v3693
        %v3695 = vshll.u32 2102212464, %v3683
        %v3696 = vshrl.u32 920167782, %v3684
        %v3697 = vor.u32 %v3695, %v3696
        %v3698 = vshll.u32 920167782, %v3683
        %v3699 = vshrl.u32 1326507024, %v3684
        %v3700 = vor.u32 %v3698, %v3699
        %vm3701 = vcmp.lt.s32.totalorder %v3682, 1
        %vm3702 = vcmp.lt.s32.totalorder %v3682, 2
        %vm3703 = vcmp.lt.s32.totalorder %v3682, 3
        %vm3704 = vcmp.lt.s32.totalorder %v3682, 4
        %v3705 = vsel %vm3701, %v3685, %v3688
        %v3706 = vsel %vm3704, %v3694, 2102212464
        %v3707 = vsel %vm3703, %v3691, %v3706
        %v3708 = vsel %vm3702, %v3705, %v3707
        %v3709 = vsel %vm3701, %v3688, %v3691
        %v3710 = vsel %vm3704, %v3697, 920167782
        %v3711 = vsel %vm3703, %v3694, %v3710
        %v3712 = vsel %vm3702, %v3709, %v3711
        %v3713 = vsel %vm3701, %v3691, %v3694
        %v3714 = vsel %vm3704, %v3700, 1326507024
        %v3715 = vsel %vm3703, %v3697, %v3714
        %v3716 = vsel %vm3702, %v3713, %v3715
        %v3717 = vshll.u32 %v3677, 8
        %v3718 = vmul.u32.u64.compose %v3717, %v3716
        %v3719 = vextract.low.u32 %v3718
        %v3720 = vextract.high.u32 %v3718
        %v3721 = vmul.u32.u64.compose %v3717, %v3712
        %v3722 = vextract.low.u32 %v3721
        %v3723 = vextract.high.u32 %v3721
        %v3724 = vmul.u32 %v3717, %v3708
        %v3725 = vadd.s32 %v3720, %v3722
        %vm3726 = vc.u32 %v3720, %v3722
        %v3727 = vadd.s32 %v3723, 1
        %v3728 = vsel %vm3726, %v3727, %v3723
        %v3729 = vadd.s32 %v3724, %v3728
        %v3730 = vadd.s32 %v3729, 536870912
        %v3731 = vshrl.u32 %v3730, 30
        %v3732 = vshll.u32 %v3731, 30
        %v3733 = vsub.s32 %v3729, %v3732
        %vm3734 = vcmp.lt.s32.totalorder %v3733, 0
        %v3735 = vsub.s32 0, %v3733
        %v3736 = vsel %vm3734, %v3735, %v3733
        %v3737 = vclz %v3736
        %v3738 = vsub.s32 %v3737, 2
        %vm3739 = vcmp.gt.s32.totalorder 0, %v3738
        %v3740 = vsel %vm3739, 0, %v3738
        %v3741 = vsub.s32 32, %v3740
        %v3742 = vshll.u32 %v3733, %v3740
        %v3743 = vshrl.u32 %v3725, %v3741
        %v3744 = vor.u32 %v3742, %v3743
        %v3745 = vsub.s32 4294967266, %v3740
        %v3746 = vadd.s32 %v3745, 127
        %v3747 = vshll.u32 %v3746, 23
        %v3748 = vor.u32 4788187, %v3747
        %v3749 = vand.u32 2147483647, %v3748
        %v3751 = vcvt.s32.f32 %v3744
        %v3752 = vmul.f32 %v3751, %v3749
        %v3753 = vxor.u32 %v3752, 2147483648
        %v3754 = vsel %vm3671, %v3753, %v3752
        %v3755 = vsub.s32 4, %v3731
        %v3756 = vsel %vm3671, %v3755, %v3731
        %v3757 = vsel %vm3670, %v816, %v3754
        %v3758 = vsel %vm3670, 0, %v3756
        %v3759 = vcosq.f32.pop %v3757
        %v3760 = vsinq.f32.pop %v3757
        %vm3761 = vweird.f32 %v816
        %v3762 = vadd.s32 %v3758, 3
        %v3763 = vand.u32 %v3762, 3
        %vm3764 = vcmp.lt.s32.totalorder %v3763, 2
        %vm3765 = vcmp.eq.s32.totalorder %v3763, 0
        %v3766 = vxor.u32 %v3760, 2147483648
        %v3767 = vsel %vm3765, %v3759, %v3766
        %vm3768 = vcmp.eq.s32.totalorder %v3763, 2
        %v3769 = vxor.u32 %v3759, 2147483648
        %v3770 = vsel %vm3768, %v3769, %v3760
        %v3771 = vsel %vm3764, %v3767, %v3770
        %v3772 = vsel %vm3761, nan, %v3771
        %v3773 = vand.u32 2147483647, %v817
        %vm3774 = vcmp.le.f32.partialorder %v3773, 0.7853982
        %vm3775 = vcmp.lt.s32.totalorder %v817, 0
        %v3776 = vand.u32 %v817, 2139095040
        %v3777 = vshrl.u32 %v3776, 23
        %v3778 = vsub.s32 %v3777, 127
        %v3779 = vand.u32 2147483647, %v817
        %v3780 = vand.u32 %v3779, 8388607
        %v3781 = vor.u32 %v3780, 8388608
        %v3782 = vsub.s32 0, %v3781
        %v3783 = vadd.s32 %v3778, 1
        %vm3784 = vcmp.gt.s32.totalorder %v3783, 0
        %v3785 = vsel %vm3784, %v3783, 0
        %v3786 = vshrl.u32 %v3785, 5
        %v3787 = vand.u32 %v3785, 31
        %v3788 = vsub.s32 32, %v3787
        %v3789 = vshrl.u32 683565275, %v3788
        %v3790 = vshll.u32 683565275, %v3787
        %v3791 = vshrl.u32 2475754826, %v3788
        %v3792 = vor.u32 %v3790, %v3791
        %v3793 = vshll.u32 2475754826, %v3787
        %v3794 = vshrl.u32 2131351028, %v3788
        %v3795 = vor.u32 %v3793, %v3794
        %v3796 = vshll.u32 2131351028, %v3787
        %v3797 = vshrl.u32 2102212464, %v3788
        %v3798 = vor.u32 %v3796, %v3797
        %v3799 = vshll.u32 2102212464, %v3787
        %v3800 = vshrl.u32 920167782, %v3788
        %v3801 = vor.u32 %v3799, %v3800
        %v3802 = vshll.u32 920167782, %v3787
        %v3803 = vshrl.u32 1326507024, %v3788
        %v3804 = vor.u32 %v3802, %v3803
        %vm3805 = vcmp.lt.s32.totalorder %v3786, 1
        %vm3806 = vcmp.lt.s32.totalorder %v3786, 2
        %vm3807 = vcmp.lt.s32.totalorder %v3786, 3
        %vm3808 = vcmp.lt.s32.totalorder %v3786, 4
        %v3809 = vsel %vm3805, %v3789, %v3792
        %v3810 = vsel %vm3808, %v3798, 2102212464
        %v3811 = vsel %vm3807, %v3795, %v3810
        %v3812 = vsel %vm3806, %v3809, %v3811
        %v3813 = vsel %vm3805, %v3792, %v3795
        %v3814 = vsel %vm3808, %v3801, 920167782
        %v3815 = vsel %vm3807, %v3798, %v3814
        %v3816 = vsel %vm3806, %v3813, %v3815
        %v3817 = vsel %vm3805, %v3795, %v3798
        %v3818 = vsel %vm3808, %v3804, 1326507024
        %v3819 = vsel %vm3807, %v3801, %v3818
        %v3820 = vsel %vm3806, %v3817, %v3819
        %v3821 = vshll.u32 %v3781, 8
        %v3822 = vmul.u32.u64.compose %v3821, %v3820
        %v3823 = vextract.low.u32 %v3822
        %v3824 = vextract.high.u32 %v3822
        %v3825 = vmul.u32.u64.compose %v3821, %v3816
        %v3826 = vextract.low.u32 %v3825
        %v3827 = vextract.high.u32 %v3825
        %v3828 = vmul.u32 %v3821, %v3812
        %v3829 = vadd.s32 %v3824, %v3826
        %vm3830 = vc.u32 %v3824, %v3826
        %v3831 = vadd.s32 %v3827, 1
        %v3832 = vsel %vm3830, %v3831, %v3827
        %v3833 = vadd.s32 %v3828, %v3832
        %v3834 = vadd.s32 %v3833, 536870912
        %v3835 = vshrl.u32 %v3834, 30
        %v3836 = vshll.u32 %v3835, 30
        %v3837 = vsub.s32 %v3833, %v3836
        %vm3838 = vcmp.lt.s32.totalorder %v3837, 0
        %v3839 = vsub.s32 0, %v3837
        %v3840 = vsel %vm3838, %v3839, %v3837
        %v3841 = vclz %v3840
        %v3842 = vsub.s32 %v3841, 2
        %vm3843 = vcmp.gt.s32.totalorder 0, %v3842
        %v3844 = vsel %vm3843, 0, %v3842
        %v3845 = vsub.s32 32, %v3844
        %v3846 = vshll.u32 %v3837, %v3844
        %v3847 = vshrl.u32 %v3829, %v3845
        %v3848 = vor.u32 %v3846, %v3847
        %v3849 = vsub.s32 4294967266, %v3844
        %v3850 = vadd.s32 %v3849, 127
        %v3851 = vshll.u32 %v3850, 23
        %v3852 = vor.u32 4788187, %v3851
        %v3853 = vand.u32 2147483647, %v3852
        %v3855 = vcvt.s32.f32 %v3848
        %v3856 = vmul.f32 %v3855, %v3853
        %v3857 = vxor.u32 %v3856, 2147483648
        %v3858 = vsel %vm3775, %v3857, %v3856
        %v3859 = vsub.s32 4, %v3835
        %v3860 = vsel %vm3775, %v3859, %v3835
        %v3861 = vsel %vm3774, %v817, %v3858
        %v3862 = vsel %vm3774, 0, %v3860
        %v3863 = vcosq.f32.pop %v3861
        %v3864 = vsinq.f32.pop %v3861
        %vm3865 = vweird.f32 %v817
        %v3866 = vadd.s32 %v3862, 3
        %v3867 = vand.u32 %v3866, 3
        %vm3868 = vcmp.lt.s32.totalorder %v3867, 2
        %vm3869 = vcmp.eq.s32.totalorder %v3867, 0
        %v3870 = vxor.u32 %v3864, 2147483648
        %v3871 = vsel %vm3869, %v3863, %v3870
        %vm3872 = vcmp.eq.s32.totalorder %v3867, 2
        %v3873 = vxor.u32 %v3863, 2147483648
        %v3874 = vsel %vm3872, %v3873, %v3864
        %v3875 = vsel %vm3868, %v3871, %v3874
        %v3876 = vsel %vm3865, nan, %v3875
        %v3877 = vand.u32 2147483647, %v818
        %vm3878 = vcmp.le.f32.partialorder %v3877, 0.7853982
        %vm3879 = vcmp.lt.s32.totalorder %v818, 0
        %v3880 = vand.u32 %v818, 2139095040
        %v3881 = vshrl.u32 %v3880, 23
        %v3882 = vsub.s32 %v3881, 127
        %v3883 = vand.u32 2147483647, %v818
        %v3884 = vand.u32 %v3883, 8388607
        %v3885 = vor.u32 %v3884, 8388608
        %v3886 = vsub.s32 0, %v3885
        %v3887 = vadd.s32 %v3882, 1
        %vm3888 = vcmp.gt.s32.totalorder %v3887, 0
        %v3889 = vsel %vm3888, %v3887, 0
        %v3890 = vshrl.u32 %v3889, 5
        %v3891 = vand.u32 %v3889, 31
        %v3892 = vsub.s32 32, %v3891
        %v3893 = vshrl.u32 683565275, %v3892
        %v3894 = vshll.u32 683565275, %v3891
        %v3895 = vshrl.u32 2475754826, %v3892
        %v3896 = vor.u32 %v3894, %v3895
        %v3897 = vshll.u32 2475754826, %v3891
        %v3898 = vshrl.u32 2131351028, %v3892
        %v3899 = vor.u32 %v3897, %v3898
        %v3900 = vshll.u32 2131351028, %v3891
        %v3901 = vshrl.u32 2102212464, %v3892
        %v3902 = vor.u32 %v3900, %v3901
        %v3903 = vshll.u32 2102212464, %v3891
        %v3904 = vshrl.u32 920167782, %v3892
        %v3905 = vor.u32 %v3903, %v3904
        %v3906 = vshll.u32 920167782, %v3891
        %v3907 = vshrl.u32 1326507024, %v3892
        %v3908 = vor.u32 %v3906, %v3907
        %vm3909 = vcmp.lt.s32.totalorder %v3890, 1
        %vm3910 = vcmp.lt.s32.totalorder %v3890, 2
        %vm3911 = vcmp.lt.s32.totalorder %v3890, 3
        %vm3912 = vcmp.lt.s32.totalorder %v3890, 4
        %v3913 = vsel %vm3909, %v3893, %v3896
        %v3914 = vsel %vm3912, %v3902, 2102212464
        %v3915 = vsel %vm3911, %v3899, %v3914
        %v3916 = vsel %vm3910, %v3913, %v3915
        %v3917 = vsel %vm3909, %v3896, %v3899
        %v3918 = vsel %vm3912, %v3905, 920167782
        %v3919 = vsel %vm3911, %v3902, %v3918
        %v3920 = vsel %vm3910, %v3917, %v3919
        %v3921 = vsel %vm3909, %v3899, %v3902
        %v3922 = vsel %vm3912, %v3908, 1326507024
        %v3923 = vsel %vm3911, %v3905, %v3922
        %v3924 = vsel %vm3910, %v3921, %v3923
        %v3925 = vshll.u32 %v3885, 8
        %v3926 = vmul.u32.u64.compose %v3925, %v3924
        %v3927 = vextract.low.u32 %v3926
        %v3928 = vextract.high.u32 %v3926
        %v3929 = vmul.u32.u64.compose %v3925, %v3920
        %v3930 = vextract.low.u32 %v3929
        %v3931 = vextract.high.u32 %v3929
        %v3932 = vmul.u32 %v3925, %v3916
        %v3933 = vadd.s32 %v3928, %v3930
        %vm3934 = vc.u32 %v3928, %v3930
        %v3935 = vadd.s32 %v3931, 1
        %v3936 = vsel %vm3934, %v3935, %v3931
        %v3937 = vadd.s32 %v3932, %v3936
        %v3938 = vadd.s32 %v3937, 536870912
        %v3939 = vshrl.u32 %v3938, 30
        %v3940 = vshll.u32 %v3939, 30
        %v3941 = vsub.s32 %v3937, %v3940
        %vm3942 = vcmp.lt.s32.totalorder %v3941, 0
        %v3943 = vsub.s32 0, %v3941
        %v3944 = vsel %vm3942, %v3943, %v3941
        %v3945 = vclz %v3944
        %v3946 = vsub.s32 %v3945, 2
        %vm3947 = vcmp.gt.s32.totalorder 0, %v3946
        %v3948 = vsel %vm3947, 0, %v3946
        %v3949 = vsub.s32 32, %v3948
        %v3950 = vshll.u32 %v3941, %v3948
        %v3951 = vshrl.u32 %v3933, %v3949
        %v3952 = vor.u32 %v3950, %v3951
        %v3953 = vsub.s32 4294967266, %v3948
        %v3954 = vadd.s32 %v3953, 127
        %v3955 = vshll.u32 %v3954, 23
        %v3956 = vor.u32 4788187, %v3955
        %v3957 = vand.u32 2147483647, %v3956
        %v3959 = vcvt.s32.f32 %v3952
        %v3960 = vmul.f32 %v3959, %v3957
        %v3961 = vxor.u32 %v3960, 2147483648
        %v3962 = vsel %vm3879, %v3961, %v3960
        %v3963 = vsub.s32 4, %v3939
        %v3964 = vsel %vm3879, %v3963, %v3939
        %v3965 = vsel %vm3878, %v818, %v3962
        %v3966 = vsel %vm3878, 0, %v3964
        %v3967 = vcosq.f32.pop %v3965
        %v3968 = vsinq.f32.pop %v3965
        %vm3969 = vweird.f32 %v818
        %v3970 = vadd.s32 %v3966, 3
        %v3971 = vand.u32 %v3970, 3
        %vm3972 = vcmp.lt.s32.totalorder %v3971, 2
        %vm3973 = vcmp.eq.s32.totalorder %v3971, 0
        %v3974 = vxor.u32 %v3968, 2147483648
        %v3975 = vsel %vm3973, %v3967, %v3974
        %vm3976 = vcmp.eq.s32.totalorder %v3971, 2
        %v3977 = vxor.u32 %v3967, 2147483648
        %v3978 = vsel %vm3976, %v3977, %v3968
        %v3979 = vsel %vm3972, %v3975, %v3978
        %v3980 = vsel %vm3969, nan, %v3979
        %v3981 = vand.u32 2147483647, %v819
        %vm3982 = vcmp.le.f32.partialorder %v3981, 0.7853982
        %vm3983 = vcmp.lt.s32.totalorder %v819, 0
        %v3984 = vand.u32 %v819, 2139095040
        %v3985 = vshrl.u32 %v3984, 23
        %v3986 = vsub.s32 %v3985, 127
        %v3987 = vand.u32 2147483647, %v819
        %v3988 = vand.u32 %v3987, 8388607
        %v3989 = vor.u32 %v3988, 8388608
        %v3990 = vsub.s32 0, %v3989
        %v3991 = vadd.s32 %v3986, 1
        %vm3992 = vcmp.gt.s32.totalorder %v3991, 0
        %v3993 = vsel %vm3992, %v3991, 0
        %v3994 = vshrl.u32 %v3993, 5
        %v3995 = vand.u32 %v3993, 31
        %v3996 = vsub.s32 32, %v3995
        %v3997 = vshrl.u32 683565275, %v3996
        %v3998 = vshll.u32 683565275, %v3995
        %v3999 = vshrl.u32 2475754826, %v3996
        %v4000 = vor.u32 %v3998, %v3999
        %v4001 = vshll.u32 2475754826, %v3995
        %v4002 = vshrl.u32 2131351028, %v3996
        %v4003 = vor.u32 %v4001, %v4002
        %v4004 = vshll.u32 2131351028, %v3995
        %v4005 = vshrl.u32 2102212464, %v3996
        %v4006 = vor.u32 %v4004, %v4005
        %v4007 = vshll.u32 2102212464, %v3995
        %v4008 = vshrl.u32 920167782, %v3996
        %v4009 = vor.u32 %v4007, %v4008
        %v4010 = vshll.u32 920167782, %v3995
        %v4011 = vshrl.u32 1326507024, %v3996
        %v4012 = vor.u32 %v4010, %v4011
        %vm4013 = vcmp.lt.s32.totalorder %v3994, 1
        %vm4014 = vcmp.lt.s32.totalorder %v3994, 2
        %vm4015 = vcmp.lt.s32.totalorder %v3994, 3
        %vm4016 = vcmp.lt.s32.totalorder %v3994, 4
        %v4017 = vsel %vm4013, %v3997, %v4000
        %v4018 = vsel %vm4016, %v4006, 2102212464
        %v4019 = vsel %vm4015, %v4003, %v4018
        %v4020 = vsel %vm4014, %v4017, %v4019
        %v4021 = vsel %vm4013, %v4000, %v4003
        %v4022 = vsel %vm4016, %v4009, 920167782
        %v4023 = vsel %vm4015, %v4006, %v4022
        %v4024 = vsel %vm4014, %v4021, %v4023
        %v4025 = vsel %vm4013, %v4003, %v4006
        %v4026 = vsel %vm4016, %v4012, 1326507024
        %v4027 = vsel %vm4015, %v4009, %v4026
        %v4028 = vsel %vm4014, %v4025, %v4027
        %v4029 = vshll.u32 %v3989, 8
        %v4030 = vmul.u32.u64.compose %v4029, %v4028
        %v4031 = vextract.low.u32 %v4030
        %v4032 = vextract.high.u32 %v4030
        %v4033 = vmul.u32.u64.compose %v4029, %v4024
        %v4034 = vextract.low.u32 %v4033
        %v4035 = vextract.high.u32 %v4033
        %v4036 = vmul.u32 %v4029, %v4020
        %v4037 = vadd.s32 %v4032, %v4034
        %vm4038 = vc.u32 %v4032, %v4034
        %v4039 = vadd.s32 %v4035, 1
        %v4040 = vsel %vm4038, %v4039, %v4035
        %v4041 = vadd.s32 %v4036, %v4040
        %v4042 = vadd.s32 %v4041, 536870912
        %v4043 = vshrl.u32 %v4042, 30
        %v4044 = vshll.u32 %v4043, 30
        %v4045 = vsub.s32 %v4041, %v4044
        %vm4046 = vcmp.lt.s32.totalorder %v4045, 0
        %v4047 = vsub.s32 0, %v4045
        %v4048 = vsel %vm4046, %v4047, %v4045
        %v4049 = vclz %v4048
        %v4050 = vsub.s32 %v4049, 2
        %vm4051 = vcmp.gt.s32.totalorder 0, %v4050
        %v4052 = vsel %vm4051, 0, %v4050
        %v4053 = vsub.s32 32, %v4052
        %v4054 = vshll.u32 %v4045, %v4052
        %v4055 = vshrl.u32 %v4037, %v4053
        %v4056 = vor.u32 %v4054, %v4055
        %v4057 = vsub.s32 4294967266, %v4052
        %v4058 = vadd.s32 %v4057, 127
        %v4059 = vshll.u32 %v4058, 23
        %v4060 = vor.u32 4788187, %v4059
        %v4061 = vand.u32 2147483647, %v4060
        %v4063 = vcvt.s32.f32 %v4056
        %v4064 = vmul.f32 %v4063, %v4061
        %v4065 = vxor.u32 %v4064, 2147483648
        %v4066 = vsel %vm3983, %v4065, %v4064
        %v4067 = vsub.s32 4, %v4043
        %v4068 = vsel %vm3983, %v4067, %v4043
        %v4069 = vsel %vm3982, %v819, %v4066
        %v4070 = vsel %vm3982, 0, %v4068
        %v4071 = vcosq.f32.pop %v4069
        %v4072 = vsinq.f32.pop %v4069
        %vm4073 = vweird.f32 %v819
        %v4074 = vadd.s32 %v4070, 3
        %v4075 = vand.u32 %v4074, 3
        %vm4076 = vcmp.lt.s32.totalorder %v4075, 2
        %vm4077 = vcmp.eq.s32.totalorder %v4075, 0
        %v4078 = vxor.u32 %v4072, 2147483648
        %v4079 = vsel %vm4077, %v4071, %v4078
        %vm4080 = vcmp.eq.s32.totalorder %v4075, 2
        %v4081 = vxor.u32 %v4071, 2147483648
        %v4082 = vsel %vm4080, %v4081, %v4072
        %v4083 = vsel %vm4076, %v4079, %v4082
        %v4084 = vsel %vm4073, nan, %v4083
        %v4085 = vand.u32 2147483647, %v820
        %vm4086 = vcmp.le.f32.partialorder %v4085, 0.7853982
        %vm4087 = vcmp.lt.s32.totalorder %v820, 0
        %v4088 = vand.u32 %v820, 2139095040
        %v4089 = vshrl.u32 %v4088, 23
        %v4090 = vsub.s32 %v4089, 127
        %v4091 = vand.u32 2147483647, %v820
        %v4092 = vand.u32 %v4091, 8388607
        %v4093 = vor.u32 %v4092, 8388608
        %v4094 = vsub.s32 0, %v4093
        %v4095 = vadd.s32 %v4090, 1
        %vm4096 = vcmp.gt.s32.totalorder %v4095, 0
        %v4097 = vsel %vm4096, %v4095, 0
        %v4098 = vshrl.u32 %v4097, 5
        %v4099 = vand.u32 %v4097, 31
        %v4100 = vsub.s32 32, %v4099
        %v4101 = vshrl.u32 683565275, %v4100
        %v4102 = vshll.u32 683565275, %v4099
        %v4103 = vshrl.u32 2475754826, %v4100
        %v4104 = vor.u32 %v4102, %v4103
        %v4105 = vshll.u32 2475754826, %v4099
        %v4106 = vshrl.u32 2131351028, %v4100
        %v4107 = vor.u32 %v4105, %v4106
        %v4108 = vshll.u32 2131351028, %v4099
        %v4109 = vshrl.u32 2102212464, %v4100
        %v4110 = vor.u32 %v4108, %v4109
        %v4111 = vshll.u32 2102212464, %v4099
        %v4112 = vshrl.u32 920167782, %v4100
        %v4113 = vor.u32 %v4111, %v4112
        %v4114 = vshll.u32 920167782, %v4099
        %v4115 = vshrl.u32 1326507024, %v4100
        %v4116 = vor.u32 %v4114, %v4115
        %vm4117 = vcmp.lt.s32.totalorder %v4098, 1
        %vm4118 = vcmp.lt.s32.totalorder %v4098, 2
        %vm4119 = vcmp.lt.s32.totalorder %v4098, 3
        %vm4120 = vcmp.lt.s32.totalorder %v4098, 4
        %v4121 = vsel %vm4117, %v4101, %v4104
        %v4122 = vsel %vm4120, %v4110, 2102212464
        %v4123 = vsel %vm4119, %v4107, %v4122
        %v4124 = vsel %vm4118, %v4121, %v4123
        %v4125 = vsel %vm4117, %v4104, %v4107
        %v4126 = vsel %vm4120, %v4113, 920167782
        %v4127 = vsel %vm4119, %v4110, %v4126
        %v4128 = vsel %vm4118, %v4125, %v4127
        %v4129 = vsel %vm4117, %v4107, %v4110
        %v4130 = vsel %vm4120, %v4116, 1326507024
        %v4131 = vsel %vm4119, %v4113, %v4130
        %v4132 = vsel %vm4118, %v4129, %v4131
        %v4133 = vshll.u32 %v4093, 8
        %v4134 = vmul.u32.u64.compose %v4133, %v4132
        %v4135 = vextract.low.u32 %v4134
        %v4136 = vextract.high.u32 %v4134
        %v4137 = vmul.u32.u64.compose %v4133, %v4128
        %v4138 = vextract.low.u32 %v4137
        %v4139 = vextract.high.u32 %v4137
        %v4140 = vmul.u32 %v4133, %v4124
        %v4141 = vadd.s32 %v4136, %v4138
        %vm4142 = vc.u32 %v4136, %v4138
        %v4143 = vadd.s32 %v4139, 1
        %v4144 = vsel %vm4142, %v4143, %v4139
        %v4145 = vadd.s32 %v4140, %v4144
        %v4146 = vadd.s32 %v4145, 536870912
        %v4147 = vshrl.u32 %v4146, 30
        %v4148 = vshll.u32 %v4147, 30
        %v4149 = vsub.s32 %v4145, %v4148
        %vm4150 = vcmp.lt.s32.totalorder %v4149, 0
        %v4151 = vsub.s32 0, %v4149
        %v4152 = vsel %vm4150, %v4151, %v4149
        %v4153 = vclz %v4152
        %v4154 = vsub.s32 %v4153, 2
        %vm4155 = vcmp.gt.s32.totalorder 0, %v4154
        %v4156 = vsel %vm4155, 0, %v4154
        %v4157 = vsub.s32 32, %v4156
        %v4158 = vshll.u32 %v4149, %v4156
        %v4159 = vshrl.u32 %v4141, %v4157
        %v4160 = vor.u32 %v4158, %v4159
        %v4161 = vsub.s32 4294967266, %v4156
        %v4162 = vadd.s32 %v4161, 127
        %v4163 = vshll.u32 %v4162, 23
        %v4164 = vor.u32 4788187, %v4163
        %v4165 = vand.u32 2147483647, %v4164
        %v4167 = vcvt.s32.f32 %v4160
        %v4168 = vmul.f32 %v4167, %v4165
        %v4169 = vxor.u32 %v4168, 2147483648
        %v4170 = vsel %vm4087, %v4169, %v4168
        %v4171 = vsub.s32 4, %v4147
        %v4172 = vsel %vm4087, %v4171, %v4147
        %v4173 = vsel %vm4086, %v820, %v4170
        %v4174 = vsel %vm4086, 0, %v4172
        %v4175 = vcosq.f32.pop %v4173
        %v4176 = vsinq.f32.pop %v4173
        %vm4177 = vweird.f32 %v820
        %v4178 = vadd.s32 %v4174, 3
        %v4179 = vand.u32 %v4178, 3
        %vm4180 = vcmp.lt.s32.totalorder %v4179, 2
        %vm4181 = vcmp.eq.s32.totalorder %v4179, 0
        %v4182 = vxor.u32 %v4176, 2147483648
        %v4183 = vsel %vm4181, %v4175, %v4182
        %vm4184 = vcmp.eq.s32.totalorder %v4179, 2
        %v4185 = vxor.u32 %v4175, 2147483648
        %v4186 = vsel %vm4184, %v4185, %v4176
        %v4187 = vsel %vm4180, %v4183, %v4186
        %v4188 = vsel %vm4177, nan, %v4187
        %v4189 = vand.u32 2147483647, %v821
        %vm4190 = vcmp.le.f32.partialorder %v4189, 0.7853982
        %vm4191 = vcmp.lt.s32.totalorder %v821, 0
        %v4192 = vand.u32 %v821, 2139095040
        %v4193 = vshrl.u32 %v4192, 23
        %v4194 = vsub.s32 %v4193, 127
        %v4195 = vand.u32 2147483647, %v821
        %v4196 = vand.u32 %v4195, 8388607
        %v4197 = vor.u32 %v4196, 8388608
        %v4198 = vsub.s32 0, %v4197
        %v4199 = vadd.s32 %v4194, 1
        %vm4200 = vcmp.gt.s32.totalorder %v4199, 0
        %v4201 = vsel %vm4200, %v4199, 0
        %v4202 = vshrl.u32 %v4201, 5
        %v4203 = vand.u32 %v4201, 31
        %v4204 = vsub.s32 32, %v4203
        %v4205 = vshrl.u32 683565275, %v4204
        %v4206 = vshll.u32 683565275, %v4203
        %v4207 = vshrl.u32 2475754826, %v4204
        %v4208 = vor.u32 %v4206, %v4207
        %v4209 = vshll.u32 2475754826, %v4203
        %v4210 = vshrl.u32 2131351028, %v4204
        %v4211 = vor.u32 %v4209, %v4210
        %v4212 = vshll.u32 2131351028, %v4203
        %v4213 = vshrl.u32 2102212464, %v4204
        %v4214 = vor.u32 %v4212, %v4213
        %v4215 = vshll.u32 2102212464, %v4203
        %v4216 = vshrl.u32 920167782, %v4204
        %v4217 = vor.u32 %v4215, %v4216
        %v4218 = vshll.u32 920167782, %v4203
        %v4219 = vshrl.u32 1326507024, %v4204
        %v4220 = vor.u32 %v4218, %v4219
        %vm4221 = vcmp.lt.s32.totalorder %v4202, 1
        %vm4222 = vcmp.lt.s32.totalorder %v4202, 2
        %vm4223 = vcmp.lt.s32.totalorder %v4202, 3
        %vm4224 = vcmp.lt.s32.totalorder %v4202, 4
        %v4225 = vsel %vm4221, %v4205, %v4208
        %v4226 = vsel %vm4224, %v4214, 2102212464
        %v4227 = vsel %vm4223, %v4211, %v4226
        %v4228 = vsel %vm4222, %v4225, %v4227
        %v4229 = vsel %vm4221, %v4208, %v4211
        %v4230 = vsel %vm4224, %v4217, 920167782
        %v4231 = vsel %vm4223, %v4214, %v4230
        %v4232 = vsel %vm4222, %v4229, %v4231
        %v4233 = vsel %vm4221, %v4211, %v4214
        %v4234 = vsel %vm4224, %v4220, 1326507024
        %v4235 = vsel %vm4223, %v4217, %v4234
        %v4236 = vsel %vm4222, %v4233, %v4235
        %v4237 = vshll.u32 %v4197, 8
        %v4238 = vmul.u32.u64.compose %v4237, %v4236
        %v4239 = vextract.low.u32 %v4238
        %v4240 = vextract.high.u32 %v4238
        %v4241 = vmul.u32.u64.compose %v4237, %v4232
        %v4242 = vextract.low.u32 %v4241
        %v4243 = vextract.high.u32 %v4241
        %v4244 = vmul.u32 %v4237, %v4228
        %v4245 = vadd.s32 %v4240, %v4242
        %vm4246 = vc.u32 %v4240, %v4242
        %v4247 = vadd.s32 %v4243, 1
        %v4248 = vsel %vm4246, %v4247, %v4243
        %v4249 = vadd.s32 %v4244, %v4248
        %v4250 = vadd.s32 %v4249, 536870912
        %v4251 = vshrl.u32 %v4250, 30
        %v4252 = vshll.u32 %v4251, 30
        %v4253 = vsub.s32 %v4249, %v4252
        %vm4254 = vcmp.lt.s32.totalorder %v4253, 0
        %v4255 = vsub.s32 0, %v4253
        %v4256 = vsel %vm4254, %v4255, %v4253
        %v4257 = vclz %v4256
        %v4258 = vsub.s32 %v4257, 2
        %vm4259 = vcmp.gt.s32.totalorder 0, %v4258
        %v4260 = vsel %vm4259, 0, %v4258
        %v4261 = vsub.s32 32, %v4260
        %v4262 = vshll.u32 %v4253, %v4260
        %v4263 = vshrl.u32 %v4245, %v4261
        %v4264 = vor.u32 %v4262, %v4263
        %v4265 = vsub.s32 4294967266, %v4260
        %v4266 = vadd.s32 %v4265, 127
        %v4267 = vshll.u32 %v4266, 23
        %v4268 = vor.u32 4788187, %v4267
        %v4269 = vand.u32 2147483647, %v4268
        %v4271 = vcvt.s32.f32 %v4264
        %v4272 = vmul.f32 %v4271, %v4269
        %v4273 = vxor.u32 %v4272, 2147483648
        %v4274 = vsel %vm4191, %v4273, %v4272
        %v4275 = vsub.s32 4, %v4251
        %v4276 = vsel %vm4191, %v4275, %v4251
        %v4277 = vsel %vm4190, %v821, %v4274
        %v4278 = vsel %vm4190, 0, %v4276
        %v4279 = vcosq.f32.pop %v4277
        %v4280 = vsinq.f32.pop %v4277
        %vm4281 = vweird.f32 %v821
        %v4282 = vadd.s32 %v4278, 3
        %v4283 = vand.u32 %v4282, 3
        %vm4284 = vcmp.lt.s32.totalorder %v4283, 2
        %vm4285 = vcmp.eq.s32.totalorder %v4283, 0
        %v4286 = vxor.u32 %v4280, 2147483648
        %v4287 = vsel %vm4285, %v4279, %v4286
        %vm4288 = vcmp.eq.s32.totalorder %v4283, 2
        %v4289 = vxor.u32 %v4279, 2147483648
        %v4290 = vsel %vm4288, %v4289, %v4280
        %v4291 = vsel %vm4284, %v4287, %v4290
        %v4292 = vsel %vm4281, nan, %v4291
        %v4293 = vand.u32 2147483647, %v822
        %vm4294 = vcmp.le.f32.partialorder %v4293, 0.7853982
        %vm4295 = vcmp.lt.s32.totalorder %v822, 0
        %v4296 = vand.u32 %v822, 2139095040
        %v4297 = vshrl.u32 %v4296, 23
        %v4298 = vsub.s32 %v4297, 127
        %v4299 = vand.u32 2147483647, %v822
        %v4300 = vand.u32 %v4299, 8388607
        %v4301 = vor.u32 %v4300, 8388608
        %v4302 = vsub.s32 0, %v4301
        %v4303 = vadd.s32 %v4298, 1
        %vm4304 = vcmp.gt.s32.totalorder %v4303, 0
        %v4305 = vsel %vm4304, %v4303, 0
        %v4306 = vshrl.u32 %v4305, 5
        %v4307 = vand.u32 %v4305, 31
        %v4308 = vsub.s32 32, %v4307
        %v4309 = vshrl.u32 683565275, %v4308
        %v4310 = vshll.u32 683565275, %v4307
        %v4311 = vshrl.u32 2475754826, %v4308
        %v4312 = vor.u32 %v4310, %v4311
        %v4313 = vshll.u32 2475754826, %v4307
        %v4314 = vshrl.u32 2131351028, %v4308
        %v4315 = vor.u32 %v4313, %v4314
        %v4316 = vshll.u32 2131351028, %v4307
        %v4317 = vshrl.u32 2102212464, %v4308
        %v4318 = vor.u32 %v4316, %v4317
        %v4319 = vshll.u32 2102212464, %v4307
        %v4320 = vshrl.u32 920167782, %v4308
        %v4321 = vor.u32 %v4319, %v4320
        %v4322 = vshll.u32 920167782, %v4307
        %v4323 = vshrl.u32 1326507024, %v4308
        %v4324 = vor.u32 %v4322, %v4323
        %vm4325 = vcmp.lt.s32.totalorder %v4306, 1
        %vm4326 = vcmp.lt.s32.totalorder %v4306, 2
        %vm4327 = vcmp.lt.s32.totalorder %v4306, 3
        %vm4328 = vcmp.lt.s32.totalorder %v4306, 4
        %v4329 = vsel %vm4325, %v4309, %v4312
        %v4330 = vsel %vm4328, %v4318, 2102212464
        %v4331 = vsel %vm4327, %v4315, %v4330
        %v4332 = vsel %vm4326, %v4329, %v4331
        %v4333 = vsel %vm4325, %v4312, %v4315
        %v4334 = vsel %vm4328, %v4321, 920167782
        %v4335 = vsel %vm4327, %v4318, %v4334
        %v4336 = vsel %vm4326, %v4333, %v4335
        %v4337 = vsel %vm4325, %v4315, %v4318
        %v4338 = vsel %vm4328, %v4324, 1326507024
        %v4339 = vsel %vm4327, %v4321, %v4338
        %v4340 = vsel %vm4326, %v4337, %v4339
        %v4341 = vshll.u32 %v4301, 8
        %v4342 = vmul.u32.u64.compose %v4341, %v4340
        %v4343 = vextract.low.u32 %v4342
        %v4344 = vextract.high.u32 %v4342
        %v4345 = vmul.u32.u64.compose %v4341, %v4336
        %v4346 = vextract.low.u32 %v4345
        %v4347 = vextract.high.u32 %v4345
        %v4348 = vmul.u32 %v4341, %v4332
        %v4349 = vadd.s32 %v4344, %v4346
        %vm4350 = vc.u32 %v4344, %v4346
        %v4351 = vadd.s32 %v4347, 1
        %v4352 = vsel %vm4350, %v4351, %v4347
        %v4353 = vadd.s32 %v4348, %v4352
        %v4354 = vadd.s32 %v4353, 536870912
        %v4355 = vshrl.u32 %v4354, 30
        %v4356 = vshll.u32 %v4355, 30
        %v4357 = vsub.s32 %v4353, %v4356
        %vm4358 = vcmp.lt.s32.totalorder %v4357, 0
        %v4359 = vsub.s32 0, %v4357
        %v4360 = vsel %vm4358, %v4359, %v4357
        %v4361 = vclz %v4360
        %v4362 = vsub.s32 %v4361, 2
        %vm4363 = vcmp.gt.s32.totalorder 0, %v4362
        %v4364 = vsel %vm4363, 0, %v4362
        %v4365 = vsub.s32 32, %v4364
        %v4366 = vshll.u32 %v4357, %v4364
        %v4367 = vshrl.u32 %v4349, %v4365
        %v4368 = vor.u32 %v4366, %v4367
        %v4369 = vsub.s32 4294967266, %v4364
        %v4370 = vadd.s32 %v4369, 127
        %v4371 = vshll.u32 %v4370, 23
        %v4372 = vor.u32 4788187, %v4371
        %v4373 = vand.u32 2147483647, %v4372
        %v4375 = vcvt.s32.f32 %v4368
        %v4376 = vmul.f32 %v4375, %v4373
        %v4377 = vxor.u32 %v4376, 2147483648
        %v4378 = vsel %vm4295, %v4377, %v4376
        %v4379 = vsub.s32 4, %v4355
        %v4380 = vsel %vm4295, %v4379, %v4355
        %v4381 = vsel %vm4294, %v822, %v4378
        %v4382 = vsel %vm4294, 0, %v4380
        %v4383 = vcosq.f32.pop %v4381
        %v4384 = vsinq.f32.pop %v4381
        %vm4385 = vweird.f32 %v822
        %v4386 = vadd.s32 %v4382, 3
        %v4387 = vand.u32 %v4386, 3
        %vm4388 = vcmp.lt.s32.totalorder %v4387, 2
        %vm4389 = vcmp.eq.s32.totalorder %v4387, 0
        %v4390 = vxor.u32 %v4384, 2147483648
        %v4391 = vsel %vm4389, %v4383, %v4390
        %vm4392 = vcmp.eq.s32.totalorder %v4387, 2
        %v4393 = vxor.u32 %v4383, 2147483648
        %v4394 = vsel %vm4392, %v4393, %v4384
        %v4395 = vsel %vm4388, %v4391, %v4394
        %v4396 = vsel %vm4385, nan, %v4395
        %v4397 = vand.u32 2147483647, %v823
        %vm4398 = vcmp.le.f32.partialorder %v4397, 0.7853982
        %vm4399 = vcmp.lt.s32.totalorder %v823, 0
        %v4400 = vand.u32 %v823, 2139095040
        %v4401 = vshrl.u32 %v4400, 23
        %v4402 = vsub.s32 %v4401, 127
        %v4403 = vand.u32 2147483647, %v823
        %v4404 = vand.u32 %v4403, 8388607
        %v4405 = vor.u32 %v4404, 8388608
        %v4406 = vsub.s32 0, %v4405
        %v4407 = vadd.s32 %v4402, 1
        %vm4408 = vcmp.gt.s32.totalorder %v4407, 0
        %v4409 = vsel %vm4408, %v4407, 0
        %v4410 = vshrl.u32 %v4409, 5
        %v4411 = vand.u32 %v4409, 31
        %v4412 = vsub.s32 32, %v4411
        %v4413 = vshrl.u32 683565275, %v4412
        %v4414 = vshll.u32 683565275, %v4411
        %v4415 = vshrl.u32 2475754826, %v4412
        %v4416 = vor.u32 %v4414, %v4415
        %v4417 = vshll.u32 2475754826, %v4411
        %v4418 = vshrl.u32 2131351028, %v4412
        %v4419 = vor.u32 %v4417, %v4418
        %v4420 = vshll.u32 2131351028, %v4411
        %v4421 = vshrl.u32 2102212464, %v4412
        %v4422 = vor.u32 %v4420, %v4421
        %v4423 = vshll.u32 2102212464, %v4411
        %v4424 = vshrl.u32 920167782, %v4412
        %v4425 = vor.u32 %v4423, %v4424
        %v4426 = vshll.u32 920167782, %v4411
        %v4427 = vshrl.u32 1326507024, %v4412
        %v4428 = vor.u32 %v4426, %v4427
        %vm4429 = vcmp.lt.s32.totalorder %v4410, 1
        %vm4430 = vcmp.lt.s32.totalorder %v4410, 2
        %vm4431 = vcmp.lt.s32.totalorder %v4410, 3
        %vm4432 = vcmp.lt.s32.totalorder %v4410, 4
        %v4433 = vsel %vm4429, %v4413, %v4416
        %v4434 = vsel %vm4432, %v4422, 2102212464
        %v4435 = vsel %vm4431, %v4419, %v4434
        %v4436 = vsel %vm4430, %v4433, %v4435
        %v4437 = vsel %vm4429, %v4416, %v4419
        %v4438 = vsel %vm4432, %v4425, 920167782
        %v4439 = vsel %vm4431, %v4422, %v4438
        %v4440 = vsel %vm4430, %v4437, %v4439
        %v4441 = vsel %vm4429, %v4419, %v4422
        %v4442 = vsel %vm4432, %v4428, 1326507024
        %v4443 = vsel %vm4431, %v4425, %v4442
        %v4444 = vsel %vm4430, %v4441, %v4443
        %v4445 = vshll.u32 %v4405, 8
        %v4446 = vmul.u32.u64.compose %v4445, %v4444
        %v4447 = vextract.low.u32 %v4446
        %v4448 = vextract.high.u32 %v4446
        %v4449 = vmul.u32.u64.compose %v4445, %v4440
        %v4450 = vextract.low.u32 %v4449
        %v4451 = vextract.high.u32 %v4449
        %v4452 = vmul.u32 %v4445, %v4436
        %v4453 = vadd.s32 %v4448, %v4450
        %vm4454 = vc.u32 %v4448, %v4450
        %v4455 = vadd.s32 %v4451, 1
        %v4456 = vsel %vm4454, %v4455, %v4451
        %v4457 = vadd.s32 %v4452, %v4456
        %v4458 = vadd.s32 %v4457, 536870912
        %v4459 = vshrl.u32 %v4458, 30
        %v4460 = vshll.u32 %v4459, 30
        %v4461 = vsub.s32 %v4457, %v4460
        %vm4462 = vcmp.lt.s32.totalorder %v4461, 0
        %v4463 = vsub.s32 0, %v4461
        %v4464 = vsel %vm4462, %v4463, %v4461
        %v4465 = vclz %v4464
        %v4466 = vsub.s32 %v4465, 2
        %vm4467 = vcmp.gt.s32.totalorder 0, %v4466
        %v4468 = vsel %vm4467, 0, %v4466
        %v4469 = vsub.s32 32, %v4468
        %v4470 = vshll.u32 %v4461, %v4468
        %v4471 = vshrl.u32 %v4453, %v4469
        %v4472 = vor.u32 %v4470, %v4471
        %v4473 = vsub.s32 4294967266, %v4468
        %v4474 = vadd.s32 %v4473, 127
        %v4475 = vshll.u32 %v4474, 23
        %v4476 = vor.u32 4788187, %v4475
        %v4477 = vand.u32 2147483647, %v4476
        %v4479 = vcvt.s32.f32 %v4472
        %v4480 = vmul.f32 %v4479, %v4477
        %v4481 = vxor.u32 %v4480, 2147483648
        %v4482 = vsel %vm4399, %v4481, %v4480
        %v4483 = vsub.s32 4, %v4459
        %v4484 = vsel %vm4399, %v4483, %v4459
        %v4485 = vsel %vm4398, %v823, %v4482
        %v4486 = vsel %vm4398, 0, %v4484
        %v4487 = vcosq.f32.pop %v4485
        %v4488 = vsinq.f32.pop %v4485
        %vm4489 = vweird.f32 %v823
        %v4490 = vadd.s32 %v4486, 3
        %v4491 = vand.u32 %v4490, 3
        %vm4492 = vcmp.lt.s32.totalorder %v4491, 2
        %vm4493 = vcmp.eq.s32.totalorder %v4491, 0
        %v4494 = vxor.u32 %v4488, 2147483648
        %v4495 = vsel %vm4493, %v4487, %v4494
        %vm4496 = vcmp.eq.s32.totalorder %v4491, 2
        %v4497 = vxor.u32 %v4487, 2147483648
        %v4498 = vsel %vm4496, %v4497, %v4488
        %v4499 = vsel %vm4492, %v4495, %v4498
        %v4500 = vsel %vm4489, nan, %v4499
        %v4501 = vand.u32 2147483647, %v824
        %vm4502 = vcmp.le.f32.partialorder %v4501, 0.7853982
        %vm4503 = vcmp.lt.s32.totalorder %v824, 0
        %v4504 = vand.u32 %v824, 2139095040
        %v4505 = vshrl.u32 %v4504, 23
        %v4506 = vsub.s32 %v4505, 127
        %v4507 = vand.u32 2147483647, %v824
        %v4508 = vand.u32 %v4507, 8388607
        %v4509 = vor.u32 %v4508, 8388608
        %v4510 = vsub.s32 0, %v4509
        %v4511 = vadd.s32 %v4506, 1
        %vm4512 = vcmp.gt.s32.totalorder %v4511, 0
        %v4513 = vsel %vm4512, %v4511, 0
        %v4514 = vshrl.u32 %v4513, 5
        %v4515 = vand.u32 %v4513, 31
        %v4516 = vsub.s32 32, %v4515
        %v4517 = vshrl.u32 683565275, %v4516
        %v4518 = vshll.u32 683565275, %v4515
        %v4519 = vshrl.u32 2475754826, %v4516
        %v4520 = vor.u32 %v4518, %v4519
        %v4521 = vshll.u32 2475754826, %v4515
        %v4522 = vshrl.u32 2131351028, %v4516
        %v4523 = vor.u32 %v4521, %v4522
        %v4524 = vshll.u32 2131351028, %v4515
        %v4525 = vshrl.u32 2102212464, %v4516
        %v4526 = vor.u32 %v4524, %v4525
        %v4527 = vshll.u32 2102212464, %v4515
        %v4528 = vshrl.u32 920167782, %v4516
        %v4529 = vor.u32 %v4527, %v4528
        %v4530 = vshll.u32 920167782, %v4515
        %v4531 = vshrl.u32 1326507024, %v4516
        %v4532 = vor.u32 %v4530, %v4531
        %vm4533 = vcmp.lt.s32.totalorder %v4514, 1
        %vm4534 = vcmp.lt.s32.totalorder %v4514, 2
        %vm4535 = vcmp.lt.s32.totalorder %v4514, 3
        %vm4536 = vcmp.lt.s32.totalorder %v4514, 4
        %v4537 = vsel %vm4533, %v4517, %v4520
        %v4538 = vsel %vm4536, %v4526, 2102212464
        %v4539 = vsel %vm4535, %v4523, %v4538
        %v4540 = vsel %vm4534, %v4537, %v4539
        %v4541 = vsel %vm4533, %v4520, %v4523
        %v4542 = vsel %vm4536, %v4529, 920167782
        %v4543 = vsel %vm4535, %v4526, %v4542
        %v4544 = vsel %vm4534, %v4541, %v4543
        %v4545 = vsel %vm4533, %v4523, %v4526
        %v4546 = vsel %vm4536, %v4532, 1326507024
        %v4547 = vsel %vm4535, %v4529, %v4546
        %v4548 = vsel %vm4534, %v4545, %v4547
        %v4549 = vshll.u32 %v4509, 8
        %v4550 = vmul.u32.u64.compose %v4549, %v4548
        %v4551 = vextract.low.u32 %v4550
        %v4552 = vextract.high.u32 %v4550
        %v4553 = vmul.u32.u64.compose %v4549, %v4544
        %v4554 = vextract.low.u32 %v4553
        %v4555 = vextract.high.u32 %v4553
        %v4556 = vmul.u32 %v4549, %v4540
        %v4557 = vadd.s32 %v4552, %v4554
        %vm4558 = vc.u32 %v4552, %v4554
        %v4559 = vadd.s32 %v4555, 1
        %v4560 = vsel %vm4558, %v4559, %v4555
        %v4561 = vadd.s32 %v4556, %v4560
        %v4562 = vadd.s32 %v4561, 536870912
        %v4563 = vshrl.u32 %v4562, 30
        %v4564 = vshll.u32 %v4563, 30
        %v4565 = vsub.s32 %v4561, %v4564
        %vm4566 = vcmp.lt.s32.totalorder %v4565, 0
        %v4567 = vsub.s32 0, %v4565
        %v4568 = vsel %vm4566, %v4567, %v4565
        %v4569 = vclz %v4568
        %v4570 = vsub.s32 %v4569, 2
        %vm4571 = vcmp.gt.s32.totalorder 0, %v4570
        %v4572 = vsel %vm4571, 0, %v4570
        %v4573 = vsub.s32 32, %v4572
        %v4574 = vshll.u32 %v4565, %v4572
        %v4575 = vshrl.u32 %v4557, %v4573
        %v4576 = vor.u32 %v4574, %v4575
        %v4577 = vsub.s32 4294967266, %v4572
        %v4578 = vadd.s32 %v4577, 127
        %v4579 = vshll.u32 %v4578, 23
        %v4580 = vor.u32 4788187, %v4579
        %v4581 = vand.u32 2147483647, %v4580
        %v4583 = vcvt.s32.f32 %v4576
        %v4584 = vmul.f32 %v4583, %v4581
        %v4585 = vxor.u32 %v4584, 2147483648
        %v4586 = vsel %vm4503, %v4585, %v4584
        %v4587 = vsub.s32 4, %v4563
        %v4588 = vsel %vm4503, %v4587, %v4563
        %v4589 = vsel %vm4502, %v824, %v4586
        %v4590 = vsel %vm4502, 0, %v4588
        %v4591 = vcosq.f32.pop %v4589
        %v4592 = vsinq.f32.pop %v4589
        %vm4593 = vweird.f32 %v824
        %v4594 = vadd.s32 %v4590, 3
        %v4595 = vand.u32 %v4594, 3
        %vm4596 = vcmp.lt.s32.totalorder %v4595, 2
        %vm4597 = vcmp.eq.s32.totalorder %v4595, 0
        %v4598 = vxor.u32 %v4592, 2147483648
        %v4599 = vsel %vm4597, %v4591, %v4598
        %vm4600 = vcmp.eq.s32.totalorder %v4595, 2
        %v4601 = vxor.u32 %v4591, 2147483648
        %v4602 = vsel %vm4600, %v4601, %v4592
        %v4603 = vsel %vm4596, %v4599, %v4602
        %v4604 = vsel %vm4593, nan, %v4603
        %v4605 = vand.u32 2147483647, %v825
        %vm4606 = vcmp.le.f32.partialorder %v4605, 0.7853982
        %vm4607 = vcmp.lt.s32.totalorder %v825, 0
        %v4608 = vand.u32 %v825, 2139095040
        %v4609 = vshrl.u32 %v4608, 23
        %v4610 = vsub.s32 %v4609, 127
        %v4611 = vand.u32 2147483647, %v825
        %v4612 = vand.u32 %v4611, 8388607
        %v4613 = vor.u32 %v4612, 8388608
        %v4614 = vsub.s32 0, %v4613
        %v4615 = vadd.s32 %v4610, 1
        %vm4616 = vcmp.gt.s32.totalorder %v4615, 0
        %v4617 = vsel %vm4616, %v4615, 0
        %v4618 = vshrl.u32 %v4617, 5
        %v4619 = vand.u32 %v4617, 31
        %v4620 = vsub.s32 32, %v4619
        %v4621 = vshrl.u32 683565275, %v4620
        %v4622 = vshll.u32 683565275, %v4619
        %v4623 = vshrl.u32 2475754826, %v4620
        %v4624 = vor.u32 %v4622, %v4623
        %v4625 = vshll.u32 2475754826, %v4619
        %v4626 = vshrl.u32 2131351028, %v4620
        %v4627 = vor.u32 %v4625, %v4626
        %v4628 = vshll.u32 2131351028, %v4619
        %v4629 = vshrl.u32 2102212464, %v4620
        %v4630 = vor.u32 %v4628, %v4629
        %v4631 = vshll.u32 2102212464, %v4619
        %v4632 = vshrl.u32 920167782, %v4620
        %v4633 = vor.u32 %v4631, %v4632
        %v4634 = vshll.u32 920167782, %v4619
        %v4635 = vshrl.u32 1326507024, %v4620
        %v4636 = vor.u32 %v4634, %v4635
        %vm4637 = vcmp.lt.s32.totalorder %v4618, 1
        %vm4638 = vcmp.lt.s32.totalorder %v4618, 2
        %vm4639 = vcmp.lt.s32.totalorder %v4618, 3
        %vm4640 = vcmp.lt.s32.totalorder %v4618, 4
        %v4641 = vsel %vm4637, %v4621, %v4624
        %v4642 = vsel %vm4640, %v4630, 2102212464
        %v4643 = vsel %vm4639, %v4627, %v4642
        %v4644 = vsel %vm4638, %v4641, %v4643
        %v4645 = vsel %vm4637, %v4624, %v4627
        %v4646 = vsel %vm4640, %v4633, 920167782
        %v4647 = vsel %vm4639, %v4630, %v4646
        %v4648 = vsel %vm4638, %v4645, %v4647
        %v4649 = vsel %vm4637, %v4627, %v4630
        %v4650 = vsel %vm4640, %v4636, 1326507024
        %v4651 = vsel %vm4639, %v4633, %v4650
        %v4652 = vsel %vm4638, %v4649, %v4651
        %v4653 = vshll.u32 %v4613, 8
        %v4654 = vmul.u32.u64.compose %v4653, %v4652
        %v4655 = vextract.low.u32 %v4654
        %v4656 = vextract.high.u32 %v4654
        %v4657 = vmul.u32.u64.compose %v4653, %v4648
        %v4658 = vextract.low.u32 %v4657
        %v4659 = vextract.high.u32 %v4657
        %v4660 = vmul.u32 %v4653, %v4644
        %v4661 = vadd.s32 %v4656, %v4658
        %vm4662 = vc.u32 %v4656, %v4658
        %v4663 = vadd.s32 %v4659, 1
        %v4664 = vsel %vm4662, %v4663, %v4659
        %v4665 = vadd.s32 %v4660, %v4664
        %v4666 = vadd.s32 %v4665, 536870912
        %v4667 = vshrl.u32 %v4666, 30
        %v4668 = vshll.u32 %v4667, 30
        %v4669 = vsub.s32 %v4665, %v4668
        %vm4670 = vcmp.lt.s32.totalorder %v4669, 0
        %v4671 = vsub.s32 0, %v4669
        %v4672 = vsel %vm4670, %v4671, %v4669
        %v4673 = vclz %v4672
        %v4674 = vsub.s32 %v4673, 2
        %vm4675 = vcmp.gt.s32.totalorder 0, %v4674
        %v4676 = vsel %vm4675, 0, %v4674
        %v4677 = vsub.s32 32, %v4676
        %v4678 = vshll.u32 %v4669, %v4676
        %v4679 = vshrl.u32 %v4661, %v4677
        %v4680 = vor.u32 %v4678, %v4679
        %v4681 = vsub.s32 4294967266, %v4676
        %v4682 = vadd.s32 %v4681, 127
        %v4683 = vshll.u32 %v4682, 23
        %v4684 = vor.u32 4788187, %v4683
        %v4685 = vand.u32 2147483647, %v4684
        %v4687 = vcvt.s32.f32 %v4680
        %v4688 = vmul.f32 %v4687, %v4685
        %v4689 = vxor.u32 %v4688, 2147483648
        %v4690 = vsel %vm4607, %v4689, %v4688
        %v4691 = vsub.s32 4, %v4667
        %v4692 = vsel %vm4607, %v4691, %v4667
        %v4693 = vsel %vm4606, %v825, %v4690
        %v4694 = vsel %vm4606, 0, %v4692
        %v4695 = vcosq.f32.pop %v4693
        %v4696 = vsinq.f32.pop %v4693
        %vm4697 = vweird.f32 %v825
        %v4698 = vadd.s32 %v4694, 3
        %v4699 = vand.u32 %v4698, 3
        %vm4700 = vcmp.lt.s32.totalorder %v4699, 2
        %vm4701 = vcmp.eq.s32.totalorder %v4699, 0
        %v4702 = vxor.u32 %v4696, 2147483648
        %v4703 = vsel %vm4701, %v4695, %v4702
        %vm4704 = vcmp.eq.s32.totalorder %v4699, 2
        %v4705 = vxor.u32 %v4695, 2147483648
        %v4706 = vsel %vm4704, %v4705, %v4696
        %v4707 = vsel %vm4700, %v4703, %v4706
        %v4708 = vsel %vm4697, nan, %v4707
        %v4709 = vand.u32 2147483647, %v826
        %vm4710 = vcmp.le.f32.partialorder %v4709, 0.7853982
        %vm4711 = vcmp.lt.s32.totalorder %v826, 0
        %v4712 = vand.u32 %v826, 2139095040
        %v4713 = vshrl.u32 %v4712, 23
        %v4714 = vsub.s32 %v4713, 127
        %v4715 = vand.u32 2147483647, %v826
        %v4716 = vand.u32 %v4715, 8388607
        %v4717 = vor.u32 %v4716, 8388608
        %v4718 = vsub.s32 0, %v4717
        %v4719 = vadd.s32 %v4714, 1
        %vm4720 = vcmp.gt.s32.totalorder %v4719, 0
        %v4721 = vsel %vm4720, %v4719, 0
        %v4722 = vshrl.u32 %v4721, 5
        %v4723 = vand.u32 %v4721, 31
        %v4724 = vsub.s32 32, %v4723
        %v4725 = vshrl.u32 683565275, %v4724
        %v4726 = vshll.u32 683565275, %v4723
        %v4727 = vshrl.u32 2475754826, %v4724
        %v4728 = vor.u32 %v4726, %v4727
        %v4729 = vshll.u32 2475754826, %v4723
        %v4730 = vshrl.u32 2131351028, %v4724
        %v4731 = vor.u32 %v4729, %v4730
        %v4732 = vshll.u32 2131351028, %v4723
        %v4733 = vshrl.u32 2102212464, %v4724
        %v4734 = vor.u32 %v4732, %v4733
        %v4735 = vshll.u32 2102212464, %v4723
        %v4736 = vshrl.u32 920167782, %v4724
        %v4737 = vor.u32 %v4735, %v4736
        %v4738 = vshll.u32 920167782, %v4723
        %v4739 = vshrl.u32 1326507024, %v4724
        %v4740 = vor.u32 %v4738, %v4739
        %vm4741 = vcmp.lt.s32.totalorder %v4722, 1
        %vm4742 = vcmp.lt.s32.totalorder %v4722, 2
        %vm4743 = vcmp.lt.s32.totalorder %v4722, 3
        %vm4744 = vcmp.lt.s32.totalorder %v4722, 4
        %v4745 = vsel %vm4741, %v4725, %v4728
        %v4746 = vsel %vm4744, %v4734, 2102212464
        %v4747 = vsel %vm4743, %v4731, %v4746
        %v4748 = vsel %vm4742, %v4745, %v4747
        %v4749 = vsel %vm4741, %v4728, %v4731
        %v4750 = vsel %vm4744, %v4737, 920167782
        %v4751 = vsel %vm4743, %v4734, %v4750
        %v4752 = vsel %vm4742, %v4749, %v4751
        %v4753 = vsel %vm4741, %v4731, %v4734
        %v4754 = vsel %vm4744, %v4740, 1326507024
        %v4755 = vsel %vm4743, %v4737, %v4754
        %v4756 = vsel %vm4742, %v4753, %v4755
        %v4757 = vshll.u32 %v4717, 8
        %v4758 = vmul.u32.u64.compose %v4757, %v4756
        %v4759 = vextract.low.u32 %v4758
        %v4760 = vextract.high.u32 %v4758
        %v4761 = vmul.u32.u64.compose %v4757, %v4752
        %v4762 = vextract.low.u32 %v4761
        %v4763 = vextract.high.u32 %v4761
        %v4764 = vmul.u32 %v4757, %v4748
        %v4765 = vadd.s32 %v4760, %v4762
        %vm4766 = vc.u32 %v4760, %v4762
        %v4767 = vadd.s32 %v4763, 1
        %v4768 = vsel %vm4766, %v4767, %v4763
        %v4769 = vadd.s32 %v4764, %v4768
        %v4770 = vadd.s32 %v4769, 536870912
        %v4771 = vshrl.u32 %v4770, 30
        %v4772 = vshll.u32 %v4771, 30
        %v4773 = vsub.s32 %v4769, %v4772
        %vm4774 = vcmp.lt.s32.totalorder %v4773, 0
        %v4775 = vsub.s32 0, %v4773
        %v4776 = vsel %vm4774, %v4775, %v4773
        %v4777 = vclz %v4776
        %v4778 = vsub.s32 %v4777, 2
        %vm4779 = vcmp.gt.s32.totalorder 0, %v4778
        %v4780 = vsel %vm4779, 0, %v4778
        %v4781 = vsub.s32 32, %v4780
        %v4782 = vshll.u32 %v4773, %v4780
        %v4783 = vshrl.u32 %v4765, %v4781
        %v4784 = vor.u32 %v4782, %v4783
        %v4785 = vsub.s32 4294967266, %v4780
        %v4786 = vadd.s32 %v4785, 127
        %v4787 = vshll.u32 %v4786, 23
        %v4788 = vor.u32 4788187, %v4787
        %v4789 = vand.u32 2147483647, %v4788
        %v4791 = vcvt.s32.f32 %v4784
        %v4792 = vmul.f32 %v4791, %v4789
        %v4793 = vxor.u32 %v4792, 2147483648
        %v4794 = vsel %vm4711, %v4793, %v4792
        %v4795 = vsub.s32 4, %v4771
        %v4796 = vsel %vm4711, %v4795, %v4771
        %v4797 = vsel %vm4710, %v826, %v4794
        %v4798 = vsel %vm4710, 0, %v4796
        %v4799 = vcosq.f32.pop %v4797
        %v4800 = vsinq.f32.pop %v4797
        %vm4801 = vweird.f32 %v826
        %v4802 = vadd.s32 %v4798, 3
        %v4803 = vand.u32 %v4802, 3
        %vm4804 = vcmp.lt.s32.totalorder %v4803, 2
        %vm4805 = vcmp.eq.s32.totalorder %v4803, 0
        %v4806 = vxor.u32 %v4800, 2147483648
        %v4807 = vsel %vm4805, %v4799, %v4806
        %vm4808 = vcmp.eq.s32.totalorder %v4803, 2
        %v4809 = vxor.u32 %v4799, 2147483648
        %v4810 = vsel %vm4808, %v4809, %v4800
        %v4811 = vsel %vm4804, %v4807, %v4810
        %v4812 = vsel %vm4801, nan, %v4811
        %v4813 = vand.u32 2147483647, %v827
        %vm4814 = vcmp.le.f32.partialorder %v4813, 0.7853982
        %vm4815 = vcmp.lt.s32.totalorder %v827, 0
        %v4816 = vand.u32 %v827, 2139095040
        %v4817 = vshrl.u32 %v4816, 23
        %v4818 = vsub.s32 %v4817, 127
        %v4819 = vand.u32 2147483647, %v827
        %v4820 = vand.u32 %v4819, 8388607
        %v4821 = vor.u32 %v4820, 8388608
        %v4822 = vsub.s32 0, %v4821
        %v4823 = vadd.s32 %v4818, 1
        %vm4824 = vcmp.gt.s32.totalorder %v4823, 0
        %v4825 = vsel %vm4824, %v4823, 0
        %v4826 = vshrl.u32 %v4825, 5
        %v4827 = vand.u32 %v4825, 31
        %v4828 = vsub.s32 32, %v4827
        %v4829 = vshrl.u32 683565275, %v4828
        %v4830 = vshll.u32 683565275, %v4827
        %v4831 = vshrl.u32 2475754826, %v4828
        %v4832 = vor.u32 %v4830, %v4831
        %v4833 = vshll.u32 2475754826, %v4827
        %v4834 = vshrl.u32 2131351028, %v4828
        %v4835 = vor.u32 %v4833, %v4834
        %v4836 = vshll.u32 2131351028, %v4827
        %v4837 = vshrl.u32 2102212464, %v4828
        %v4838 = vor.u32 %v4836, %v4837
        %v4839 = vshll.u32 2102212464, %v4827
        %v4840 = vshrl.u32 920167782, %v4828
        %v4841 = vor.u32 %v4839, %v4840
        %v4842 = vshll.u32 920167782, %v4827
        %v4843 = vshrl.u32 1326507024, %v4828
        %v4844 = vor.u32 %v4842, %v4843
        %vm4845 = vcmp.lt.s32.totalorder %v4826, 1
        %vm4846 = vcmp.lt.s32.totalorder %v4826, 2
        %vm4847 = vcmp.lt.s32.totalorder %v4826, 3
        %vm4848 = vcmp.lt.s32.totalorder %v4826, 4
        %v4849 = vsel %vm4845, %v4829, %v4832
        %v4850 = vsel %vm4848, %v4838, 2102212464
        %v4851 = vsel %vm4847, %v4835, %v4850
        %v4852 = vsel %vm4846, %v4849, %v4851
        %v4853 = vsel %vm4845, %v4832, %v4835
        %v4854 = vsel %vm4848, %v4841, 920167782
        %v4855 = vsel %vm4847, %v4838, %v4854
        %v4856 = vsel %vm4846, %v4853, %v4855
        %v4857 = vsel %vm4845, %v4835, %v4838
        %v4858 = vsel %vm4848, %v4844, 1326507024
        %v4859 = vsel %vm4847, %v4841, %v4858
        %v4860 = vsel %vm4846, %v4857, %v4859
        %v4861 = vshll.u32 %v4821, 8
        %v4862 = vmul.u32.u64.compose %v4861, %v4860
        %v4863 = vextract.low.u32 %v4862
        %v4864 = vextract.high.u32 %v4862
        %v4865 = vmul.u32.u64.compose %v4861, %v4856
        %v4866 = vextract.low.u32 %v4865
        %v4867 = vextract.high.u32 %v4865
        %v4868 = vmul.u32 %v4861, %v4852
        %v4869 = vadd.s32 %v4864, %v4866
        %vm4870 = vc.u32 %v4864, %v4866
        %v4871 = vadd.s32 %v4867, 1
        %v4872 = vsel %vm4870, %v4871, %v4867
        %v4873 = vadd.s32 %v4868, %v4872
        %v4874 = vadd.s32 %v4873, 536870912
        %v4875 = vshrl.u32 %v4874, 30
        %v4876 = vshll.u32 %v4875, 30
        %v4877 = vsub.s32 %v4873, %v4876
        %vm4878 = vcmp.lt.s32.totalorder %v4877, 0
        %v4879 = vsub.s32 0, %v4877
        %v4880 = vsel %vm4878, %v4879, %v4877
        %v4881 = vclz %v4880
        %v4882 = vsub.s32 %v4881, 2
        %vm4883 = vcmp.gt.s32.totalorder 0, %v4882
        %v4884 = vsel %vm4883, 0, %v4882
        %v4885 = vsub.s32 32, %v4884
        %v4886 = vshll.u32 %v4877, %v4884
        %v4887 = vshrl.u32 %v4869, %v4885
        %v4888 = vor.u32 %v4886, %v4887
        %v4889 = vsub.s32 4294967266, %v4884
        %v4890 = vadd.s32 %v4889, 127
        %v4891 = vshll.u32 %v4890, 23
        %v4892 = vor.u32 4788187, %v4891
        %v4893 = vand.u32 2147483647, %v4892
        %v4895 = vcvt.s32.f32 %v4888
        %v4896 = vmul.f32 %v4895, %v4893
        %v4897 = vxor.u32 %v4896, 2147483648
        %v4898 = vsel %vm4815, %v4897, %v4896
        %v4899 = vsub.s32 4, %v4875
        %v4900 = vsel %vm4815, %v4899, %v4875
        %v4901 = vsel %vm4814, %v827, %v4898
        %v4902 = vsel %vm4814, 0, %v4900
        %v4903 = vcosq.f32.pop %v4901
        %v4904 = vsinq.f32.pop %v4901
        %vm4905 = vweird.f32 %v827
        %v4906 = vadd.s32 %v4902, 3
        %v4907 = vand.u32 %v4906, 3
        %vm4908 = vcmp.lt.s32.totalorder %v4907, 2
        %vm4909 = vcmp.eq.s32.totalorder %v4907, 0
        %v4910 = vxor.u32 %v4904, 2147483648
        %v4911 = vsel %vm4909, %v4903, %v4910
        %vm4912 = vcmp.eq.s32.totalorder %v4907, 2
        %v4913 = vxor.u32 %v4903, 2147483648
        %v4914 = vsel %vm4912, %v4913, %v4904
        %v4915 = vsel %vm4908, %v4911, %v4914
        %v4916 = vsel %vm4905, nan, %v4915
        %v4917 = vand.u32 2147483647, %v828
        %vm4918 = vcmp.le.f32.partialorder %v4917, 0.7853982
        %vm4919 = vcmp.lt.s32.totalorder %v828, 0
        %v4920 = vand.u32 %v828, 2139095040
        %v4921 = vshrl.u32 %v4920, 23
        %v4922 = vsub.s32 %v4921, 127
        %v4923 = vand.u32 2147483647, %v828
        %v4924 = vand.u32 %v4923, 8388607
        %v4925 = vor.u32 %v4924, 8388608
        %v4926 = vsub.s32 0, %v4925
        %v4927 = vadd.s32 %v4922, 1
        %vm4928 = vcmp.gt.s32.totalorder %v4927, 0
        %v4929 = vsel %vm4928, %v4927, 0
        %v4930 = vshrl.u32 %v4929, 5
        %v4931 = vand.u32 %v4929, 31
        %v4932 = vsub.s32 32, %v4931
        %v4933 = vshrl.u32 683565275, %v4932
        %v4934 = vshll.u32 683565275, %v4931
        %v4935 = vshrl.u32 2475754826, %v4932
        %v4936 = vor.u32 %v4934, %v4935
        %v4937 = vshll.u32 2475754826, %v4931
        %v4938 = vshrl.u32 2131351028, %v4932
        %v4939 = vor.u32 %v4937, %v4938
        %v4940 = vshll.u32 2131351028, %v4931
        %v4941 = vshrl.u32 2102212464, %v4932
        %v4942 = vor.u32 %v4940, %v4941
        %v4943 = vshll.u32 2102212464, %v4931
        %v4944 = vshrl.u32 920167782, %v4932
        %v4945 = vor.u32 %v4943, %v4944
        %v4946 = vshll.u32 920167782, %v4931
        %v4947 = vshrl.u32 1326507024, %v4932
        %v4948 = vor.u32 %v4946, %v4947
        %vm4949 = vcmp.lt.s32.totalorder %v4930, 1
        %vm4950 = vcmp.lt.s32.totalorder %v4930, 2
        %vm4951 = vcmp.lt.s32.totalorder %v4930, 3
        %vm4952 = vcmp.lt.s32.totalorder %v4930, 4
        %v4953 = vsel %vm4949, %v4933, %v4936
        %v4954 = vsel %vm4952, %v4942, 2102212464
        %v4955 = vsel %vm4951, %v4939, %v4954
        %v4956 = vsel %vm4950, %v4953, %v4955
        %v4957 = vsel %vm4949, %v4936, %v4939
        %v4958 = vsel %vm4952, %v4945, 920167782
        %v4959 = vsel %vm4951, %v4942, %v4958
        %v4960 = vsel %vm4950, %v4957, %v4959
        %v4961 = vsel %vm4949, %v4939, %v4942
        %v4962 = vsel %vm4952, %v4948, 1326507024
        %v4963 = vsel %vm4951, %v4945, %v4962
        %v4964 = vsel %vm4950, %v4961, %v4963
        %v4965 = vshll.u32 %v4925, 8
        %v4966 = vmul.u32.u64.compose %v4965, %v4964
        %v4967 = vextract.low.u32 %v4966
        %v4968 = vextract.high.u32 %v4966
        %v4969 = vmul.u32.u64.compose %v4965, %v4960
        %v4970 = vextract.low.u32 %v4969
        %v4971 = vextract.high.u32 %v4969
        %v4972 = vmul.u32 %v4965, %v4956
        %v4973 = vadd.s32 %v4968, %v4970
        %vm4974 = vc.u32 %v4968, %v4970
        %v4975 = vadd.s32 %v4971, 1
        %v4976 = vsel %vm4974, %v4975, %v4971
        %v4977 = vadd.s32 %v4972, %v4976
        %v4978 = vadd.s32 %v4977, 536870912
        %v4979 = vshrl.u32 %v4978, 30
        %v4980 = vshll.u32 %v4979, 30
        %v4981 = vsub.s32 %v4977, %v4980
        %vm4982 = vcmp.lt.s32.totalorder %v4981, 0
        %v4983 = vsub.s32 0, %v4981
        %v4984 = vsel %vm4982, %v4983, %v4981
        %v4985 = vclz %v4984
        %v4986 = vsub.s32 %v4985, 2
        %vm4987 = vcmp.gt.s32.totalorder 0, %v4986
        %v4988 = vsel %vm4987, 0, %v4986
        %v4989 = vsub.s32 32, %v4988
        %v4990 = vshll.u32 %v4981, %v4988
        %v4991 = vshrl.u32 %v4973, %v4989
        %v4992 = vor.u32 %v4990, %v4991
        %v4993 = vsub.s32 4294967266, %v4988
        %v4994 = vadd.s32 %v4993, 127
        %v4995 = vshll.u32 %v4994, 23
        %v4996 = vor.u32 4788187, %v4995
        %v4997 = vand.u32 2147483647, %v4996
        %v4999 = vcvt.s32.f32 %v4992
        %v5000 = vmul.f32 %v4999, %v4997
        %v5001 = vxor.u32 %v5000, 2147483648
        %v5002 = vsel %vm4919, %v5001, %v5000
        %v5003 = vsub.s32 4, %v4979
        %v5004 = vsel %vm4919, %v5003, %v4979
        %v5005 = vsel %vm4918, %v828, %v5002
        %v5006 = vsel %vm4918, 0, %v5004
        %v5007 = vcosq.f32.pop %v5005
        %v5008 = vsinq.f32.pop %v5005
        %vm5009 = vweird.f32 %v828
        %v5010 = vadd.s32 %v5006, 3
        %v5011 = vand.u32 %v5010, 3
        %vm5012 = vcmp.lt.s32.totalorder %v5011, 2
        %vm5013 = vcmp.eq.s32.totalorder %v5011, 0
        %v5014 = vxor.u32 %v5008, 2147483648
        %v5015 = vsel %vm5013, %v5007, %v5014
        %vm5016 = vcmp.eq.s32.totalorder %v5011, 2
        %v5017 = vxor.u32 %v5007, 2147483648
        %v5018 = vsel %vm5016, %v5017, %v5008
        %v5019 = vsel %vm5012, %v5015, %v5018
        %v5020 = vsel %vm5009, nan, %v5019
        %v5021 = vand.u32 2147483647, %v829
        %vm5022 = vcmp.le.f32.partialorder %v5021, 0.7853982
        %vm5023 = vcmp.lt.s32.totalorder %v829, 0
        %v5024 = vand.u32 %v829, 2139095040
        %v5025 = vshrl.u32 %v5024, 23
        %v5026 = vsub.s32 %v5025, 127
        %v5027 = vand.u32 2147483647, %v829
        %v5028 = vand.u32 %v5027, 8388607
        %v5029 = vor.u32 %v5028, 8388608
        %v5030 = vsub.s32 0, %v5029
        %v5031 = vadd.s32 %v5026, 1
        %vm5032 = vcmp.gt.s32.totalorder %v5031, 0
        %v5033 = vsel %vm5032, %v5031, 0
        %v5034 = vshrl.u32 %v5033, 5
        %v5035 = vand.u32 %v5033, 31
        %v5036 = vsub.s32 32, %v5035
        %v5037 = vshrl.u32 683565275, %v5036
        %v5038 = vshll.u32 683565275, %v5035
        %v5039 = vshrl.u32 2475754826, %v5036
        %v5040 = vor.u32 %v5038, %v5039
        %v5041 = vshll.u32 2475754826, %v5035
        %v5042 = vshrl.u32 2131351028, %v5036
        %v5043 = vor.u32 %v5041, %v5042
        %v5044 = vshll.u32 2131351028, %v5035
        %v5045 = vshrl.u32 2102212464, %v5036
        %v5046 = vor.u32 %v5044, %v5045
        %v5047 = vshll.u32 2102212464, %v5035
        %v5048 = vshrl.u32 920167782, %v5036
        %v5049 = vor.u32 %v5047, %v5048
        %v5050 = vshll.u32 920167782, %v5035
        %v5051 = vshrl.u32 1326507024, %v5036
        %v5052 = vor.u32 %v5050, %v5051
        %vm5053 = vcmp.lt.s32.totalorder %v5034, 1
        %vm5054 = vcmp.lt.s32.totalorder %v5034, 2
        %vm5055 = vcmp.lt.s32.totalorder %v5034, 3
        %vm5056 = vcmp.lt.s32.totalorder %v5034, 4
        %v5057 = vsel %vm5053, %v5037, %v5040
        %v5058 = vsel %vm5056, %v5046, 2102212464
        %v5059 = vsel %vm5055, %v5043, %v5058
        %v5060 = vsel %vm5054, %v5057, %v5059
        %v5061 = vsel %vm5053, %v5040, %v5043
        %v5062 = vsel %vm5056, %v5049, 920167782
        %v5063 = vsel %vm5055, %v5046, %v5062
        %v5064 = vsel %vm5054, %v5061, %v5063
        %v5065 = vsel %vm5053, %v5043, %v5046
        %v5066 = vsel %vm5056, %v5052, 1326507024
        %v5067 = vsel %vm5055, %v5049, %v5066
        %v5068 = vsel %vm5054, %v5065, %v5067
        %v5069 = vshll.u32 %v5029, 8
        %v5070 = vmul.u32.u64.compose %v5069, %v5068
        %v5071 = vextract.low.u32 %v5070
        %v5072 = vextract.high.u32 %v5070
        %v5073 = vmul.u32.u64.compose %v5069, %v5064
        %v5074 = vextract.low.u32 %v5073
        %v5075 = vextract.high.u32 %v5073
        %v5076 = vmul.u32 %v5069, %v5060
        %v5077 = vadd.s32 %v5072, %v5074
        %vm5078 = vc.u32 %v5072, %v5074
        %v5079 = vadd.s32 %v5075, 1
        %v5080 = vsel %vm5078, %v5079, %v5075
        %v5081 = vadd.s32 %v5076, %v5080
        %v5082 = vadd.s32 %v5081, 536870912
        %v5083 = vshrl.u32 %v5082, 30
        %v5084 = vshll.u32 %v5083, 30
        %v5085 = vsub.s32 %v5081, %v5084
        %vm5086 = vcmp.lt.s32.totalorder %v5085, 0
        %v5087 = vsub.s32 0, %v5085
        %v5088 = vsel %vm5086, %v5087, %v5085
        %v5089 = vclz %v5088
        %v5090 = vsub.s32 %v5089, 2
        %vm5091 = vcmp.gt.s32.totalorder 0, %v5090
        %v5092 = vsel %vm5091, 0, %v5090
        %v5093 = vsub.s32 32, %v5092
        %v5094 = vshll.u32 %v5085, %v5092
        %v5095 = vshrl.u32 %v5077, %v5093
        %v5096 = vor.u32 %v5094, %v5095
        %v5097 = vsub.s32 4294967266, %v5092
        %v5098 = vadd.s32 %v5097, 127
        %v5099 = vshll.u32 %v5098, 23
        %v5100 = vor.u32 4788187, %v5099
        %v5101 = vand.u32 2147483647, %v5100
        %v5103 = vcvt.s32.f32 %v5096
        %v5104 = vmul.f32 %v5103, %v5101
        %v5105 = vxor.u32 %v5104, 2147483648
        %v5106 = vsel %vm5023, %v5105, %v5104
        %v5107 = vsub.s32 4, %v5083
        %v5108 = vsel %vm5023, %v5107, %v5083
        %v5109 = vsel %vm5022, %v829, %v5106
        %v5110 = vsel %vm5022, 0, %v5108
        %v5111 = vcosq.f32.pop %v5109
        %v5112 = vsinq.f32.pop %v5109
        %vm5113 = vweird.f32 %v829
        %v5114 = vadd.s32 %v5110, 3
        %v5115 = vand.u32 %v5114, 3
        %vm5116 = vcmp.lt.s32.totalorder %v5115, 2
        %vm5117 = vcmp.eq.s32.totalorder %v5115, 0
        %v5118 = vxor.u32 %v5112, 2147483648
        %v5119 = vsel %vm5117, %v5111, %v5118
        %vm5120 = vcmp.eq.s32.totalorder %v5115, 2
        %v5121 = vxor.u32 %v5111, 2147483648
        %v5122 = vsel %vm5120, %v5121, %v5112
        %v5123 = vsel %vm5116, %v5119, %v5122
        %v5124 = vsel %vm5113, nan, %v5123
        %v5125 = vand.u32 2147483647, %v830
        %vm5126 = vcmp.le.f32.partialorder %v5125, 0.7853982
        %vm5127 = vcmp.lt.s32.totalorder %v830, 0
        %v5128 = vand.u32 %v830, 2139095040
        %v5129 = vshrl.u32 %v5128, 23
        %v5130 = vsub.s32 %v5129, 127
        %v5131 = vand.u32 2147483647, %v830
        %v5132 = vand.u32 %v5131, 8388607
        %v5133 = vor.u32 %v5132, 8388608
        %v5134 = vsub.s32 0, %v5133
        %v5135 = vadd.s32 %v5130, 1
        %vm5136 = vcmp.gt.s32.totalorder %v5135, 0
        %v5137 = vsel %vm5136, %v5135, 0
        %v5138 = vshrl.u32 %v5137, 5
        %v5139 = vand.u32 %v5137, 31
        %v5140 = vsub.s32 32, %v5139
        %v5141 = vshrl.u32 683565275, %v5140
        %v5142 = vshll.u32 683565275, %v5139
        %v5143 = vshrl.u32 2475754826, %v5140
        %v5144 = vor.u32 %v5142, %v5143
        %v5145 = vshll.u32 2475754826, %v5139
        %v5146 = vshrl.u32 2131351028, %v5140
        %v5147 = vor.u32 %v5145, %v5146
        %v5148 = vshll.u32 2131351028, %v5139
        %v5149 = vshrl.u32 2102212464, %v5140
        %v5150 = vor.u32 %v5148, %v5149
        %v5151 = vshll.u32 2102212464, %v5139
        %v5152 = vshrl.u32 920167782, %v5140
        %v5153 = vor.u32 %v5151, %v5152
        %v5154 = vshll.u32 920167782, %v5139
        %v5155 = vshrl.u32 1326507024, %v5140
        %v5156 = vor.u32 %v5154, %v5155
        %vm5157 = vcmp.lt.s32.totalorder %v5138, 1
        %vm5158 = vcmp.lt.s32.totalorder %v5138, 2
        %vm5159 = vcmp.lt.s32.totalorder %v5138, 3
        %vm5160 = vcmp.lt.s32.totalorder %v5138, 4
        %v5161 = vsel %vm5157, %v5141, %v5144
        %v5162 = vsel %vm5160, %v5150, 2102212464
        %v5163 = vsel %vm5159, %v5147, %v5162
        %v5164 = vsel %vm5158, %v5161, %v5163
        %v5165 = vsel %vm5157, %v5144, %v5147
        %v5166 = vsel %vm5160, %v5153, 920167782
        %v5167 = vsel %vm5159, %v5150, %v5166
        %v5168 = vsel %vm5158, %v5165, %v5167
        %v5169 = vsel %vm5157, %v5147, %v5150
        %v5170 = vsel %vm5160, %v5156, 1326507024
        %v5171 = vsel %vm5159, %v5153, %v5170
        %v5172 = vsel %vm5158, %v5169, %v5171
        %v5173 = vshll.u32 %v5133, 8
        %v5174 = vmul.u32.u64.compose %v5173, %v5172
        %v5175 = vextract.low.u32 %v5174
        %v5176 = vextract.high.u32 %v5174
        %v5177 = vmul.u32.u64.compose %v5173, %v5168
        %v5178 = vextract.low.u32 %v5177
        %v5179 = vextract.high.u32 %v5177
        %v5180 = vmul.u32 %v5173, %v5164
        %v5181 = vadd.s32 %v5176, %v5178
        %vm5182 = vc.u32 %v5176, %v5178
        %v5183 = vadd.s32 %v5179, 1
        %v5184 = vsel %vm5182, %v5183, %v5179
        %v5185 = vadd.s32 %v5180, %v5184
        %v5186 = vadd.s32 %v5185, 536870912
        %v5187 = vshrl.u32 %v5186, 30
        %v5188 = vshll.u32 %v5187, 30
        %v5189 = vsub.s32 %v5185, %v5188
        %vm5190 = vcmp.lt.s32.totalorder %v5189, 0
        %v5191 = vsub.s32 0, %v5189
        %v5192 = vsel %vm5190, %v5191, %v5189
        %v5193 = vclz %v5192
        %v5194 = vsub.s32 %v5193, 2
        %vm5195 = vcmp.gt.s32.totalorder 0, %v5194
        %v5196 = vsel %vm5195, 0, %v5194
        %v5197 = vsub.s32 32, %v5196
        %v5198 = vshll.u32 %v5189, %v5196
        %v5199 = vshrl.u32 %v5181, %v5197
        %v5200 = vor.u32 %v5198, %v5199
        %v5201 = vsub.s32 4294967266, %v5196
        %v5202 = vadd.s32 %v5201, 127
        %v5203 = vshll.u32 %v5202, 23
        %v5204 = vor.u32 4788187, %v5203
        %v5205 = vand.u32 2147483647, %v5204
        %v5207 = vcvt.s32.f32 %v5200
        %v5208 = vmul.f32 %v5207, %v5205
        %v5209 = vxor.u32 %v5208, 2147483648
        %v5210 = vsel %vm5127, %v5209, %v5208
        %v5211 = vsub.s32 4, %v5187
        %v5212 = vsel %vm5127, %v5211, %v5187
        %v5213 = vsel %vm5126, %v830, %v5210
        %v5214 = vsel %vm5126, 0, %v5212
        %v5215 = vcosq.f32.pop %v5213
        %v5216 = vsinq.f32.pop %v5213
        %vm5217 = vweird.f32 %v830
        %v5218 = vadd.s32 %v5214, 3
        %v5219 = vand.u32 %v5218, 3
        %vm5220 = vcmp.lt.s32.totalorder %v5219, 2
        %vm5221 = vcmp.eq.s32.totalorder %v5219, 0
        %v5222 = vxor.u32 %v5216, 2147483648
        %v5223 = vsel %vm5221, %v5215, %v5222
        %vm5224 = vcmp.eq.s32.totalorder %v5219, 2
        %v5225 = vxor.u32 %v5215, 2147483648
        %v5226 = vsel %vm5224, %v5225, %v5216
        %v5227 = vsel %vm5220, %v5223, %v5226
        %v5228 = vsel %vm5217, nan, %v5227
        %v5229 = vand.u32 2147483647, %v831
        %vm5230 = vcmp.le.f32.partialorder %v5229, 0.7853982
        %vm5231 = vcmp.lt.s32.totalorder %v831, 0
        %v5232 = vand.u32 %v831, 2139095040
        %v5233 = vshrl.u32 %v5232, 23
        %v5234 = vsub.s32 %v5233, 127
        %v5235 = vand.u32 2147483647, %v831
        %v5236 = vand.u32 %v5235, 8388607
        %v5237 = vor.u32 %v5236, 8388608
        %v5238 = vsub.s32 0, %v5237
        %v5239 = vadd.s32 %v5234, 1
        %vm5240 = vcmp.gt.s32.totalorder %v5239, 0
        %v5241 = vsel %vm5240, %v5239, 0
        %v5242 = vshrl.u32 %v5241, 5
        %v5243 = vand.u32 %v5241, 31
        %v5244 = vsub.s32 32, %v5243
        %v5245 = vshrl.u32 683565275, %v5244
        %v5246 = vshll.u32 683565275, %v5243
        %v5247 = vshrl.u32 2475754826, %v5244
        %v5248 = vor.u32 %v5246, %v5247
        %v5249 = vshll.u32 2475754826, %v5243
        %v5250 = vshrl.u32 2131351028, %v5244
        %v5251 = vor.u32 %v5249, %v5250
        %v5252 = vshll.u32 2131351028, %v5243
        %v5253 = vshrl.u32 2102212464, %v5244
        %v5254 = vor.u32 %v5252, %v5253
        %v5255 = vshll.u32 2102212464, %v5243
        %v5256 = vshrl.u32 920167782, %v5244
        %v5257 = vor.u32 %v5255, %v5256
        %v5258 = vshll.u32 920167782, %v5243
        %v5259 = vshrl.u32 1326507024, %v5244
        %v5260 = vor.u32 %v5258, %v5259
        %vm5261 = vcmp.lt.s32.totalorder %v5242, 1
        %vm5262 = vcmp.lt.s32.totalorder %v5242, 2
        %vm5263 = vcmp.lt.s32.totalorder %v5242, 3
        %vm5264 = vcmp.lt.s32.totalorder %v5242, 4
        %v5265 = vsel %vm5261, %v5245, %v5248
        %v5266 = vsel %vm5264, %v5254, 2102212464
        %v5267 = vsel %vm5263, %v5251, %v5266
        %v5268 = vsel %vm5262, %v5265, %v5267
        %v5269 = vsel %vm5261, %v5248, %v5251
        %v5270 = vsel %vm5264, %v5257, 920167782
        %v5271 = vsel %vm5263, %v5254, %v5270
        %v5272 = vsel %vm5262, %v5269, %v5271
        %v5273 = vsel %vm5261, %v5251, %v5254
        %v5274 = vsel %vm5264, %v5260, 1326507024
        %v5275 = vsel %vm5263, %v5257, %v5274
        %v5276 = vsel %vm5262, %v5273, %v5275
        %v5277 = vshll.u32 %v5237, 8
        %v5278 = vmul.u32.u64.compose %v5277, %v5276
        %v5279 = vextract.low.u32 %v5278
        %v5280 = vextract.high.u32 %v5278
        %v5281 = vmul.u32.u64.compose %v5277, %v5272
        %v5282 = vextract.low.u32 %v5281
        %v5283 = vextract.high.u32 %v5281
        %v5284 = vmul.u32 %v5277, %v5268
        %v5285 = vadd.s32 %v5280, %v5282
        %vm5286 = vc.u32 %v5280, %v5282
        %v5287 = vadd.s32 %v5283, 1
        %v5288 = vsel %vm5286, %v5287, %v5283
        %v5289 = vadd.s32 %v5284, %v5288
        %v5290 = vadd.s32 %v5289, 536870912
        %v5291 = vshrl.u32 %v5290, 30
        %v5292 = vshll.u32 %v5291, 30
        %v5293 = vsub.s32 %v5289, %v5292
        %vm5294 = vcmp.lt.s32.totalorder %v5293, 0
        %v5295 = vsub.s32 0, %v5293
        %v5296 = vsel %vm5294, %v5295, %v5293
        %v5297 = vclz %v5296
        %v5298 = vsub.s32 %v5297, 2
        %vm5299 = vcmp.gt.s32.totalorder 0, %v5298
        %v5300 = vsel %vm5299, 0, %v5298
        %v5301 = vsub.s32 32, %v5300
        %v5302 = vshll.u32 %v5293, %v5300
        %v5303 = vshrl.u32 %v5285, %v5301
        %v5304 = vor.u32 %v5302, %v5303
        %v5305 = vsub.s32 4294967266, %v5300
        %v5306 = vadd.s32 %v5305, 127
        %v5307 = vshll.u32 %v5306, 23
        %v5308 = vor.u32 4788187, %v5307
        %v5309 = vand.u32 2147483647, %v5308
        %v5311 = vcvt.s32.f32 %v5304
        %v5312 = vmul.f32 %v5311, %v5309
        %v5313 = vxor.u32 %v5312, 2147483648
        %v5314 = vsel %vm5231, %v5313, %v5312
        %v5315 = vsub.s32 4, %v5291
        %v5316 = vsel %vm5231, %v5315, %v5291
        %v5317 = vsel %vm5230, %v831, %v5314
        %v5318 = vsel %vm5230, 0, %v5316
        %v5319 = vcosq.f32.pop %v5317
        %v5320 = vsinq.f32.pop %v5317
        %vm5321 = vweird.f32 %v831
        %v5322 = vadd.s32 %v5318, 3
        %v5323 = vand.u32 %v5322, 3
        %vm5324 = vcmp.lt.s32.totalorder %v5323, 2
        %vm5325 = vcmp.eq.s32.totalorder %v5323, 0
        %v5326 = vxor.u32 %v5320, 2147483648
        %v5327 = vsel %vm5325, %v5319, %v5326
        %vm5328 = vcmp.eq.s32.totalorder %v5323, 2
        %v5329 = vxor.u32 %v5319, 2147483648
        %v5330 = vsel %vm5328, %v5329, %v5320
        %v5331 = vsel %vm5324, %v5327, %v5330
        %v5332 = vsel %vm5321, nan, %v5331
        %v5333 = vand.u32 2147483647, %v832
        %vm5334 = vcmp.le.f32.partialorder %v5333, 0.7853982
        %vm5335 = vcmp.lt.s32.totalorder %v832, 0
        %v5336 = vand.u32 %v832, 2139095040
        %v5337 = vshrl.u32 %v5336, 23
        %v5338 = vsub.s32 %v5337, 127
        %v5339 = vand.u32 2147483647, %v832
        %v5340 = vand.u32 %v5339, 8388607
        %v5341 = vor.u32 %v5340, 8388608
        %v5342 = vsub.s32 0, %v5341
        %v5343 = vadd.s32 %v5338, 1
        %vm5344 = vcmp.gt.s32.totalorder %v5343, 0
        %v5345 = vsel %vm5344, %v5343, 0
        %v5346 = vshrl.u32 %v5345, 5
        %v5347 = vand.u32 %v5345, 31
        %v5348 = vsub.s32 32, %v5347
        %v5349 = vshrl.u32 683565275, %v5348
        %v5350 = vshll.u32 683565275, %v5347
        %v5351 = vshrl.u32 2475754826, %v5348
        %v5352 = vor.u32 %v5350, %v5351
        %v5353 = vshll.u32 2475754826, %v5347
        %v5354 = vshrl.u32 2131351028, %v5348
        %v5355 = vor.u32 %v5353, %v5354
        %v5356 = vshll.u32 2131351028, %v5347
        %v5357 = vshrl.u32 2102212464, %v5348
        %v5358 = vor.u32 %v5356, %v5357
        %v5359 = vshll.u32 2102212464, %v5347
        %v5360 = vshrl.u32 920167782, %v5348
        %v5361 = vor.u32 %v5359, %v5360
        %v5362 = vshll.u32 920167782, %v5347
        %v5363 = vshrl.u32 1326507024, %v5348
        %v5364 = vor.u32 %v5362, %v5363
        %vm5365 = vcmp.lt.s32.totalorder %v5346, 1
        %vm5366 = vcmp.lt.s32.totalorder %v5346, 2
        %vm5367 = vcmp.lt.s32.totalorder %v5346, 3
        %vm5368 = vcmp.lt.s32.totalorder %v5346, 4
        %v5369 = vsel %vm5365, %v5349, %v5352
        %v5370 = vsel %vm5368, %v5358, 2102212464
        %v5371 = vsel %vm5367, %v5355, %v5370
        %v5372 = vsel %vm5366, %v5369, %v5371
        %v5373 = vsel %vm5365, %v5352, %v5355
        %v5374 = vsel %vm5368, %v5361, 920167782
        %v5375 = vsel %vm5367, %v5358, %v5374
        %v5376 = vsel %vm5366, %v5373, %v5375
        %v5377 = vsel %vm5365, %v5355, %v5358
        %v5378 = vsel %vm5368, %v5364, 1326507024
        %v5379 = vsel %vm5367, %v5361, %v5378
        %v5380 = vsel %vm5366, %v5377, %v5379
        %v5381 = vshll.u32 %v5341, 8
        %v5382 = vmul.u32.u64.compose %v5381, %v5380
        %v5383 = vextract.low.u32 %v5382
        %v5384 = vextract.high.u32 %v5382
        %v5385 = vmul.u32.u64.compose %v5381, %v5376
        %v5386 = vextract.low.u32 %v5385
        %v5387 = vextract.high.u32 %v5385
        %v5388 = vmul.u32 %v5381, %v5372
        %v5389 = vadd.s32 %v5384, %v5386
        %vm5390 = vc.u32 %v5384, %v5386
        %v5391 = vadd.s32 %v5387, 1
        %v5392 = vsel %vm5390, %v5391, %v5387
        %v5393 = vadd.s32 %v5388, %v5392
        %v5394 = vadd.s32 %v5393, 536870912
        %v5395 = vshrl.u32 %v5394, 30
        %v5396 = vshll.u32 %v5395, 30
        %v5397 = vsub.s32 %v5393, %v5396
        %vm5398 = vcmp.lt.s32.totalorder %v5397, 0
        %v5399 = vsub.s32 0, %v5397
        %v5400 = vsel %vm5398, %v5399, %v5397
        %v5401 = vclz %v5400
        %v5402 = vsub.s32 %v5401, 2
        %vm5403 = vcmp.gt.s32.totalorder 0, %v5402
        %v5404 = vsel %vm5403, 0, %v5402
        %v5405 = vsub.s32 32, %v5404
        %v5406 = vshll.u32 %v5397, %v5404
        %v5407 = vshrl.u32 %v5389, %v5405
        %v5408 = vor.u32 %v5406, %v5407
        %v5409 = vsub.s32 4294967266, %v5404
        %v5410 = vadd.s32 %v5409, 127
        %v5411 = vshll.u32 %v5410, 23
        %v5412 = vor.u32 4788187, %v5411
        %v5413 = vand.u32 2147483647, %v5412
        %v5415 = vcvt.s32.f32 %v5408
        %v5416 = vmul.f32 %v5415, %v5413
        %v5417 = vxor.u32 %v5416, 2147483648
        %v5418 = vsel %vm5335, %v5417, %v5416
        %v5419 = vsub.s32 4, %v5395
        %v5420 = vsel %vm5335, %v5419, %v5395
        %v5421 = vsel %vm5334, %v832, %v5418
        %v5422 = vsel %vm5334, 0, %v5420
        %v5423 = vcosq.f32.pop %v5421
        %v5424 = vsinq.f32.pop %v5421
        %vm5425 = vweird.f32 %v832
        %v5426 = vadd.s32 %v5422, 3
        %v5427 = vand.u32 %v5426, 3
        %vm5428 = vcmp.lt.s32.totalorder %v5427, 2
        %vm5429 = vcmp.eq.s32.totalorder %v5427, 0
        %v5430 = vxor.u32 %v5424, 2147483648
        %v5431 = vsel %vm5429, %v5423, %v5430
        %vm5432 = vcmp.eq.s32.totalorder %v5427, 2
        %v5433 = vxor.u32 %v5423, 2147483648
        %v5434 = vsel %vm5432, %v5433, %v5424
        %v5435 = vsel %vm5428, %v5431, %v5434
        %v5436 = vsel %vm5425, nan, %v5435
        %v5437 = vand.u32 2147483647, %v833
        %vm5438 = vcmp.le.f32.partialorder %v5437, 0.7853982
        %vm5439 = vcmp.lt.s32.totalorder %v833, 0
        %v5440 = vand.u32 %v833, 2139095040
        %v5441 = vshrl.u32 %v5440, 23
        %v5442 = vsub.s32 %v5441, 127
        %v5443 = vand.u32 2147483647, %v833
        %v5444 = vand.u32 %v5443, 8388607
        %v5445 = vor.u32 %v5444, 8388608
        %v5446 = vsub.s32 0, %v5445
        %v5447 = vadd.s32 %v5442, 1
        %vm5448 = vcmp.gt.s32.totalorder %v5447, 0
        %v5449 = vsel %vm5448, %v5447, 0
        %v5450 = vshrl.u32 %v5449, 5
        %v5451 = vand.u32 %v5449, 31
        %v5452 = vsub.s32 32, %v5451
        %v5453 = vshrl.u32 683565275, %v5452
        %v5454 = vshll.u32 683565275, %v5451
        %v5455 = vshrl.u32 2475754826, %v5452
        %v5456 = vor.u32 %v5454, %v5455
        %v5457 = vshll.u32 2475754826, %v5451
        %v5458 = vshrl.u32 2131351028, %v5452
        %v5459 = vor.u32 %v5457, %v5458
        %v5460 = vshll.u32 2131351028, %v5451
        %v5461 = vshrl.u32 2102212464, %v5452
        %v5462 = vor.u32 %v5460, %v5461
        %v5463 = vshll.u32 2102212464, %v5451
        %v5464 = vshrl.u32 920167782, %v5452
        %v5465 = vor.u32 %v5463, %v5464
        %v5466 = vshll.u32 920167782, %v5451
        %v5467 = vshrl.u32 1326507024, %v5452
        %v5468 = vor.u32 %v5466, %v5467
        %vm5469 = vcmp.lt.s32.totalorder %v5450, 1
        %vm5470 = vcmp.lt.s32.totalorder %v5450, 2
        %vm5471 = vcmp.lt.s32.totalorder %v5450, 3
        %vm5472 = vcmp.lt.s32.totalorder %v5450, 4
        %v5473 = vsel %vm5469, %v5453, %v5456
        %v5474 = vsel %vm5472, %v5462, 2102212464
        %v5475 = vsel %vm5471, %v5459, %v5474
        %v5476 = vsel %vm5470, %v5473, %v5475
        %v5477 = vsel %vm5469, %v5456, %v5459
        %v5478 = vsel %vm5472, %v5465, 920167782
        %v5479 = vsel %vm5471, %v5462, %v5478
        %v5480 = vsel %vm5470, %v5477, %v5479
        %v5481 = vsel %vm5469, %v5459, %v5462
        %v5482 = vsel %vm5472, %v5468, 1326507024
        %v5483 = vsel %vm5471, %v5465, %v5482
        %v5484 = vsel %vm5470, %v5481, %v5483
        %v5485 = vshll.u32 %v5445, 8
        %v5486 = vmul.u32.u64.compose %v5485, %v5484
        %v5487 = vextract.low.u32 %v5486
        %v5488 = vextract.high.u32 %v5486
        %v5489 = vmul.u32.u64.compose %v5485, %v5480
        %v5490 = vextract.low.u32 %v5489
        %v5491 = vextract.high.u32 %v5489
        %v5492 = vmul.u32 %v5485, %v5476
        %v5493 = vadd.s32 %v5488, %v5490
        %vm5494 = vc.u32 %v5488, %v5490
        %v5495 = vadd.s32 %v5491, 1
        %v5496 = vsel %vm5494, %v5495, %v5491
        %v5497 = vadd.s32 %v5492, %v5496
        %v5498 = vadd.s32 %v5497, 536870912
        %v5499 = vshrl.u32 %v5498, 30
        %v5500 = vshll.u32 %v5499, 30
        %v5501 = vsub.s32 %v5497, %v5500
        %vm5502 = vcmp.lt.s32.totalorder %v5501, 0
        %v5503 = vsub.s32 0, %v5501
        %v5504 = vsel %vm5502, %v5503, %v5501
        %v5505 = vclz %v5504
        %v5506 = vsub.s32 %v5505, 2
        %vm5507 = vcmp.gt.s32.totalorder 0, %v5506
        %v5508 = vsel %vm5507, 0, %v5506
        %v5509 = vsub.s32 32, %v5508
        %v5510 = vshll.u32 %v5501, %v5508
        %v5511 = vshrl.u32 %v5493, %v5509
        %v5512 = vor.u32 %v5510, %v5511
        %v5513 = vsub.s32 4294967266, %v5508
        %v5514 = vadd.s32 %v5513, 127
        %v5515 = vshll.u32 %v5514, 23
        %v5516 = vor.u32 4788187, %v5515
        %v5517 = vand.u32 2147483647, %v5516
        %v5519 = vcvt.s32.f32 %v5512
        %v5520 = vmul.f32 %v5519, %v5517
        %v5521 = vxor.u32 %v5520, 2147483648
        %v5522 = vsel %vm5439, %v5521, %v5520
        %v5523 = vsub.s32 4, %v5499
        %v5524 = vsel %vm5439, %v5523, %v5499
        %v5525 = vsel %vm5438, %v833, %v5522
        %v5526 = vsel %vm5438, 0, %v5524
        %v5527 = vcosq.f32.pop %v5525
        %v5528 = vsinq.f32.pop %v5525
        %vm5529 = vweird.f32 %v833
        %v5530 = vadd.s32 %v5526, 3
        %v5531 = vand.u32 %v5530, 3
        %vm5532 = vcmp.lt.s32.totalorder %v5531, 2
        %vm5533 = vcmp.eq.s32.totalorder %v5531, 0
        %v5534 = vxor.u32 %v5528, 2147483648
        %v5535 = vsel %vm5533, %v5527, %v5534
        %vm5536 = vcmp.eq.s32.totalorder %v5531, 2
        %v5537 = vxor.u32 %v5527, 2147483648
        %v5538 = vsel %vm5536, %v5537, %v5528
        %v5539 = vsel %vm5532, %v5535, %v5538
        %v5540 = vsel %vm5529, nan, %v5539
        %v5541 = vand.u32 2147483647, %v834
        %vm5542 = vcmp.le.f32.partialorder %v5541, 0.7853982
        %vm5543 = vcmp.lt.s32.totalorder %v834, 0
        %v5544 = vand.u32 %v834, 2139095040
        %v5545 = vshrl.u32 %v5544, 23
        %v5546 = vsub.s32 %v5545, 127
        %v5547 = vand.u32 2147483647, %v834
        %v5548 = vand.u32 %v5547, 8388607
        %v5549 = vor.u32 %v5548, 8388608
        %v5550 = vsub.s32 0, %v5549
        %v5551 = vadd.s32 %v5546, 1
        %vm5552 = vcmp.gt.s32.totalorder %v5551, 0
        %v5553 = vsel %vm5552, %v5551, 0
        %v5554 = vshrl.u32 %v5553, 5
        %v5555 = vand.u32 %v5553, 31
        %v5556 = vsub.s32 32, %v5555
        %v5557 = vshrl.u32 683565275, %v5556
        %v5558 = vshll.u32 683565275, %v5555
        %v5559 = vshrl.u32 2475754826, %v5556
        %v5560 = vor.u32 %v5558, %v5559
        %v5561 = vshll.u32 2475754826, %v5555
        %v5562 = vshrl.u32 2131351028, %v5556
        %v5563 = vor.u32 %v5561, %v5562
        %v5564 = vshll.u32 2131351028, %v5555
        %v5565 = vshrl.u32 2102212464, %v5556
        %v5566 = vor.u32 %v5564, %v5565
        %v5567 = vshll.u32 2102212464, %v5555
        %v5568 = vshrl.u32 920167782, %v5556
        %v5569 = vor.u32 %v5567, %v5568
        %v5570 = vshll.u32 920167782, %v5555
        %v5571 = vshrl.u32 1326507024, %v5556
        %v5572 = vor.u32 %v5570, %v5571
        %vm5573 = vcmp.lt.s32.totalorder %v5554, 1
        %vm5574 = vcmp.lt.s32.totalorder %v5554, 2
        %vm5575 = vcmp.lt.s32.totalorder %v5554, 3
        %vm5576 = vcmp.lt.s32.totalorder %v5554, 4
        %v5577 = vsel %vm5573, %v5557, %v5560
        %v5578 = vsel %vm5576, %v5566, 2102212464
        %v5579 = vsel %vm5575, %v5563, %v5578
        %v5580 = vsel %vm5574, %v5577, %v5579
        %v5581 = vsel %vm5573, %v5560, %v5563
        %v5582 = vsel %vm5576, %v5569, 920167782
        %v5583 = vsel %vm5575, %v5566, %v5582
        %v5584 = vsel %vm5574, %v5581, %v5583
        %v5585 = vsel %vm5573, %v5563, %v5566
        %v5586 = vsel %vm5576, %v5572, 1326507024
        %v5587 = vsel %vm5575, %v5569, %v5586
        %v5588 = vsel %vm5574, %v5585, %v5587
        %v5589 = vshll.u32 %v5549, 8
        %v5590 = vmul.u32.u64.compose %v5589, %v5588
        %v5591 = vextract.low.u32 %v5590
        %v5592 = vextract.high.u32 %v5590
        %v5593 = vmul.u32.u64.compose %v5589, %v5584
        %v5594 = vextract.low.u32 %v5593
        %v5595 = vextract.high.u32 %v5593
        %v5596 = vmul.u32 %v5589, %v5580
        %v5597 = vadd.s32 %v5592, %v5594
        %vm5598 = vc.u32 %v5592, %v5594
        %v5599 = vadd.s32 %v5595, 1
        %v5600 = vsel %vm5598, %v5599, %v5595
        %v5601 = vadd.s32 %v5596, %v5600
        %v5602 = vadd.s32 %v5601, 536870912
        %v5603 = vshrl.u32 %v5602, 30
        %v5604 = vshll.u32 %v5603, 30
        %v5605 = vsub.s32 %v5601, %v5604
        %vm5606 = vcmp.lt.s32.totalorder %v5605, 0
        %v5607 = vsub.s32 0, %v5605
        %v5608 = vsel %vm5606, %v5607, %v5605
        %v5609 = vclz %v5608
        %v5610 = vsub.s32 %v5609, 2
        %vm5611 = vcmp.gt.s32.totalorder 0, %v5610
        %v5612 = vsel %vm5611, 0, %v5610
        %v5613 = vsub.s32 32, %v5612
        %v5614 = vshll.u32 %v5605, %v5612
        %v5615 = vshrl.u32 %v5597, %v5613
        %v5616 = vor.u32 %v5614, %v5615
        %v5617 = vsub.s32 4294967266, %v5612
        %v5618 = vadd.s32 %v5617, 127
        %v5619 = vshll.u32 %v5618, 23
        %v5620 = vor.u32 4788187, %v5619
        %v5621 = vand.u32 2147483647, %v5620
        %v5623 = vcvt.s32.f32 %v5616
        %v5624 = vmul.f32 %v5623, %v5621
        %v5625 = vxor.u32 %v5624, 2147483648
        %v5626 = vsel %vm5543, %v5625, %v5624
        %v5627 = vsub.s32 4, %v5603
        %v5628 = vsel %vm5543, %v5627, %v5603
        %v5629 = vsel %vm5542, %v834, %v5626
        %v5630 = vsel %vm5542, 0, %v5628
        %v5631 = vcosq.f32.pop %v5629
        %v5632 = vsinq.f32.pop %v5629
        %vm5633 = vweird.f32 %v834
        %v5634 = vadd.s32 %v5630, 3
        %v5635 = vand.u32 %v5634, 3
        %vm5636 = vcmp.lt.s32.totalorder %v5635, 2
        %vm5637 = vcmp.eq.s32.totalorder %v5635, 0
        %v5638 = vxor.u32 %v5632, 2147483648
        %v5639 = vsel %vm5637, %v5631, %v5638
        %vm5640 = vcmp.eq.s32.totalorder %v5635, 2
        %v5641 = vxor.u32 %v5631, 2147483648
        %v5642 = vsel %vm5640, %v5641, %v5632
        %v5643 = vsel %vm5636, %v5639, %v5642
        %v5644 = vsel %vm5633, nan, %v5643
        %v5645 = vand.u32 2147483647, %v835
        %vm5646 = vcmp.le.f32.partialorder %v5645, 0.7853982
        %vm5647 = vcmp.lt.s32.totalorder %v835, 0
        %v5648 = vand.u32 %v835, 2139095040
        %v5649 = vshrl.u32 %v5648, 23
        %v5650 = vsub.s32 %v5649, 127
        %v5651 = vand.u32 2147483647, %v835
        %v5652 = vand.u32 %v5651, 8388607
        %v5653 = vor.u32 %v5652, 8388608
        %v5654 = vsub.s32 0, %v5653
        %v5655 = vadd.s32 %v5650, 1
        %vm5656 = vcmp.gt.s32.totalorder %v5655, 0
        %v5657 = vsel %vm5656, %v5655, 0
        %v5658 = vshrl.u32 %v5657, 5
        %v5659 = vand.u32 %v5657, 31
        %v5660 = vsub.s32 32, %v5659
        %v5661 = vshrl.u32 683565275, %v5660
        %v5662 = vshll.u32 683565275, %v5659
        %v5663 = vshrl.u32 2475754826, %v5660
        %v5664 = vor.u32 %v5662, %v5663
        %v5665 = vshll.u32 2475754826, %v5659
        %v5666 = vshrl.u32 2131351028, %v5660
        %v5667 = vor.u32 %v5665, %v5666
        %v5668 = vshll.u32 2131351028, %v5659
        %v5669 = vshrl.u32 2102212464, %v5660
        %v5670 = vor.u32 %v5668, %v5669
        %v5671 = vshll.u32 2102212464, %v5659
        %v5672 = vshrl.u32 920167782, %v5660
        %v5673 = vor.u32 %v5671, %v5672
        %v5674 = vshll.u32 920167782, %v5659
        %v5675 = vshrl.u32 1326507024, %v5660
        %v5676 = vor.u32 %v5674, %v5675
        %vm5677 = vcmp.lt.s32.totalorder %v5658, 1
        %vm5678 = vcmp.lt.s32.totalorder %v5658, 2
        %vm5679 = vcmp.lt.s32.totalorder %v5658, 3
        %vm5680 = vcmp.lt.s32.totalorder %v5658, 4
        %v5681 = vsel %vm5677, %v5661, %v5664
        %v5682 = vsel %vm5680, %v5670, 2102212464
        %v5683 = vsel %vm5679, %v5667, %v5682
        %v5684 = vsel %vm5678, %v5681, %v5683
        %v5685 = vsel %vm5677, %v5664, %v5667
        %v5686 = vsel %vm5680, %v5673, 920167782
        %v5687 = vsel %vm5679, %v5670, %v5686
        %v5688 = vsel %vm5678, %v5685, %v5687
        %v5689 = vsel %vm5677, %v5667, %v5670
        %v5690 = vsel %vm5680, %v5676, 1326507024
        %v5691 = vsel %vm5679, %v5673, %v5690
        %v5692 = vsel %vm5678, %v5689, %v5691
        %v5693 = vshll.u32 %v5653, 8
        %v5694 = vmul.u32.u64.compose %v5693, %v5692
        %v5695 = vextract.low.u32 %v5694
        %v5696 = vextract.high.u32 %v5694
        %v5697 = vmul.u32.u64.compose %v5693, %v5688
        %v5698 = vextract.low.u32 %v5697
        %v5699 = vextract.high.u32 %v5697
        %v5700 = vmul.u32 %v5693, %v5684
        %v5701 = vadd.s32 %v5696, %v5698
        %vm5702 = vc.u32 %v5696, %v5698
        %v5703 = vadd.s32 %v5699, 1
        %v5704 = vsel %vm5702, %v5703, %v5699
        %v5705 = vadd.s32 %v5700, %v5704
        %v5706 = vadd.s32 %v5705, 536870912
        %v5707 = vshrl.u32 %v5706, 30
        %v5708 = vshll.u32 %v5707, 30
        %v5709 = vsub.s32 %v5705, %v5708
        %vm5710 = vcmp.lt.s32.totalorder %v5709, 0
        %v5711 = vsub.s32 0, %v5709
        %v5712 = vsel %vm5710, %v5711, %v5709
        %v5713 = vclz %v5712
        %v5714 = vsub.s32 %v5713, 2
        %vm5715 = vcmp.gt.s32.totalorder 0, %v5714
        %v5716 = vsel %vm5715, 0, %v5714
        %v5717 = vsub.s32 32, %v5716
        %v5718 = vshll.u32 %v5709, %v5716
        %v5719 = vshrl.u32 %v5701, %v5717
        %v5720 = vor.u32 %v5718, %v5719
        %v5721 = vsub.s32 4294967266, %v5716
        %v5722 = vadd.s32 %v5721, 127
        %v5723 = vshll.u32 %v5722, 23
        %v5724 = vor.u32 4788187, %v5723
        %v5725 = vand.u32 2147483647, %v5724
        %v5727 = vcvt.s32.f32 %v5720
        %v5728 = vmul.f32 %v5727, %v5725
        %v5729 = vxor.u32 %v5728, 2147483648
        %v5730 = vsel %vm5647, %v5729, %v5728
        %v5731 = vsub.s32 4, %v5707
        %v5732 = vsel %vm5647, %v5731, %v5707
        %v5733 = vsel %vm5646, %v835, %v5730
        %v5734 = vsel %vm5646, 0, %v5732
        %v5735 = vcosq.f32.pop %v5733
        %v5736 = vsinq.f32.pop %v5733
        %vm5737 = vweird.f32 %v835
        %v5738 = vadd.s32 %v5734, 3
        %v5739 = vand.u32 %v5738, 3
        %vm5740 = vcmp.lt.s32.totalorder %v5739, 2
        %vm5741 = vcmp.eq.s32.totalorder %v5739, 0
        %v5742 = vxor.u32 %v5736, 2147483648
        %v5743 = vsel %vm5741, %v5735, %v5742
        %vm5744 = vcmp.eq.s32.totalorder %v5739, 2
        %v5745 = vxor.u32 %v5735, 2147483648
        %v5746 = vsel %vm5744, %v5745, %v5736
        %v5747 = vsel %vm5740, %v5743, %v5746
        %v5748 = vsel %vm5737, nan, %v5747
        %v5749 = vand.u32 2147483647, %v836
        %vm5750 = vcmp.le.f32.partialorder %v5749, 0.7853982
        %vm5751 = vcmp.lt.s32.totalorder %v836, 0
        %v5752 = vand.u32 %v836, 2139095040
        %v5753 = vshrl.u32 %v5752, 23
        %v5754 = vsub.s32 %v5753, 127
        %v5755 = vand.u32 2147483647, %v836
        %v5756 = vand.u32 %v5755, 8388607
        %v5757 = vor.u32 %v5756, 8388608
        %v5758 = vsub.s32 0, %v5757
        %v5759 = vadd.s32 %v5754, 1
        %vm5760 = vcmp.gt.s32.totalorder %v5759, 0
        %v5761 = vsel %vm5760, %v5759, 0
        %v5762 = vshrl.u32 %v5761, 5
        %v5763 = vand.u32 %v5761, 31
        %v5764 = vsub.s32 32, %v5763
        %v5765 = vshrl.u32 683565275, %v5764
        %v5766 = vshll.u32 683565275, %v5763
        %v5767 = vshrl.u32 2475754826, %v5764
        %v5768 = vor.u32 %v5766, %v5767
        %v5769 = vshll.u32 2475754826, %v5763
        %v5770 = vshrl.u32 2131351028, %v5764
        %v5771 = vor.u32 %v5769, %v5770
        %v5772 = vshll.u32 2131351028, %v5763
        %v5773 = vshrl.u32 2102212464, %v5764
        %v5774 = vor.u32 %v5772, %v5773
        %v5775 = vshll.u32 2102212464, %v5763
        %v5776 = vshrl.u32 920167782, %v5764
        %v5777 = vor.u32 %v5775, %v5776
        %v5778 = vshll.u32 920167782, %v5763
        %v5779 = vshrl.u32 1326507024, %v5764
        %v5780 = vor.u32 %v5778, %v5779
        %vm5781 = vcmp.lt.s32.totalorder %v5762, 1
        %vm5782 = vcmp.lt.s32.totalorder %v5762, 2
        %vm5783 = vcmp.lt.s32.totalorder %v5762, 3
        %vm5784 = vcmp.lt.s32.totalorder %v5762, 4
        %v5785 = vsel %vm5781, %v5765, %v5768
        %v5786 = vsel %vm5784, %v5774, 2102212464
        %v5787 = vsel %vm5783, %v5771, %v5786
        %v5788 = vsel %vm5782, %v5785, %v5787
        %v5789 = vsel %vm5781, %v5768, %v5771
        %v5790 = vsel %vm5784, %v5777, 920167782
        %v5791 = vsel %vm5783, %v5774, %v5790
        %v5792 = vsel %vm5782, %v5789, %v5791
        %v5793 = vsel %vm5781, %v5771, %v5774
        %v5794 = vsel %vm5784, %v5780, 1326507024
        %v5795 = vsel %vm5783, %v5777, %v5794
        %v5796 = vsel %vm5782, %v5793, %v5795
        %v5797 = vshll.u32 %v5757, 8
        %v5798 = vmul.u32.u64.compose %v5797, %v5796
        %v5799 = vextract.low.u32 %v5798
        %v5800 = vextract.high.u32 %v5798
        %v5801 = vmul.u32.u64.compose %v5797, %v5792
        %v5802 = vextract.low.u32 %v5801
        %v5803 = vextract.high.u32 %v5801
        %v5804 = vmul.u32 %v5797, %v5788
        %v5805 = vadd.s32 %v5800, %v5802
        %vm5806 = vc.u32 %v5800, %v5802
        %v5807 = vadd.s32 %v5803, 1
        %v5808 = vsel %vm5806, %v5807, %v5803
        %v5809 = vadd.s32 %v5804, %v5808
        %v5810 = vadd.s32 %v5809, 536870912
        %v5811 = vshrl.u32 %v5810, 30
        %v5812 = vshll.u32 %v5811, 30
        %v5813 = vsub.s32 %v5809, %v5812
        %vm5814 = vcmp.lt.s32.totalorder %v5813, 0
        %v5815 = vsub.s32 0, %v5813
        %v5816 = vsel %vm5814, %v5815, %v5813
        %v5817 = vclz %v5816
        %v5818 = vsub.s32 %v5817, 2
        %vm5819 = vcmp.gt.s32.totalorder 0, %v5818
        %v5820 = vsel %vm5819, 0, %v5818
        %v5821 = vsub.s32 32, %v5820
        %v5822 = vshll.u32 %v5813, %v5820
        %v5823 = vshrl.u32 %v5805, %v5821
        %v5824 = vor.u32 %v5822, %v5823
        %v5825 = vsub.s32 4294967266, %v5820
        %v5826 = vadd.s32 %v5825, 127
        %v5827 = vshll.u32 %v5826, 23
        %v5828 = vor.u32 4788187, %v5827
        %v5829 = vand.u32 2147483647, %v5828
        %v5831 = vcvt.s32.f32 %v5824
        %v5832 = vmul.f32 %v5831, %v5829
        %v5833 = vxor.u32 %v5832, 2147483648
        %v5834 = vsel %vm5751, %v5833, %v5832
        %v5835 = vsub.s32 4, %v5811
        %v5836 = vsel %vm5751, %v5835, %v5811
        %v5837 = vsel %vm5750, %v836, %v5834
        %v5838 = vsel %vm5750, 0, %v5836
        %v5839 = vcosq.f32.pop %v5837
        %v5840 = vsinq.f32.pop %v5837
        %vm5841 = vweird.f32 %v836
        %v5842 = vadd.s32 %v5838, 3
        %v5843 = vand.u32 %v5842, 3
        %vm5844 = vcmp.lt.s32.totalorder %v5843, 2
        %vm5845 = vcmp.eq.s32.totalorder %v5843, 0
        %v5846 = vxor.u32 %v5840, 2147483648
        %v5847 = vsel %vm5845, %v5839, %v5846
        %vm5848 = vcmp.eq.s32.totalorder %v5843, 2
        %v5849 = vxor.u32 %v5839, 2147483648
        %v5850 = vsel %vm5848, %v5849, %v5840
        %v5851 = vsel %vm5844, %v5847, %v5850
        %v5852 = vsel %vm5841, nan, %v5851
        %v5853 = vand.u32 2147483647, %v837
        %vm5854 = vcmp.le.f32.partialorder %v5853, 0.7853982
        %vm5855 = vcmp.lt.s32.totalorder %v837, 0
        %v5856 = vand.u32 %v837, 2139095040
        %v5857 = vshrl.u32 %v5856, 23
        %v5858 = vsub.s32 %v5857, 127
        %v5859 = vand.u32 2147483647, %v837
        %v5860 = vand.u32 %v5859, 8388607
        %v5861 = vor.u32 %v5860, 8388608
        %v5862 = vsub.s32 0, %v5861
        %v5863 = vadd.s32 %v5858, 1
        %vm5864 = vcmp.gt.s32.totalorder %v5863, 0
        %v5865 = vsel %vm5864, %v5863, 0
        %v5866 = vshrl.u32 %v5865, 5
        %v5867 = vand.u32 %v5865, 31
        %v5868 = vsub.s32 32, %v5867
        %v5869 = vshrl.u32 683565275, %v5868
        %v5870 = vshll.u32 683565275, %v5867
        %v5871 = vshrl.u32 2475754826, %v5868
        %v5872 = vor.u32 %v5870, %v5871
        %v5873 = vshll.u32 2475754826, %v5867
        %v5874 = vshrl.u32 2131351028, %v5868
        %v5875 = vor.u32 %v5873, %v5874
        %v5876 = vshll.u32 2131351028, %v5867
        %v5877 = vshrl.u32 2102212464, %v5868
        %v5878 = vor.u32 %v5876, %v5877
        %v5879 = vshll.u32 2102212464, %v5867
        %v5880 = vshrl.u32 920167782, %v5868
        %v5881 = vor.u32 %v5879, %v5880
        %v5882 = vshll.u32 920167782, %v5867
        %v5883 = vshrl.u32 1326507024, %v5868
        %v5884 = vor.u32 %v5882, %v5883
        %vm5885 = vcmp.lt.s32.totalorder %v5866, 1
        %vm5886 = vcmp.lt.s32.totalorder %v5866, 2
        %vm5887 = vcmp.lt.s32.totalorder %v5866, 3
        %vm5888 = vcmp.lt.s32.totalorder %v5866, 4
        %v5889 = vsel %vm5885, %v5869, %v5872
        %v5890 = vsel %vm5888, %v5878, 2102212464
        %v5891 = vsel %vm5887, %v5875, %v5890
        %v5892 = vsel %vm5886, %v5889, %v5891
        %v5893 = vsel %vm5885, %v5872, %v5875
        %v5894 = vsel %vm5888, %v5881, 920167782
        %v5895 = vsel %vm5887, %v5878, %v5894
        %v5896 = vsel %vm5886, %v5893, %v5895
        %v5897 = vsel %vm5885, %v5875, %v5878
        %v5898 = vsel %vm5888, %v5884, 1326507024
        %v5899 = vsel %vm5887, %v5881, %v5898
        %v5900 = vsel %vm5886, %v5897, %v5899
        %v5901 = vshll.u32 %v5861, 8
        %v5902 = vmul.u32.u64.compose %v5901, %v5900
        %v5903 = vextract.low.u32 %v5902
        %v5904 = vextract.high.u32 %v5902
        %v5905 = vmul.u32.u64.compose %v5901, %v5896
        %v5906 = vextract.low.u32 %v5905
        %v5907 = vextract.high.u32 %v5905
        %v5908 = vmul.u32 %v5901, %v5892
        %v5909 = vadd.s32 %v5904, %v5906
        %vm5910 = vc.u32 %v5904, %v5906
        %v5911 = vadd.s32 %v5907, 1
        %v5912 = vsel %vm5910, %v5911, %v5907
        %v5913 = vadd.s32 %v5908, %v5912
        %v5914 = vadd.s32 %v5913, 536870912
        %v5915 = vshrl.u32 %v5914, 30
        %v5916 = vshll.u32 %v5915, 30
        %v5917 = vsub.s32 %v5913, %v5916
        %vm5918 = vcmp.lt.s32.totalorder %v5917, 0
        %v5919 = vsub.s32 0, %v5917
        %v5920 = vsel %vm5918, %v5919, %v5917
        %v5921 = vclz %v5920
        %v5922 = vsub.s32 %v5921, 2
        %vm5923 = vcmp.gt.s32.totalorder 0, %v5922
        %v5924 = vsel %vm5923, 0, %v5922
        %v5925 = vsub.s32 32, %v5924
        %v5926 = vshll.u32 %v5917, %v5924
        %v5927 = vshrl.u32 %v5909, %v5925
        %v5928 = vor.u32 %v5926, %v5927
        %v5929 = vsub.s32 4294967266, %v5924
        %v5930 = vadd.s32 %v5929, 127
        %v5931 = vshll.u32 %v5930, 23
        %v5932 = vor.u32 4788187, %v5931
        %v5933 = vand.u32 2147483647, %v5932
        %v5935 = vcvt.s32.f32 %v5928
        %v5936 = vmul.f32 %v5935, %v5933
        %v5937 = vxor.u32 %v5936, 2147483648
        %v5938 = vsel %vm5855, %v5937, %v5936
        %v5939 = vsub.s32 4, %v5915
        %v5940 = vsel %vm5855, %v5939, %v5915
        %v5941 = vsel %vm5854, %v837, %v5938
        %v5942 = vsel %vm5854, 0, %v5940
        %v5943 = vcosq.f32.pop %v5941
        %v5944 = vsinq.f32.pop %v5941
        %vm5945 = vweird.f32 %v837
        %v5946 = vadd.s32 %v5942, 3
        %v5947 = vand.u32 %v5946, 3
        %vm5948 = vcmp.lt.s32.totalorder %v5947, 2
        %vm5949 = vcmp.eq.s32.totalorder %v5947, 0
        %v5950 = vxor.u32 %v5944, 2147483648
        %v5951 = vsel %vm5949, %v5943, %v5950
        %vm5952 = vcmp.eq.s32.totalorder %v5947, 2
        %v5953 = vxor.u32 %v5943, 2147483648
        %v5954 = vsel %vm5952, %v5953, %v5944
        %v5955 = vsel %vm5948, %v5951, %v5954
        %v5956 = vsel %vm5945, nan, %v5955
        %v5957 = vand.u32 2147483647, %v838
        %vm5958 = vcmp.le.f32.partialorder %v5957, 0.7853982
        %vm5959 = vcmp.lt.s32.totalorder %v838, 0
        %v5960 = vand.u32 %v838, 2139095040
        %v5961 = vshrl.u32 %v5960, 23
        %v5962 = vsub.s32 %v5961, 127
        %v5963 = vand.u32 2147483647, %v838
        %v5964 = vand.u32 %v5963, 8388607
        %v5965 = vor.u32 %v5964, 8388608
        %v5966 = vsub.s32 0, %v5965
        %v5967 = vadd.s32 %v5962, 1
        %vm5968 = vcmp.gt.s32.totalorder %v5967, 0
        %v5969 = vsel %vm5968, %v5967, 0
        %v5970 = vshrl.u32 %v5969, 5
        %v5971 = vand.u32 %v5969, 31
        %v5972 = vsub.s32 32, %v5971
        %v5973 = vshrl.u32 683565275, %v5972
        %v5974 = vshll.u32 683565275, %v5971
        %v5975 = vshrl.u32 2475754826, %v5972
        %v5976 = vor.u32 %v5974, %v5975
        %v5977 = vshll.u32 2475754826, %v5971
        %v5978 = vshrl.u32 2131351028, %v5972
        %v5979 = vor.u32 %v5977, %v5978
        %v5980 = vshll.u32 2131351028, %v5971
        %v5981 = vshrl.u32 2102212464, %v5972
        %v5982 = vor.u32 %v5980, %v5981
        %v5983 = vshll.u32 2102212464, %v5971
        %v5984 = vshrl.u32 920167782, %v5972
        %v5985 = vor.u32 %v5983, %v5984
        %v5986 = vshll.u32 920167782, %v5971
        %v5987 = vshrl.u32 1326507024, %v5972
        %v5988 = vor.u32 %v5986, %v5987
        %vm5989 = vcmp.lt.s32.totalorder %v5970, 1
        %vm5990 = vcmp.lt.s32.totalorder %v5970, 2
        %vm5991 = vcmp.lt.s32.totalorder %v5970, 3
        %vm5992 = vcmp.lt.s32.totalorder %v5970, 4
        %v5993 = vsel %vm5989, %v5973, %v5976
        %v5994 = vsel %vm5992, %v5982, 2102212464
        %v5995 = vsel %vm5991, %v5979, %v5994
        %v5996 = vsel %vm5990, %v5993, %v5995
        %v5997 = vsel %vm5989, %v5976, %v5979
        %v5998 = vsel %vm5992, %v5985, 920167782
        %v5999 = vsel %vm5991, %v5982, %v5998
        %v6000 = vsel %vm5990, %v5997, %v5999
        %v6001 = vsel %vm5989, %v5979, %v5982
        %v6002 = vsel %vm5992, %v5988, 1326507024
        %v6003 = vsel %vm5991, %v5985, %v6002
        %v6004 = vsel %vm5990, %v6001, %v6003
        %v6005 = vshll.u32 %v5965, 8
        %v6006 = vmul.u32.u64.compose %v6005, %v6004
        %v6007 = vextract.low.u32 %v6006
        %v6008 = vextract.high.u32 %v6006
        %v6009 = vmul.u32.u64.compose %v6005, %v6000
        %v6010 = vextract.low.u32 %v6009
        %v6011 = vextract.high.u32 %v6009
        %v6012 = vmul.u32 %v6005, %v5996
        %v6013 = vadd.s32 %v6008, %v6010
        %vm6014 = vc.u32 %v6008, %v6010
        %v6015 = vadd.s32 %v6011, 1
        %v6016 = vsel %vm6014, %v6015, %v6011
        %v6017 = vadd.s32 %v6012, %v6016
        %v6018 = vadd.s32 %v6017, 536870912
        %v6019 = vshrl.u32 %v6018, 30
        %v6020 = vshll.u32 %v6019, 30
        %v6021 = vsub.s32 %v6017, %v6020
        %vm6022 = vcmp.lt.s32.totalorder %v6021, 0
        %v6023 = vsub.s32 0, %v6021
        %v6024 = vsel %vm6022, %v6023, %v6021
        %v6025 = vclz %v6024
        %v6026 = vsub.s32 %v6025, 2
        %vm6027 = vcmp.gt.s32.totalorder 0, %v6026
        %v6028 = vsel %vm6027, 0, %v6026
        %v6029 = vsub.s32 32, %v6028
        %v6030 = vshll.u32 %v6021, %v6028
        %v6031 = vshrl.u32 %v6013, %v6029
        %v6032 = vor.u32 %v6030, %v6031
        %v6033 = vsub.s32 4294967266, %v6028
        %v6034 = vadd.s32 %v6033, 127
        %v6035 = vshll.u32 %v6034, 23
        %v6036 = vor.u32 4788187, %v6035
        %v6037 = vand.u32 2147483647, %v6036
        %v6039 = vcvt.s32.f32 %v6032
        %v6040 = vmul.f32 %v6039, %v6037
        %v6041 = vxor.u32 %v6040, 2147483648
        %v6042 = vsel %vm5959, %v6041, %v6040
        %v6043 = vsub.s32 4, %v6019
        %v6044 = vsel %vm5959, %v6043, %v6019
        %v6045 = vsel %vm5958, %v838, %v6042
        %v6046 = vsel %vm5958, 0, %v6044
        %v6047 = vcosq.f32.pop %v6045
        %v6048 = vsinq.f32.pop %v6045
        %vm6049 = vweird.f32 %v838
        %v6050 = vadd.s32 %v6046, 3
        %v6051 = vand.u32 %v6050, 3
        %vm6052 = vcmp.lt.s32.totalorder %v6051, 2
        %vm6053 = vcmp.eq.s32.totalorder %v6051, 0
        %v6054 = vxor.u32 %v6048, 2147483648
        %v6055 = vsel %vm6053, %v6047, %v6054
        %vm6056 = vcmp.eq.s32.totalorder %v6051, 2
        %v6057 = vxor.u32 %v6047, 2147483648
        %v6058 = vsel %vm6056, %v6057, %v6048
        %v6059 = vsel %vm6052, %v6055, %v6058
        %v6060 = vsel %vm6049, nan, %v6059
        %v6061 = vand.u32 2147483647, %v839
        %vm6062 = vcmp.le.f32.partialorder %v6061, 0.7853982
        %vm6063 = vcmp.lt.s32.totalorder %v839, 0
        %v6064 = vand.u32 %v839, 2139095040
        %v6065 = vshrl.u32 %v6064, 23
        %v6066 = vsub.s32 %v6065, 127
        %v6067 = vand.u32 2147483647, %v839
        %v6068 = vand.u32 %v6067, 8388607
        %v6069 = vor.u32 %v6068, 8388608
        %v6070 = vsub.s32 0, %v6069
        %v6071 = vadd.s32 %v6066, 1
        %vm6072 = vcmp.gt.s32.totalorder %v6071, 0
        %v6073 = vsel %vm6072, %v6071, 0
        %v6074 = vshrl.u32 %v6073, 5
        %v6075 = vand.u32 %v6073, 31
        %v6076 = vsub.s32 32, %v6075
        %v6077 = vshrl.u32 683565275, %v6076
        %v6078 = vshll.u32 683565275, %v6075
        %v6079 = vshrl.u32 2475754826, %v6076
        %v6080 = vor.u32 %v6078, %v6079
        %v6081 = vshll.u32 2475754826, %v6075
        %v6082 = vshrl.u32 2131351028, %v6076
        %v6083 = vor.u32 %v6081, %v6082
        %v6084 = vshll.u32 2131351028, %v6075
        %v6085 = vshrl.u32 2102212464, %v6076
        %v6086 = vor.u32 %v6084, %v6085
        %v6087 = vshll.u32 2102212464, %v6075
        %v6088 = vshrl.u32 920167782, %v6076
        %v6089 = vor.u32 %v6087, %v6088
        %v6090 = vshll.u32 920167782, %v6075
        %v6091 = vshrl.u32 1326507024, %v6076
        %v6092 = vor.u32 %v6090, %v6091
        %vm6093 = vcmp.lt.s32.totalorder %v6074, 1
        %vm6094 = vcmp.lt.s32.totalorder %v6074, 2
        %vm6095 = vcmp.lt.s32.totalorder %v6074, 3
        %vm6096 = vcmp.lt.s32.totalorder %v6074, 4
        %v6097 = vsel %vm6093, %v6077, %v6080
        %v6098 = vsel %vm6096, %v6086, 2102212464
        %v6099 = vsel %vm6095, %v6083, %v6098
        %v6100 = vsel %vm6094, %v6097, %v6099
        %v6101 = vsel %vm6093, %v6080, %v6083
        %v6102 = vsel %vm6096, %v6089, 920167782
        %v6103 = vsel %vm6095, %v6086, %v6102
        %v6104 = vsel %vm6094, %v6101, %v6103
        %v6105 = vsel %vm6093, %v6083, %v6086
        %v6106 = vsel %vm6096, %v6092, 1326507024
        %v6107 = vsel %vm6095, %v6089, %v6106
        %v6108 = vsel %vm6094, %v6105, %v6107
        %v6109 = vshll.u32 %v6069, 8
        %v6110 = vmul.u32.u64.compose %v6109, %v6108
        %v6111 = vextract.low.u32 %v6110
        %v6112 = vextract.high.u32 %v6110
        %v6113 = vmul.u32.u64.compose %v6109, %v6104
        %v6114 = vextract.low.u32 %v6113
        %v6115 = vextract.high.u32 %v6113
        %v6116 = vmul.u32 %v6109, %v6100
        %v6117 = vadd.s32 %v6112, %v6114
        %vm6118 = vc.u32 %v6112, %v6114
        %v6119 = vadd.s32 %v6115, 1
        %v6120 = vsel %vm6118, %v6119, %v6115
        %v6121 = vadd.s32 %v6116, %v6120
        %v6122 = vadd.s32 %v6121, 536870912
        %v6123 = vshrl.u32 %v6122, 30
        %v6124 = vshll.u32 %v6123, 30
        %v6125 = vsub.s32 %v6121, %v6124
        %vm6126 = vcmp.lt.s32.totalorder %v6125, 0
        %v6127 = vsub.s32 0, %v6125
        %v6128 = vsel %vm6126, %v6127, %v6125
        %v6129 = vclz %v6128
        %v6130 = vsub.s32 %v6129, 2
        %vm6131 = vcmp.gt.s32.totalorder 0, %v6130
        %v6132 = vsel %vm6131, 0, %v6130
        %v6133 = vsub.s32 32, %v6132
        %v6134 = vshll.u32 %v6125, %v6132
        %v6135 = vshrl.u32 %v6117, %v6133
        %v6136 = vor.u32 %v6134, %v6135
        %v6137 = vsub.s32 4294967266, %v6132
        %v6138 = vadd.s32 %v6137, 127
        %v6139 = vshll.u32 %v6138, 23
        %v6140 = vor.u32 4788187, %v6139
        %v6141 = vand.u32 2147483647, %v6140
        %v6143 = vcvt.s32.f32 %v6136
        %v6144 = vmul.f32 %v6143, %v6141
        %v6145 = vxor.u32 %v6144, 2147483648
        %v6146 = vsel %vm6063, %v6145, %v6144
        %v6147 = vsub.s32 4, %v6123
        %v6148 = vsel %vm6063, %v6147, %v6123
        %v6149 = vsel %vm6062, %v839, %v6146
        %v6150 = vsel %vm6062, 0, %v6148
        %v6151 = vcosq.f32.pop %v6149
        %v6152 = vsinq.f32.pop %v6149
        %vm6153 = vweird.f32 %v839
        %v6154 = vadd.s32 %v6150, 3
        %v6155 = vand.u32 %v6154, 3
        %vm6156 = vcmp.lt.s32.totalorder %v6155, 2
        %vm6157 = vcmp.eq.s32.totalorder %v6155, 0
        %v6158 = vxor.u32 %v6152, 2147483648
        %v6159 = vsel %vm6157, %v6151, %v6158
        %vm6160 = vcmp.eq.s32.totalorder %v6155, 2
        %v6161 = vxor.u32 %v6151, 2147483648
        %v6162 = vsel %vm6160, %v6161, %v6152
        %v6163 = vsel %vm6156, %v6159, %v6162
        %v6164 = vsel %vm6153, nan, %v6163
        %v6165 = vand.u32 2147483647, %v840
        %vm6166 = vcmp.le.f32.partialorder %v6165, 0.7853982
        %vm6167 = vcmp.lt.s32.totalorder %v840, 0
        %v6168 = vand.u32 %v840, 2139095040
        %v6169 = vshrl.u32 %v6168, 23
        %v6170 = vsub.s32 %v6169, 127
        %v6171 = vand.u32 2147483647, %v840
        %v6172 = vand.u32 %v6171, 8388607
        %v6173 = vor.u32 %v6172, 8388608
        %v6174 = vsub.s32 0, %v6173
        %v6175 = vadd.s32 %v6170, 1
        %vm6176 = vcmp.gt.s32.totalorder %v6175, 0
        %v6177 = vsel %vm6176, %v6175, 0
        %v6178 = vshrl.u32 %v6177, 5
        %v6179 = vand.u32 %v6177, 31
        %v6180 = vsub.s32 32, %v6179
        %v6181 = vshrl.u32 683565275, %v6180
        %v6182 = vshll.u32 683565275, %v6179
        %v6183 = vshrl.u32 2475754826, %v6180
        %v6184 = vor.u32 %v6182, %v6183
        %v6185 = vshll.u32 2475754826, %v6179
        %v6186 = vshrl.u32 2131351028, %v6180
        %v6187 = vor.u32 %v6185, %v6186
        %v6188 = vshll.u32 2131351028, %v6179
        %v6189 = vshrl.u32 2102212464, %v6180
        %v6190 = vor.u32 %v6188, %v6189
        %v6191 = vshll.u32 2102212464, %v6179
        %v6192 = vshrl.u32 920167782, %v6180
        %v6193 = vor.u32 %v6191, %v6192
        %v6194 = vshll.u32 920167782, %v6179
        %v6195 = vshrl.u32 1326507024, %v6180
        %v6196 = vor.u32 %v6194, %v6195
        %vm6197 = vcmp.lt.s32.totalorder %v6178, 1
        %vm6198 = vcmp.lt.s32.totalorder %v6178, 2
        %vm6199 = vcmp.lt.s32.totalorder %v6178, 3
        %vm6200 = vcmp.lt.s32.totalorder %v6178, 4
        %v6201 = vsel %vm6197, %v6181, %v6184
        %v6202 = vsel %vm6200, %v6190, 2102212464
        %v6203 = vsel %vm6199, %v6187, %v6202
        %v6204 = vsel %vm6198, %v6201, %v6203
        %v6205 = vsel %vm6197, %v6184, %v6187
        %v6206 = vsel %vm6200, %v6193, 920167782
        %v6207 = vsel %vm6199, %v6190, %v6206
        %v6208 = vsel %vm6198, %v6205, %v6207
        %v6209 = vsel %vm6197, %v6187, %v6190
        %v6210 = vsel %vm6200, %v6196, 1326507024
        %v6211 = vsel %vm6199, %v6193, %v6210
        %v6212 = vsel %vm6198, %v6209, %v6211
        %v6213 = vshll.u32 %v6173, 8
        %v6214 = vmul.u32.u64.compose %v6213, %v6212
        %v6215 = vextract.low.u32 %v6214
        %v6216 = vextract.high.u32 %v6214
        %v6217 = vmul.u32.u64.compose %v6213, %v6208
        %v6218 = vextract.low.u32 %v6217
        %v6219 = vextract.high.u32 %v6217
        %v6220 = vmul.u32 %v6213, %v6204
        %v6221 = vadd.s32 %v6216, %v6218
        %vm6222 = vc.u32 %v6216, %v6218
        %v6223 = vadd.s32 %v6219, 1
        %v6224 = vsel %vm6222, %v6223, %v6219
        %v6225 = vadd.s32 %v6220, %v6224
        %v6226 = vadd.s32 %v6225, 536870912
        %v6227 = vshrl.u32 %v6226, 30
        %v6228 = vshll.u32 %v6227, 30
        %v6229 = vsub.s32 %v6225, %v6228
        %vm6230 = vcmp.lt.s32.totalorder %v6229, 0
        %v6231 = vsub.s32 0, %v6229
        %v6232 = vsel %vm6230, %v6231, %v6229
        %v6233 = vclz %v6232
        %v6234 = vsub.s32 %v6233, 2
        %vm6235 = vcmp.gt.s32.totalorder 0, %v6234
        %v6236 = vsel %vm6235, 0, %v6234
        %v6237 = vsub.s32 32, %v6236
        %v6238 = vshll.u32 %v6229, %v6236
        %v6239 = vshrl.u32 %v6221, %v6237
        %v6240 = vor.u32 %v6238, %v6239
        %v6241 = vsub.s32 4294967266, %v6236
        %v6242 = vadd.s32 %v6241, 127
        %v6243 = vshll.u32 %v6242, 23
        %v6244 = vor.u32 4788187, %v6243
        %v6245 = vand.u32 2147483647, %v6244
        %v6247 = vcvt.s32.f32 %v6240
        %v6248 = vmul.f32 %v6247, %v6245
        %v6249 = vxor.u32 %v6248, 2147483648
        %v6250 = vsel %vm6167, %v6249, %v6248
        %v6251 = vsub.s32 4, %v6227
        %v6252 = vsel %vm6167, %v6251, %v6227
        %v6253 = vsel %vm6166, %v840, %v6250
        %v6254 = vsel %vm6166, 0, %v6252
        %v6255 = vcosq.f32.pop %v6253
        %v6256 = vsinq.f32.pop %v6253
        %vm6257 = vweird.f32 %v840
        %v6258 = vadd.s32 %v6254, 3
        %v6259 = vand.u32 %v6258, 3
        %vm6260 = vcmp.lt.s32.totalorder %v6259, 2
        %vm6261 = vcmp.eq.s32.totalorder %v6259, 0
        %v6262 = vxor.u32 %v6256, 2147483648
        %v6263 = vsel %vm6261, %v6255, %v6262
        %vm6264 = vcmp.eq.s32.totalorder %v6259, 2
        %v6265 = vxor.u32 %v6255, 2147483648
        %v6266 = vsel %vm6264, %v6265, %v6256
        %v6267 = vsel %vm6260, %v6263, %v6266
        %v6268 = vsel %vm6257, nan, %v6267
        %v6269 = vand.u32 2147483647, %v841
        %vm6270 = vcmp.le.f32.partialorder %v6269, 0.7853982
        %vm6271 = vcmp.lt.s32.totalorder %v841, 0
        %v6272 = vand.u32 %v841, 2139095040
        %v6273 = vshrl.u32 %v6272, 23
        %v6274 = vsub.s32 %v6273, 127
        %v6275 = vand.u32 2147483647, %v841
        %v6276 = vand.u32 %v6275, 8388607
        %v6277 = vor.u32 %v6276, 8388608
        %v6278 = vsub.s32 0, %v6277
        %v6279 = vadd.s32 %v6274, 1
        %vm6280 = vcmp.gt.s32.totalorder %v6279, 0
        %v6281 = vsel %vm6280, %v6279, 0
        %v6282 = vshrl.u32 %v6281, 5
        %v6283 = vand.u32 %v6281, 31
        %v6284 = vsub.s32 32, %v6283
        %v6285 = vshrl.u32 683565275, %v6284
        %v6286 = vshll.u32 683565275, %v6283
        %v6287 = vshrl.u32 2475754826, %v6284
        %v6288 = vor.u32 %v6286, %v6287
        %v6289 = vshll.u32 2475754826, %v6283
        %v6290 = vshrl.u32 2131351028, %v6284
        %v6291 = vor.u32 %v6289, %v6290
        %v6292 = vshll.u32 2131351028, %v6283
        %v6293 = vshrl.u32 2102212464, %v6284
        %v6294 = vor.u32 %v6292, %v6293
        %v6295 = vshll.u32 2102212464, %v6283
        %v6296 = vshrl.u32 920167782, %v6284
        %v6297 = vor.u32 %v6295, %v6296
        %v6298 = vshll.u32 920167782, %v6283
        %v6299 = vshrl.u32 1326507024, %v6284
        %v6300 = vor.u32 %v6298, %v6299
        %vm6301 = vcmp.lt.s32.totalorder %v6282, 1
        %vm6302 = vcmp.lt.s32.totalorder %v6282, 2
        %vm6303 = vcmp.lt.s32.totalorder %v6282, 3
        %vm6304 = vcmp.lt.s32.totalorder %v6282, 4
        %v6305 = vsel %vm6301, %v6285, %v6288
        %v6306 = vsel %vm6304, %v6294, 2102212464
        %v6307 = vsel %vm6303, %v6291, %v6306
        %v6308 = vsel %vm6302, %v6305, %v6307
        %v6309 = vsel %vm6301, %v6288, %v6291
        %v6310 = vsel %vm6304, %v6297, 920167782
        %v6311 = vsel %vm6303, %v6294, %v6310
        %v6312 = vsel %vm6302, %v6309, %v6311
        %v6313 = vsel %vm6301, %v6291, %v6294
        %v6314 = vsel %vm6304, %v6300, 1326507024
        %v6315 = vsel %vm6303, %v6297, %v6314
        %v6316 = vsel %vm6302, %v6313, %v6315
        %v6317 = vshll.u32 %v6277, 8
        %v6318 = vmul.u32.u64.compose %v6317, %v6316
        %v6319 = vextract.low.u32 %v6318
        %v6320 = vextract.high.u32 %v6318
        %v6321 = vmul.u32.u64.compose %v6317, %v6312
        %v6322 = vextract.low.u32 %v6321
        %v6323 = vextract.high.u32 %v6321
        %v6324 = vmul.u32 %v6317, %v6308
        %v6325 = vadd.s32 %v6320, %v6322
        %vm6326 = vc.u32 %v6320, %v6322
        %v6327 = vadd.s32 %v6323, 1
        %v6328 = vsel %vm6326, %v6327, %v6323
        %v6329 = vadd.s32 %v6324, %v6328
        %v6330 = vadd.s32 %v6329, 536870912
        %v6331 = vshrl.u32 %v6330, 30
        %v6332 = vshll.u32 %v6331, 30
        %v6333 = vsub.s32 %v6329, %v6332
        %vm6334 = vcmp.lt.s32.totalorder %v6333, 0
        %v6335 = vsub.s32 0, %v6333
        %v6336 = vsel %vm6334, %v6335, %v6333
        %v6337 = vclz %v6336
        %v6338 = vsub.s32 %v6337, 2
        %vm6339 = vcmp.gt.s32.totalorder 0, %v6338
        %v6340 = vsel %vm6339, 0, %v6338
        %v6341 = vsub.s32 32, %v6340
        %v6342 = vshll.u32 %v6333, %v6340
        %v6343 = vshrl.u32 %v6325, %v6341
        %v6344 = vor.u32 %v6342, %v6343
        %v6345 = vsub.s32 4294967266, %v6340
        %v6346 = vadd.s32 %v6345, 127
        %v6347 = vshll.u32 %v6346, 23
        %v6348 = vor.u32 4788187, %v6347
        %v6349 = vand.u32 2147483647, %v6348
        %v6351 = vcvt.s32.f32 %v6344
        %v6352 = vmul.f32 %v6351, %v6349
        %v6353 = vxor.u32 %v6352, 2147483648
        %v6354 = vsel %vm6271, %v6353, %v6352
        %v6355 = vsub.s32 4, %v6331
        %v6356 = vsel %vm6271, %v6355, %v6331
        %v6357 = vsel %vm6270, %v841, %v6354
        %v6358 = vsel %vm6270, 0, %v6356
        %v6359 = vcosq.f32.pop %v6357
        %v6360 = vsinq.f32.pop %v6357
        %vm6361 = vweird.f32 %v841
        %v6362 = vadd.s32 %v6358, 3
        %v6363 = vand.u32 %v6362, 3
        %vm6364 = vcmp.lt.s32.totalorder %v6363, 2
        %vm6365 = vcmp.eq.s32.totalorder %v6363, 0
        %v6366 = vxor.u32 %v6360, 2147483648
        %v6367 = vsel %vm6365, %v6359, %v6366
        %vm6368 = vcmp.eq.s32.totalorder %v6363, 2
        %v6369 = vxor.u32 %v6359, 2147483648
        %v6370 = vsel %vm6368, %v6369, %v6360
        %v6371 = vsel %vm6364, %v6367, %v6370
        %v6372 = vsel %vm6361, nan, %v6371
        %v6373 = vand.u32 2147483647, %v842
        %vm6374 = vcmp.le.f32.partialorder %v6373, 0.7853982
        %vm6375 = vcmp.lt.s32.totalorder %v842, 0
        %v6376 = vand.u32 %v842, 2139095040
        %v6377 = vshrl.u32 %v6376, 23
        %v6378 = vsub.s32 %v6377, 127
        %v6379 = vand.u32 2147483647, %v842
        %v6380 = vand.u32 %v6379, 8388607
        %v6381 = vor.u32 %v6380, 8388608
        %v6382 = vsub.s32 0, %v6381
        %v6383 = vadd.s32 %v6378, 1
        %vm6384 = vcmp.gt.s32.totalorder %v6383, 0
        %v6385 = vsel %vm6384, %v6383, 0
        %v6386 = vshrl.u32 %v6385, 5
        %v6387 = vand.u32 %v6385, 31
        %v6388 = vsub.s32 32, %v6387
        %v6389 = vshrl.u32 683565275, %v6388
        %v6390 = vshll.u32 683565275, %v6387
        %v6391 = vshrl.u32 2475754826, %v6388
        %v6392 = vor.u32 %v6390, %v6391
        %v6393 = vshll.u32 2475754826, %v6387
        %v6394 = vshrl.u32 2131351028, %v6388
        %v6395 = vor.u32 %v6393, %v6394
        %v6396 = vshll.u32 2131351028, %v6387
        %v6397 = vshrl.u32 2102212464, %v6388
        %v6398 = vor.u32 %v6396, %v6397
        %v6399 = vshll.u32 2102212464, %v6387
        %v6400 = vshrl.u32 920167782, %v6388
        %v6401 = vor.u32 %v6399, %v6400
        %v6402 = vshll.u32 920167782, %v6387
        %v6403 = vshrl.u32 1326507024, %v6388
        %v6404 = vor.u32 %v6402, %v6403
        %vm6405 = vcmp.lt.s32.totalorder %v6386, 1
        %vm6406 = vcmp.lt.s32.totalorder %v6386, 2
        %vm6407 = vcmp.lt.s32.totalorder %v6386, 3
        %vm6408 = vcmp.lt.s32.totalorder %v6386, 4
        %v6409 = vsel %vm6405, %v6389, %v6392
        %v6410 = vsel %vm6408, %v6398, 2102212464
        %v6411 = vsel %vm6407, %v6395, %v6410
        %v6412 = vsel %vm6406, %v6409, %v6411
        %v6413 = vsel %vm6405, %v6392, %v6395
        %v6414 = vsel %vm6408, %v6401, 920167782
        %v6415 = vsel %vm6407, %v6398, %v6414
        %v6416 = vsel %vm6406, %v6413, %v6415
        %v6417 = vsel %vm6405, %v6395, %v6398
        %v6418 = vsel %vm6408, %v6404, 1326507024
        %v6419 = vsel %vm6407, %v6401, %v6418
        %v6420 = vsel %vm6406, %v6417, %v6419
        %v6421 = vshll.u32 %v6381, 8
        %v6422 = vmul.u32.u64.compose %v6421, %v6420
        %v6423 = vextract.low.u32 %v6422
        %v6424 = vextract.high.u32 %v6422
        %v6425 = vmul.u32.u64.compose %v6421, %v6416
        %v6426 = vextract.low.u32 %v6425
        %v6427 = vextract.high.u32 %v6425
        %v6428 = vmul.u32 %v6421, %v6412
        %v6429 = vadd.s32 %v6424, %v6426
        %vm6430 = vc.u32 %v6424, %v6426
        %v6431 = vadd.s32 %v6427, 1
        %v6432 = vsel %vm6430, %v6431, %v6427
        %v6433 = vadd.s32 %v6428, %v6432
        %v6434 = vadd.s32 %v6433, 536870912
        %v6435 = vshrl.u32 %v6434, 30
        %v6436 = vshll.u32 %v6435, 30
        %v6437 = vsub.s32 %v6433, %v6436
        %vm6438 = vcmp.lt.s32.totalorder %v6437, 0
        %v6439 = vsub.s32 0, %v6437
        %v6440 = vsel %vm6438, %v6439, %v6437
        %v6441 = vclz %v6440
        %v6442 = vsub.s32 %v6441, 2
        %vm6443 = vcmp.gt.s32.totalorder 0, %v6442
        %v6444 = vsel %vm6443, 0, %v6442
        %v6445 = vsub.s32 32, %v6444
        %v6446 = vshll.u32 %v6437, %v6444
        %v6447 = vshrl.u32 %v6429, %v6445
        %v6448 = vor.u32 %v6446, %v6447
        %v6449 = vsub.s32 4294967266, %v6444
        %v6450 = vadd.s32 %v6449, 127
        %v6451 = vshll.u32 %v6450, 23
        %v6452 = vor.u32 4788187, %v6451
        %v6453 = vand.u32 2147483647, %v6452
        %v6455 = vcvt.s32.f32 %v6448
        %v6456 = vmul.f32 %v6455, %v6453
        %v6457 = vxor.u32 %v6456, 2147483648
        %v6458 = vsel %vm6375, %v6457, %v6456
        %v6459 = vsub.s32 4, %v6435
        %v6460 = vsel %vm6375, %v6459, %v6435
        %v6461 = vsel %vm6374, %v842, %v6458
        %v6462 = vsel %vm6374, 0, %v6460
        %v6463 = vcosq.f32.pop %v6461
        %v6464 = vsinq.f32.pop %v6461
        %vm6465 = vweird.f32 %v842
        %v6466 = vadd.s32 %v6462, 3
        %v6467 = vand.u32 %v6466, 3
        %vm6468 = vcmp.lt.s32.totalorder %v6467, 2
        %vm6469 = vcmp.eq.s32.totalorder %v6467, 0
        %v6470 = vxor.u32 %v6464, 2147483648
        %v6471 = vsel %vm6469, %v6463, %v6470
        %vm6472 = vcmp.eq.s32.totalorder %v6467, 2
        %v6473 = vxor.u32 %v6463, 2147483648
        %v6474 = vsel %vm6472, %v6473, %v6464
        %v6475 = vsel %vm6468, %v6471, %v6474
        %v6476 = vsel %vm6465, nan, %v6475
        %v6477 = vand.u32 2147483647, %v843
        %vm6478 = vcmp.le.f32.partialorder %v6477, 0.7853982
        %vm6479 = vcmp.lt.s32.totalorder %v843, 0
        %v6480 = vand.u32 %v843, 2139095040
        %v6481 = vshrl.u32 %v6480, 23
        %v6482 = vsub.s32 %v6481, 127
        %v6483 = vand.u32 2147483647, %v843
        %v6484 = vand.u32 %v6483, 8388607
        %v6485 = vor.u32 %v6484, 8388608
        %v6486 = vsub.s32 0, %v6485
        %v6487 = vadd.s32 %v6482, 1
        %vm6488 = vcmp.gt.s32.totalorder %v6487, 0
        %v6489 = vsel %vm6488, %v6487, 0
        %v6490 = vshrl.u32 %v6489, 5
        %v6491 = vand.u32 %v6489, 31
        %v6492 = vsub.s32 32, %v6491
        %v6493 = vshrl.u32 683565275, %v6492
        %v6494 = vshll.u32 683565275, %v6491
        %v6495 = vshrl.u32 2475754826, %v6492
        %v6496 = vor.u32 %v6494, %v6495
        %v6497 = vshll.u32 2475754826, %v6491
        %v6498 = vshrl.u32 2131351028, %v6492
        %v6499 = vor.u32 %v6497, %v6498
        %v6500 = vshll.u32 2131351028, %v6491
        %v6501 = vshrl.u32 2102212464, %v6492
        %v6502 = vor.u32 %v6500, %v6501
        %v6503 = vshll.u32 2102212464, %v6491
        %v6504 = vshrl.u32 920167782, %v6492
        %v6505 = vor.u32 %v6503, %v6504
        %v6506 = vshll.u32 920167782, %v6491
        %v6507 = vshrl.u32 1326507024, %v6492
        %v6508 = vor.u32 %v6506, %v6507
        %vm6509 = vcmp.lt.s32.totalorder %v6490, 1
        %vm6510 = vcmp.lt.s32.totalorder %v6490, 2
        %vm6511 = vcmp.lt.s32.totalorder %v6490, 3
        %vm6512 = vcmp.lt.s32.totalorder %v6490, 4
        %v6513 = vsel %vm6509, %v6493, %v6496
        %v6514 = vsel %vm6512, %v6502, 2102212464
        %v6515 = vsel %vm6511, %v6499, %v6514
        %v6516 = vsel %vm6510, %v6513, %v6515
        %v6517 = vsel %vm6509, %v6496, %v6499
        %v6518 = vsel %vm6512, %v6505, 920167782
        %v6519 = vsel %vm6511, %v6502, %v6518
        %v6520 = vsel %vm6510, %v6517, %v6519
        %v6521 = vsel %vm6509, %v6499, %v6502
        %v6522 = vsel %vm6512, %v6508, 1326507024
        %v6523 = vsel %vm6511, %v6505, %v6522
        %v6524 = vsel %vm6510, %v6521, %v6523
        %v6525 = vshll.u32 %v6485, 8
        %v6526 = vmul.u32.u64.compose %v6525, %v6524
        %v6527 = vextract.low.u32 %v6526
        %v6528 = vextract.high.u32 %v6526
        %v6529 = vmul.u32.u64.compose %v6525, %v6520
        %v6530 = vextract.low.u32 %v6529
        %v6531 = vextract.high.u32 %v6529
        %v6532 = vmul.u32 %v6525, %v6516
        %v6533 = vadd.s32 %v6528, %v6530
        %vm6534 = vc.u32 %v6528, %v6530
        %v6535 = vadd.s32 %v6531, 1
        %v6536 = vsel %vm6534, %v6535, %v6531
        %v6537 = vadd.s32 %v6532, %v6536
        %v6538 = vadd.s32 %v6537, 536870912
        %v6539 = vshrl.u32 %v6538, 30
        %v6540 = vshll.u32 %v6539, 30
        %v6541 = vsub.s32 %v6537, %v6540
        %vm6542 = vcmp.lt.s32.totalorder %v6541, 0
        %v6543 = vsub.s32 0, %v6541
        %v6544 = vsel %vm6542, %v6543, %v6541
        %v6545 = vclz %v6544
        %v6546 = vsub.s32 %v6545, 2
        %vm6547 = vcmp.gt.s32.totalorder 0, %v6546
        %v6548 = vsel %vm6547, 0, %v6546
        %v6549 = vsub.s32 32, %v6548
        %v6550 = vshll.u32 %v6541, %v6548
        %v6551 = vshrl.u32 %v6533, %v6549
        %v6552 = vor.u32 %v6550, %v6551
        %v6553 = vsub.s32 4294967266, %v6548
        %v6554 = vadd.s32 %v6553, 127
        %v6555 = vshll.u32 %v6554, 23
        %v6556 = vor.u32 4788187, %v6555
        %v6557 = vand.u32 2147483647, %v6556
        %v6559 = vcvt.s32.f32 %v6552
        %v6560 = vmul.f32 %v6559, %v6557
        %v6561 = vxor.u32 %v6560, 2147483648
        %v6562 = vsel %vm6479, %v6561, %v6560
        %v6563 = vsub.s32 4, %v6539
        %v6564 = vsel %vm6479, %v6563, %v6539
        %v6565 = vsel %vm6478, %v843, %v6562
        %v6566 = vsel %vm6478, 0, %v6564
        %v6567 = vcosq.f32.pop %v6565
        %v6568 = vsinq.f32.pop %v6565
        %vm6569 = vweird.f32 %v843
        %v6570 = vadd.s32 %v6566, 3
        %v6571 = vand.u32 %v6570, 3
        %vm6572 = vcmp.lt.s32.totalorder %v6571, 2
        %vm6573 = vcmp.eq.s32.totalorder %v6571, 0
        %v6574 = vxor.u32 %v6568, 2147483648
        %v6575 = vsel %vm6573, %v6567, %v6574
        %vm6576 = vcmp.eq.s32.totalorder %v6571, 2
        %v6577 = vxor.u32 %v6567, 2147483648
        %v6578 = vsel %vm6576, %v6577, %v6568
        %v6579 = vsel %vm6572, %v6575, %v6578
        %v6580 = vsel %vm6569, nan, %v6579
        %v6581 = vand.u32 2147483647, %v844
        %vm6582 = vcmp.le.f32.partialorder %v6581, 0.7853982
        %vm6583 = vcmp.lt.s32.totalorder %v844, 0
        %v6584 = vand.u32 %v844, 2139095040
        %v6585 = vshrl.u32 %v6584, 23
        %v6586 = vsub.s32 %v6585, 127
        %v6587 = vand.u32 2147483647, %v844
        %v6588 = vand.u32 %v6587, 8388607
        %v6589 = vor.u32 %v6588, 8388608
        %v6590 = vsub.s32 0, %v6589
        %v6591 = vadd.s32 %v6586, 1
        %vm6592 = vcmp.gt.s32.totalorder %v6591, 0
        %v6593 = vsel %vm6592, %v6591, 0
        %v6594 = vshrl.u32 %v6593, 5
        %v6595 = vand.u32 %v6593, 31
        %v6596 = vsub.s32 32, %v6595
        %v6597 = vshrl.u32 683565275, %v6596
        %v6598 = vshll.u32 683565275, %v6595
        %v6599 = vshrl.u32 2475754826, %v6596
        %v6600 = vor.u32 %v6598, %v6599
        %v6601 = vshll.u32 2475754826, %v6595
        %v6602 = vshrl.u32 2131351028, %v6596
        %v6603 = vor.u32 %v6601, %v6602
        %v6604 = vshll.u32 2131351028, %v6595
        %v6605 = vshrl.u32 2102212464, %v6596
        %v6606 = vor.u32 %v6604, %v6605
        %v6607 = vshll.u32 2102212464, %v6595
        %v6608 = vshrl.u32 920167782, %v6596
        %v6609 = vor.u32 %v6607, %v6608
        %v6610 = vshll.u32 920167782, %v6595
        %v6611 = vshrl.u32 1326507024, %v6596
        %v6612 = vor.u32 %v6610, %v6611
        %vm6613 = vcmp.lt.s32.totalorder %v6594, 1
        %vm6614 = vcmp.lt.s32.totalorder %v6594, 2
        %vm6615 = vcmp.lt.s32.totalorder %v6594, 3
        %vm6616 = vcmp.lt.s32.totalorder %v6594, 4
        %v6617 = vsel %vm6613, %v6597, %v6600
        %v6618 = vsel %vm6616, %v6606, 2102212464
        %v6619 = vsel %vm6615, %v6603, %v6618
        %v6620 = vsel %vm6614, %v6617, %v6619
        %v6621 = vsel %vm6613, %v6600, %v6603
        %v6622 = vsel %vm6616, %v6609, 920167782
        %v6623 = vsel %vm6615, %v6606, %v6622
        %v6624 = vsel %vm6614, %v6621, %v6623
        %v6625 = vsel %vm6613, %v6603, %v6606
        %v6626 = vsel %vm6616, %v6612, 1326507024
        %v6627 = vsel %vm6615, %v6609, %v6626
        %v6628 = vsel %vm6614, %v6625, %v6627
        %v6629 = vshll.u32 %v6589, 8
        %v6630 = vmul.u32.u64.compose %v6629, %v6628
        %v6631 = vextract.low.u32 %v6630
        %v6632 = vextract.high.u32 %v6630
        %v6633 = vmul.u32.u64.compose %v6629, %v6624
        %v6634 = vextract.low.u32 %v6633
        %v6635 = vextract.high.u32 %v6633
        %v6636 = vmul.u32 %v6629, %v6620
        %v6637 = vadd.s32 %v6632, %v6634
        %vm6638 = vc.u32 %v6632, %v6634
        %v6639 = vadd.s32 %v6635, 1
        %v6640 = vsel %vm6638, %v6639, %v6635
        %v6641 = vadd.s32 %v6636, %v6640
        %v6642 = vadd.s32 %v6641, 536870912
        %v6643 = vshrl.u32 %v6642, 30
        %v6644 = vshll.u32 %v6643, 30
        %v6645 = vsub.s32 %v6641, %v6644
        %vm6646 = vcmp.lt.s32.totalorder %v6645, 0
        %v6647 = vsub.s32 0, %v6645
        %v6648 = vsel %vm6646, %v6647, %v6645
        %v6649 = vclz %v6648
        %v6650 = vsub.s32 %v6649, 2
        %vm6651 = vcmp.gt.s32.totalorder 0, %v6650
        %v6652 = vsel %vm6651, 0, %v6650
        %v6653 = vsub.s32 32, %v6652
        %v6654 = vshll.u32 %v6645, %v6652
        %v6655 = vshrl.u32 %v6637, %v6653
        %v6656 = vor.u32 %v6654, %v6655
        %v6657 = vsub.s32 4294967266, %v6652
        %v6658 = vadd.s32 %v6657, 127
        %v6659 = vshll.u32 %v6658, 23
        %v6660 = vor.u32 4788187, %v6659
        %v6661 = vand.u32 2147483647, %v6660
        %v6663 = vcvt.s32.f32 %v6656
        %v6664 = vmul.f32 %v6663, %v6661
        %v6665 = vxor.u32 %v6664, 2147483648
        %v6666 = vsel %vm6583, %v6665, %v6664
        %v6667 = vsub.s32 4, %v6643
        %v6668 = vsel %vm6583, %v6667, %v6643
        %v6669 = vsel %vm6582, %v844, %v6666
        %v6670 = vsel %vm6582, 0, %v6668
        %v6671 = vcosq.f32.pop %v6669
        %v6672 = vsinq.f32.pop %v6669
        %vm6673 = vweird.f32 %v844
        %v6674 = vadd.s32 %v6670, 3
        %v6675 = vand.u32 %v6674, 3
        %vm6676 = vcmp.lt.s32.totalorder %v6675, 2
        %vm6677 = vcmp.eq.s32.totalorder %v6675, 0
        %v6678 = vxor.u32 %v6672, 2147483648
        %v6679 = vsel %vm6677, %v6671, %v6678
        %vm6680 = vcmp.eq.s32.totalorder %v6675, 2
        %v6681 = vxor.u32 %v6671, 2147483648
        %v6682 = vsel %vm6680, %v6681, %v6672
        %v6683 = vsel %vm6676, %v6679, %v6682
        %v6684 = vsel %vm6673, nan, %v6683
        %v6685 = vand.u32 2147483647, %v845
        %vm6686 = vcmp.le.f32.partialorder %v6685, 0.7853982
        %vm6687 = vcmp.lt.s32.totalorder %v845, 0
        %v6688 = vand.u32 %v845, 2139095040
        %v6689 = vshrl.u32 %v6688, 23
        %v6690 = vsub.s32 %v6689, 127
        %v6691 = vand.u32 2147483647, %v845
        %v6692 = vand.u32 %v6691, 8388607
        %v6693 = vor.u32 %v6692, 8388608
        %v6694 = vsub.s32 0, %v6693
        %v6695 = vadd.s32 %v6690, 1
        %vm6696 = vcmp.gt.s32.totalorder %v6695, 0
        %v6697 = vsel %vm6696, %v6695, 0
        %v6698 = vshrl.u32 %v6697, 5
        %v6699 = vand.u32 %v6697, 31
        %v6700 = vsub.s32 32, %v6699
        %v6701 = vshrl.u32 683565275, %v6700
        %v6702 = vshll.u32 683565275, %v6699
        %v6703 = vshrl.u32 2475754826, %v6700
        %v6704 = vor.u32 %v6702, %v6703
        %v6705 = vshll.u32 2475754826, %v6699
        %v6706 = vshrl.u32 2131351028, %v6700
        %v6707 = vor.u32 %v6705, %v6706
        %v6708 = vshll.u32 2131351028, %v6699
        %v6709 = vshrl.u32 2102212464, %v6700
        %v6710 = vor.u32 %v6708, %v6709
        %v6711 = vshll.u32 2102212464, %v6699
        %v6712 = vshrl.u32 920167782, %v6700
        %v6713 = vor.u32 %v6711, %v6712
        %v6714 = vshll.u32 920167782, %v6699
        %v6715 = vshrl.u32 1326507024, %v6700
        %v6716 = vor.u32 %v6714, %v6715
        %vm6717 = vcmp.lt.s32.totalorder %v6698, 1
        %vm6718 = vcmp.lt.s32.totalorder %v6698, 2
        %vm6719 = vcmp.lt.s32.totalorder %v6698, 3
        %vm6720 = vcmp.lt.s32.totalorder %v6698, 4
        %v6721 = vsel %vm6717, %v6701, %v6704
        %v6722 = vsel %vm6720, %v6710, 2102212464
        %v6723 = vsel %vm6719, %v6707, %v6722
        %v6724 = vsel %vm6718, %v6721, %v6723
        %v6725 = vsel %vm6717, %v6704, %v6707
        %v6726 = vsel %vm6720, %v6713, 920167782
        %v6727 = vsel %vm6719, %v6710, %v6726
        %v6728 = vsel %vm6718, %v6725, %v6727
        %v6729 = vsel %vm6717, %v6707, %v6710
        %v6730 = vsel %vm6720, %v6716, 1326507024
        %v6731 = vsel %vm6719, %v6713, %v6730
        %v6732 = vsel %vm6718, %v6729, %v6731
        %v6733 = vshll.u32 %v6693, 8
        %v6734 = vmul.u32.u64.compose %v6733, %v6732
        %v6735 = vextract.low.u32 %v6734
        %v6736 = vextract.high.u32 %v6734
        %v6737 = vmul.u32.u64.compose %v6733, %v6728
        %v6738 = vextract.low.u32 %v6737
        %v6739 = vextract.high.u32 %v6737
        %v6740 = vmul.u32 %v6733, %v6724
        %v6741 = vadd.s32 %v6736, %v6738
        %vm6742 = vc.u32 %v6736, %v6738
        %v6743 = vadd.s32 %v6739, 1
        %v6744 = vsel %vm6742, %v6743, %v6739
        %v6745 = vadd.s32 %v6740, %v6744
        %v6746 = vadd.s32 %v6745, 536870912
        %v6747 = vshrl.u32 %v6746, 30
        %v6748 = vshll.u32 %v6747, 30
        %v6749 = vsub.s32 %v6745, %v6748
        %vm6750 = vcmp.lt.s32.totalorder %v6749, 0
        %v6751 = vsub.s32 0, %v6749
        %v6752 = vsel %vm6750, %v6751, %v6749
        %v6753 = vclz %v6752
        %v6754 = vsub.s32 %v6753, 2
        %vm6755 = vcmp.gt.s32.totalorder 0, %v6754
        %v6756 = vsel %vm6755, 0, %v6754
        %v6757 = vsub.s32 32, %v6756
        %v6758 = vshll.u32 %v6749, %v6756
        %v6759 = vshrl.u32 %v6741, %v6757
        %v6760 = vor.u32 %v6758, %v6759
        %v6761 = vsub.s32 4294967266, %v6756
        %v6762 = vadd.s32 %v6761, 127
        %v6763 = vshll.u32 %v6762, 23
        %v6764 = vor.u32 4788187, %v6763
        %v6765 = vand.u32 2147483647, %v6764
        %v6767 = vcvt.s32.f32 %v6760
        %v6768 = vmul.f32 %v6767, %v6765
        %v6769 = vxor.u32 %v6768, 2147483648
        %v6770 = vsel %vm6687, %v6769, %v6768
        %v6771 = vsub.s32 4, %v6747
        %v6772 = vsel %vm6687, %v6771, %v6747
        %v6773 = vsel %vm6686, %v845, %v6770
        %v6774 = vsel %vm6686, 0, %v6772
        %v6775 = vcosq.f32.pop %v6773
        %v6776 = vsinq.f32.pop %v6773
        %vm6777 = vweird.f32 %v845
        %v6778 = vadd.s32 %v6774, 3
        %v6779 = vand.u32 %v6778, 3
        %vm6780 = vcmp.lt.s32.totalorder %v6779, 2
        %vm6781 = vcmp.eq.s32.totalorder %v6779, 0
        %v6782 = vxor.u32 %v6776, 2147483648
        %v6783 = vsel %vm6781, %v6775, %v6782
        %vm6784 = vcmp.eq.s32.totalorder %v6779, 2
        %v6785 = vxor.u32 %v6775, 2147483648
        %v6786 = vsel %vm6784, %v6785, %v6776
        %v6787 = vsel %vm6780, %v6783, %v6786
        %v6788 = vsel %vm6777, nan, %v6787
        %v6789 = vand.u32 2147483647, %v846
        %vm6790 = vcmp.le.f32.partialorder %v6789, 0.7853982
        %vm6791 = vcmp.lt.s32.totalorder %v846, 0
        %v6792 = vand.u32 %v846, 2139095040
        %v6793 = vshrl.u32 %v6792, 23
        %v6794 = vsub.s32 %v6793, 127
        %v6795 = vand.u32 2147483647, %v846
        %v6796 = vand.u32 %v6795, 8388607
        %v6797 = vor.u32 %v6796, 8388608
        %v6798 = vsub.s32 0, %v6797
        %v6799 = vadd.s32 %v6794, 1
        %vm6800 = vcmp.gt.s32.totalorder %v6799, 0
        %v6801 = vsel %vm6800, %v6799, 0
        %v6802 = vshrl.u32 %v6801, 5
        %v6803 = vand.u32 %v6801, 31
        %v6804 = vsub.s32 32, %v6803
        %v6805 = vshrl.u32 683565275, %v6804
        %v6806 = vshll.u32 683565275, %v6803
        %v6807 = vshrl.u32 2475754826, %v6804
        %v6808 = vor.u32 %v6806, %v6807
        %v6809 = vshll.u32 2475754826, %v6803
        %v6810 = vshrl.u32 2131351028, %v6804
        %v6811 = vor.u32 %v6809, %v6810
        %v6812 = vshll.u32 2131351028, %v6803
        %v6813 = vshrl.u32 2102212464, %v6804
        %v6814 = vor.u32 %v6812, %v6813
        %v6815 = vshll.u32 2102212464, %v6803
        %v6816 = vshrl.u32 920167782, %v6804
        %v6817 = vor.u32 %v6815, %v6816
        %v6818 = vshll.u32 920167782, %v6803
        %v6819 = vshrl.u32 1326507024, %v6804
        %v6820 = vor.u32 %v6818, %v6819
        %vm6821 = vcmp.lt.s32.totalorder %v6802, 1
        %vm6822 = vcmp.lt.s32.totalorder %v6802, 2
        %vm6823 = vcmp.lt.s32.totalorder %v6802, 3
        %vm6824 = vcmp.lt.s32.totalorder %v6802, 4
        %v6825 = vsel %vm6821, %v6805, %v6808
        %v6826 = vsel %vm6824, %v6814, 2102212464
        %v6827 = vsel %vm6823, %v6811, %v6826
        %v6828 = vsel %vm6822, %v6825, %v6827
        %v6829 = vsel %vm6821, %v6808, %v6811
        %v6830 = vsel %vm6824, %v6817, 920167782
        %v6831 = vsel %vm6823, %v6814, %v6830
        %v6832 = vsel %vm6822, %v6829, %v6831
        %v6833 = vsel %vm6821, %v6811, %v6814
        %v6834 = vsel %vm6824, %v6820, 1326507024
        %v6835 = vsel %vm6823, %v6817, %v6834
        %v6836 = vsel %vm6822, %v6833, %v6835
        %v6837 = vshll.u32 %v6797, 8
        %v6838 = vmul.u32.u64.compose %v6837, %v6836
        %v6839 = vextract.low.u32 %v6838
        %v6840 = vextract.high.u32 %v6838
        %v6841 = vmul.u32.u64.compose %v6837, %v6832
        %v6842 = vextract.low.u32 %v6841
        %v6843 = vextract.high.u32 %v6841
        %v6844 = vmul.u32 %v6837, %v6828
        %v6845 = vadd.s32 %v6840, %v6842
        %vm6846 = vc.u32 %v6840, %v6842
        %v6847 = vadd.s32 %v6843, 1
        %v6848 = vsel %vm6846, %v6847, %v6843
        %v6849 = vadd.s32 %v6844, %v6848
        %v6850 = vadd.s32 %v6849, 536870912
        %v6851 = vshrl.u32 %v6850, 30
        %v6852 = vshll.u32 %v6851, 30
        %v6853 = vsub.s32 %v6849, %v6852
        %vm6854 = vcmp.lt.s32.totalorder %v6853, 0
        %v6855 = vsub.s32 0, %v6853
        %v6856 = vsel %vm6854, %v6855, %v6853
        %v6857 = vclz %v6856
        %v6858 = vsub.s32 %v6857, 2
        %vm6859 = vcmp.gt.s32.totalorder 0, %v6858
        %v6860 = vsel %vm6859, 0, %v6858
        %v6861 = vsub.s32 32, %v6860
        %v6862 = vshll.u32 %v6853, %v6860
        %v6863 = vshrl.u32 %v6845, %v6861
        %v6864 = vor.u32 %v6862, %v6863
        %v6865 = vsub.s32 4294967266, %v6860
        %v6866 = vadd.s32 %v6865, 127
        %v6867 = vshll.u32 %v6866, 23
        %v6868 = vor.u32 4788187, %v6867
        %v6869 = vand.u32 2147483647, %v6868
        %v6871 = vcvt.s32.f32 %v6864
        %v6872 = vmul.f32 %v6871, %v6869
        %v6873 = vxor.u32 %v6872, 2147483648
        %v6874 = vsel %vm6791, %v6873, %v6872
        %v6875 = vsub.s32 4, %v6851
        %v6876 = vsel %vm6791, %v6875, %v6851
        %v6877 = vsel %vm6790, %v846, %v6874
        %v6878 = vsel %vm6790, 0, %v6876
        %v6879 = vcosq.f32.pop %v6877
        %v6880 = vsinq.f32.pop %v6877
        %vm6881 = vweird.f32 %v846
        %v6882 = vadd.s32 %v6878, 3
        %v6883 = vand.u32 %v6882, 3
        %vm6884 = vcmp.lt.s32.totalorder %v6883, 2
        %vm6885 = vcmp.eq.s32.totalorder %v6883, 0
        %v6886 = vxor.u32 %v6880, 2147483648
        %v6887 = vsel %vm6885, %v6879, %v6886
        %vm6888 = vcmp.eq.s32.totalorder %v6883, 2
        %v6889 = vxor.u32 %v6879, 2147483648
        %v6890 = vsel %vm6888, %v6889, %v6880
        %v6891 = vsel %vm6884, %v6887, %v6890
        %v6892 = vsel %vm6881, nan, %v6891
        %v6893 = vand.u32 2147483647, %v847
        %vm6894 = vcmp.le.f32.partialorder %v6893, 0.7853982
        %vm6895 = vcmp.lt.s32.totalorder %v847, 0
        %v6896 = vand.u32 %v847, 2139095040
        %v6897 = vshrl.u32 %v6896, 23
        %v6898 = vsub.s32 %v6897, 127
        %v6899 = vand.u32 2147483647, %v847
        %v6900 = vand.u32 %v6899, 8388607
        %v6901 = vor.u32 %v6900, 8388608
        %v6902 = vsub.s32 0, %v6901
        %v6903 = vadd.s32 %v6898, 1
        %vm6904 = vcmp.gt.s32.totalorder %v6903, 0
        %v6905 = vsel %vm6904, %v6903, 0
        %v6906 = vshrl.u32 %v6905, 5
        %v6907 = vand.u32 %v6905, 31
        %v6908 = vsub.s32 32, %v6907
        %v6909 = vshrl.u32 683565275, %v6908
        %v6910 = vshll.u32 683565275, %v6907
        %v6911 = vshrl.u32 2475754826, %v6908
        %v6912 = vor.u32 %v6910, %v6911
        %v6913 = vshll.u32 2475754826, %v6907
        %v6914 = vshrl.u32 2131351028, %v6908
        %v6915 = vor.u32 %v6913, %v6914
        %v6916 = vshll.u32 2131351028, %v6907
        %v6917 = vshrl.u32 2102212464, %v6908
        %v6918 = vor.u32 %v6916, %v6917
        %v6919 = vshll.u32 2102212464, %v6907
        %v6920 = vshrl.u32 920167782, %v6908
        %v6921 = vor.u32 %v6919, %v6920
        %v6922 = vshll.u32 920167782, %v6907
        %v6923 = vshrl.u32 1326507024, %v6908
        %v6924 = vor.u32 %v6922, %v6923
        %vm6925 = vcmp.lt.s32.totalorder %v6906, 1
        %vm6926 = vcmp.lt.s32.totalorder %v6906, 2
        %vm6927 = vcmp.lt.s32.totalorder %v6906, 3
        %vm6928 = vcmp.lt.s32.totalorder %v6906, 4
        %v6929 = vsel %vm6925, %v6909, %v6912
        %v6930 = vsel %vm6928, %v6918, 2102212464
        %v6931 = vsel %vm6927, %v6915, %v6930
        %v6932 = vsel %vm6926, %v6929, %v6931
        %v6933 = vsel %vm6925, %v6912, %v6915
        %v6934 = vsel %vm6928, %v6921, 920167782
        %v6935 = vsel %vm6927, %v6918, %v6934
        %v6936 = vsel %vm6926, %v6933, %v6935
        %v6937 = vsel %vm6925, %v6915, %v6918
        %v6938 = vsel %vm6928, %v6924, 1326507024
        %v6939 = vsel %vm6927, %v6921, %v6938
        %v6940 = vsel %vm6926, %v6937, %v6939
        %v6941 = vshll.u32 %v6901, 8
        %v6942 = vmul.u32.u64.compose %v6941, %v6940
        %v6943 = vextract.low.u32 %v6942
        %v6944 = vextract.high.u32 %v6942
        %v6945 = vmul.u32.u64.compose %v6941, %v6936
        %v6946 = vextract.low.u32 %v6945
        %v6947 = vextract.high.u32 %v6945
        %v6948 = vmul.u32 %v6941, %v6932
        %v6949 = vadd.s32 %v6944, %v6946
        %vm6950 = vc.u32 %v6944, %v6946
        %v6951 = vadd.s32 %v6947, 1
        %v6952 = vsel %vm6950, %v6951, %v6947
        %v6953 = vadd.s32 %v6948, %v6952
        %v6954 = vadd.s32 %v6953, 536870912
        %v6955 = vshrl.u32 %v6954, 30
        %v6956 = vshll.u32 %v6955, 30
        %v6957 = vsub.s32 %v6953, %v6956
        %vm6958 = vcmp.lt.s32.totalorder %v6957, 0
        %v6959 = vsub.s32 0, %v6957
        %v6960 = vsel %vm6958, %v6959, %v6957
        %v6961 = vclz %v6960
        %v6962 = vsub.s32 %v6961, 2
        %vm6963 = vcmp.gt.s32.totalorder 0, %v6962
        %v6964 = vsel %vm6963, 0, %v6962
        %v6965 = vsub.s32 32, %v6964
        %v6966 = vshll.u32 %v6957, %v6964
        %v6967 = vshrl.u32 %v6949, %v6965
        %v6968 = vor.u32 %v6966, %v6967
        %v6969 = vsub.s32 4294967266, %v6964
        %v6970 = vadd.s32 %v6969, 127
        %v6971 = vshll.u32 %v6970, 23
        %v6972 = vor.u32 4788187, %v6971
        %v6973 = vand.u32 2147483647, %v6972
        %v6975 = vcvt.s32.f32 %v6968
        %v6976 = vmul.f32 %v6975, %v6973
        %v6977 = vxor.u32 %v6976, 2147483648
        %v6978 = vsel %vm6895, %v6977, %v6976
        %v6979 = vsub.s32 4, %v6955
        %v6980 = vsel %vm6895, %v6979, %v6955
        %v6981 = vsel %vm6894, %v847, %v6978
        %v6982 = vsel %vm6894, 0, %v6980
        %v6983 = vcosq.f32.pop %v6981
        %v6984 = vsinq.f32.pop %v6981
        %vm6985 = vweird.f32 %v847
        %v6986 = vadd.s32 %v6982, 3
        %v6987 = vand.u32 %v6986, 3
        %vm6988 = vcmp.lt.s32.totalorder %v6987, 2
        %vm6989 = vcmp.eq.s32.totalorder %v6987, 0
        %v6990 = vxor.u32 %v6984, 2147483648
        %v6991 = vsel %vm6989, %v6983, %v6990
        %vm6992 = vcmp.eq.s32.totalorder %v6987, 2
        %v6993 = vxor.u32 %v6983, 2147483648
        %v6994 = vsel %vm6992, %v6993, %v6984
        %v6995 = vsel %vm6988, %v6991, %v6994
        %v6996 = vsel %vm6985, nan, %v6995
        %v6997 = vand.u32 2147483647, %v848
        %vm6998 = vcmp.le.f32.partialorder %v6997, 0.7853982
        %vm6999 = vcmp.lt.s32.totalorder %v848, 0
        %v7000 = vand.u32 %v848, 2139095040
        %v7001 = vshrl.u32 %v7000, 23
        %v7002 = vsub.s32 %v7001, 127
        %v7003 = vand.u32 2147483647, %v848
        %v7004 = vand.u32 %v7003, 8388607
        %v7005 = vor.u32 %v7004, 8388608
        %v7006 = vsub.s32 0, %v7005
        %v7007 = vadd.s32 %v7002, 1
        %vm7008 = vcmp.gt.s32.totalorder %v7007, 0
        %v7009 = vsel %vm7008, %v7007, 0
        %v7010 = vshrl.u32 %v7009, 5
        %v7011 = vand.u32 %v7009, 31
        %v7012 = vsub.s32 32, %v7011
        %v7013 = vshrl.u32 683565275, %v7012
        %v7014 = vshll.u32 683565275, %v7011
        %v7015 = vshrl.u32 2475754826, %v7012
        %v7016 = vor.u32 %v7014, %v7015
        %v7017 = vshll.u32 2475754826, %v7011
        %v7018 = vshrl.u32 2131351028, %v7012
        %v7019 = vor.u32 %v7017, %v7018
        %v7020 = vshll.u32 2131351028, %v7011
        %v7021 = vshrl.u32 2102212464, %v7012
        %v7022 = vor.u32 %v7020, %v7021
        %v7023 = vshll.u32 2102212464, %v7011
        %v7024 = vshrl.u32 920167782, %v7012
        %v7025 = vor.u32 %v7023, %v7024
        %v7026 = vshll.u32 920167782, %v7011
        %v7027 = vshrl.u32 1326507024, %v7012
        %v7028 = vor.u32 %v7026, %v7027
        %vm7029 = vcmp.lt.s32.totalorder %v7010, 1
        %vm7030 = vcmp.lt.s32.totalorder %v7010, 2
        %vm7031 = vcmp.lt.s32.totalorder %v7010, 3
        %vm7032 = vcmp.lt.s32.totalorder %v7010, 4
        %v7033 = vsel %vm7029, %v7013, %v7016
        %v7034 = vsel %vm7032, %v7022, 2102212464
        %v7035 = vsel %vm7031, %v7019, %v7034
        %v7036 = vsel %vm7030, %v7033, %v7035
        %v7037 = vsel %vm7029, %v7016, %v7019
        %v7038 = vsel %vm7032, %v7025, 920167782
        %v7039 = vsel %vm7031, %v7022, %v7038
        %v7040 = vsel %vm7030, %v7037, %v7039
        %v7041 = vsel %vm7029, %v7019, %v7022
        %v7042 = vsel %vm7032, %v7028, 1326507024
        %v7043 = vsel %vm7031, %v7025, %v7042
        %v7044 = vsel %vm7030, %v7041, %v7043
        %v7045 = vshll.u32 %v7005, 8
        %v7046 = vmul.u32.u64.compose %v7045, %v7044
        %v7047 = vextract.low.u32 %v7046
        %v7048 = vextract.high.u32 %v7046
        %v7049 = vmul.u32.u64.compose %v7045, %v7040
        %v7050 = vextract.low.u32 %v7049
        %v7051 = vextract.high.u32 %v7049
        %v7052 = vmul.u32 %v7045, %v7036
        %v7053 = vadd.s32 %v7048, %v7050
        %vm7054 = vc.u32 %v7048, %v7050
        %v7055 = vadd.s32 %v7051, 1
        %v7056 = vsel %vm7054, %v7055, %v7051
        %v7057 = vadd.s32 %v7052, %v7056
        %v7058 = vadd.s32 %v7057, 536870912
        %v7059 = vshrl.u32 %v7058, 30
        %v7060 = vshll.u32 %v7059, 30
        %v7061 = vsub.s32 %v7057, %v7060
        %vm7062 = vcmp.lt.s32.totalorder %v7061, 0
        %v7063 = vsub.s32 0, %v7061
        %v7064 = vsel %vm7062, %v7063, %v7061
        %v7065 = vclz %v7064
        %v7066 = vsub.s32 %v7065, 2
        %vm7067 = vcmp.gt.s32.totalorder 0, %v7066
        %v7068 = vsel %vm7067, 0, %v7066
        %v7069 = vsub.s32 32, %v7068
        %v7070 = vshll.u32 %v7061, %v7068
        %v7071 = vshrl.u32 %v7053, %v7069
        %v7072 = vor.u32 %v7070, %v7071
        %v7073 = vsub.s32 4294967266, %v7068
        %v7074 = vadd.s32 %v7073, 127
        %v7075 = vshll.u32 %v7074, 23
        %v7076 = vor.u32 4788187, %v7075
        %v7077 = vand.u32 2147483647, %v7076
        %v7079 = vcvt.s32.f32 %v7072
        %v7080 = vmul.f32 %v7079, %v7077
        %v7081 = vxor.u32 %v7080, 2147483648
        %v7082 = vsel %vm6999, %v7081, %v7080
        %v7083 = vsub.s32 4, %v7059
        %v7084 = vsel %vm6999, %v7083, %v7059
        %v7085 = vsel %vm6998, %v848, %v7082
        %v7086 = vsel %vm6998, 0, %v7084
        %v7087 = vcosq.f32.pop %v7085
        %v7088 = vsinq.f32.pop %v7085
        %vm7089 = vweird.f32 %v848
        %v7090 = vadd.s32 %v7086, 3
        %v7091 = vand.u32 %v7090, 3
        %vm7092 = vcmp.lt.s32.totalorder %v7091, 2
        %vm7093 = vcmp.eq.s32.totalorder %v7091, 0
        %v7094 = vxor.u32 %v7088, 2147483648
        %v7095 = vsel %vm7093, %v7087, %v7094
        %vm7096 = vcmp.eq.s32.totalorder %v7091, 2
        %v7097 = vxor.u32 %v7087, 2147483648
        %v7098 = vsel %vm7096, %v7097, %v7088
        %v7099 = vsel %vm7092, %v7095, %v7098
        %v7100 = vsel %vm7089, nan, %v7099
        %v7101 = vand.u32 2147483647, %v849
        %vm7102 = vcmp.le.f32.partialorder %v7101, 0.7853982
        %vm7103 = vcmp.lt.s32.totalorder %v849, 0
        %v7104 = vand.u32 %v849, 2139095040
        %v7105 = vshrl.u32 %v7104, 23
        %v7106 = vsub.s32 %v7105, 127
        %v7107 = vand.u32 2147483647, %v849
        %v7108 = vand.u32 %v7107, 8388607
        %v7109 = vor.u32 %v7108, 8388608
        %v7110 = vsub.s32 0, %v7109
        %v7111 = vadd.s32 %v7106, 1
        %vm7112 = vcmp.gt.s32.totalorder %v7111, 0
        %v7113 = vsel %vm7112, %v7111, 0
        %v7114 = vshrl.u32 %v7113, 5
        %v7115 = vand.u32 %v7113, 31
        %v7116 = vsub.s32 32, %v7115
        %v7117 = vshrl.u32 683565275, %v7116
        %v7118 = vshll.u32 683565275, %v7115
        %v7119 = vshrl.u32 2475754826, %v7116
        %v7120 = vor.u32 %v7118, %v7119
        %v7121 = vshll.u32 2475754826, %v7115
        %v7122 = vshrl.u32 2131351028, %v7116
        %v7123 = vor.u32 %v7121, %v7122
        %v7124 = vshll.u32 2131351028, %v7115
        %v7125 = vshrl.u32 2102212464, %v7116
        %v7126 = vor.u32 %v7124, %v7125
        %v7127 = vshll.u32 2102212464, %v7115
        %v7128 = vshrl.u32 920167782, %v7116
        %v7129 = vor.u32 %v7127, %v7128
        %v7130 = vshll.u32 920167782, %v7115
        %v7131 = vshrl.u32 1326507024, %v7116
        %v7132 = vor.u32 %v7130, %v7131
        %vm7133 = vcmp.lt.s32.totalorder %v7114, 1
        %vm7134 = vcmp.lt.s32.totalorder %v7114, 2
        %vm7135 = vcmp.lt.s32.totalorder %v7114, 3
        %vm7136 = vcmp.lt.s32.totalorder %v7114, 4
        %v7137 = vsel %vm7133, %v7117, %v7120
        %v7138 = vsel %vm7136, %v7126, 2102212464
        %v7139 = vsel %vm7135, %v7123, %v7138
        %v7140 = vsel %vm7134, %v7137, %v7139
        %v7141 = vsel %vm7133, %v7120, %v7123
        %v7142 = vsel %vm7136, %v7129, 920167782
        %v7143 = vsel %vm7135, %v7126, %v7142
        %v7144 = vsel %vm7134, %v7141, %v7143
        %v7145 = vsel %vm7133, %v7123, %v7126
        %v7146 = vsel %vm7136, %v7132, 1326507024
        %v7147 = vsel %vm7135, %v7129, %v7146
        %v7148 = vsel %vm7134, %v7145, %v7147
        %v7149 = vshll.u32 %v7109, 8
        %v7150 = vmul.u32.u64.compose %v7149, %v7148
        %v7151 = vextract.low.u32 %v7150
        %v7152 = vextract.high.u32 %v7150
        %v7153 = vmul.u32.u64.compose %v7149, %v7144
        %v7154 = vextract.low.u32 %v7153
        %v7155 = vextract.high.u32 %v7153
        %v7156 = vmul.u32 %v7149, %v7140
        %v7157 = vadd.s32 %v7152, %v7154
        %vm7158 = vc.u32 %v7152, %v7154
        %v7159 = vadd.s32 %v7155, 1
        %v7160 = vsel %vm7158, %v7159, %v7155
        %v7161 = vadd.s32 %v7156, %v7160
        %v7162 = vadd.s32 %v7161, 536870912
        %v7163 = vshrl.u32 %v7162, 30
        %v7164 = vshll.u32 %v7163, 30
        %v7165 = vsub.s32 %v7161, %v7164
        %vm7166 = vcmp.lt.s32.totalorder %v7165, 0
        %v7167 = vsub.s32 0, %v7165
        %v7168 = vsel %vm7166, %v7167, %v7165
        %v7169 = vclz %v7168
        %v7170 = vsub.s32 %v7169, 2
        %vm7171 = vcmp.gt.s32.totalorder 0, %v7170
        %v7172 = vsel %vm7171, 0, %v7170
        %v7173 = vsub.s32 32, %v7172
        %v7174 = vshll.u32 %v7165, %v7172
        %v7175 = vshrl.u32 %v7157, %v7173
        %v7176 = vor.u32 %v7174, %v7175
        %v7177 = vsub.s32 4294967266, %v7172
        %v7178 = vadd.s32 %v7177, 127
        %v7179 = vshll.u32 %v7178, 23
        %v7180 = vor.u32 4788187, %v7179
        %v7181 = vand.u32 2147483647, %v7180
        %v7183 = vcvt.s32.f32 %v7176
        %v7184 = vmul.f32 %v7183, %v7181
        %v7185 = vxor.u32 %v7184, 2147483648
        %v7186 = vsel %vm7103, %v7185, %v7184
        %v7187 = vsub.s32 4, %v7163
        %v7188 = vsel %vm7103, %v7187, %v7163
        %v7189 = vsel %vm7102, %v849, %v7186
        %v7190 = vsel %vm7102, 0, %v7188
        %v7191 = vcosq.f32.pop %v7189
        %v7192 = vsinq.f32.pop %v7189
        %vm7193 = vweird.f32 %v849
        %v7194 = vadd.s32 %v7190, 3
        %v7195 = vand.u32 %v7194, 3
        %vm7196 = vcmp.lt.s32.totalorder %v7195, 2
        %vm7197 = vcmp.eq.s32.totalorder %v7195, 0
        %v7198 = vxor.u32 %v7192, 2147483648
        %v7199 = vsel %vm7197, %v7191, %v7198
        %vm7200 = vcmp.eq.s32.totalorder %v7195, 2
        %v7201 = vxor.u32 %v7191, 2147483648
        %v7202 = vsel %vm7200, %v7201, %v7192
        %v7203 = vsel %vm7196, %v7199, %v7202
        %v7204 = vsel %vm7193, nan, %v7203
        %v7205 = vand.u32 2147483647, %v850
        %vm7206 = vcmp.le.f32.partialorder %v7205, 0.7853982
        %vm7207 = vcmp.lt.s32.totalorder %v850, 0
        %v7208 = vand.u32 %v850, 2139095040
        %v7209 = vshrl.u32 %v7208, 23
        %v7210 = vsub.s32 %v7209, 127
        %v7211 = vand.u32 2147483647, %v850
        %v7212 = vand.u32 %v7211, 8388607
        %v7213 = vor.u32 %v7212, 8388608
        %v7214 = vsub.s32 0, %v7213
        %v7215 = vadd.s32 %v7210, 1
        %vm7216 = vcmp.gt.s32.totalorder %v7215, 0
        %v7217 = vsel %vm7216, %v7215, 0
        %v7218 = vshrl.u32 %v7217, 5
        %v7219 = vand.u32 %v7217, 31
        %v7220 = vsub.s32 32, %v7219
        %v7221 = vshrl.u32 683565275, %v7220
        %v7222 = vshll.u32 683565275, %v7219
        %v7223 = vshrl.u32 2475754826, %v7220
        %v7224 = vor.u32 %v7222, %v7223
        %v7225 = vshll.u32 2475754826, %v7219
        %v7226 = vshrl.u32 2131351028, %v7220
        %v7227 = vor.u32 %v7225, %v7226
        %v7228 = vshll.u32 2131351028, %v7219
        %v7229 = vshrl.u32 2102212464, %v7220
        %v7230 = vor.u32 %v7228, %v7229
        %v7231 = vshll.u32 2102212464, %v7219
        %v7232 = vshrl.u32 920167782, %v7220
        %v7233 = vor.u32 %v7231, %v7232
        %v7234 = vshll.u32 920167782, %v7219
        %v7235 = vshrl.u32 1326507024, %v7220
        %v7236 = vor.u32 %v7234, %v7235
        %vm7237 = vcmp.lt.s32.totalorder %v7218, 1
        %vm7238 = vcmp.lt.s32.totalorder %v7218, 2
        %vm7239 = vcmp.lt.s32.totalorder %v7218, 3
        %vm7240 = vcmp.lt.s32.totalorder %v7218, 4
        %v7241 = vsel %vm7237, %v7221, %v7224
        %v7242 = vsel %vm7240, %v7230, 2102212464
        %v7243 = vsel %vm7239, %v7227, %v7242
        %v7244 = vsel %vm7238, %v7241, %v7243
        %v7245 = vsel %vm7237, %v7224, %v7227
        %v7246 = vsel %vm7240, %v7233, 920167782
        %v7247 = vsel %vm7239, %v7230, %v7246
        %v7248 = vsel %vm7238, %v7245, %v7247
        %v7249 = vsel %vm7237, %v7227, %v7230
        %v7250 = vsel %vm7240, %v7236, 1326507024
        %v7251 = vsel %vm7239, %v7233, %v7250
        %v7252 = vsel %vm7238, %v7249, %v7251
        %v7253 = vshll.u32 %v7213, 8
        %v7254 = vmul.u32.u64.compose %v7253, %v7252
        %v7255 = vextract.low.u32 %v7254
        %v7256 = vextract.high.u32 %v7254
        %v7257 = vmul.u32.u64.compose %v7253, %v7248
        %v7258 = vextract.low.u32 %v7257
        %v7259 = vextract.high.u32 %v7257
        %v7260 = vmul.u32 %v7253, %v7244
        %v7261 = vadd.s32 %v7256, %v7258
        %vm7262 = vc.u32 %v7256, %v7258
        %v7263 = vadd.s32 %v7259, 1
        %v7264 = vsel %vm7262, %v7263, %v7259
        %v7265 = vadd.s32 %v7260, %v7264
        %v7266 = vadd.s32 %v7265, 536870912
        %v7267 = vshrl.u32 %v7266, 30
        %v7268 = vshll.u32 %v7267, 30
        %v7269 = vsub.s32 %v7265, %v7268
        %vm7270 = vcmp.lt.s32.totalorder %v7269, 0
        %v7271 = vsub.s32 0, %v7269
        %v7272 = vsel %vm7270, %v7271, %v7269
        %v7273 = vclz %v7272
        %v7274 = vsub.s32 %v7273, 2
        %vm7275 = vcmp.gt.s32.totalorder 0, %v7274
        %v7276 = vsel %vm7275, 0, %v7274
        %v7277 = vsub.s32 32, %v7276
        %v7278 = vshll.u32 %v7269, %v7276
        %v7279 = vshrl.u32 %v7261, %v7277
        %v7280 = vor.u32 %v7278, %v7279
        %v7281 = vsub.s32 4294967266, %v7276
        %v7282 = vadd.s32 %v7281, 127
        %v7283 = vshll.u32 %v7282, 23
        %v7284 = vor.u32 4788187, %v7283
        %v7285 = vand.u32 2147483647, %v7284
        %v7287 = vcvt.s32.f32 %v7280
        %v7288 = vmul.f32 %v7287, %v7285
        %v7289 = vxor.u32 %v7288, 2147483648
        %v7290 = vsel %vm7207, %v7289, %v7288
        %v7291 = vsub.s32 4, %v7267
        %v7292 = vsel %vm7207, %v7291, %v7267
        %v7293 = vsel %vm7206, %v850, %v7290
        %v7294 = vsel %vm7206, 0, %v7292
        %v7295 = vcosq.f32.pop %v7293
        %v7296 = vsinq.f32.pop %v7293
        %vm7297 = vweird.f32 %v850
        %v7298 = vadd.s32 %v7294, 3
        %v7299 = vand.u32 %v7298, 3
        %vm7300 = vcmp.lt.s32.totalorder %v7299, 2
        %vm7301 = vcmp.eq.s32.totalorder %v7299, 0
        %v7302 = vxor.u32 %v7296, 2147483648
        %v7303 = vsel %vm7301, %v7295, %v7302
        %vm7304 = vcmp.eq.s32.totalorder %v7299, 2
        %v7305 = vxor.u32 %v7295, 2147483648
        %v7306 = vsel %vm7304, %v7305, %v7296
        %v7307 = vsel %vm7300, %v7303, %v7306
        %v7308 = vsel %vm7297, nan, %v7307
        %v7309 = vand.u32 2147483647, %v851
        %vm7310 = vcmp.le.f32.partialorder %v7309, 0.7853982
        %vm7311 = vcmp.lt.s32.totalorder %v851, 0
        %v7312 = vand.u32 %v851, 2139095040
        %v7313 = vshrl.u32 %v7312, 23
        %v7314 = vsub.s32 %v7313, 127
        %v7315 = vand.u32 2147483647, %v851
        %v7316 = vand.u32 %v7315, 8388607
        %v7317 = vor.u32 %v7316, 8388608
        %v7318 = vsub.s32 0, %v7317
        %v7319 = vadd.s32 %v7314, 1
        %vm7320 = vcmp.gt.s32.totalorder %v7319, 0
        %v7321 = vsel %vm7320, %v7319, 0
        %v7322 = vshrl.u32 %v7321, 5
        %v7323 = vand.u32 %v7321, 31
        %v7324 = vsub.s32 32, %v7323
        %v7325 = vshrl.u32 683565275, %v7324
        %v7326 = vshll.u32 683565275, %v7323
        %v7327 = vshrl.u32 2475754826, %v7324
        %v7328 = vor.u32 %v7326, %v7327
        %v7329 = vshll.u32 2475754826, %v7323
        %v7330 = vshrl.u32 2131351028, %v7324
        %v7331 = vor.u32 %v7329, %v7330
        %v7332 = vshll.u32 2131351028, %v7323
        %v7333 = vshrl.u32 2102212464, %v7324
        %v7334 = vor.u32 %v7332, %v7333
        %v7335 = vshll.u32 2102212464, %v7323
        %v7336 = vshrl.u32 920167782, %v7324
        %v7337 = vor.u32 %v7335, %v7336
        %v7338 = vshll.u32 920167782, %v7323
        %v7339 = vshrl.u32 1326507024, %v7324
        %v7340 = vor.u32 %v7338, %v7339
        %vm7341 = vcmp.lt.s32.totalorder %v7322, 1
        %vm7342 = vcmp.lt.s32.totalorder %v7322, 2
        %vm7343 = vcmp.lt.s32.totalorder %v7322, 3
        %vm7344 = vcmp.lt.s32.totalorder %v7322, 4
        %v7345 = vsel %vm7341, %v7325, %v7328
        %v7346 = vsel %vm7344, %v7334, 2102212464
        %v7347 = vsel %vm7343, %v7331, %v7346
        %v7348 = vsel %vm7342, %v7345, %v7347
        %v7349 = vsel %vm7341, %v7328, %v7331
        %v7350 = vsel %vm7344, %v7337, 920167782
        %v7351 = vsel %vm7343, %v7334, %v7350
        %v7352 = vsel %vm7342, %v7349, %v7351
        %v7353 = vsel %vm7341, %v7331, %v7334
        %v7354 = vsel %vm7344, %v7340, 1326507024
        %v7355 = vsel %vm7343, %v7337, %v7354
        %v7356 = vsel %vm7342, %v7353, %v7355
        %v7357 = vshll.u32 %v7317, 8
        %v7358 = vmul.u32.u64.compose %v7357, %v7356
        %v7359 = vextract.low.u32 %v7358
        %v7360 = vextract.high.u32 %v7358
        %v7361 = vmul.u32.u64.compose %v7357, %v7352
        %v7362 = vextract.low.u32 %v7361
        %v7363 = vextract.high.u32 %v7361
        %v7364 = vmul.u32 %v7357, %v7348
        %v7365 = vadd.s32 %v7360, %v7362
        %vm7366 = vc.u32 %v7360, %v7362
        %v7367 = vadd.s32 %v7363, 1
        %v7368 = vsel %vm7366, %v7367, %v7363
        %v7369 = vadd.s32 %v7364, %v7368
        %v7370 = vadd.s32 %v7369, 536870912
        %v7371 = vshrl.u32 %v7370, 30
        %v7372 = vshll.u32 %v7371, 30
        %v7373 = vsub.s32 %v7369, %v7372
        %vm7374 = vcmp.lt.s32.totalorder %v7373, 0
        %v7375 = vsub.s32 0, %v7373
        %v7376 = vsel %vm7374, %v7375, %v7373
        %v7377 = vclz %v7376
        %v7378 = vsub.s32 %v7377, 2
        %vm7379 = vcmp.gt.s32.totalorder 0, %v7378
        %v7380 = vsel %vm7379, 0, %v7378
        %v7381 = vsub.s32 32, %v7380
        %v7382 = vshll.u32 %v7373, %v7380
        %v7383 = vshrl.u32 %v7365, %v7381
        %v7384 = vor.u32 %v7382, %v7383
        %v7385 = vsub.s32 4294967266, %v7380
        %v7386 = vadd.s32 %v7385, 127
        %v7387 = vshll.u32 %v7386, 23
        %v7388 = vor.u32 4788187, %v7387
        %v7389 = vand.u32 2147483647, %v7388
        %v7391 = vcvt.s32.f32 %v7384
        %v7392 = vmul.f32 %v7391, %v7389
        %v7393 = vxor.u32 %v7392, 2147483648
        %v7394 = vsel %vm7311, %v7393, %v7392
        %v7395 = vsub.s32 4, %v7371
        %v7396 = vsel %vm7311, %v7395, %v7371
        %v7397 = vsel %vm7310, %v851, %v7394
        %v7398 = vsel %vm7310, 0, %v7396
        %v7399 = vcosq.f32.pop %v7397
        %v7400 = vsinq.f32.pop %v7397
        %vm7401 = vweird.f32 %v851
        %v7402 = vadd.s32 %v7398, 3
        %v7403 = vand.u32 %v7402, 3
        %vm7404 = vcmp.lt.s32.totalorder %v7403, 2
        %vm7405 = vcmp.eq.s32.totalorder %v7403, 0
        %v7406 = vxor.u32 %v7400, 2147483648
        %v7407 = vsel %vm7405, %v7399, %v7406
        %vm7408 = vcmp.eq.s32.totalorder %v7403, 2
        %v7409 = vxor.u32 %v7399, 2147483648
        %v7410 = vsel %vm7408, %v7409, %v7400
        %v7411 = vsel %vm7404, %v7407, %v7410
        %v7412 = vsel %vm7401, nan, %v7411
        %v7413 = vand.u32 2147483647, %v852
        %vm7414 = vcmp.le.f32.partialorder %v7413, 0.7853982
        %vm7415 = vcmp.lt.s32.totalorder %v852, 0
        %v7416 = vand.u32 %v852, 2139095040
        %v7417 = vshrl.u32 %v7416, 23
        %v7418 = vsub.s32 %v7417, 127
        %v7419 = vand.u32 2147483647, %v852
        %v7420 = vand.u32 %v7419, 8388607
        %v7421 = vor.u32 %v7420, 8388608
        %v7422 = vsub.s32 0, %v7421
        %v7423 = vadd.s32 %v7418, 1
        %vm7424 = vcmp.gt.s32.totalorder %v7423, 0
        %v7425 = vsel %vm7424, %v7423, 0
        %v7426 = vshrl.u32 %v7425, 5
        %v7427 = vand.u32 %v7425, 31
        %v7428 = vsub.s32 32, %v7427
        %v7429 = vshrl.u32 683565275, %v7428
        %v7430 = vshll.u32 683565275, %v7427
        %v7431 = vshrl.u32 2475754826, %v7428
        %v7432 = vor.u32 %v7430, %v7431
        %v7433 = vshll.u32 2475754826, %v7427
        %v7434 = vshrl.u32 2131351028, %v7428
        %v7435 = vor.u32 %v7433, %v7434
        %v7436 = vshll.u32 2131351028, %v7427
        %v7437 = vshrl.u32 2102212464, %v7428
        %v7438 = vor.u32 %v7436, %v7437
        %v7439 = vshll.u32 2102212464, %v7427
        %v7440 = vshrl.u32 920167782, %v7428
        %v7441 = vor.u32 %v7439, %v7440
        %v7442 = vshll.u32 920167782, %v7427
        %v7443 = vshrl.u32 1326507024, %v7428
        %v7444 = vor.u32 %v7442, %v7443
        %vm7445 = vcmp.lt.s32.totalorder %v7426, 1
        %vm7446 = vcmp.lt.s32.totalorder %v7426, 2
        %vm7447 = vcmp.lt.s32.totalorder %v7426, 3
        %vm7448 = vcmp.lt.s32.totalorder %v7426, 4
        %v7449 = vsel %vm7445, %v7429, %v7432
        %v7450 = vsel %vm7448, %v7438, 2102212464
        %v7451 = vsel %vm7447, %v7435, %v7450
        %v7452 = vsel %vm7446, %v7449, %v7451
        %v7453 = vsel %vm7445, %v7432, %v7435
        %v7454 = vsel %vm7448, %v7441, 920167782
        %v7455 = vsel %vm7447, %v7438, %v7454
        %v7456 = vsel %vm7446, %v7453, %v7455
        %v7457 = vsel %vm7445, %v7435, %v7438
        %v7458 = vsel %vm7448, %v7444, 1326507024
        %v7459 = vsel %vm7447, %v7441, %v7458
        %v7460 = vsel %vm7446, %v7457, %v7459
        %v7461 = vshll.u32 %v7421, 8
        %v7462 = vmul.u32.u64.compose %v7461, %v7460
        %v7463 = vextract.low.u32 %v7462
        %v7464 = vextract.high.u32 %v7462
        %v7465 = vmul.u32.u64.compose %v7461, %v7456
        %v7466 = vextract.low.u32 %v7465
        %v7467 = vextract.high.u32 %v7465
        %v7468 = vmul.u32 %v7461, %v7452
        %v7469 = vadd.s32 %v7464, %v7466
        %vm7470 = vc.u32 %v7464, %v7466
        %v7471 = vadd.s32 %v7467, 1
        %v7472 = vsel %vm7470, %v7471, %v7467
        %v7473 = vadd.s32 %v7468, %v7472
        %v7474 = vadd.s32 %v7473, 536870912
        %v7475 = vshrl.u32 %v7474, 30
        %v7476 = vshll.u32 %v7475, 30
        %v7477 = vsub.s32 %v7473, %v7476
        %vm7478 = vcmp.lt.s32.totalorder %v7477, 0
        %v7479 = vsub.s32 0, %v7477
        %v7480 = vsel %vm7478, %v7479, %v7477
        %v7481 = vclz %v7480
        %v7482 = vsub.s32 %v7481, 2
        %vm7483 = vcmp.gt.s32.totalorder 0, %v7482
        %v7484 = vsel %vm7483, 0, %v7482
        %v7485 = vsub.s32 32, %v7484
        %v7486 = vshll.u32 %v7477, %v7484
        %v7487 = vshrl.u32 %v7469, %v7485
        %v7488 = vor.u32 %v7486, %v7487
        %v7489 = vsub.s32 4294967266, %v7484
        %v7490 = vadd.s32 %v7489, 127
        %v7491 = vshll.u32 %v7490, 23
        %v7492 = vor.u32 4788187, %v7491
        %v7493 = vand.u32 2147483647, %v7492
        %v7495 = vcvt.s32.f32 %v7488
        %v7496 = vmul.f32 %v7495, %v7493
        %v7497 = vxor.u32 %v7496, 2147483648
        %v7498 = vsel %vm7415, %v7497, %v7496
        %v7499 = vsub.s32 4, %v7475
        %v7500 = vsel %vm7415, %v7499, %v7475
        %v7501 = vsel %vm7414, %v852, %v7498
        %v7502 = vsel %vm7414, 0, %v7500
        %v7503 = vcosq.f32.pop %v7501
        %v7504 = vsinq.f32.pop %v7501
        %vm7505 = vweird.f32 %v852
        %v7506 = vadd.s32 %v7502, 3
        %v7507 = vand.u32 %v7506, 3
        %vm7508 = vcmp.lt.s32.totalorder %v7507, 2
        %vm7509 = vcmp.eq.s32.totalorder %v7507, 0
        %v7510 = vxor.u32 %v7504, 2147483648
        %v7511 = vsel %vm7509, %v7503, %v7510
        %vm7512 = vcmp.eq.s32.totalorder %v7507, 2
        %v7513 = vxor.u32 %v7503, 2147483648
        %v7514 = vsel %vm7512, %v7513, %v7504
        %v7515 = vsel %vm7508, %v7511, %v7514
        %v7516 = vsel %vm7505, nan, %v7515
        %v7517 = vand.u32 2147483647, %v853
        %vm7518 = vcmp.le.f32.partialorder %v7517, 0.7853982
        %vm7519 = vcmp.lt.s32.totalorder %v853, 0
        %v7520 = vand.u32 %v853, 2139095040
        %v7521 = vshrl.u32 %v7520, 23
        %v7522 = vsub.s32 %v7521, 127
        %v7523 = vand.u32 2147483647, %v853
        %v7524 = vand.u32 %v7523, 8388607
        %v7525 = vor.u32 %v7524, 8388608
        %v7526 = vsub.s32 0, %v7525
        %v7527 = vadd.s32 %v7522, 1
        %vm7528 = vcmp.gt.s32.totalorder %v7527, 0
        %v7529 = vsel %vm7528, %v7527, 0
        %v7530 = vshrl.u32 %v7529, 5
        %v7531 = vand.u32 %v7529, 31
        %v7532 = vsub.s32 32, %v7531
        %v7533 = vshrl.u32 683565275, %v7532
        %v7534 = vshll.u32 683565275, %v7531
        %v7535 = vshrl.u32 2475754826, %v7532
        %v7536 = vor.u32 %v7534, %v7535
        %v7537 = vshll.u32 2475754826, %v7531
        %v7538 = vshrl.u32 2131351028, %v7532
        %v7539 = vor.u32 %v7537, %v7538
        %v7540 = vshll.u32 2131351028, %v7531
        %v7541 = vshrl.u32 2102212464, %v7532
        %v7542 = vor.u32 %v7540, %v7541
        %v7543 = vshll.u32 2102212464, %v7531
        %v7544 = vshrl.u32 920167782, %v7532
        %v7545 = vor.u32 %v7543, %v7544
        %v7546 = vshll.u32 920167782, %v7531
        %v7547 = vshrl.u32 1326507024, %v7532
        %v7548 = vor.u32 %v7546, %v7547
        %vm7549 = vcmp.lt.s32.totalorder %v7530, 1
        %vm7550 = vcmp.lt.s32.totalorder %v7530, 2
        %vm7551 = vcmp.lt.s32.totalorder %v7530, 3
        %vm7552 = vcmp.lt.s32.totalorder %v7530, 4
        %v7553 = vsel %vm7549, %v7533, %v7536
        %v7554 = vsel %vm7552, %v7542, 2102212464
        %v7555 = vsel %vm7551, %v7539, %v7554
        %v7556 = vsel %vm7550, %v7553, %v7555
        %v7557 = vsel %vm7549, %v7536, %v7539
        %v7558 = vsel %vm7552, %v7545, 920167782
        %v7559 = vsel %vm7551, %v7542, %v7558
        %v7560 = vsel %vm7550, %v7557, %v7559
        %v7561 = vsel %vm7549, %v7539, %v7542
        %v7562 = vsel %vm7552, %v7548, 1326507024
        %v7563 = vsel %vm7551, %v7545, %v7562
        %v7564 = vsel %vm7550, %v7561, %v7563
        %v7565 = vshll.u32 %v7525, 8
        %v7566 = vmul.u32.u64.compose %v7565, %v7564
        %v7567 = vextract.low.u32 %v7566
        %v7568 = vextract.high.u32 %v7566
        %v7569 = vmul.u32.u64.compose %v7565, %v7560
        %v7570 = vextract.low.u32 %v7569
        %v7571 = vextract.high.u32 %v7569
        %v7572 = vmul.u32 %v7565, %v7556
        %v7573 = vadd.s32 %v7568, %v7570
        %vm7574 = vc.u32 %v7568, %v7570
        %v7575 = vadd.s32 %v7571, 1
        %v7576 = vsel %vm7574, %v7575, %v7571
        %v7577 = vadd.s32 %v7572, %v7576
        %v7578 = vadd.s32 %v7577, 536870912
        %v7579 = vshrl.u32 %v7578, 30
        %v7580 = vshll.u32 %v7579, 30
        %v7581 = vsub.s32 %v7577, %v7580
        %vm7582 = vcmp.lt.s32.totalorder %v7581, 0
        %v7583 = vsub.s32 0, %v7581
        %v7584 = vsel %vm7582, %v7583, %v7581
        %v7585 = vclz %v7584
        %v7586 = vsub.s32 %v7585, 2
        %vm7587 = vcmp.gt.s32.totalorder 0, %v7586
        %v7588 = vsel %vm7587, 0, %v7586
        %v7589 = vsub.s32 32, %v7588
        %v7590 = vshll.u32 %v7581, %v7588
        %v7591 = vshrl.u32 %v7573, %v7589
        %v7592 = vor.u32 %v7590, %v7591
        %v7593 = vsub.s32 4294967266, %v7588
        %v7594 = vadd.s32 %v7593, 127
        %v7595 = vshll.u32 %v7594, 23
        %v7596 = vor.u32 4788187, %v7595
        %v7597 = vand.u32 2147483647, %v7596
        %v7599 = vcvt.s32.f32 %v7592
        %v7600 = vmul.f32 %v7599, %v7597
        %v7601 = vxor.u32 %v7600, 2147483648
        %v7602 = vsel %vm7519, %v7601, %v7600
        %v7603 = vsub.s32 4, %v7579
        %v7604 = vsel %vm7519, %v7603, %v7579
        %v7605 = vsel %vm7518, %v853, %v7602
        %v7606 = vsel %vm7518, 0, %v7604
        %v7607 = vcosq.f32.pop %v7605
        %v7608 = vsinq.f32.pop %v7605
        %vm7609 = vweird.f32 %v853
        %v7610 = vadd.s32 %v7606, 3
        %v7611 = vand.u32 %v7610, 3
        %vm7612 = vcmp.lt.s32.totalorder %v7611, 2
        %vm7613 = vcmp.eq.s32.totalorder %v7611, 0
        %v7614 = vxor.u32 %v7608, 2147483648
        %v7615 = vsel %vm7613, %v7607, %v7614
        %vm7616 = vcmp.eq.s32.totalorder %v7611, 2
        %v7617 = vxor.u32 %v7607, 2147483648
        %v7618 = vsel %vm7616, %v7617, %v7608
        %v7619 = vsel %vm7612, %v7615, %v7618
        %v7620 = vsel %vm7609, nan, %v7619
        %v7621 = vand.u32 2147483647, %v854
        %vm7622 = vcmp.le.f32.partialorder %v7621, 0.7853982
        %vm7623 = vcmp.lt.s32.totalorder %v854, 0
        %v7624 = vand.u32 %v854, 2139095040
        %v7625 = vshrl.u32 %v7624, 23
        %v7626 = vsub.s32 %v7625, 127
        %v7627 = vand.u32 2147483647, %v854
        %v7628 = vand.u32 %v7627, 8388607
        %v7629 = vor.u32 %v7628, 8388608
        %v7630 = vsub.s32 0, %v7629
        %v7631 = vadd.s32 %v7626, 1
        %vm7632 = vcmp.gt.s32.totalorder %v7631, 0
        %v7633 = vsel %vm7632, %v7631, 0
        %v7634 = vshrl.u32 %v7633, 5
        %v7635 = vand.u32 %v7633, 31
        %v7636 = vsub.s32 32, %v7635
        %v7637 = vshrl.u32 683565275, %v7636
        %v7638 = vshll.u32 683565275, %v7635
        %v7639 = vshrl.u32 2475754826, %v7636
        %v7640 = vor.u32 %v7638, %v7639
        %v7641 = vshll.u32 2475754826, %v7635
        %v7642 = vshrl.u32 2131351028, %v7636
        %v7643 = vor.u32 %v7641, %v7642
        %v7644 = vshll.u32 2131351028, %v7635
        %v7645 = vshrl.u32 2102212464, %v7636
        %v7646 = vor.u32 %v7644, %v7645
        %v7647 = vshll.u32 2102212464, %v7635
        %v7648 = vshrl.u32 920167782, %v7636
        %v7649 = vor.u32 %v7647, %v7648
        %v7650 = vshll.u32 920167782, %v7635
        %v7651 = vshrl.u32 1326507024, %v7636
        %v7652 = vor.u32 %v7650, %v7651
        %vm7653 = vcmp.lt.s32.totalorder %v7634, 1
        %vm7654 = vcmp.lt.s32.totalorder %v7634, 2
        %vm7655 = vcmp.lt.s32.totalorder %v7634, 3
        %vm7656 = vcmp.lt.s32.totalorder %v7634, 4
        %v7657 = vsel %vm7653, %v7637, %v7640
        %v7658 = vsel %vm7656, %v7646, 2102212464
        %v7659 = vsel %vm7655, %v7643, %v7658
        %v7660 = vsel %vm7654, %v7657, %v7659
        %v7661 = vsel %vm7653, %v7640, %v7643
        %v7662 = vsel %vm7656, %v7649, 920167782
        %v7663 = vsel %vm7655, %v7646, %v7662
        %v7664 = vsel %vm7654, %v7661, %v7663
        %v7665 = vsel %vm7653, %v7643, %v7646
        %v7666 = vsel %vm7656, %v7652, 1326507024
        %v7667 = vsel %vm7655, %v7649, %v7666
        %v7668 = vsel %vm7654, %v7665, %v7667
        %v7669 = vshll.u32 %v7629, 8
        %v7670 = vmul.u32.u64.compose %v7669, %v7668
        %v7671 = vextract.low.u32 %v7670
        %v7672 = vextract.high.u32 %v7670
        %v7673 = vmul.u32.u64.compose %v7669, %v7664
        %v7674 = vextract.low.u32 %v7673
        %v7675 = vextract.high.u32 %v7673
        %v7676 = vmul.u32 %v7669, %v7660
        %v7677 = vadd.s32 %v7672, %v7674
        %vm7678 = vc.u32 %v7672, %v7674
        %v7679 = vadd.s32 %v7675, 1
        %v7680 = vsel %vm7678, %v7679, %v7675
        %v7681 = vadd.s32 %v7676, %v7680
        %v7682 = vadd.s32 %v7681, 536870912
        %v7683 = vshrl.u32 %v7682, 30
        %v7684 = vshll.u32 %v7683, 30
        %v7685 = vsub.s32 %v7681, %v7684
        %vm7686 = vcmp.lt.s32.totalorder %v7685, 0
        %v7687 = vsub.s32 0, %v7685
        %v7688 = vsel %vm7686, %v7687, %v7685
        %v7689 = vclz %v7688
        %v7690 = vsub.s32 %v7689, 2
        %vm7691 = vcmp.gt.s32.totalorder 0, %v7690
        %v7692 = vsel %vm7691, 0, %v7690
        %v7693 = vsub.s32 32, %v7692
        %v7694 = vshll.u32 %v7685, %v7692
        %v7695 = vshrl.u32 %v7677, %v7693
        %v7696 = vor.u32 %v7694, %v7695
        %v7697 = vsub.s32 4294967266, %v7692
        %v7698 = vadd.s32 %v7697, 127
        %v7699 = vshll.u32 %v7698, 23
        %v7700 = vor.u32 4788187, %v7699
        %v7701 = vand.u32 2147483647, %v7700
        %v7703 = vcvt.s32.f32 %v7696
        %v7704 = vmul.f32 %v7703, %v7701
        %v7705 = vxor.u32 %v7704, 2147483648
        %v7706 = vsel %vm7623, %v7705, %v7704
        %v7707 = vsub.s32 4, %v7683
        %v7708 = vsel %vm7623, %v7707, %v7683
        %v7709 = vsel %vm7622, %v854, %v7706
        %v7710 = vsel %vm7622, 0, %v7708
        %v7711 = vcosq.f32.pop %v7709
        %v7712 = vsinq.f32.pop %v7709
        %vm7713 = vweird.f32 %v854
        %v7714 = vadd.s32 %v7710, 3
        %v7715 = vand.u32 %v7714, 3
        %vm7716 = vcmp.lt.s32.totalorder %v7715, 2
        %vm7717 = vcmp.eq.s32.totalorder %v7715, 0
        %v7718 = vxor.u32 %v7712, 2147483648
        %v7719 = vsel %vm7717, %v7711, %v7718
        %vm7720 = vcmp.eq.s32.totalorder %v7715, 2
        %v7721 = vxor.u32 %v7711, 2147483648
        %v7722 = vsel %vm7720, %v7721, %v7712
        %v7723 = vsel %vm7716, %v7719, %v7722
        %v7724 = vsel %vm7713, nan, %v7723
        %v7725 = vand.u32 2147483647, %v855
        %vm7726 = vcmp.le.f32.partialorder %v7725, 0.7853982
        %vm7727 = vcmp.lt.s32.totalorder %v855, 0
        %v7728 = vand.u32 %v855, 2139095040
        %v7729 = vshrl.u32 %v7728, 23
        %v7730 = vsub.s32 %v7729, 127
        %v7731 = vand.u32 2147483647, %v855
        %v7732 = vand.u32 %v7731, 8388607
        %v7733 = vor.u32 %v7732, 8388608
        %v7734 = vsub.s32 0, %v7733
        %v7735 = vadd.s32 %v7730, 1
        %vm7736 = vcmp.gt.s32.totalorder %v7735, 0
        %v7737 = vsel %vm7736, %v7735, 0
        %v7738 = vshrl.u32 %v7737, 5
        %v7739 = vand.u32 %v7737, 31
        %v7740 = vsub.s32 32, %v7739
        %v7741 = vshrl.u32 683565275, %v7740
        %v7742 = vshll.u32 683565275, %v7739
        %v7743 = vshrl.u32 2475754826, %v7740
        %v7744 = vor.u32 %v7742, %v7743
        %v7745 = vshll.u32 2475754826, %v7739
        %v7746 = vshrl.u32 2131351028, %v7740
        %v7747 = vor.u32 %v7745, %v7746
        %v7748 = vshll.u32 2131351028, %v7739
        %v7749 = vshrl.u32 2102212464, %v7740
        %v7750 = vor.u32 %v7748, %v7749
        %v7751 = vshll.u32 2102212464, %v7739
        %v7752 = vshrl.u32 920167782, %v7740
        %v7753 = vor.u32 %v7751, %v7752
        %v7754 = vshll.u32 920167782, %v7739
        %v7755 = vshrl.u32 1326507024, %v7740
        %v7756 = vor.u32 %v7754, %v7755
        %vm7757 = vcmp.lt.s32.totalorder %v7738, 1
        %vm7758 = vcmp.lt.s32.totalorder %v7738, 2
        %vm7759 = vcmp.lt.s32.totalorder %v7738, 3
        %vm7760 = vcmp.lt.s32.totalorder %v7738, 4
        %v7761 = vsel %vm7757, %v7741, %v7744
        %v7762 = vsel %vm7760, %v7750, 2102212464
        %v7763 = vsel %vm7759, %v7747, %v7762
        %v7764 = vsel %vm7758, %v7761, %v7763
        %v7765 = vsel %vm7757, %v7744, %v7747
        %v7766 = vsel %vm7760, %v7753, 920167782
        %v7767 = vsel %vm7759, %v7750, %v7766
        %v7768 = vsel %vm7758, %v7765, %v7767
        %v7769 = vsel %vm7757, %v7747, %v7750
        %v7770 = vsel %vm7760, %v7756, 1326507024
        %v7771 = vsel %vm7759, %v7753, %v7770
        %v7772 = vsel %vm7758, %v7769, %v7771
        %v7773 = vshll.u32 %v7733, 8
        %v7774 = vmul.u32.u64.compose %v7773, %v7772
        %v7775 = vextract.low.u32 %v7774
        %v7776 = vextract.high.u32 %v7774
        %v7777 = vmul.u32.u64.compose %v7773, %v7768
        %v7778 = vextract.low.u32 %v7777
        %v7779 = vextract.high.u32 %v7777
        %v7780 = vmul.u32 %v7773, %v7764
        %v7781 = vadd.s32 %v7776, %v7778
        %vm7782 = vc.u32 %v7776, %v7778
        %v7783 = vadd.s32 %v7779, 1
        %v7784 = vsel %vm7782, %v7783, %v7779
        %v7785 = vadd.s32 %v7780, %v7784
        %v7786 = vadd.s32 %v7785, 536870912
        %v7787 = vshrl.u32 %v7786, 30
        %v7788 = vshll.u32 %v7787, 30
        %v7789 = vsub.s32 %v7785, %v7788
        %vm7790 = vcmp.lt.s32.totalorder %v7789, 0
        %v7791 = vsub.s32 0, %v7789
        %v7792 = vsel %vm7790, %v7791, %v7789
        %v7793 = vclz %v7792
        %v7794 = vsub.s32 %v7793, 2
        %vm7795 = vcmp.gt.s32.totalorder 0, %v7794
        %v7796 = vsel %vm7795, 0, %v7794
        %v7797 = vsub.s32 32, %v7796
        %v7798 = vshll.u32 %v7789, %v7796
        %v7799 = vshrl.u32 %v7781, %v7797
        %v7800 = vor.u32 %v7798, %v7799
        %v7801 = vsub.s32 4294967266, %v7796
        %v7802 = vadd.s32 %v7801, 127
        %v7803 = vshll.u32 %v7802, 23
        %v7804 = vor.u32 4788187, %v7803
        %v7805 = vand.u32 2147483647, %v7804
        %v7807 = vcvt.s32.f32 %v7800
        %v7808 = vmul.f32 %v7807, %v7805
        %v7809 = vxor.u32 %v7808, 2147483648
        %v7810 = vsel %vm7727, %v7809, %v7808
        %v7811 = vsub.s32 4, %v7787
        %v7812 = vsel %vm7727, %v7811, %v7787
        %v7813 = vsel %vm7726, %v855, %v7810
        %v7814 = vsel %vm7726, 0, %v7812
        %v7815 = vcosq.f32.pop %v7813
        %v7816 = vsinq.f32.pop %v7813
        %vm7817 = vweird.f32 %v855
        %v7818 = vadd.s32 %v7814, 3
        %v7819 = vand.u32 %v7818, 3
        %vm7820 = vcmp.lt.s32.totalorder %v7819, 2
        %vm7821 = vcmp.eq.s32.totalorder %v7819, 0
        %v7822 = vxor.u32 %v7816, 2147483648
        %v7823 = vsel %vm7821, %v7815, %v7822
        %vm7824 = vcmp.eq.s32.totalorder %v7819, 2
        %v7825 = vxor.u32 %v7815, 2147483648
        %v7826 = vsel %vm7824, %v7825, %v7816
        %v7827 = vsel %vm7820, %v7823, %v7826
        %v7828 = vsel %vm7817, nan, %v7827
        %v7829 = vand.u32 2147483647, %v856
        %vm7830 = vcmp.le.f32.partialorder %v7829, 0.7853982
        %vm7831 = vcmp.lt.s32.totalorder %v856, 0
        %v7832 = vand.u32 %v856, 2139095040
        %v7833 = vshrl.u32 %v7832, 23
        %v7834 = vsub.s32 %v7833, 127
        %v7835 = vand.u32 2147483647, %v856
        %v7836 = vand.u32 %v7835, 8388607
        %v7837 = vor.u32 %v7836, 8388608
        %v7838 = vsub.s32 0, %v7837
        %v7839 = vadd.s32 %v7834, 1
        %vm7840 = vcmp.gt.s32.totalorder %v7839, 0
        %v7841 = vsel %vm7840, %v7839, 0
        %v7842 = vshrl.u32 %v7841, 5
        %v7843 = vand.u32 %v7841, 31
        %v7844 = vsub.s32 32, %v7843
        %v7845 = vshrl.u32 683565275, %v7844
        %v7846 = vshll.u32 683565275, %v7843
        %v7847 = vshrl.u32 2475754826, %v7844
        %v7848 = vor.u32 %v7846, %v7847
        %v7849 = vshll.u32 2475754826, %v7843
        %v7850 = vshrl.u32 2131351028, %v7844
        %v7851 = vor.u32 %v7849, %v7850
        %v7852 = vshll.u32 2131351028, %v7843
        %v7853 = vshrl.u32 2102212464, %v7844
        %v7854 = vor.u32 %v7852, %v7853
        %v7855 = vshll.u32 2102212464, %v7843
        %v7856 = vshrl.u32 920167782, %v7844
        %v7857 = vor.u32 %v7855, %v7856
        %v7858 = vshll.u32 920167782, %v7843
        %v7859 = vshrl.u32 1326507024, %v7844
        %v7860 = vor.u32 %v7858, %v7859
        %vm7861 = vcmp.lt.s32.totalorder %v7842, 1
        %vm7862 = vcmp.lt.s32.totalorder %v7842, 2
        %vm7863 = vcmp.lt.s32.totalorder %v7842, 3
        %vm7864 = vcmp.lt.s32.totalorder %v7842, 4
        %v7865 = vsel %vm7861, %v7845, %v7848
        %v7866 = vsel %vm7864, %v7854, 2102212464
        %v7867 = vsel %vm7863, %v7851, %v7866
        %v7868 = vsel %vm7862, %v7865, %v7867
        %v7869 = vsel %vm7861, %v7848, %v7851
        %v7870 = vsel %vm7864, %v7857, 920167782
        %v7871 = vsel %vm7863, %v7854, %v7870
        %v7872 = vsel %vm7862, %v7869, %v7871
        %v7873 = vsel %vm7861, %v7851, %v7854
        %v7874 = vsel %vm7864, %v7860, 1326507024
        %v7875 = vsel %vm7863, %v7857, %v7874
        %v7876 = vsel %vm7862, %v7873, %v7875
        %v7877 = vshll.u32 %v7837, 8
        %v7878 = vmul.u32.u64.compose %v7877, %v7876
        %v7879 = vextract.low.u32 %v7878
        %v7880 = vextract.high.u32 %v7878
        %v7881 = vmul.u32.u64.compose %v7877, %v7872
        %v7882 = vextract.low.u32 %v7881
        %v7883 = vextract.high.u32 %v7881
        %v7884 = vmul.u32 %v7877, %v7868
        %v7885 = vadd.s32 %v7880, %v7882
        %vm7886 = vc.u32 %v7880, %v7882
        %v7887 = vadd.s32 %v7883, 1
        %v7888 = vsel %vm7886, %v7887, %v7883
        %v7889 = vadd.s32 %v7884, %v7888
        %v7890 = vadd.s32 %v7889, 536870912
        %v7891 = vshrl.u32 %v7890, 30
        %v7892 = vshll.u32 %v7891, 30
        %v7893 = vsub.s32 %v7889, %v7892
        %vm7894 = vcmp.lt.s32.totalorder %v7893, 0
        %v7895 = vsub.s32 0, %v7893
        %v7896 = vsel %vm7894, %v7895, %v7893
        %v7897 = vclz %v7896
        %v7898 = vsub.s32 %v7897, 2
        %vm7899 = vcmp.gt.s32.totalorder 0, %v7898
        %v7900 = vsel %vm7899, 0, %v7898
        %v7901 = vsub.s32 32, %v7900
        %v7902 = vshll.u32 %v7893, %v7900
        %v7903 = vshrl.u32 %v7885, %v7901
        %v7904 = vor.u32 %v7902, %v7903
        %v7905 = vsub.s32 4294967266, %v7900
        %v7906 = vadd.s32 %v7905, 127
        %v7907 = vshll.u32 %v7906, 23
        %v7908 = vor.u32 4788187, %v7907
        %v7909 = vand.u32 2147483647, %v7908
        %v7911 = vcvt.s32.f32 %v7904
        %v7912 = vmul.f32 %v7911, %v7909
        %v7913 = vxor.u32 %v7912, 2147483648
        %v7914 = vsel %vm7831, %v7913, %v7912
        %v7915 = vsub.s32 4, %v7891
        %v7916 = vsel %vm7831, %v7915, %v7891
        %v7917 = vsel %vm7830, %v856, %v7914
        %v7918 = vsel %vm7830, 0, %v7916
        %v7919 = vcosq.f32.pop %v7917
        %v7920 = vsinq.f32.pop %v7917
        %vm7921 = vweird.f32 %v856
        %v7922 = vadd.s32 %v7918, 3
        %v7923 = vand.u32 %v7922, 3
        %vm7924 = vcmp.lt.s32.totalorder %v7923, 2
        %vm7925 = vcmp.eq.s32.totalorder %v7923, 0
        %v7926 = vxor.u32 %v7920, 2147483648
        %v7927 = vsel %vm7925, %v7919, %v7926
        %vm7928 = vcmp.eq.s32.totalorder %v7923, 2
        %v7929 = vxor.u32 %v7919, 2147483648
        %v7930 = vsel %vm7928, %v7929, %v7920
        %v7931 = vsel %vm7924, %v7927, %v7930
        %v7932 = vsel %vm7921, nan, %v7931
        %v7933 = vand.u32 2147483647, %v857
        %vm7934 = vcmp.le.f32.partialorder %v7933, 0.7853982
        %vm7935 = vcmp.lt.s32.totalorder %v857, 0
        %v7936 = vand.u32 %v857, 2139095040
        %v7937 = vshrl.u32 %v7936, 23
        %v7938 = vsub.s32 %v7937, 127
        %v7939 = vand.u32 2147483647, %v857
        %v7940 = vand.u32 %v7939, 8388607
        %v7941 = vor.u32 %v7940, 8388608
        %v7942 = vsub.s32 0, %v7941
        %v7943 = vadd.s32 %v7938, 1
        %vm7944 = vcmp.gt.s32.totalorder %v7943, 0
        %v7945 = vsel %vm7944, %v7943, 0
        %v7946 = vshrl.u32 %v7945, 5
        %v7947 = vand.u32 %v7945, 31
        %v7948 = vsub.s32 32, %v7947
        %v7949 = vshrl.u32 683565275, %v7948
        %v7950 = vshll.u32 683565275, %v7947
        %v7951 = vshrl.u32 2475754826, %v7948
        %v7952 = vor.u32 %v7950, %v7951
        %v7953 = vshll.u32 2475754826, %v7947
        %v7954 = vshrl.u32 2131351028, %v7948
        %v7955 = vor.u32 %v7953, %v7954
        %v7956 = vshll.u32 2131351028, %v7947
        %v7957 = vshrl.u32 2102212464, %v7948
        %v7958 = vor.u32 %v7956, %v7957
        %v7959 = vshll.u32 2102212464, %v7947
        %v7960 = vshrl.u32 920167782, %v7948
        %v7961 = vor.u32 %v7959, %v7960
        %v7962 = vshll.u32 920167782, %v7947
        %v7963 = vshrl.u32 1326507024, %v7948
        %v7964 = vor.u32 %v7962, %v7963
        %vm7965 = vcmp.lt.s32.totalorder %v7946, 1
        %vm7966 = vcmp.lt.s32.totalorder %v7946, 2
        %vm7967 = vcmp.lt.s32.totalorder %v7946, 3
        %vm7968 = vcmp.lt.s32.totalorder %v7946, 4
        %v7969 = vsel %vm7965, %v7949, %v7952
        %v7970 = vsel %vm7968, %v7958, 2102212464
        %v7971 = vsel %vm7967, %v7955, %v7970
        %v7972 = vsel %vm7966, %v7969, %v7971
        %v7973 = vsel %vm7965, %v7952, %v7955
        %v7974 = vsel %vm7968, %v7961, 920167782
        %v7975 = vsel %vm7967, %v7958, %v7974
        %v7976 = vsel %vm7966, %v7973, %v7975
        %v7977 = vsel %vm7965, %v7955, %v7958
        %v7978 = vsel %vm7968, %v7964, 1326507024
        %v7979 = vsel %vm7967, %v7961, %v7978
        %v7980 = vsel %vm7966, %v7977, %v7979
        %v7981 = vshll.u32 %v7941, 8
        %v7982 = vmul.u32.u64.compose %v7981, %v7980
        %v7983 = vextract.low.u32 %v7982
        %v7984 = vextract.high.u32 %v7982
        %v7985 = vmul.u32.u64.compose %v7981, %v7976
        %v7986 = vextract.low.u32 %v7985
        %v7987 = vextract.high.u32 %v7985
        %v7988 = vmul.u32 %v7981, %v7972
        %v7989 = vadd.s32 %v7984, %v7986
        %vm7990 = vc.u32 %v7984, %v7986
        %v7991 = vadd.s32 %v7987, 1
        %v7992 = vsel %vm7990, %v7991, %v7987
        %v7993 = vadd.s32 %v7988, %v7992
        %v7994 = vadd.s32 %v7993, 536870912
        %v7995 = vshrl.u32 %v7994, 30
        %v7996 = vshll.u32 %v7995, 30
        %v7997 = vsub.s32 %v7993, %v7996
        %vm7998 = vcmp.lt.s32.totalorder %v7997, 0
        %v7999 = vsub.s32 0, %v7997
        %v8000 = vsel %vm7998, %v7999, %v7997
        %v8001 = vclz %v8000
        %v8002 = vsub.s32 %v8001, 2
        %vm8003 = vcmp.gt.s32.totalorder 0, %v8002
        %v8004 = vsel %vm8003, 0, %v8002
        %v8005 = vsub.s32 32, %v8004
        %v8006 = vshll.u32 %v7997, %v8004
        %v8007 = vshrl.u32 %v7989, %v8005
        %v8008 = vor.u32 %v8006, %v8007
        %v8009 = vsub.s32 4294967266, %v8004
        %v8010 = vadd.s32 %v8009, 127
        %v8011 = vshll.u32 %v8010, 23
        %v8012 = vor.u32 4788187, %v8011
        %v8013 = vand.u32 2147483647, %v8012
        %v8015 = vcvt.s32.f32 %v8008
        %v8016 = vmul.f32 %v8015, %v8013
        %v8017 = vxor.u32 %v8016, 2147483648
        %v8018 = vsel %vm7935, %v8017, %v8016
        %v8019 = vsub.s32 4, %v7995
        %v8020 = vsel %vm7935, %v8019, %v7995
        %v8021 = vsel %vm7934, %v857, %v8018
        %v8022 = vsel %vm7934, 0, %v8020
        %v8023 = vcosq.f32.pop %v8021
        %v8024 = vsinq.f32.pop %v8021
        %vm8025 = vweird.f32 %v857
        %v8026 = vadd.s32 %v8022, 3
        %v8027 = vand.u32 %v8026, 3
        %vm8028 = vcmp.lt.s32.totalorder %v8027, 2
        %vm8029 = vcmp.eq.s32.totalorder %v8027, 0
        %v8030 = vxor.u32 %v8024, 2147483648
        %v8031 = vsel %vm8029, %v8023, %v8030
        %vm8032 = vcmp.eq.s32.totalorder %v8027, 2
        %v8033 = vxor.u32 %v8023, 2147483648
        %v8034 = vsel %vm8032, %v8033, %v8024
        %v8035 = vsel %vm8028, %v8031, %v8034
        %v8036 = vsel %vm8025, nan, %v8035
        %v8037 = vand.u32 2147483647, %v858
        %vm8038 = vcmp.le.f32.partialorder %v8037, 0.7853982
        %vm8039 = vcmp.lt.s32.totalorder %v858, 0
        %v8040 = vand.u32 %v858, 2139095040
        %v8041 = vshrl.u32 %v8040, 23
        %v8042 = vsub.s32 %v8041, 127
        %v8043 = vand.u32 2147483647, %v858
        %v8044 = vand.u32 %v8043, 8388607
        %v8045 = vor.u32 %v8044, 8388608
        %v8046 = vsub.s32 0, %v8045
        %v8047 = vadd.s32 %v8042, 1
        %vm8048 = vcmp.gt.s32.totalorder %v8047, 0
        %v8049 = vsel %vm8048, %v8047, 0
        %v8050 = vshrl.u32 %v8049, 5
        %v8051 = vand.u32 %v8049, 31
        %v8052 = vsub.s32 32, %v8051
        %v8053 = vshrl.u32 683565275, %v8052
        %v8054 = vshll.u32 683565275, %v8051
        %v8055 = vshrl.u32 2475754826, %v8052
        %v8056 = vor.u32 %v8054, %v8055
        %v8057 = vshll.u32 2475754826, %v8051
        %v8058 = vshrl.u32 2131351028, %v8052
        %v8059 = vor.u32 %v8057, %v8058
        %v8060 = vshll.u32 2131351028, %v8051
        %v8061 = vshrl.u32 2102212464, %v8052
        %v8062 = vor.u32 %v8060, %v8061
        %v8063 = vshll.u32 2102212464, %v8051
        %v8064 = vshrl.u32 920167782, %v8052
        %v8065 = vor.u32 %v8063, %v8064
        %v8066 = vshll.u32 920167782, %v8051
        %v8067 = vshrl.u32 1326507024, %v8052
        %v8068 = vor.u32 %v8066, %v8067
        %vm8069 = vcmp.lt.s32.totalorder %v8050, 1
        %vm8070 = vcmp.lt.s32.totalorder %v8050, 2
        %vm8071 = vcmp.lt.s32.totalorder %v8050, 3
        %vm8072 = vcmp.lt.s32.totalorder %v8050, 4
        %v8073 = vsel %vm8069, %v8053, %v8056
        %v8074 = vsel %vm8072, %v8062, 2102212464
        %v8075 = vsel %vm8071, %v8059, %v8074
        %v8076 = vsel %vm8070, %v8073, %v8075
        %v8077 = vsel %vm8069, %v8056, %v8059
        %v8078 = vsel %vm8072, %v8065, 920167782
        %v8079 = vsel %vm8071, %v8062, %v8078
        %v8080 = vsel %vm8070, %v8077, %v8079
        %v8081 = vsel %vm8069, %v8059, %v8062
        %v8082 = vsel %vm8072, %v8068, 1326507024
        %v8083 = vsel %vm8071, %v8065, %v8082
        %v8084 = vsel %vm8070, %v8081, %v8083
        %v8085 = vshll.u32 %v8045, 8
        %v8086 = vmul.u32.u64.compose %v8085, %v8084
        %v8087 = vextract.low.u32 %v8086
        %v8088 = vextract.high.u32 %v8086
        %v8089 = vmul.u32.u64.compose %v8085, %v8080
        %v8090 = vextract.low.u32 %v8089
        %v8091 = vextract.high.u32 %v8089
        %v8092 = vmul.u32 %v8085, %v8076
        %v8093 = vadd.s32 %v8088, %v8090
        %vm8094 = vc.u32 %v8088, %v8090
        %v8095 = vadd.s32 %v8091, 1
        %v8096 = vsel %vm8094, %v8095, %v8091
        %v8097 = vadd.s32 %v8092, %v8096
        %v8098 = vadd.s32 %v8097, 536870912
        %v8099 = vshrl.u32 %v8098, 30
        %v8100 = vshll.u32 %v8099, 30
        %v8101 = vsub.s32 %v8097, %v8100
        %vm8102 = vcmp.lt.s32.totalorder %v8101, 0
        %v8103 = vsub.s32 0, %v8101
        %v8104 = vsel %vm8102, %v8103, %v8101
        %v8105 = vclz %v8104
        %v8106 = vsub.s32 %v8105, 2
        %vm8107 = vcmp.gt.s32.totalorder 0, %v8106
        %v8108 = vsel %vm8107, 0, %v8106
        %v8109 = vsub.s32 32, %v8108
        %v8110 = vshll.u32 %v8101, %v8108
        %v8111 = vshrl.u32 %v8093, %v8109
        %v8112 = vor.u32 %v8110, %v8111
        %v8113 = vsub.s32 4294967266, %v8108
        %v8114 = vadd.s32 %v8113, 127
        %v8115 = vshll.u32 %v8114, 23
        %v8116 = vor.u32 4788187, %v8115
        %v8117 = vand.u32 2147483647, %v8116
        %v8119 = vcvt.s32.f32 %v8112
        %v8120 = vmul.f32 %v8119, %v8117
        %v8121 = vxor.u32 %v8120, 2147483648
        %v8122 = vsel %vm8039, %v8121, %v8120
        %v8123 = vsub.s32 4, %v8099
        %v8124 = vsel %vm8039, %v8123, %v8099
        %v8125 = vsel %vm8038, %v858, %v8122
        %v8126 = vsel %vm8038, 0, %v8124
        %v8127 = vcosq.f32.pop %v8125
        %v8128 = vsinq.f32.pop %v8125
        %vm8129 = vweird.f32 %v858
        %v8130 = vadd.s32 %v8126, 3
        %v8131 = vand.u32 %v8130, 3
        %vm8132 = vcmp.lt.s32.totalorder %v8131, 2
        %vm8133 = vcmp.eq.s32.totalorder %v8131, 0
        %v8134 = vxor.u32 %v8128, 2147483648
        %v8135 = vsel %vm8133, %v8127, %v8134
        %vm8136 = vcmp.eq.s32.totalorder %v8131, 2
        %v8137 = vxor.u32 %v8127, 2147483648
        %v8138 = vsel %vm8136, %v8137, %v8128
        %v8139 = vsel %vm8132, %v8135, %v8138
        %v8140 = vsel %vm8129, nan, %v8139
        %v8141 = vand.u32 2147483647, %v859
        %vm8142 = vcmp.le.f32.partialorder %v8141, 0.7853982
        %vm8143 = vcmp.lt.s32.totalorder %v859, 0
        %v8144 = vand.u32 %v859, 2139095040
        %v8145 = vshrl.u32 %v8144, 23
        %v8146 = vsub.s32 %v8145, 127
        %v8147 = vand.u32 2147483647, %v859
        %v8148 = vand.u32 %v8147, 8388607
        %v8149 = vor.u32 %v8148, 8388608
        %v8150 = vsub.s32 0, %v8149
        %v8151 = vadd.s32 %v8146, 1
        %vm8152 = vcmp.gt.s32.totalorder %v8151, 0
        %v8153 = vsel %vm8152, %v8151, 0
        %v8154 = vshrl.u32 %v8153, 5
        %v8155 = vand.u32 %v8153, 31
        %v8156 = vsub.s32 32, %v8155
        %v8157 = vshrl.u32 683565275, %v8156
        %v8158 = vshll.u32 683565275, %v8155
        %v8159 = vshrl.u32 2475754826, %v8156
        %v8160 = vor.u32 %v8158, %v8159
        %v8161 = vshll.u32 2475754826, %v8155
        %v8162 = vshrl.u32 2131351028, %v8156
        %v8163 = vor.u32 %v8161, %v8162
        %v8164 = vshll.u32 2131351028, %v8155
        %v8165 = vshrl.u32 2102212464, %v8156
        %v8166 = vor.u32 %v8164, %v8165
        %v8167 = vshll.u32 2102212464, %v8155
        %v8168 = vshrl.u32 920167782, %v8156
        %v8169 = vor.u32 %v8167, %v8168
        %v8170 = vshll.u32 920167782, %v8155
        %v8171 = vshrl.u32 1326507024, %v8156
        %v8172 = vor.u32 %v8170, %v8171
        %vm8173 = vcmp.lt.s32.totalorder %v8154, 1
        %vm8174 = vcmp.lt.s32.totalorder %v8154, 2
        %vm8175 = vcmp.lt.s32.totalorder %v8154, 3
        %vm8176 = vcmp.lt.s32.totalorder %v8154, 4
        %v8177 = vsel %vm8173, %v8157, %v8160
        %v8178 = vsel %vm8176, %v8166, 2102212464
        %v8179 = vsel %vm8175, %v8163, %v8178
        %v8180 = vsel %vm8174, %v8177, %v8179
        %v8181 = vsel %vm8173, %v8160, %v8163
        %v8182 = vsel %vm8176, %v8169, 920167782
        %v8183 = vsel %vm8175, %v8166, %v8182
        %v8184 = vsel %vm8174, %v8181, %v8183
        %v8185 = vsel %vm8173, %v8163, %v8166
        %v8186 = vsel %vm8176, %v8172, 1326507024
        %v8187 = vsel %vm8175, %v8169, %v8186
        %v8188 = vsel %vm8174, %v8185, %v8187
        %v8189 = vshll.u32 %v8149, 8
        %v8190 = vmul.u32.u64.compose %v8189, %v8188
        %v8191 = vextract.low.u32 %v8190
        %v8192 = vextract.high.u32 %v8190
        %v8193 = vmul.u32.u64.compose %v8189, %v8184
        %v8194 = vextract.low.u32 %v8193
        %v8195 = vextract.high.u32 %v8193
        %v8196 = vmul.u32 %v8189, %v8180
        %v8197 = vadd.s32 %v8192, %v8194
        %vm8198 = vc.u32 %v8192, %v8194
        %v8199 = vadd.s32 %v8195, 1
        %v8200 = vsel %vm8198, %v8199, %v8195
        %v8201 = vadd.s32 %v8196, %v8200
        %v8202 = vadd.s32 %v8201, 536870912
        %v8203 = vshrl.u32 %v8202, 30
        %v8204 = vshll.u32 %v8203, 30
        %v8205 = vsub.s32 %v8201, %v8204
        %vm8206 = vcmp.lt.s32.totalorder %v8205, 0
        %v8207 = vsub.s32 0, %v8205
        %v8208 = vsel %vm8206, %v8207, %v8205
        %v8209 = vclz %v8208
        %v8210 = vsub.s32 %v8209, 2
        %vm8211 = vcmp.gt.s32.totalorder 0, %v8210
        %v8212 = vsel %vm8211, 0, %v8210
        %v8213 = vsub.s32 32, %v8212
        %v8214 = vshll.u32 %v8205, %v8212
        %v8215 = vshrl.u32 %v8197, %v8213
        %v8216 = vor.u32 %v8214, %v8215
        %v8217 = vsub.s32 4294967266, %v8212
        %v8218 = vadd.s32 %v8217, 127
        %v8219 = vshll.u32 %v8218, 23
        %v8220 = vor.u32 4788187, %v8219
        %v8221 = vand.u32 2147483647, %v8220
        %v8223 = vcvt.s32.f32 %v8216
        %v8224 = vmul.f32 %v8223, %v8221
        %v8225 = vxor.u32 %v8224, 2147483648
        %v8226 = vsel %vm8143, %v8225, %v8224
        %v8227 = vsub.s32 4, %v8203
        %v8228 = vsel %vm8143, %v8227, %v8203
        %v8229 = vsel %vm8142, %v859, %v8226
        %v8230 = vsel %vm8142, 0, %v8228
        %v8231 = vcosq.f32.pop %v8229
        %v8232 = vsinq.f32.pop %v8229
        %vm8233 = vweird.f32 %v859
        %v8234 = vadd.s32 %v8230, 3
        %v8235 = vand.u32 %v8234, 3
        %vm8236 = vcmp.lt.s32.totalorder %v8235, 2
        %vm8237 = vcmp.eq.s32.totalorder %v8235, 0
        %v8238 = vxor.u32 %v8232, 2147483648
        %v8239 = vsel %vm8237, %v8231, %v8238
        %vm8240 = vcmp.eq.s32.totalorder %v8235, 2
        %v8241 = vxor.u32 %v8231, 2147483648
        %v8242 = vsel %vm8240, %v8241, %v8232
        %v8243 = vsel %vm8236, %v8239, %v8242
        %v8244 = vsel %vm8233, nan, %v8243
        %v8245 = vand.u32 2147483647, %v860
        %vm8246 = vcmp.le.f32.partialorder %v8245, 0.7853982
        %vm8247 = vcmp.lt.s32.totalorder %v860, 0
        %v8248 = vand.u32 %v860, 2139095040
        %v8249 = vshrl.u32 %v8248, 23
        %v8250 = vsub.s32 %v8249, 127
        %v8251 = vand.u32 2147483647, %v860
        %v8252 = vand.u32 %v8251, 8388607
        %v8253 = vor.u32 %v8252, 8388608
        %v8254 = vsub.s32 0, %v8253
        %v8255 = vadd.s32 %v8250, 1
        %vm8256 = vcmp.gt.s32.totalorder %v8255, 0
        %v8257 = vsel %vm8256, %v8255, 0
        %v8258 = vshrl.u32 %v8257, 5
        %v8259 = vand.u32 %v8257, 31
        %v8260 = vsub.s32 32, %v8259
        %v8261 = vshrl.u32 683565275, %v8260
        %v8262 = vshll.u32 683565275, %v8259
        %v8263 = vshrl.u32 2475754826, %v8260
        %v8264 = vor.u32 %v8262, %v8263
        %v8265 = vshll.u32 2475754826, %v8259
        %v8266 = vshrl.u32 2131351028, %v8260
        %v8267 = vor.u32 %v8265, %v8266
        %v8268 = vshll.u32 2131351028, %v8259
        %v8269 = vshrl.u32 2102212464, %v8260
        %v8270 = vor.u32 %v8268, %v8269
        %v8271 = vshll.u32 2102212464, %v8259
        %v8272 = vshrl.u32 920167782, %v8260
        %v8273 = vor.u32 %v8271, %v8272
        %v8274 = vshll.u32 920167782, %v8259
        %v8275 = vshrl.u32 1326507024, %v8260
        %v8276 = vor.u32 %v8274, %v8275
        %vm8277 = vcmp.lt.s32.totalorder %v8258, 1
        %vm8278 = vcmp.lt.s32.totalorder %v8258, 2
        %vm8279 = vcmp.lt.s32.totalorder %v8258, 3
        %vm8280 = vcmp.lt.s32.totalorder %v8258, 4
        %v8281 = vsel %vm8277, %v8261, %v8264
        %v8282 = vsel %vm8280, %v8270, 2102212464
        %v8283 = vsel %vm8279, %v8267, %v8282
        %v8284 = vsel %vm8278, %v8281, %v8283
        %v8285 = vsel %vm8277, %v8264, %v8267
        %v8286 = vsel %vm8280, %v8273, 920167782
        %v8287 = vsel %vm8279, %v8270, %v8286
        %v8288 = vsel %vm8278, %v8285, %v8287
        %v8289 = vsel %vm8277, %v8267, %v8270
        %v8290 = vsel %vm8280, %v8276, 1326507024
        %v8291 = vsel %vm8279, %v8273, %v8290
        %v8292 = vsel %vm8278, %v8289, %v8291
        %v8293 = vshll.u32 %v8253, 8
        %v8294 = vmul.u32.u64.compose %v8293, %v8292
        %v8295 = vextract.low.u32 %v8294
        %v8296 = vextract.high.u32 %v8294
        %v8297 = vmul.u32.u64.compose %v8293, %v8288
        %v8298 = vextract.low.u32 %v8297
        %v8299 = vextract.high.u32 %v8297
        %v8300 = vmul.u32 %v8293, %v8284
        %v8301 = vadd.s32 %v8296, %v8298
        %vm8302 = vc.u32 %v8296, %v8298
        %v8303 = vadd.s32 %v8299, 1
        %v8304 = vsel %vm8302, %v8303, %v8299
        %v8305 = vadd.s32 %v8300, %v8304
        %v8306 = vadd.s32 %v8305, 536870912
        %v8307 = vshrl.u32 %v8306, 30
        %v8308 = vshll.u32 %v8307, 30
        %v8309 = vsub.s32 %v8305, %v8308
        %vm8310 = vcmp.lt.s32.totalorder %v8309, 0
        %v8311 = vsub.s32 0, %v8309
        %v8312 = vsel %vm8310, %v8311, %v8309
        %v8313 = vclz %v8312
        %v8314 = vsub.s32 %v8313, 2
        %vm8315 = vcmp.gt.s32.totalorder 0, %v8314
        %v8316 = vsel %vm8315, 0, %v8314
        %v8317 = vsub.s32 32, %v8316
        %v8318 = vshll.u32 %v8309, %v8316
        %v8319 = vshrl.u32 %v8301, %v8317
        %v8320 = vor.u32 %v8318, %v8319
        %v8321 = vsub.s32 4294967266, %v8316
        %v8322 = vadd.s32 %v8321, 127
        %v8323 = vshll.u32 %v8322, 23
        %v8324 = vor.u32 4788187, %v8323
        %v8325 = vand.u32 2147483647, %v8324
        %v8327 = vcvt.s32.f32 %v8320
        %v8328 = vmul.f32 %v8327, %v8325
        %v8329 = vxor.u32 %v8328, 2147483648
        %v8330 = vsel %vm8247, %v8329, %v8328
        %v8331 = vsub.s32 4, %v8307
        %v8332 = vsel %vm8247, %v8331, %v8307
        %v8333 = vsel %vm8246, %v860, %v8330
        %v8334 = vsel %vm8246, 0, %v8332
        %v8335 = vcosq.f32.pop %v8333
        %v8336 = vsinq.f32.pop %v8333
        %vm8337 = vweird.f32 %v860
        %v8338 = vadd.s32 %v8334, 3
        %v8339 = vand.u32 %v8338, 3
        %vm8340 = vcmp.lt.s32.totalorder %v8339, 2
        %vm8341 = vcmp.eq.s32.totalorder %v8339, 0
        %v8342 = vxor.u32 %v8336, 2147483648
        %v8343 = vsel %vm8341, %v8335, %v8342
        %vm8344 = vcmp.eq.s32.totalorder %v8339, 2
        %v8345 = vxor.u32 %v8335, 2147483648
        %v8346 = vsel %vm8344, %v8345, %v8336
        %v8347 = vsel %vm8340, %v8343, %v8346
        %v8348 = vsel %vm8337, nan, %v8347
        %8350 = vset.pattern.permute.xlu0 0
        %8351 = vperm.xlu0 %8350, %v436
        %v8352 = vpop.permute.xlu0 %8351
        %8355 = vset.pattern.permute.xlu0 0
        %8356 = vperm.xlu0 %8355, %v437
        %v8357 = vpop.permute.xlu0 %8356
        %v8359 = vmul.f32 %v8352, %v964
        %v8360 = vmul.f32 %v8352, %v1068
        %v8361 = vmul.f32 %v8352, %v1172
        %v8362 = vmul.f32 %v8352, %v1276
        %v8363 = vmul.f32 %v8352, %v1380
        %v8364 = vmul.f32 %v8352, %v1484
        %v8365 = vmul.f32 %v8352, %v1588
        %v8366 = vmul.f32 %v8352, %v1692
        %v8367 = vmul.f32 %v8352, %v1796
        %v8368 = vmul.f32 %v8352, %v1900
        %v8369 = vmul.f32 %v8352, %v2004
        %v8370 = vmul.f32 %v8352, %v2108
        %v8371 = vmul.f32 %v8352, %v2212
        %v8372 = vmul.f32 %v8352, %v2316
        %v8373 = vmul.f32 %v8352, %v2420
        %v8374 = vmul.f32 %v8352, %v2524
        %v8375 = vmul.f32 %v8352, %v2628
        %v8376 = vmul.f32 %v8352, %v2732
        %v8377 = vmul.f32 %v8352, %v2836
        %v8378 = vmul.f32 %v8352, %v2940
        %v8379 = vmul.f32 %v8352, %v3044
        %v8380 = vmul.f32 %v8352, %v3148
        %v8381 = vmul.f32 %v8352, %v3252
        %v8382 = vmul.f32 %v8352, %v3356
        %v8383 = vmul.f32 %v8352, %v3460
        %v8384 = vmul.f32 %v8352, %v3564
        %v8385 = vmul.f32 %v8352, %v3668
        %v8386 = vmul.f32 %v8352, %v3772
        %v8387 = vmul.f32 %v8352, %v3876
        %v8388 = vmul.f32 %v8352, %v3980
        %v8389 = vmul.f32 %v8352, %v4084
        %v8390 = vmul.f32 %v8352, %v4188
        %v8391 = vmul.f32 %v8352, %v4292
        %v8392 = vmul.f32 %v8352, %v4396
        %v8393 = vmul.f32 %v8352, %v4500
        %v8394 = vmul.f32 %v8352, %v4604
        %v8395 = vmul.f32 %v8357, %v4708
        %v8396 = vmul.f32 %v8357, %v4812
        %v8397 = vmul.f32 %v8357, %v4916
        %v8398 = vmul.f32 %v8357, %v5020
        %v8399 = vmul.f32 %v8357, %v5124
        %v8400 = vmul.f32 %v8357, %v5228
        %v8401 = vmul.f32 %v8357, %v5332
        %v8402 = vmul.f32 %v8357, %v5436
        %v8403 = vmul.f32 %v8357, %v5540
        %v8404 = vmul.f32 %v8357, %v5644
        %v8405 = vmul.f32 %v8357, %v5748
        %v8406 = vmul.f32 %v8357, %v5852
        %v8407 = vmul.f32 %v8357, %v5956
        %v8408 = vmul.f32 %v8357, %v6060
        %v8409 = vmul.f32 %v8357, %v6164
        %v8410 = vmul.f32 %v8357, %v6268
        %v8411 = vmul.f32 %v8357, %v6372
        %v8412 = vmul.f32 %v8357, %v6476
        %v8413 = vmul.f32 %v8357, %v6580
        %v8414 = vmul.f32 %v8357, %v6684
        %v8415 = vmul.f32 %v8357, %v6788
        %v8416 = vmul.f32 %v8357, %v6892
        %v8417 = vmul.f32 %v8357, %v6996
        %v8418 = vmul.f32 %v8357, %v7100
        %v8419 = vmul.f32 %v8357, %v7204
        %v8420 = vmul.f32 %v8357, %v7308
        %v8421 = vmul.f32 %v8357, %v7412
        %v8422 = vmul.f32 %v8357, %v7516
        %v8423 = vmul.f32 %v8357, %v7620
        %v8424 = vmul.f32 %v8357, %v7724
        %v8425 = vmul.f32 %v8357, %v7828
        %v8426 = vmul.f32 %v8357, %v7932
        %v8427 = vmul.f32 %v8357, %v8036
        %v8428 = vmul.f32 %v8357, %v8140
        %v8429 = vmul.f32 %v8357, %v8244
        %v8430 = vmul.f32 %v8357, %v8348
        %vm8431 = vcmask 1043456
        %v8432 = vsel %vm8431, %v8395, 0.0
        %v8433 = vadd.f32 %v8359, %v8432
        %v8434 = vrot.slane %v8433, 4
        %v8435 = vadd.f32 %v8433, %v8434
        %v8436 = vrot.slane %v8435, 2
        %v8437 = vadd.f32 %v8435, %v8436
        %v8438 = vrot.slane %v8437, 1
        %v8439 = vadd.f32 %v8437, %v8438
        %v8440 = vsel %vm8431, %v8396, 0.0
        %v8441 = vadd.f32 %v8360, %v8440
        %v8442 = vrot.slane %v8441, 4
        %v8443 = vadd.f32 %v8441, %v8442
        %v8444 = vrot.slane %v8443, 2
        %v8445 = vadd.f32 %v8443, %v8444
        %v8446 = vrot.slane %v8445, 1
        %v8447 = vadd.f32 %v8445, %v8446
        %v8448 = vsel %vm8431, %v8397, 0.0
        %v8449 = vadd.f32 %v8361, %v8448
        %v8450 = vrot.slane %v8449, 4
        %v8451 = vadd.f32 %v8449, %v8450
        %v8452 = vrot.slane %v8451, 2
        %v8453 = vadd.f32 %v8451, %v8452
        %v8454 = vrot.slane %v8453, 1
        %v8455 = vadd.f32 %v8453, %v8454
        %v8456 = vsel %vm8431, %v8398, 0.0
        %v8457 = vadd.f32 %v8362, %v8456
        %v8458 = vrot.slane %v8457, 4
        %v8459 = vadd.f32 %v8457, %v8458
        %v8460 = vrot.slane %v8459, 2
        %v8461 = vadd.f32 %v8459, %v8460
        %v8462 = vrot.slane %v8461, 1
        %v8463 = vadd.f32 %v8461, %v8462
        %v8464 = vsel %vm8431, %v8399, 0.0
        %v8465 = vadd.f32 %v8363, %v8464
        %v8466 = vrot.slane %v8465, 4
        %v8467 = vadd.f32 %v8465, %v8466
        %v8468 = vrot.slane %v8467, 2
        %v8469 = vadd.f32 %v8467, %v8468
        %v8470 = vrot.slane %v8469, 1
        %v8471 = vadd.f32 %v8469, %v8470
        %v8472 = vsel %vm8431, %v8400, 0.0
        %v8473 = vadd.f32 %v8364, %v8472
        %v8474 = vrot.slane %v8473, 4
        %v8475 = vadd.f32 %v8473, %v8474
        %v8476 = vrot.slane %v8475, 2
        %v8477 = vadd.f32 %v8475, %v8476
        %v8478 = vrot.slane %v8477, 1
        %v8479 = vadd.f32 %v8477, %v8478
        %v8480 = vsel %vm8431, %v8401, 0.0
        %v8481 = vadd.f32 %v8365, %v8480
        %v8482 = vrot.slane %v8481, 4
        %v8483 = vadd.f32 %v8481, %v8482
        %v8484 = vrot.slane %v8483, 2
        %v8485 = vadd.f32 %v8483, %v8484
        %v8486 = vrot.slane %v8485, 1
        %v8487 = vadd.f32 %v8485, %v8486
        %v8488 = vsel %vm8431, %v8402, 0.0
        %v8489 = vadd.f32 %v8366, %v8488
        %v8490 = vrot.slane %v8489, 4
        %v8491 = vadd.f32 %v8489, %v8490
        %v8492 = vrot.slane %v8491, 2
        %v8493 = vadd.f32 %v8491, %v8492
        %v8494 = vrot.slane %v8493, 1
        %v8495 = vadd.f32 %v8493, %v8494
        %v8496 = vsel %vm8431, %v8403, 0.0
        %v8497 = vadd.f32 %v8367, %v8496
        %v8498 = vrot.slane %v8497, 4
        %v8499 = vadd.f32 %v8497, %v8498
        %v8500 = vrot.slane %v8499, 2
        %v8501 = vadd.f32 %v8499, %v8500
        %v8502 = vrot.slane %v8501, 1
        %v8503 = vadd.f32 %v8501, %v8502
        %v8504 = vsel %vm8431, %v8404, 0.0
        %v8505 = vadd.f32 %v8368, %v8504
        %v8506 = vrot.slane %v8505, 4
        %v8507 = vadd.f32 %v8505, %v8506
        %v8508 = vrot.slane %v8507, 2
        %v8509 = vadd.f32 %v8507, %v8508
        %v8510 = vrot.slane %v8509, 1
        %v8511 = vadd.f32 %v8509, %v8510
        %v8512 = vsel %vm8431, %v8405, 0.0
        %v8513 = vadd.f32 %v8369, %v8512
        %v8514 = vrot.slane %v8513, 4
        %v8515 = vadd.f32 %v8513, %v8514
        %v8516 = vrot.slane %v8515, 2
        %v8517 = vadd.f32 %v8515, %v8516
        %v8518 = vrot.slane %v8517, 1
        %v8519 = vadd.f32 %v8517, %v8518
        %v8520 = vsel %vm8431, %v8406, 0.0
        %v8521 = vadd.f32 %v8370, %v8520
        %v8522 = vrot.slane %v8521, 4
        %v8523 = vadd.f32 %v8521, %v8522
        %v8524 = vrot.slane %v8523, 2
        %v8525 = vadd.f32 %v8523, %v8524
        %v8526 = vrot.slane %v8525, 1
        %v8527 = vadd.f32 %v8525, %v8526
        %v8528 = vsel %vm8431, %v8407, 0.0
        %v8529 = vadd.f32 %v8371, %v8528
        %v8530 = vrot.slane %v8529, 4
        %v8531 = vadd.f32 %v8529, %v8530
        %v8532 = vrot.slane %v8531, 2
        %v8533 = vadd.f32 %v8531, %v8532
        %v8534 = vrot.slane %v8533, 1
        %v8535 = vadd.f32 %v8533, %v8534
        %v8536 = vsel %vm8431, %v8408, 0.0
        %v8537 = vadd.f32 %v8372, %v8536
        %v8538 = vrot.slane %v8537, 4
        %v8539 = vadd.f32 %v8537, %v8538
        %v8540 = vrot.slane %v8539, 2
        %v8541 = vadd.f32 %v8539, %v8540
        %v8542 = vrot.slane %v8541, 1
        %v8543 = vadd.f32 %v8541, %v8542
        %v8544 = vsel %vm8431, %v8409, 0.0
        %v8545 = vadd.f32 %v8373, %v8544
        %v8546 = vrot.slane %v8545, 4
        %v8547 = vadd.f32 %v8545, %v8546
        %v8548 = vrot.slane %v8547, 2
        %v8549 = vadd.f32 %v8547, %v8548
        %v8550 = vrot.slane %v8549, 1
        %v8551 = vadd.f32 %v8549, %v8550
        %v8552 = vsel %vm8431, %v8410, 0.0
        %v8553 = vadd.f32 %v8374, %v8552
        %v8554 = vrot.slane %v8553, 4
        %v8555 = vadd.f32 %v8553, %v8554
        %v8556 = vrot.slane %v8555, 2
        %v8557 = vadd.f32 %v8555, %v8556
        %v8558 = vrot.slane %v8557, 1
        %v8559 = vadd.f32 %v8557, %v8558
        %v8560 = vsel %vm8431, %v8411, 0.0
        %v8561 = vadd.f32 %v8375, %v8560
        %v8562 = vrot.slane %v8561, 4
        %v8563 = vadd.f32 %v8561, %v8562
        %v8564 = vrot.slane %v8563, 2
        %v8565 = vadd.f32 %v8563, %v8564
        %v8566 = vrot.slane %v8565, 1
        %v8567 = vadd.f32 %v8565, %v8566
        %v8568 = vsel %vm8431, %v8412, 0.0
        %v8569 = vadd.f32 %v8376, %v8568
        %v8570 = vrot.slane %v8569, 4
        %v8571 = vadd.f32 %v8569, %v8570
        %v8572 = vrot.slane %v8571, 2
        %v8573 = vadd.f32 %v8571, %v8572
        %v8574 = vrot.slane %v8573, 1
        %v8575 = vadd.f32 %v8573, %v8574
        %v8576 = vsel %vm8431, %v8413, 0.0
        %v8577 = vadd.f32 %v8377, %v8576
        %v8578 = vrot.slane %v8577, 4
        %v8579 = vadd.f32 %v8577, %v8578
        %v8580 = vrot.slane %v8579, 2
        %v8581 = vadd.f32 %v8579, %v8580
        %v8582 = vrot.slane %v8581, 1
        %v8583 = vadd.f32 %v8581, %v8582
        %v8584 = vsel %vm8431, %v8414, 0.0
        %v8585 = vadd.f32 %v8378, %v8584
        %v8586 = vrot.slane %v8585, 4
        %v8587 = vadd.f32 %v8585, %v8586
        %v8588 = vrot.slane %v8587, 2
        %v8589 = vadd.f32 %v8587, %v8588
        %v8590 = vrot.slane %v8589, 1
        %v8591 = vadd.f32 %v8589, %v8590
        %v8592 = vsel %vm8431, %v8415, 0.0
        %v8593 = vadd.f32 %v8379, %v8592
        %v8594 = vrot.slane %v8593, 4
        %v8595 = vadd.f32 %v8593, %v8594
        %v8596 = vrot.slane %v8595, 2
        %v8597 = vadd.f32 %v8595, %v8596
        %v8598 = vrot.slane %v8597, 1
        %v8599 = vadd.f32 %v8597, %v8598
        %v8600 = vsel %vm8431, %v8416, 0.0
        %v8601 = vadd.f32 %v8380, %v8600
        %v8602 = vrot.slane %v8601, 4
        %v8603 = vadd.f32 %v8601, %v8602
        %v8604 = vrot.slane %v8603, 2
        %v8605 = vadd.f32 %v8603, %v8604
        %v8606 = vrot.slane %v8605, 1
        %v8607 = vadd.f32 %v8605, %v8606
        %v8608 = vsel %vm8431, %v8417, 0.0
        %v8609 = vadd.f32 %v8381, %v8608
        %v8610 = vrot.slane %v8609, 4
        %v8611 = vadd.f32 %v8609, %v8610
        %v8612 = vrot.slane %v8611, 2
        %v8613 = vadd.f32 %v8611, %v8612
        %v8614 = vrot.slane %v8613, 1
        %v8615 = vadd.f32 %v8613, %v8614
        %v8616 = vsel %vm8431, %v8418, 0.0
        %v8617 = vadd.f32 %v8382, %v8616
        %v8618 = vrot.slane %v8617, 4
        %v8619 = vadd.f32 %v8617, %v8618
        %v8620 = vrot.slane %v8619, 2
        %v8621 = vadd.f32 %v8619, %v8620
        %v8622 = vrot.slane %v8621, 1
        %v8623 = vadd.f32 %v8621, %v8622
        %v8624 = vsel %vm8431, %v8419, 0.0
        %v8625 = vadd.f32 %v8383, %v8624
        %v8626 = vrot.slane %v8625, 4
        %v8627 = vadd.f32 %v8625, %v8626
        %v8628 = vrot.slane %v8627, 2
        %v8629 = vadd.f32 %v8627, %v8628
        %v8630 = vrot.slane %v8629, 1
        %v8631 = vadd.f32 %v8629, %v8630
        %v8632 = vsel %vm8431, %v8420, 0.0
        %v8633 = vadd.f32 %v8384, %v8632
        %v8634 = vrot.slane %v8633, 4
        %v8635 = vadd.f32 %v8633, %v8634
        %v8636 = vrot.slane %v8635, 2
        %v8637 = vadd.f32 %v8635, %v8636
        %v8638 = vrot.slane %v8637, 1
        %v8639 = vadd.f32 %v8637, %v8638
        %v8640 = vsel %vm8431, %v8421, 0.0
        %v8641 = vadd.f32 %v8385, %v8640
        %v8642 = vrot.slane %v8641, 4
        %v8643 = vadd.f32 %v8641, %v8642
        %v8644 = vrot.slane %v8643, 2
        %v8645 = vadd.f32 %v8643, %v8644
        %v8646 = vrot.slane %v8645, 1
        %v8647 = vadd.f32 %v8645, %v8646
        %v8648 = vsel %vm8431, %v8422, 0.0
        %v8649 = vadd.f32 %v8386, %v8648
        %v8650 = vrot.slane %v8649, 4
        %v8651 = vadd.f32 %v8649, %v8650
        %v8652 = vrot.slane %v8651, 2
        %v8653 = vadd.f32 %v8651, %v8652
        %v8654 = vrot.slane %v8653, 1
        %v8655 = vadd.f32 %v8653, %v8654
        %v8656 = vsel %vm8431, %v8423, 0.0
        %v8657 = vadd.f32 %v8387, %v8656
        %v8658 = vrot.slane %v8657, 4
        %v8659 = vadd.f32 %v8657, %v8658
        %v8660 = vrot.slane %v8659, 2
        %v8661 = vadd.f32 %v8659, %v8660
        %v8662 = vrot.slane %v8661, 1
        %v8663 = vadd.f32 %v8661, %v8662
        %v8664 = vsel %vm8431, %v8424, 0.0
        %v8665 = vadd.f32 %v8388, %v8664
        %v8666 = vrot.slane %v8665, 4
        %v8667 = vadd.f32 %v8665, %v8666
        %v8668 = vrot.slane %v8667, 2
        %v8669 = vadd.f32 %v8667, %v8668
        %v8670 = vrot.slane %v8669, 1
        %v8671 = vadd.f32 %v8669, %v8670
        %v8672 = vsel %vm8431, %v8425, 0.0
        %v8673 = vadd.f32 %v8389, %v8672
        %v8674 = vrot.slane %v8673, 4
        %v8675 = vadd.f32 %v8673, %v8674
        %v8676 = vrot.slane %v8675, 2
        %v8677 = vadd.f32 %v8675, %v8676
        %v8678 = vrot.slane %v8677, 1
        %v8679 = vadd.f32 %v8677, %v8678
        %v8680 = vsel %vm8431, %v8426, 0.0
        %v8681 = vadd.f32 %v8390, %v8680
        %v8682 = vrot.slane %v8681, 4
        %v8683 = vadd.f32 %v8681, %v8682
        %v8684 = vrot.slane %v8683, 2
        %v8685 = vadd.f32 %v8683, %v8684
        %v8686 = vrot.slane %v8685, 1
        %v8687 = vadd.f32 %v8685, %v8686
        %v8688 = vsel %vm8431, %v8427, 0.0
        %v8689 = vadd.f32 %v8391, %v8688
        %v8690 = vrot.slane %v8689, 4
        %v8691 = vadd.f32 %v8689, %v8690
        %v8692 = vrot.slane %v8691, 2
        %v8693 = vadd.f32 %v8691, %v8692
        %v8694 = vrot.slane %v8693, 1
        %v8695 = vadd.f32 %v8693, %v8694
        %v8696 = vsel %vm8431, %v8428, 0.0
        %v8697 = vadd.f32 %v8392, %v8696
        %v8698 = vrot.slane %v8697, 4
        %v8699 = vadd.f32 %v8697, %v8698
        %v8700 = vrot.slane %v8699, 2
        %v8701 = vadd.f32 %v8699, %v8700
        %v8702 = vrot.slane %v8701, 1
        %v8703 = vadd.f32 %v8701, %v8702
        %v8704 = vsel %vm8431, %v8429, 0.0
        %v8705 = vadd.f32 %v8393, %v8704
        %v8706 = vrot.slane %v8705, 4
        %v8707 = vadd.f32 %v8705, %v8706
        %v8708 = vrot.slane %v8707, 2
        %v8709 = vadd.f32 %v8707, %v8708
        %v8710 = vrot.slane %v8709, 1
        %v8711 = vadd.f32 %v8709, %v8710
        %v8712 = vsel %vm8431, %v8430, 0.0
        %v8713 = vadd.f32 %v8394, %v8712
        %v8714 = vrot.slane %v8713, 4
        %v8715 = vadd.f32 %v8713, %v8714
        %v8716 = vrot.slane %v8715, 2
        %v8717 = vadd.f32 %v8715, %v8716
        %v8718 = vrot.slane %v8717, 1
        %v8719 = vadd.f32 %v8717, %v8718
        %v8720 = vmul.f32 %v424, 0.003
        %v8721 = vmul.f32 %v425, 0.003
        %v8722 = vmul.f32 %v426, 0.003
        %v8723 = vmul.f32 %v427, 0.003
        %v8724 = vmul.f32 %v428, 0.003
        %v8725 = vsub.f32 1.0, %v424
        %v8726 = vsub.f32 1.0, %v425
        %v8727 = vsub.f32 1.0, %v426
        %v8728 = vsub.f32 1.0, %v427
        %v8729 = vsub.f32 1.0, %v428
        %v8730 = vmul.f32 %v8725, 0.033333335
        %v8731 = vmul.f32 %v8726, 0.033333335
        %v8732 = vmul.f32 %v8727, 0.033333335
        %v8733 = vmul.f32 %v8728, 0.033333335
        %v8734 = vmul.f32 %v8729, 0.033333335
        %v8735 = vadd.f32 %v8720, %v8730
        %v8736 = vadd.f32 %v8721, %v8731
        %v8737 = vadd.f32 %v8722, %v8732
        %v8738 = vadd.f32 %v8723, %v8733
        %v8739 = vadd.f32 %v8724, %v8734
        %s8740 = sld [smem:[#allocation2]]
        %v8777 = vcombine.low %v8439, %v8447
        %v8778 = vcombine.low %v8455, %v8463
        %v8779 = vcombine.low %v8471, %v8479
        %v8780 = vcombine.low %v8487, %v8495
        %v8782 = vunpack.c.l.s4 1966171168
        %v8783 = vunpack.c.0.s8 %v8782
        %v8784 = vlaneseq
        %v8785 = vshrl.u32 %v8784, 7
        %v8786 = vsub.s32 %v8783, %v8785
        %v8787 = vrot.slane %v8777, %v8786
        %v8789 = vunpack.c.l.s4 1966171168
        %v8790 = vunpack.c.0.s8 %v8789
        %v8791 = vlaneseq
        %v8792 = vshrl.u32 %v8791, 7
        %v8793 = vsub.s32 %v8790, %v8792
        %v8794 = vrot.slane %v8778, %v8793
        %v8796 = vunpack.c.l.s4 1966171168
        %v8797 = vunpack.c.0.s8 %v8796
        %v8798 = vlaneseq
        %v8799 = vshrl.u32 %v8798, 7
        %v8800 = vsub.s32 %v8797, %v8799
        %v8801 = vrot.slane %v8779, %v8800
        %v8803 = vunpack.c.l.s4 1966171168
        %v8804 = vunpack.c.0.s8 %v8803
        %v8805 = vlaneseq
        %v8806 = vshrl.u32 %v8805, 7
        %v8807 = vsub.s32 %v8804, %v8806
        %v8808 = vrot.slane %v8780, %v8807
        %v8809 = vcombine.low %v8787, %v8794
        %v8810 = vcombine.low %v8801, %v8808
        %v8812 = vunpack.c.l.s4 1966171168
        %v8813 = vunpack.c.0.s8 %v8812
        %v8814 = vlaneseq
        %v8815 = vshrl.u32 %v8814, 7
        %v8816 = vsub.s32 %v8813, %v8815
        %v8817 = vrot.slane %v8809, %v8816
        %v8819 = vunpack.c.l.s4 1966171168
        %v8820 = vunpack.c.0.s8 %v8819
        %v8821 = vlaneseq
        %v8822 = vshrl.u32 %v8821, 7
        %v8823 = vsub.s32 %v8820, %v8822
        %v8824 = vrot.slane %v8810, %v8823
        %v8825 = vcombine.low %v8817, %v8824
        %v8826 = vcombine.low %v8503, %v8511
        %v8827 = vcombine.low %v8519, %v8527
        %v8828 = vcombine.low %v8535, %v8543
        %v8829 = vcombine.low %v8551, %v8559
        %v8831 = vunpack.c.l.s4 1966171168
        %v8832 = vunpack.c.0.s8 %v8831
        %v8833 = vlaneseq
        %v8834 = vshrl.u32 %v8833, 7
        %v8835 = vsub.s32 %v8832, %v8834
        %v8836 = vrot.slane %v8826, %v8835
        %v8838 = vunpack.c.l.s4 1966171168
        %v8839 = vunpack.c.0.s8 %v8838
        %v8840 = vlaneseq
        %v8841 = vshrl.u32 %v8840, 7
        %v8842 = vsub.s32 %v8839, %v8841
        %v8843 = vrot.slane %v8827, %v8842
        %v8845 = vunpack.c.l.s4 1966171168
        %v8846 = vunpack.c.0.s8 %v8845
        %v8847 = vlaneseq
        %v8848 = vshrl.u32 %v8847, 7
        %v8849 = vsub.s32 %v8846, %v8848
        %v8850 = vrot.slane %v8828, %v8849
        %v8852 = vunpack.c.l.s4 1966171168
        %v8853 = vunpack.c.0.s8 %v8852
        %v8854 = vlaneseq
        %v8855 = vshrl.u32 %v8854, 7
        %v8856 = vsub.s32 %v8853, %v8855
        %v8857 = vrot.slane %v8829, %v8856
        %v8858 = vcombine.low %v8836, %v8843
        %v8859 = vcombine.low %v8850, %v8857
        %v8861 = vunpack.c.l.s4 1966171168
        %v8862 = vunpack.c.0.s8 %v8861
        %v8863 = vlaneseq
        %v8864 = vshrl.u32 %v8863, 7
        %v8865 = vsub.s32 %v8862, %v8864
        %v8866 = vrot.slane %v8858, %v8865
        %v8868 = vunpack.c.l.s4 1966171168
        %v8869 = vunpack.c.0.s8 %v8868
        %v8870 = vlaneseq
        %v8871 = vshrl.u32 %v8870, 7
        %v8872 = vsub.s32 %v8869, %v8871
        %v8873 = vrot.slane %v8859, %v8872
        %v8874 = vcombine.low %v8866, %v8873
        %v8875 = vcombine.low %v8567, %v8575
        %v8876 = vcombine.low %v8583, %v8591
        %v8877 = vcombine.low %v8599, %v8607
        %v8878 = vcombine.low %v8615, %v8623
        %v8880 = vunpack.c.l.s4 1966171168
        %v8881 = vunpack.c.0.s8 %v8880
        %v8882 = vlaneseq
        %v8883 = vshrl.u32 %v8882, 7
        %v8884 = vsub.s32 %v8881, %v8883
        %v8885 = vrot.slane %v8875, %v8884
        %v8887 = vunpack.c.l.s4 1966171168
        %v8888 = vunpack.c.0.s8 %v8887
        %v8889 = vlaneseq
        %v8890 = vshrl.u32 %v8889, 7
        %v8891 = vsub.s32 %v8888, %v8890
        %v8892 = vrot.slane %v8876, %v8891
        %v8894 = vunpack.c.l.s4 1966171168
        %v8895 = vunpack.c.0.s8 %v8894
        %v8896 = vlaneseq
        %v8897 = vshrl.u32 %v8896, 7
        %v8898 = vsub.s32 %v8895, %v8897
        %v8899 = vrot.slane %v8877, %v8898
        %v8901 = vunpack.c.l.s4 1966171168
        %v8902 = vunpack.c.0.s8 %v8901
        %v8903 = vlaneseq
        %v8904 = vshrl.u32 %v8903, 7
        %v8905 = vsub.s32 %v8902, %v8904
        %v8906 = vrot.slane %v8878, %v8905
        %v8907 = vcombine.low %v8885, %v8892
        %v8908 = vcombine.low %v8899, %v8906
        %v8910 = vunpack.c.l.s4 1966171168
        %v8911 = vunpack.c.0.s8 %v8910
        %v8912 = vlaneseq
        %v8913 = vshrl.u32 %v8912, 7
        %v8914 = vsub.s32 %v8911, %v8913
        %v8915 = vrot.slane %v8907, %v8914
        %v8917 = vunpack.c.l.s4 1966171168
        %v8918 = vunpack.c.0.s8 %v8917
        %v8919 = vlaneseq
        %v8920 = vshrl.u32 %v8919, 7
        %v8921 = vsub.s32 %v8918, %v8920
        %v8922 = vrot.slane %v8908, %v8921
        %v8923 = vcombine.low %v8915, %v8922
        %v8924 = vcombine.low %v8631, %v8639
        %v8925 = vcombine.low %v8647, %v8655
        %v8926 = vcombine.low %v8663, %v8671
        %v8927 = vcombine.low %v8679, %v8687
        %v8929 = vunpack.c.l.s4 1966171168
        %v8930 = vunpack.c.0.s8 %v8929
        %v8931 = vlaneseq
        %v8932 = vshrl.u32 %v8931, 7
        %v8933 = vsub.s32 %v8930, %v8932
        %v8934 = vrot.slane %v8924, %v8933
        %v8936 = vunpack.c.l.s4 1966171168
        %v8937 = vunpack.c.0.s8 %v8936
        %v8938 = vlaneseq
        %v8939 = vshrl.u32 %v8938, 7
        %v8940 = vsub.s32 %v8937, %v8939
        %v8941 = vrot.slane %v8925, %v8940
        %v8943 = vunpack.c.l.s4 1966171168
        %v8944 = vunpack.c.0.s8 %v8943
        %v8945 = vlaneseq
        %v8946 = vshrl.u32 %v8945, 7
        %v8947 = vsub.s32 %v8944, %v8946
        %v8948 = vrot.slane %v8926, %v8947
        %v8950 = vunpack.c.l.s4 1966171168
        %v8951 = vunpack.c.0.s8 %v8950
        %v8952 = vlaneseq
        %v8953 = vshrl.u32 %v8952, 7
        %v8954 = vsub.s32 %v8951, %v8953
        %v8955 = vrot.slane %v8927, %v8954
        %v8956 = vcombine.low %v8934, %v8941
        %v8957 = vcombine.low %v8948, %v8955
        %v8959 = vunpack.c.l.s4 1966171168
        %v8960 = vunpack.c.0.s8 %v8959
        %v8961 = vlaneseq
        %v8962 = vshrl.u32 %v8961, 7
        %v8963 = vsub.s32 %v8960, %v8962
        %v8964 = vrot.slane %v8956, %v8963
        %v8966 = vunpack.c.l.s4 1966171168
        %v8967 = vunpack.c.0.s8 %v8966
        %v8968 = vlaneseq
        %v8969 = vshrl.u32 %v8968, 7
        %v8970 = vsub.s32 %v8967, %v8969
        %v8971 = vrot.slane %v8957, %v8970
        %v8972 = vcombine.low %v8964, %v8971
        %v8973 = vcombine.low %v8695, %v8703
        %v8974 = vcombine.low %v8711, %v8719
        %v8976 = vunpack.c.l.s4 1966171168
        %v8977 = vunpack.c.0.s8 %v8976
        %v8978 = vlaneseq
        %v8979 = vshrl.u32 %v8978, 7
        %v8980 = vsub.s32 %v8977, %v8979
        %v8981 = vrot.slane %v8973, %v8980
        %v8983 = vunpack.c.l.s4 1966171168
        %v8984 = vunpack.c.0.s8 %v8983
        %v8985 = vlaneseq
        %v8986 = vshrl.u32 %v8985, 7
        %v8987 = vsub.s32 %v8984, %v8986
        %v8988 = vrot.slane %v8974, %v8987
        %v8989 = vcombine.low %v8981, %v8988
        %v8991 = vunpack.c.l.s4 1966171168
        %v8992 = vunpack.c.0.s8 %v8991
        %v8993 = vlaneseq
        %v8994 = vshrl.u32 %v8993, 7
        %v8995 = vsub.s32 %v8992, %v8994
        %v8996 = vrot.slane %v8989, %v8995
        %v9002 = vmul.f32 %v424, %v8825
        %v9003 = vmul.f32 %v425, %v8874
        %v9004 = vmul.f32 %v426, %v8923
        %v9005 = vmul.f32 %v427, %v8972
        %v9006 = vmul.f32 %v428, %v8996
        %v9007 = vstv %s8740
        %v9008 = vadd.f32 %v9007, %v9002
        %v9009 = vadd.f32 %v9007, %v9003
        %v9010 = vadd.f32 %v9007, %v9004
        %v9011 = vadd.f32 %v9007, %v9005
        %v9012 = vadd.f32 %v9007, %v9006
        %v9013 = vmul.f32 %v8735, %v429
        %v9014 = vmul.f32 %v8736, %v430
        %v9015 = vmul.f32 %v8737, %v431
        %v9016 = vmul.f32 %v8738, %v432
        %v9017 = vmul.f32 %v8739, %v433
        %v9018 = vadd.f32 %v9008, %v9013
        %v9019 = vadd.f32 %v9009, %v9014
        %v9020 = vadd.f32 %v9010, %v9015
        %v9021 = vadd.f32 %v9011, %v9016
        %v9022 = vadd.f32 %v9012, %v9017
        %v9023 = vtanh.pop %v9018
        %v9024 = vtanh.pop %v9019
        %v9025 = vtanh.pop %v9020
        %v9026 = vtanh.pop %v9021
        %v9027 = vtanh.pop %v9022
        %9028 = vst [vmem:[%s409] sm:$0xff] %v9023
        %9029 = vst [vmem:[%s409 + $0x8] sm:$0xff] %v9024
        %9030 = vst [vmem:[%s409 + $0x10] sm:$0xff] %v9025
        %9031 = vst [vmem:[%s409 + $0x18] sm:$0xff] %v9026
        %v9032 = vlaneseq
        %vm9033 = vcmp.ge.s32.totalorder %v9032, 0
        %vm9034 = vcmp.lt.s32.totalorder %v9032, 512
        %vm9035 = vmand %vm9033, %vm9034
        %9036 = vst.msk [vmem:[%s409 + $0x20] sm:$0xf] %vm9035, %v9027
        %s9037 = sand.u32 %s223, 1
        %s9038 = scalar_lea.sflag [#allocation5], %s9037
        %s9039 = sand.u32 %s223, 1
        %s9040 = smul.addr %s9039, 36
        %s9041 = scalar_lea.vmem [#allocation9], %s9040
        // Predicated region
        $region61: #{tpu_custom_call.1} parent=47 // pred_check
          %p9042 = pneg %p233
        $region62: #{tpu_custom_call.1} parent=47 // pred_check_branch
          %9044 = sbr.rel (%p9042) target = $region64
        $region63: #{tpu_custom_call.1} parent=47 // pred_region
          %s9045 = smul.u32 36, %s33
          %s9047 = ssub.s32 576, 576
          %9048 = vsyncadd %s9038, %s9047
          %s9049 = smul.addr %s32, 72
          %s9050 = sadd.s32 %s9045, %s9049
          %s9051 = smul.addr %s9050, 16
          %s9052 = scalar_lea.hbm %s7, %s9051
          %s9054 = sshll.u32 %s9041, 4
          %s9055 = int_to_ptr.vmem [resolvable:$true] %s9054
          %9057 = dma.vmem_to_hbm [thread:$0]  %s9055, 576, %s9052, %s9038
        $region64: #{tpu_custom_call.1} parent=47 // pred_fallthru
          _
      $region48: #{tpu_custom_call.1} parent=5 // pred_fallthru
        _
      %p9058 = scmp.le.s32.totalorder 2, %s23
      // Predicated region
      $region65: #{tpu_custom_call.1} parent=5 // pred_check
        %p9059 = pneg %p9058
      $region66: #{tpu_custom_call.1} parent=5 // pred_check_branch
        %9061 = sbr.rel (%p9059) target = $region68
      $region67: #{tpu_custom_call.1} parent=5 // pred_region
        %s9062 = ssub.s32 %s23, 2
        // Predicated region
        $region69: #{tpu_custom_call.1} parent=67 // pred_check
          %p9063 = pneg %p239
        $region70: #{tpu_custom_call.1} parent=67 // pred_check_branch
          %9065 = sbr.rel (%p9063) target = $region72
        $region71: #{tpu_custom_call.1} parent=67 // pred_region
          %s9066 = sand.u32 %s224, 1
          %s9067 = scalar_lea.sflag [#allocation5], %s9066
          %s9068 = sand.u32 %s224, 1
          %s9069 = smul.addr %s9068, 36
          %s9070 = scalar_lea.vmem [#allocation9], %s9069
          %9071 = dma.done %s9067, 576
        $region72: #{tpu_custom_call.1} parent=67 // pred_fallthru
          _
      $region68: #{tpu_custom_call.1} parent=5 // pred_fallthru
        _
    $region6: #{tpu_custom_call.1} parent=1 // loop_footer
      %s27 = sadd.s32 1, %s23
    $region7: #{tpu_custom_call.1} parent=1 // loop_footer_branch
      %22 = sbr.rel target = $region3
    $region8: #{tpu_custom_call.1} parent=1 // loop_exit
      _
    %9072 = vsyncpa [#allocation4], 1
    %s9073 = scalar_lea.sflag [#allocation4], 1
    %9074 = vsyncpa %s9073, 1
    %9075 = vsyncpa [#allocation7], 1
    %s9076 = scalar_lea.sflag [#allocation7], 1
    %9077 = vsyncpa %s9076, 1
    %9078 = vsyncpa [#allocation5], 1
    %s9079 = scalar_lea.sflag [#allocation5], 1
    %9080 = vsyncpa %s9079, 1

</llo_original>
